<compile_context>
chip_gen: v5e
topology: v5e:2x2
jax: 0.10.0
libtpu: 0.0.40
codegen_flags: <defaults>
</compile_context>

<pallas_src>
import math

import numpy as np
import jax
import jax.numpy as jnp
from jax import lax
from jax.experimental import pallas as pl
from jax.experimental.pallas import tpu as pltpu

BN_EPS = 1e-5
HI = jax.lax.Precision.HIGHEST
_PAD = 8          # aligned halo margin inside the depthwise-conv VMEM scratch


# ------------------------------ fused kernel -------------------------------

def _make_fused_kernel(cfg):
    """Fused GhostBottleneck kernel; one batch sample per grid step."""
    H, W = cfg['H'], cfg['W']
    Ho, Wo = cfg['Ho'], cfg['Wo']
    stride = cfg['stride']
    use_se = cfg['use_se']
    identity = cfg['identity']
    inp = cfg['inp']
    init1, c1b = cfg['init1'], cfg['c1b']
    init2, c2b = cfg['init2'], cfg['c2b']
    M, Mo = H * W, Ho * Wo

    def dw_conv(pad_ref, xflat, Hh, Ww, w_ref, s_ref, b_ref, relu):
        # Depthwise KxK, stride 1, "same" padding, from an aligned zero halo in
        # a VMEM scratch.  Returns flat (Hh*Ww, C) with folded-BN affine applied.
        C = xflat.shape[-1]
        Kk = w_ref.shape[0]
        p = Kk // 2
        pad_ref[...] = jnp.zeros_like(pad_ref)
        pad_ref[_PAD:_PAD + Hh, _PAD:_PAD + Ww, :] = xflat.reshape(Hh, Ww, C)
        xp = pad_ref[...]                               # (Hh+16, Ww+16, C)
        w = w_ref[...]                                  # (K, K, C)
        acc = None
        for i in range(Kk):
            for j in range(Kk):
                a0 = _PAD - p + i
                b0 = _PAD - p + j
                tap = xp[a0:a0 + Hh, b0:b0 + Ww, :]
                term = tap * w[i, j, :].reshape(1, 1, C)
                acc = term if acc is None else acc + term
        y = acc.reshape(Hh * Ww, C) * s_ref[...] + b_ref[...]
        return jnp.maximum(y, 0.0) if relu else y

    def pw(xflat, w_ref, s_ref, b_ref, relu):
        y = jnp.dot(xflat, w_ref[...], preferred_element_type=jnp.float32)
        y = y * s_ref[...] + b_ref[...]
        return jnp.maximum(y, 0.0) if relu else y

    def kernel(*refs):
        it = iter(refs)
        x_ref = next(it)
        sel_ref = next(it) if stride == 2 else None
        # ghost module 1
        wp1, sp1, bp1 = next(it), next(it), next(it)
        wc1, sc1, bc1 = next(it), next(it), next(it)
        if stride == 2:
            wdw_a, sdw_a, bdw_a = next(it), next(it), next(it)
            wdw_b, sdw_b, bdw_b = next(it), next(it), next(it)
        if use_se:
            w1a, w1b, b1 = next(it), next(it), next(it)
            w2a, b2a = next(it), next(it)
            w2b, b2b = next(it), next(it)
        # ghost module 2
        wp2a, wp2b, sp2, bp2 = next(it), next(it), next(it), next(it)
        wc2, sc2, bc2 = next(it), next(it), next(it)
        # shortcut
        if identity:
            xres_a, xres_b = next(it), next(it)
        else:
            wsdw, ssdw, bsdw = next(it), next(it), next(it)
            wspw_a, sspw_a, bspw_a = next(it), next(it), next(it)
            wspw_b, sspw_b, bspw_b = next(it), next(it), next(it)
        # outputs
        oa_ref = next(it)
        ob_ref = next(it)
        # scratch
        pad_c1 = next(it)
        if stride == 2:
            pad_ma, pad_mb = next(it), next(it)
        if not identity:
            pad_s = next(it)
        pad_c2 = next(it)

        xflat = x_ref[0].reshape(M, inp)                       # (M, Cin)
        sel = sel_ref[...] if stride == 2 else None            # (Mo, M)

        # ---- GhostModule 1: primary 1x1 + cheap 3x3 dw (channel-split) -----
        h_a = pw(xflat, wp1, sp1, bp1, relu=True)              # (M, init1)
        h_b = dw_conv(pad_c1, h_a[:, :c1b], H, W,
                      wc1, sc1, bc1, relu=True)                # (M, c1b)

        # ---- optional stride-2 depthwise (stride-1 taps, then an MXU
        #      selection matmul performs the spatial subsample) --------------
        if stride == 2:
            h_a = jnp.dot(sel,
                          dw_conv(pad_ma, h_a, H, W, wdw_a, sdw_a, bdw_a, False),
                          preferred_element_type=jnp.float32)  # (Mo, init1)
            h_b = jnp.dot(sel,
                          dw_conv(pad_mb, h_b, H, W, wdw_b, sdw_b, bdw_b, False),
                          preferred_element_type=jnp.float32)  # (Mo, c1b)

        # ---- optional SE gate (fully in VMEM) -------------------------------
        if use_se:
            ones_mean = jnp.full((1, Mo), 1.0 / float(Mo), dtype=jnp.float32)
            mean_a = jnp.dot(ones_mean, h_a, preferred_element_type=jnp.float32)
            mean_b = jnp.dot(ones_mean, h_b, preferred_element_type=jnp.float32)
            z = (jnp.dot(mean_a, w1a[...], preferred_element_type=jnp.float32) +
                 jnp.dot(mean_b, w1b[...], preferred_element_type=jnp.float32) +
                 b1[...])
            z = jnp.maximum(z, 0.0)                            # (1, cr)
            g_a = jnp.clip(jnp.dot(z, w2a[...],
                                   preferred_element_type=jnp.float32) + b2a[...],
                           0.0, 1.0)                           # (1, init1)
            g_b = jnp.clip(jnp.dot(z, w2b[...],
                                   preferred_element_type=jnp.float32) + b2b[...],
                           0.0, 1.0)                           # (1, c1b)
            h_a = h_a * g_a
            h_b = h_b * g_b

        # ---- GhostModule 2 ---------------------------------------------------
        y1 = (jnp.dot(h_a, wp2a[...], preferred_element_type=jnp.float32) +
              jnp.dot(h_b, wp2b[...], preferred_element_type=jnp.float32))
        y1 = y1 * sp2[...] + bp2[...]                          # (Mo, init2)
        y2 = dw_conv(pad_c2, y1[:, :c2b], Ho, Wo,
                     wc2, sc2, bc2, relu=False)                # (Mo, c2b)

        # ---- shortcut + fused residual add -----------------------------------
        if identity:
            s1 = xres_a[0]                                     # (Mo, init2)
            s2 = xres_b[0]                                     # (Mo, c2b)
        else:
            sdw = dw_conv(pad_s, xflat, H, W, wsdw, ssdw, bsdw, relu=False)
            if stride == 2:
                sdw = jnp.dot(sel, sdw, preferred_element_type=jnp.float32)
            s1 = pw(sdw, wspw_a, sspw_a, bspw_a, relu=False)   # (Mo, init2)
            s2 = pw(sdw, wspw_b, sspw_b, bspw_b, relu=False)   # (Mo, c2b)

        oa_ref[0] = (y1 + s1).astype(oa_ref.dtype)
        ob_ref[0] = (y2 + s2).astype(ob_ref.dtype)

    return kernel


# ------------------------------- public wrapper -----------------------------

def ghost_bottleneck_forward(x_nchw, params, *, stride, use_se, inp, oup):
    x = jnp.transpose(x_nchw, (0, 2, 3, 1)).astype(jnp.float32)   # NCHW -> NHWC
    N, H, W, _ = x.shape
    assert H % stride == 0 and W % stride == 0

    g1, g2 = params['ghost1'], params['ghost2']
    hidden = g1['oup']
    init1 = g1['w_primary'].shape[1]
    c1b = hidden - init1
    init2 = g2['w_primary'].shape[1]
    c2b = oup - init2
    assert 0 < c1b <= init1 and 0 < c2b <= init2
    identity = (stride == 1 and inp == oup)
    Ho, Wo = H // stride, W // stride
    M, Mo = H * W, Ho * Wo

    row = lambda v: jnp.asarray(v, jnp.float32).reshape(1, -1)

    inputs, in_specs = [], []

    def add(arr):
        arr = jnp.asarray(arr, jnp.float32)
        idx = {2: (lambda n: (0, 0)), 3: (lambda n: (0, 0, 0))}[arr.ndim]
        inputs.append(arr)
        in_specs.append(pl.BlockSpec(arr.shape, idx))

    # block input (per-sample tile)
    inputs.append(x)
    in_specs.append(pl.BlockSpec((1, H, W, inp), lambda n: (n, 0, 0, 0)))

    if stride == 2:
        sel = np.zeros((Mo, M), np.float32)
        for ho in range(Ho):
            for wo in range(Wo):
                sel[ho * Wo + wo, (ho * stride) * W + wo * stride] = 1.0
        add(sel)

    # ghost module 1 (cheap-dw params pre-trimmed to the kept channels)
    add(g1['w_primary']); add(row(g1['s_primary'])); add(row(g1['b_primary']))
    add(g1['w_cheap'][:, :, :c1b]); add(row(g1['s_cheap'][:c1b])); add(row(g1['b_cheap'][:c1b]))

    if stride == 2:
        wdw, sdw, bdw = params['w_dw'], params['s_dw'], params['b_dw']
        add(wdw[:, :, :init1]); add(row(sdw[:init1])); add(row(bdw[:init1]))
        add(wdw[:, :, init1:hidden]); add(row(sdw[init1:hidden])); add(row(bdw[init1:hidden]))

    if use_se:
        w1, b1 = params['se_w1'], params['se_b1']
        w2, b2 = params['se_w2'], params['se_b2']
        add(w1[:init1]); add(w1[init1:hidden]); add(row(b1))
        add(w2[:, :init1]); add(row(b2[:init1]))
        add(w2[:, init1:hidden]); add(row(b2[init1:hidden]))

    # ghost module 2
    wp2 = g2['w_primary']
    add(wp2[:init1]); add(wp2[init1:hidden])
    add(row(g2['s_primary'])); add(row(g2['b_primary']))
    add(g2['w_cheap'][:, :, :c2b]); add(row(g2['s_cheap'][:c2b])); add(row(g2['b_cheap'][:c2b]))

    # shortcut
    if identity:
        xr = x.reshape(N, M, inp)
        inputs.append(xr[:, :, :init2])
        in_specs.append(pl.BlockSpec((1, M, init2), lambda n: (n, 0, 0)))
        inputs.append(xr[:, :, init2:oup])
        in_specs.append(pl.BlockSpec((1, M, c2b), lambda n: (n, 0, 0)))
    else:
        add(params['w_sdw']); add(row(params['s_sdw'])); add(row(params['b_sdw']))
        wspw, sspw, bspw = params['w_spw'], params['s_spw'], params['b_spw']
        add(wspw[:, :init2]); add(row(sspw[:init2])); add(row(bspw[:init2]))
        add(wspw[:, init2:oup]); add(row(sspw[init2:oup])); add(row(bspw[init2:oup]))

    # VMEM halo scratch buffers for the depthwise convs.
    def halo(hh, ww, c):
        return pltpu.VMEM((hh + 2 * _PAD, ww + 2 * _PAD, c), jnp.float32)

    scratch = [halo(H, W, c1b)]
    if stride == 2:
        scratch += [halo(H, W, init1), halo(H, W, c1b)]
    if not identity:
        scratch += [halo(H, W, inp)]
    scratch += [halo(Ho, Wo, c2b)]

    cfg = dict(H=H, W=W, Ho=Ho, Wo=Wo, stride=stride, use_se=use_se,
               identity=identity, inp=inp, init1=init1, c1b=c1b,
               init2=init2, c2b=c2b)
    kernel = _make_fused_kernel(cfg)

    out_a, out_b = pl.pallas_call(
        kernel,
        out_shape=(jax.ShapeDtypeStruct((N, Mo, init2), jnp.float32),
                   jax.ShapeDtypeStruct((N, Mo, c2b), jnp.float32)),
        grid=(N,),
        in_specs=in_specs,
        out_specs=(pl.BlockSpec((1, Mo, init2), lambda n: (n, 0, 0)),
                   pl.BlockSpec((1, Mo, c2b), lambda n: (n, 0, 0))),
        scratch_shapes=scratch,
        compiler_params=pltpu.CompilerParams(dimension_semantics=("parallel",)),
    )(*inputs)

    out = jnp.concatenate([out_a, out_b], axis=-1).reshape(N, Ho, Wo, oup)
    return jnp.transpose(out, (0, 3, 1, 2))                       # NHWC -> NCHW


# ----------------------------- parameter setup ------------------------------

def _fold_bn(gamma, beta, mean, var, eps=BN_EPS):
    scale = gamma / jnp.sqrt(var + eps)
    bias = beta - mean * scale
    return scale, bias


def _make_bn(key, c):
    k1, k2, k3, k4 = jax.random.split(key, 4)
    gamma = 1.0 + 0.1 * jax.random.normal(k1, (c,), jnp.float32)
    beta = 0.1 * jax.random.normal(k2, (c,), jnp.float32)
    mean = 0.1 * jax.random.normal(k3, (c,), jnp.float32)
    var = 0.5 + jax.random.uniform(k4, (c,), jnp.float32)
    return _fold_bn(gamma, beta, mean, var)


def make_params(key, inp, hidden, oup, k, use_se, stride):
    ks = jax.random.split(key, 20)
    init1 = math.ceil(hidden / 2)   # GhostModule ratio=2
    init2 = math.ceil(oup / 2)
    p = {}

    s, b = _make_bn(ks[1], init1)
    p['ghost1'] = {'oup': hidden,
                   'w_primary': 0.2 * jax.random.normal(ks[0], (inp, init1), jnp.float32),
                   's_primary': s, 'b_primary': b}
    s, b = _make_bn(ks[3], init1)
    p['ghost1'].update({'w_cheap': 0.2 * jax.random.normal(ks[2], (3, 3, init1), jnp.float32),
                        's_cheap': s, 'b_cheap': b})

    if stride == 2:
        s, b = _make_bn(ks[5], hidden)
        p['w_dw'] = 0.2 * jax.random.normal(ks[4], (k, k, hidden), jnp.float32)
        p['s_dw'], p['b_dw'] = s, b

    if use_se:
        cr = hidden // 4
        p['se_w1'] = 0.2 * jax.random.normal(ks[6], (hidden, cr), jnp.float32)
        p['se_b1'] = 0.1 * jax.random.normal(ks[7], (cr,), jnp.float32)
        p['se_w2'] = 0.2 * jax.random.normal(ks[8], (cr, hidden), jnp.float32)
        p['se_b2'] = 0.1 * jax.random.normal(ks[9], (hidden,), jnp.float32)

    s, b = _make_bn(ks[11], init2)
    p['ghost2'] = {'oup': oup,
                   'w_primary': 0.2 * jax.random.normal(ks[10], (hidden, init2), jnp.float32),
                   's_primary': s, 'b_primary': b}
    s, b = _make_bn(ks[13], init2)
    p['ghost2'].update({'w_cheap': 0.2 * jax.random.normal(ks[12], (3, 3, init2), jnp.float32),
                        's_cheap': s, 'b_cheap': b})

    if not (stride == 1 and inp == oup):
        s, b = _make_bn(ks[15], inp)
        p['w_sdw'] = 0.2 * jax.random.normal(ks[14], (k, k, inp), jnp.float32)
        p['s_sdw'], p['b_sdw'] = s, b
        p['w_spw'] = 0.2 * jax.random.normal(ks[16], (inp, oup), jnp.float32)
        s, b = _make_bn(ks[17], oup)
        p['s_spw'], p['b_spw'] = s, b
    return p


# ----------------------- pure-JAX reference (check) --------------------------

def _ref_pointwise(x, w, s, b, relu):
    y = jnp.einsum('nhwc,cd->nhwd', x, w, precision=HI) * s + b
    return jnp.maximum(y, 0.0) if relu else y


def _ref_depthwise(x, w, s, b, stride, relu):
    C, K = x.shape[-1], w.shape[0]
    wf = w.reshape(K, K, 1, C)
    y = lax.conv_general_dilated(
        x, wf, window_strides=(stride, stride),
        padding=[(K // 2, K // 2)] * 2,
        dimension_numbers=('NHWC', 'HWIO', 'NHWC'),
        feature_group_count=C, precision=HI)
    y = y * s + b
    return jnp.maximum(y, 0.0) if relu else y


def _ref_se(x, w1, b1, w2, b2):
    m = jnp.mean(x, axis=(1, 2))
    y = jnp.maximum(jnp.dot(m, w1, precision=HI) + b1, 0.0)
    y = jnp.clip(jnp.dot(y, w2, precision=HI) + b2, 0.0, 1.0)
    return x * y[:, None, None, :]


def _ref_ghost(x, gp, relu):
    x1 = _ref_pointwise(x, gp['w_primary'], gp['s_primary'], gp['b_primary'], relu)
    x2 = _ref_depthwise(x1, gp['w_cheap'], gp['s_cheap'], gp['b_cheap'], 1, relu)
    return jnp.concatenate([x1, x2], axis=-1)[..., :gp['oup']]


def ghost_bottleneck_reference(x_nchw, params, *, stride, use_se, inp, oup):
    x = jnp.transpose(x_nchw, (0, 2, 3, 1)).astype(jnp.float32)
    h = _ref_ghost(x, params['ghost1'], True)
    if stride == 2:
        h = _ref_depthwise(h, params['w_dw'], params['s_dw'], params['b_dw'], stride, False)
    if use_se:
        h = _ref_se(h, params['se_w1'], params['se_b1'], params['se_w2'], params['se_b2'])
    h = _ref_ghost(h, params['ghost2'], False)
    if stride == 1 and inp == oup:
        s = x
    else:
        s = _ref_depthwise(x, params['w_sdw'], params['s_sdw'], params['b_sdw'], stride, False)
        s = _ref_pointwise(s, params['w_spw'], params['s_spw'], params['b_spw'], False)
    return jnp.transpose(h + s, (0, 3, 1, 2))


# ---------------------------------- main -------------------------------------

if __name__ == "__main__":
    key = jax.random.PRNGKey(0)

    def run_case(case_key, *, N, H, W, inp, hidden, oup, k, stride, use_se):
        kx, kp = jax.random.split(case_key)
        x = jax.random.normal(kx, (N, inp, H, W), jnp.float32)   # NCHW like PyTorch
        params = make_params(kp, inp, hidden, oup, k, use_se, stride)

        out = jax.block_until_ready(
            ghost_bottleneck_forward(x, params, stride=stride, use_se=use_se,
                                     inp=inp, oup=oup))
        assert out.shape == (N, oup, H // stride, W // stride), out.shape

        ref = jax.block_until_ready(
            ghost_bottleneck_reference(x, params, stride=stride, use_se=use_se,
                                       inp=inp, oup=oup))
        max_err = float(jnp.max(jnp.abs(out - ref)))
        assert max_err < 5e-2, f"mismatch vs reference: max abs err = {max_err}"

    k1, k2 = jax.random.split(key)
    # GhostBottleneck(inp=8, hidden=16, oup=12, k=3, stride=2, use_se=True)
    run_case(k1, N=2, H=16, W=16, inp=8, hidden=16, oup=12, k=3, stride=2, use_se=True)
    # GhostBottleneck(inp=16, hidden=24, oup=16, k=3, stride=1, use_se=False)  (identity shortcut)
    run_case(k2, N=2, H=16, W=16, inp=16, hidden=24, oup=16, k=3, stride=1, use_se=False)

    print("KERNEL_OK")
</pallas_src>

<mosaic_0001>
module attributes {stable_mosaic.version = 11 : i64} {
  func.func @kernel(%arg0: i32, %arg1: memref<1x16x16x8xf32, #tpu.memory_space<vmem>>, %arg2: memref<64x256xf32, #tpu.memory_space<vmem>>, %arg3: memref<8x8xf32, #tpu.memory_space<vmem>>, %arg4: memref<1x8xf32, #tpu.memory_space<vmem>>, %arg5: memref<1x8xf32, #tpu.memory_space<vmem>>, %arg6: memref<3x3x8xf32, #tpu.memory_space<vmem>>, %arg7: memref<1x8xf32, #tpu.memory_space<vmem>>, %arg8: memref<1x8xf32, #tpu.memory_space<vmem>>, %arg9: memref<3x3x8xf32, #tpu.memory_space<vmem>>, %arg10: memref<1x8xf32, #tpu.memory_space<vmem>>, %arg11: memref<1x8xf32, #tpu.memory_space<vmem>>, %arg12: memref<3x3x8xf32, #tpu.memory_space<vmem>>, %arg13: memref<1x8xf32, #tpu.memory_space<vmem>>, %arg14: memref<1x8xf32, #tpu.memory_space<vmem>>, %arg15: memref<8x4xf32, #tpu.memory_space<vmem>>, %arg16: memref<8x4xf32, #tpu.memory_space<vmem>>, %arg17: memref<1x4xf32, #tpu.memory_space<vmem>>, %arg18: memref<4x8xf32, #tpu.memory_space<vmem>>, %arg19: memref<1x8xf32, #tpu.memory_space<vmem>>, %arg20: memref<4x8xf32, #tpu.memory_space<vmem>>, %arg21: memref<1x8xf32, #tpu.memory_space<vmem>>, %arg22: memref<8x6xf32, #tpu.memory_space<vmem>>, %arg23: memref<8x6xf32, #tpu.memory_space<vmem>>, %arg24: memref<1x6xf32, #tpu.memory_space<vmem>>, %arg25: memref<1x6xf32, #tpu.memory_space<vmem>>, %arg26: memref<3x3x6xf32, #tpu.memory_space<vmem>>, %arg27: memref<1x6xf32, #tpu.memory_space<vmem>>, %arg28: memref<1x6xf32, #tpu.memory_space<vmem>>, %arg29: memref<3x3x8xf32, #tpu.memory_space<vmem>>, %arg30: memref<1x8xf32, #tpu.memory_space<vmem>>, %arg31: memref<1x8xf32, #tpu.memory_space<vmem>>, %arg32: memref<8x6xf32, #tpu.memory_space<vmem>>, %arg33: memref<1x6xf32, #tpu.memory_space<vmem>>, %arg34: memref<1x6xf32, #tpu.memory_space<vmem>>, %arg35: memref<8x6xf32, #tpu.memory_space<vmem>>, %arg36: memref<1x6xf32, #tpu.memory_space<vmem>>, %arg37: memref<1x6xf32, #tpu.memory_space<vmem>>, %arg38: memref<1x64x6xf32, #tpu.memory_space<vmem>>, %arg39: memref<1x64x6xf32, #tpu.memory_space<vmem>>, %arg40: memref<32x32x8xf32, #tpu.memory_space<vmem>>, %arg41: memref<32x32x8xf32, #tpu.memory_space<vmem>>, %arg42: memref<32x32x8xf32, #tpu.memory_space<vmem>>, %arg43: memref<32x32x8xf32, #tpu.memory_space<vmem>>, %arg44: memref<24x24x6xf32, #tpu.memory_space<vmem>>) attributes {dimension_semantics = [#tpu.dimension_semantics<parallel>], iteration_bounds = array<i64: 2>, scalar_prefetch = 0 : i64, scratch_operands = 5 : i64, tpu.core_type = #tpu.core_type<tc>, window_params = [{transform_indices = @transform_0, window_bounds = array<i64: 1, 16, 16, 8>}, {pipeline_mode = #tpu.pipeline_mode<synchronous>, transform_indices = @transform_1, window_bounds = array<i64: 64, 256>}, {pipeline_mode = #tpu.pipeline_mode<synchronous>, transform_indices = @transform_2, window_bounds = array<i64: 8, 8>}, {pipeline_mode = #tpu.pipeline_mode<synchronous>, transform_indices = @transform_3, window_bounds = array<i64: 1, 8>}, {pipeline_mode = #tpu.pipeline_mode<synchronous>, transform_indices = @transform_4, window_bounds = array<i64: 1, 8>}, {pipeline_mode = #tpu.pipeline_mode<synchronous>, transform_indices = @transform_5, window_bounds = array<i64: 3, 3, 8>}, {pipeline_mode = #tpu.pipeline_mode<synchronous>, transform_indices = @transform_6, window_bounds = array<i64: 1, 8>}, {pipeline_mode = #tpu.pipeline_mode<synchronous>, transform_indices = @transform_7, window_bounds = array<i64: 1, 8>}, {pipeline_mode = #tpu.pipeline_mode<synchronous>, transform_indices = @transform_8, window_bounds = array<i64: 3, 3, 8>}, {pipeline_mode = #tpu.pipeline_mode<synchronous>, transform_indices = @transform_9, window_bounds = array<i64: 1, 8>}, {pipeline_mode = #tpu.pipeline_mode<synchronous>, transform_indices = @transform_10, window_bounds = array<i64: 1, 8>}, {pipeline_mode = #tpu.pipeline_mode<synchronous>, transform_indices = @transform_11, window_bounds = array<i64: 3, 3, 8>}, {pipeline_mode = #tpu.pipeline_mode<synchronous>, transform_indices = @transform_12, window_bounds = array<i64: 1, 8>}, {pipeline_mode = #tpu.pipeline_mode<synchronous>, transform_indices = @transform_13, window_bounds = array<i64: 1, 8>}, {pipeline_mode = #tpu.pipeline_mode<synchronous>, transform_indices = @transform_14, window_bounds = array<i64: 8, 4>}, {pipeline_mode = #tpu.pipeline_mode<synchronous>, transform_indices = @transform_15, window_bounds = array<i64: 8, 4>}, {pipeline_mode = #tpu.pipeline_mode<synchronous>, transform_indices = @transform_16, window_bounds = array<i64: 1, 4>}, {pipeline_mode = #tpu.pipeline_mode<synchronous>, transform_indices = @transform_17, window_bounds = array<i64: 4, 8>}, {pipeline_mode = #tpu.pipeline_mode<synchronous>, transform_indices = @transform_18, window_bounds = array<i64: 1, 8>}, {pipeline_mode = #tpu.pipeline_mode<synchronous>, transform_indices = @transform_19, window_bounds = array<i64: 4, 8>}, {pipeline_mode = #tpu.pipeline_mode<synchronous>, transform_indices = @transform_20, window_bounds = array<i64: 1, 8>}, {pipeline_mode = #tpu.pipeline_mode<synchronous>, transform_indices = @transform_21, window_bounds = array<i64: 8, 6>}, {pipeline_mode = #tpu.pipeline_mode<synchronous>, transform_indices = @transform_22, window_bounds = array<i64: 8, 6>}, {pipeline_mode = #tpu.pipeline_mode<synchronous>, transform_indices = @transform_23, window_bounds = array<i64: 1, 6>}, {pipeline_mode = #tpu.pipeline_mode<synchronous>, transform_indices = @transform_24, window_bounds = array<i64: 1, 6>}, {pipeline_mode = #tpu.pipeline_mode<synchronous>, transform_indices = @transform_25, window_bounds = array<i64: 3, 3, 6>}, {pipeline_mode = #tpu.pipeline_mode<synchronous>, transform_indices = @transform_26, window_bounds = array<i64: 1, 6>}, {pipeline_mode = #tpu.pipeline_mode<synchronous>, transform_indices = @transform_27, window_bounds = array<i64: 1, 6>}, {pipeline_mode = #tpu.pipeline_mode<synchronous>, transform_indices = @transform_28, window_bounds = array<i64: 3, 3, 8>}, {pipeline_mode = #tpu.pipeline_mode<synchronous>, transform_indices = @transform_29, window_bounds = array<i64: 1, 8>}, {pipeline_mode = #tpu.pipeline_mode<synchronous>, transform_indices = @transform_30, window_bounds = array<i64: 1, 8>}, {pipeline_mode = #tpu.pipeline_mode<synchronous>, transform_indices = @transform_31, window_bounds = array<i64: 8, 6>}, {pipeline_mode = #tpu.pipeline_mode<synchronous>, transform_indices = @transform_32, window_bounds = array<i64: 1, 6>}, {pipeline_mode = #tpu.pipeline_mode<synchronous>, transform_indices = @transform_33, window_bounds = array<i64: 1, 6>}, {pipeline_mode = #tpu.pipeline_mode<synchronous>, transform_indices = @transform_34, window_bounds = array<i64: 8, 6>}, {pipeline_mode = #tpu.pipeline_mode<synchronous>, transform_indices = @transform_35, window_bounds = array<i64: 1, 6>}, {pipeline_mode = #tpu.pipeline_mode<synchronous>, transform_indices = @transform_36, window_bounds = array<i64: 1, 6>}, {transform_indices = @transform_37, window_bounds = array<i64: 1, 64, 6>}, {transform_indices = @transform_38, window_bounds = array<i64: 1, 64, 6>}]} {
    %c0 = arith.constant 0 : index
    %c0_0 = arith.constant 0 : index
    %c0_1 = arith.constant 0 : index
    %c0_2 = arith.constant 0 : index
    %0 = vector.load %arg1[%c0, %c0_0, %c0_1, %c0_2] : memref<1x16x16x8xf32, #tpu.memory_space<vmem>>, vector<1x16x16x8xf32>
    %1 = vector.shape_cast %0 : vector<1x16x16x8xf32> to vector<16x16x8xf32>
    %2 = vector.shape_cast %1 : vector<16x16x8xf32> to vector<256x8xf32>
    %c0_3 = arith.constant 0 : index
    %c0_4 = arith.constant 0 : index
    %3 = vector.load %arg2[%c0_3, %c0_4] : memref<64x256xf32, #tpu.memory_space<vmem>>, vector<64x256xf32>
    %c0_5 = arith.constant 0 : index
    %c0_6 = arith.constant 0 : index
    %4 = vector.load %arg3[%c0_5, %c0_6] : memref<8x8xf32, #tpu.memory_space<vmem>>, vector<8x8xf32>
    %cst = arith.constant dense<0.000000e+00> : vector<256x8xf32>
    %5 = tpu.matmul %2, %4, %cst {dimension_numbers = #tpu.dot_dimension_numbers<[1], [0], [0], [1], [0, 0, 1, 1], [], []>} : vector<256x8xf32>, vector<8x8xf32>, vector<256x8xf32> -> vector<256x8xf32>
    %c0_7 = arith.constant 0 : index
    %c0_8 = arith.constant 0 : index
    %6 = vector.load %arg4[%c0_7, %c0_8] : memref<1x8xf32, #tpu.memory_space<vmem>>, vector<1x8xf32>
    %7 = vector.broadcast %6 : vector<1x8xf32> to vector<256x8xf32>
    %8 = arith.mulf %5, %7 : vector<256x8xf32>
    %c0_9 = arith.constant 0 : index
    %c0_10 = arith.constant 0 : index
    %9 = vector.load %arg5[%c0_9, %c0_10] : memref<1x8xf32, #tpu.memory_space<vmem>>, vector<1x8xf32>
    %10 = vector.broadcast %9 : vector<1x8xf32> to vector<256x8xf32>
    %11 = arith.addf %8, %10 : vector<256x8xf32>
    %cst_11 = arith.constant 0.000000e+00 : f32
    %12 = vector.broadcast %cst_11 : f32 to vector<256x8xf32>
    %13 = arith.maximumf %11, %12 : vector<256x8xf32>
    %cst_12 = arith.constant 0.000000e+00 : f32
    %14 = vector.broadcast %cst_12 : f32 to vector<32x32x8xf32>
    %c0_13 = arith.constant 0 : index
    %c0_14 = arith.constant 0 : index
    %c0_15 = arith.constant 0 : index
    %15 = vector.load %arg40[%c0_13, %c0_14, %c0_15] : memref<32x32x8xf32, #tpu.memory_space<vmem>>, vector<32x32x8xf32>
    tpu.vector_store %arg40[%c0_13, %c0_14, %c0_15], %14 {strides = array<i32>} : memref<32x32x8xf32, #tpu.memory_space<vmem>>, vector<32x32x8xf32>,
    %16 = vector.shape_cast %13 : vector<256x8xf32> to vector<16x16x8xf32>
    %c8 = arith.constant 8 : index
    %c8_16 = arith.constant 8 : index
    %c0_17 = arith.constant 0 : index
    %17 = vector.load %arg40[%c8, %c8_16, %c0_17] : memref<32x32x8xf32, #tpu.memory_space<vmem>>, vector<16x16x8xf32>
    tpu.vector_store %arg40[%c8, %c8_16, %c0_17], %16 {strides = array<i32>} : memref<32x32x8xf32, #tpu.memory_space<vmem>>, vector<16x16x8xf32>,
    %c0_18 = arith.constant 0 : index
    %c0_19 = arith.constant 0 : index
    %c0_20 = arith.constant 0 : index
    %18 = vector.load %arg40[%c0_18, %c0_19, %c0_20] : memref<32x32x8xf32, #tpu.memory_space<vmem>>, vector<32x32x8xf32>
    %c0_21 = arith.constant 0 : index
    %c0_22 = arith.constant 0 : index
    %c0_23 = arith.constant 0 : index
    %19 = vector.load %arg6[%c0_21, %c0_22, %c0_23] : memref<3x3x8xf32, #tpu.memory_space<vmem>>, vector<3x3x8xf32>
    %20 = vector.extract_strided_slice %18 {offsets = [7, 7, 0], sizes = [16, 16, 8], strides = [1, 1, 1]} : vector<32x32x8xf32> to vector<16x16x8xf32>
    %21 = vector.extract_strided_slice %19 {offsets = [0, 0, 0], sizes = [1, 1, 8], strides = [1, 1, 1]} : vector<3x3x8xf32> to vector<1x1x8xf32>
    %22 = vector.shape_cast %21 : vector<1x1x8xf32> to vector<8xf32>
    %23 = vector.shape_cast %22 : vector<8xf32> to vector<1x1x8xf32>
    %24 = vector.broadcast %23 : vector<1x1x8xf32> to vector<16x16x8xf32>
    %25 = arith.mulf %20, %24 : vector<16x16x8xf32>
    %26 = vector.extract_strided_slice %18 {offsets = [7, 8, 0], sizes = [16, 16, 8], strides = [1, 1, 1]} : vector<32x32x8xf32> to vector<16x16x8xf32>
    %27 = vector.extract_strided_slice %19 {offsets = [0, 1, 0], sizes = [1, 1, 8], strides = [1, 1, 1]} : vector<3x3x8xf32> to vector<1x1x8xf32>
    %28 = vector.shape_cast %27 : vector<1x1x8xf32> to vector<8xf32>
    %29 = vector.shape_cast %28 : vector<8xf32> to vector<1x1x8xf32>
    %30 = vector.broadcast %29 : vector<1x1x8xf32> to vector<16x16x8xf32>
    %31 = arith.mulf %26, %30 : vector<16x16x8xf32>
    %32 = arith.addf %25, %31 : vector<16x16x8xf32>
    %33 = vector.extract_strided_slice %18 {offsets = [7, 9, 0], sizes = [16, 16, 8], strides = [1, 1, 1]} : vector<32x32x8xf32> to vector<16x16x8xf32>
    %34 = vector.extract_strided_slice %19 {offsets = [0, 2, 0], sizes = [1, 1, 8], strides = [1, 1, 1]} : vector<3x3x8xf32> to vector<1x1x8xf32>
    %35 = vector.shape_cast %34 : vector<1x1x8xf32> to vector<8xf32>
    %36 = vector.shape_cast %35 : vector<8xf32> to vector<1x1x8xf32>
    %37 = vector.broadcast %36 : vector<1x1x8xf32> to vector<16x16x8xf32>
    %38 = arith.mulf %33, %37 : vector<16x16x8xf32>
    %39 = arith.addf %32, %38 : vector<16x16x8xf32>
    %40 = vector.extract_strided_slice %18 {offsets = [8, 7, 0], sizes = [16, 16, 8], strides = [1, 1, 1]} : vector<32x32x8xf32> to vector<16x16x8xf32>
    %41 = vector.extract_strided_slice %19 {offsets = [1, 0, 0], sizes = [1, 1, 8], strides = [1, 1, 1]} : vector<3x3x8xf32> to vector<1x1x8xf32>
    %42 = vector.shape_cast %41 : vector<1x1x8xf32> to vector<8xf32>
    %43 = vector.shape_cast %42 : vector<8xf32> to vector<1x1x8xf32>
    %44 = vector.broadcast %43 : vector<1x1x8xf32> to vector<16x16x8xf32>
    %45 = arith.mulf %40, %44 : vector<16x16x8xf32>
    %46 = arith.addf %39, %45 : vector<16x16x8xf32>
    %47 = vector.extract_strided_slice %18 {offsets = [8, 8, 0], sizes = [16, 16, 8], strides = [1, 1, 1]} : vector<32x32x8xf32> to vector<16x16x8xf32>
    %48 = vector.extract_strided_slice %19 {offsets = [1, 1, 0], sizes = [1, 1, 8], strides = [1, 1, 1]} : vector<3x3x8xf32> to vector<1x1x8xf32>
    %49 = vector.shape_cast %48 : vector<1x1x8xf32> to vector<8xf32>
    %50 = vector.shape_cast %49 : vector<8xf32> to vector<1x1x8xf32>
    %51 = vector.broadcast %50 : vector<1x1x8xf32> to vector<16x16x8xf32>
    %52 = arith.mulf %47, %51 : vector<16x16x8xf32>
    %53 = arith.addf %46, %52 : vector<16x16x8xf32>
    %54 = vector.extract_strided_slice %18 {offsets = [8, 9, 0], sizes = [16, 16, 8], strides = [1, 1, 1]} : vector<32x32x8xf32> to vector<16x16x8xf32>
    %55 = vector.extract_strided_slice %19 {offsets = [1, 2, 0], sizes = [1, 1, 8], strides = [1, 1, 1]} : vector<3x3x8xf32> to vector<1x1x8xf32>
    %56 = vector.shape_cast %55 : vector<1x1x8xf32> to vector<8xf32>
    %57 = vector.shape_cast %56 : vector<8xf32> to vector<1x1x8xf32>
    %58 = vector.broadcast %57 : vector<1x1x8xf32> to vector<16x16x8xf32>
    %59 = arith.mulf %54, %58 : vector<16x16x8xf32>
    %60 = arith.addf %53, %59 : vector<16x16x8xf32>
    %61 = vector.extract_strided_slice %18 {offsets = [9, 7, 0], sizes = [16, 16, 8], strides = [1, 1, 1]} : vector<32x32x8xf32> to vector<16x16x8xf32>
    %62 = vector.extract_strided_slice %19 {offsets = [2, 0, 0], sizes = [1, 1, 8], strides = [1, 1, 1]} : vector<3x3x8xf32> to vector<1x1x8xf32>
    %63 = vector.shape_cast %62 : vector<1x1x8xf32> to vector<8xf32>
    %64 = vector.shape_cast %63 : vector<8xf32> to vector<1x1x8xf32>
    %65 = vector.broadcast %64 : vector<1x1x8xf32> to vector<16x16x8xf32>
    %66 = arith.mulf %61, %65 : vector<16x16x8xf32>
    %67 = arith.addf %60, %66 : vector<16x16x8xf32>
    %68 = vector.extract_strided_slice %18 {offsets = [9, 8, 0], sizes = [16, 16, 8], strides = [1, 1, 1]} : vector<32x32x8xf32> to vector<16x16x8xf32>
    %69 = vector.extract_strided_slice %19 {offsets = [2, 1, 0], sizes = [1, 1, 8], strides = [1, 1, 1]} : vector<3x3x8xf32> to vector<1x1x8xf32>
    %70 = vector.shape_cast %69 : vector<1x1x8xf32> to vector<8xf32>
    %71 = vector.shape_cast %70 : vector<8xf32> to vector<1x1x8xf32>
    %72 = vector.broadcast %71 : vector<1x1x8xf32> to vector<16x16x8xf32>
    %73 = arith.mulf %68, %72 : vector<16x16x8xf32>
    %74 = arith.addf %67, %73 : vector<16x16x8xf32>
    %75 = vector.extract_strided_slice %18 {offsets = [9, 9, 0], sizes = [16, 16, 8], strides = [1, 1, 1]} : vector<32x32x8xf32> to vector<16x16x8xf32>
    %76 = vector.extract_strided_slice %19 {offsets = [2, 2, 0], sizes = [1, 1, 8], strides = [1, 1, 1]} : vector<3x3x8xf32> to vector<1x1x8xf32>
    %77 = vector.shape_cast %76 : vector<1x1x8xf32> to vector<8xf32>
    %78 = vector.shape_cast %77 : vector<8xf32> to vector<1x1x8xf32>
    %79 = vector.broadcast %78 : vector<1x1x8xf32> to vector<16x16x8xf32>
    %80 = arith.mulf %75, %79 : vector<16x16x8xf32>
    %81 = arith.addf %74, %80 : vector<16x16x8xf32>
    %82 = vector.shape_cast %81 : vector<16x16x8xf32> to vector<256x8xf32>
    %c0_24 = arith.constant 0 : index
    %c0_25 = arith.constant 0 : index
    %83 = vector.load %arg7[%c0_24, %c0_25] : memref<1x8xf32, #tpu.memory_space<vmem>>, vector<1x8xf32>
    %84 = vector.broadcast %83 : vector<1x8xf32> to vector<256x8xf32>
    %85 = arith.mulf %82, %84 : vector<256x8xf32>
    %c0_26 = arith.constant 0 : index
    %c0_27 = arith.constant 0 : index
    %86 = vector.load %arg8[%c0_26, %c0_27] : memref<1x8xf32, #tpu.memory_space<vmem>>, vector<1x8xf32>
    %87 = vector.broadcast %86 : vector<1x8xf32> to vector<256x8xf32>
    %88 = arith.addf %85, %87 : vector<256x8xf32>
    %cst_28 = arith.constant 0.000000e+00 : f32
    %89 = vector.broadcast %cst_28 : f32 to vector<256x8xf32>
    %90 = arith.maximumf %88, %89 : vector<256x8xf32>
    %cst_29 = arith.constant 0.000000e+00 : f32
    %91 = vector.broadcast %cst_29 : f32 to vector<32x32x8xf32>
    %c0_30 = arith.constant 0 : index
    %c0_31 = arith.constant 0 : index
    %c0_32 = arith.constant 0 : index
    %92 = vector.load %arg41[%c0_30, %c0_31, %c0_32] : memref<32x32x8xf32, #tpu.memory_space<vmem>>, vector<32x32x8xf32>
    tpu.vector_store %arg41[%c0_30, %c0_31, %c0_32], %91 {strides = array<i32>} : memref<32x32x8xf32, #tpu.memory_space<vmem>>, vector<32x32x8xf32>,
    %93 = vector.shape_cast %13 : vector<256x8xf32> to vector<16x16x8xf32>
    %c8_33 = arith.constant 8 : index
    %c8_34 = arith.constant 8 : index
    %c0_35 = arith.constant 0 : index
    %94 = vector.load %arg41[%c8_33, %c8_34, %c0_35] : memref<32x32x8xf32, #tpu.memory_space<vmem>>, vector<16x16x8xf32>
    tpu.vector_store %arg41[%c8_33, %c8_34, %c0_35], %93 {strides = array<i32>} : memref<32x32x8xf32, #tpu.memory_space<vmem>>, vector<16x16x8xf32>,
    %c0_36 = arith.constant 0 : index
    %c0_37 = arith.constant 0 : index
    %c0_38 = arith.constant 0 : index
    %95 = vector.load %arg41[%c0_36, %c0_37, %c0_38] : memref<32x32x8xf32, #tpu.memory_space<vmem>>, vector<32x32x8xf32>
    %c0_39 = arith.constant 0 : index
    %c0_40 = arith.constant 0 : index
    %c0_41 = arith.constant 0 : index
    %96 = vector.load %arg9[%c0_39, %c0_40, %c0_41] : memref<3x3x8xf32, #tpu.memory_space<vmem>>, vector<3x3x8xf32>
    %97 = vector.extract_strided_slice %95 {offsets = [7, 7, 0], sizes = [16, 16, 8], strides = [1, 1, 1]} : vector<32x32x8xf32> to vector<16x16x8xf32>
    %98 = vector.extract_strided_slice %96 {offsets = [0, 0, 0], sizes = [1, 1, 8], strides = [1, 1, 1]} : vector<3x3x8xf32> to vector<1x1x8xf32>
    %99 = vector.shape_cast %98 : vector<1x1x8xf32> to vector<8xf32>
    %100 = vector.shape_cast %99 : vector<8xf32> to vector<1x1x8xf32>
    %101 = vector.broadcast %100 : vector<1x1x8xf32> to vector<16x16x8xf32>
    %102 = arith.mulf %97, %101 : vector<16x16x8xf32>
    %103 = vector.extract_strided_slice %95 {offsets = [7, 8, 0], sizes = [16, 16, 8], strides = [1, 1, 1]} : vector<32x32x8xf32> to vector<16x16x8xf32>
    %104 = vector.extract_strided_slice %96 {offsets = [0, 1, 0], sizes = [1, 1, 8], strides = [1, 1, 1]} : vector<3x3x8xf32> to vector<1x1x8xf32>
    %105 = vector.shape_cast %104 : vector<1x1x8xf32> to vector<8xf32>
    %106 = vector.shape_cast %105 : vector<8xf32> to vector<1x1x8xf32>
    %107 = vector.broadcast %106 : vector<1x1x8xf32> to vector<16x16x8xf32>
    %108 = arith.mulf %103, %107 : vector<16x16x8xf32>
    %109 = arith.addf %102, %108 : vector<16x16x8xf32>
    %110 = vector.extract_strided_slice %95 {offsets = [7, 9, 0], sizes = [16, 16, 8], strides = [1, 1, 1]} : vector<32x32x8xf32> to vector<16x16x8xf32>
    %111 = vector.extract_strided_slice %96 {offsets = [0, 2, 0], sizes = [1, 1, 8], strides = [1, 1, 1]} : vector<3x3x8xf32> to vector<1x1x8xf32>
    %112 = vector.shape_cast %111 : vector<1x1x8xf32> to vector<8xf32>
    %113 = vector.shape_cast %112 : vector<8xf32> to vector<1x1x8xf32>
    %114 = vector.broadcast %113 : vector<1x1x8xf32> to vector<16x16x8xf32>
    %115 = arith.mulf %110, %114 : vector<16x16x8xf32>
    %116 = arith.addf %109, %115 : vector<16x16x8xf32>
    %117 = vector.extract_strided_slice %95 {offsets = [8, 7, 0], sizes = [16, 16, 8], strides = [1, 1, 1]} : vector<32x32x8xf32> to vector<16x16x8xf32>
    %118 = vector.extract_strided_slice %96 {offsets = [1, 0, 0], sizes = [1, 1, 8], strides = [1, 1, 1]} : vector<3x3x8xf32> to vector<1x1x8xf32>
    %119 = vector.shape_cast %118 : vector<1x1x8xf32> to vector<8xf32>
    %120 = vector.shape_cast %119 : vector<8xf32> to vector<1x1x8xf32>
    %121 = vector.broadcast %120 : vector<1x1x8xf32> to vector<16x16x8xf32>
    %122 = arith.mulf %117, %121 : vector<16x16x8xf32>
    %123 = arith.addf %116, %122 : vector<16x16x8xf32>
    %124 = vector.extract_strided_slice %95 {offsets = [8, 8, 0], sizes = [16, 16, 8], strides = [1, 1, 1]} : vector<32x32x8xf32> to vector<16x16x8xf32>
    %125 = vector.extract_strided_slice %96 {offsets = [1, 1, 0], sizes = [1, 1, 8], strides = [1, 1, 1]} : vector<3x3x8xf32> to vector<1x1x8xf32>
    %126 = vector.shape_cast %125 : vector<1x1x8xf32> to vector<8xf32>
    %127 = vector.shape_cast %126 : vector<8xf32> to vector<1x1x8xf32>
    %128 = vector.broadcast %127 : vector<1x1x8xf32> to vector<16x16x8xf32>
    %129 = arith.mulf %124, %128 : vector<16x16x8xf32>
    %130 = arith.addf %123, %129 : vector<16x16x8xf32>
    %131 = vector.extract_strided_slice %95 {offsets = [8, 9, 0], sizes = [16, 16, 8], strides = [1, 1, 1]} : vector<32x32x8xf32> to vector<16x16x8xf32>
    %132 = vector.extract_strided_slice %96 {offsets = [1, 2, 0], sizes = [1, 1, 8], strides = [1, 1, 1]} : vector<3x3x8xf32> to vector<1x1x8xf32>
    %133 = vector.shape_cast %132 : vector<1x1x8xf32> to vector<8xf32>
    %134 = vector.shape_cast %133 : vector<8xf32> to vector<1x1x8xf32>
    %135 = vector.broadcast %134 : vector<1x1x8xf32> to vector<16x16x8xf32>
    %136 = arith.mulf %131, %135 : vector<16x16x8xf32>
    %137 = arith.addf %130, %136 : vector<16x16x8xf32>
    %138 = vector.extract_strided_slice %95 {offsets = [9, 7, 0], sizes = [16, 16, 8], strides = [1, 1, 1]} : vector<32x32x8xf32> to vector<16x16x8xf32>
    %139 = vector.extract_strided_slice %96 {offsets = [2, 0, 0], sizes = [1, 1, 8], strides = [1, 1, 1]} : vector<3x3x8xf32> to vector<1x1x8xf32>
    %140 = vector.shape_cast %139 : vector<1x1x8xf32> to vector<8xf32>
    %141 = vector.shape_cast %140 : vector<8xf32> to vector<1x1x8xf32>
    %142 = vector.broadcast %141 : vector<1x1x8xf32> to vector<16x16x8xf32>
    %143 = arith.mulf %138, %142 : vector<16x16x8xf32>
    %144 = arith.addf %137, %143 : vector<16x16x8xf32>
    %145 = vector.extract_strided_slice %95 {offsets = [9, 8, 0], sizes = [16, 16, 8], strides = [1, 1, 1]} : vector<32x32x8xf32> to vector<16x16x8xf32>
    %146 = vector.extract_strided_slice %96 {offsets = [2, 1, 0], sizes = [1, 1, 8], strides = [1, 1, 1]} : vector<3x3x8xf32> to vector<1x1x8xf32>
    %147 = vector.shape_cast %146 : vector<1x1x8xf32> to vector<8xf32>
    %148 = vector.shape_cast %147 : vector<8xf32> to vector<1x1x8xf32>
    %149 = vector.broadcast %148 : vector<1x1x8xf32> to vector<16x16x8xf32>
    %150 = arith.mulf %145, %149 : vector<16x16x8xf32>
    %151 = arith.addf %144, %150 : vector<16x16x8xf32>
    %152 = vector.extract_strided_slice %95 {offsets = [9, 9, 0], sizes = [16, 16, 8], strides = [1, 1, 1]} : vector<32x32x8xf32> to vector<16x16x8xf32>
    %153 = vector.extract_strided_slice %96 {offsets = [2, 2, 0], sizes = [1, 1, 8], strides = [1, 1, 1]} : vector<3x3x8xf32> to vector<1x1x8xf32>
    %154 = vector.shape_cast %153 : vector<1x1x8xf32> to vector<8xf32>
    %155 = vector.shape_cast %154 : vector<8xf32> to vector<1x1x8xf32>
    %156 = vector.broadcast %155 : vector<1x1x8xf32> to vector<16x16x8xf32>
    %157 = arith.mulf %152, %156 : vector<16x16x8xf32>
    %158 = arith.addf %151, %157 : vector<16x16x8xf32>
    %159 = vector.shape_cast %158 : vector<16x16x8xf32> to vector<256x8xf32>
    %c0_42 = arith.constant 0 : index
    %c0_43 = arith.constant 0 : index
    %160 = vector.load %arg10[%c0_42, %c0_43] : memref<1x8xf32, #tpu.memory_space<vmem>>, vector<1x8xf32>
    %161 = vector.broadcast %160 : vector<1x8xf32> to vector<256x8xf32>
    %162 = arith.mulf %159, %161 : vector<256x8xf32>
    %c0_44 = arith.constant 0 : index
    %c0_45 = arith.constant 0 : index
    %163 = vector.load %arg11[%c0_44, %c0_45] : memref<1x8xf32, #tpu.memory_space<vmem>>, vector<1x8xf32>
    %164 = vector.broadcast %163 : vector<1x8xf32> to vector<256x8xf32>
    %165 = arith.addf %162, %164 : vector<256x8xf32>
    %cst_46 = arith.constant dense<0.000000e+00> : vector<64x8xf32>
    %166 = tpu.matmul %3, %165, %cst_46 {dimension_numbers = #tpu.dot_dimension_numbers<[1], [0], [0], [1], [0, 0, 1, 1], [], []>} : vector<64x256xf32>, vector<256x8xf32>, vector<64x8xf32> -> vector<64x8xf32>
    %cst_47 = arith.constant 0.000000e+00 : f32
    %167 = vector.broadcast %cst_47 : f32 to vector<32x32x8xf32>
    %c0_48 = arith.constant 0 : index
    %c0_49 = arith.constant 0 : index
    %c0_50 = arith.constant 0 : index
    %168 = vector.load %arg42[%c0_48, %c0_49, %c0_50] : memref<32x32x8xf32, #tpu.memory_space<vmem>>, vector<32x32x8xf32>
    tpu.vector_store %arg42[%c0_48, %c0_49, %c0_50], %167 {strides = array<i32>} : memref<32x32x8xf32, #tpu.memory_space<vmem>>, vector<32x32x8xf32>,
    %169 = vector.shape_cast %90 : vector<256x8xf32> to vector<16x16x8xf32>
    %c8_51 = arith.constant 8 : index
    %c8_52 = arith.constant 8 : index
    %c0_53 = arith.constant 0 : index
    %170 = vector.load %arg42[%c8_51, %c8_52, %c0_53] : memref<32x32x8xf32, #tpu.memory_space<vmem>>, vector<16x16x8xf32>
    tpu.vector_store %arg42[%c8_51, %c8_52, %c0_53], %169 {strides = array<i32>} : memref<32x32x8xf32, #tpu.memory_space<vmem>>, vector<16x16x8xf32>,
    %c0_54 = arith.constant 0 : index
    %c0_55 = arith.constant 0 : index
    %c0_56 = arith.constant 0 : index
    %171 = vector.load %arg42[%c0_54, %c0_55, %c0_56] : memref<32x32x8xf32, #tpu.memory_space<vmem>>, vector<32x32x8xf32>
    %c0_57 = arith.constant 0 : index
    %c0_58 = arith.constant 0 : index
    %c0_59 = arith.constant 0 : index
    %172 = vector.load %arg12[%c0_57, %c0_58, %c0_59] : memref<3x3x8xf32, #tpu.memory_space<vmem>>, vector<3x3x8xf32>
    %173 = vector.extract_strided_slice %171 {offsets = [7, 7, 0], sizes = [16, 16, 8], strides = [1, 1, 1]} : vector<32x32x8xf32> to vector<16x16x8xf32>
    %174 = vector.extract_strided_slice %172 {offsets = [0, 0, 0], sizes = [1, 1, 8], strides = [1, 1, 1]} : vector<3x3x8xf32> to vector<1x1x8xf32>
    %175 = vector.shape_cast %174 : vector<1x1x8xf32> to vector<8xf32>
    %176 = vector.shape_cast %175 : vector<8xf32> to vector<1x1x8xf32>
    %177 = vector.broadcast %176 : vector<1x1x8xf32> to vector<16x16x8xf32>
    %178 = arith.mulf %173, %177 : vector<16x16x8xf32>
    %179 = vector.extract_strided_slice %171 {offsets = [7, 8, 0], sizes = [16, 16, 8], strides = [1, 1, 1]} : vector<32x32x8xf32> to vector<16x16x8xf32>
    %180 = vector.extract_strided_slice %172 {offsets = [0, 1, 0], sizes = [1, 1, 8], strides = [1, 1, 1]} : vector<3x3x8xf32> to vector<1x1x8xf32>
    %181 = vector.shape_cast %180 : vector<1x1x8xf32> to vector<8xf32>
    %182 = vector.shape_cast %181 : vector<8xf32> to vector<1x1x8xf32>
    %183 = vector.broadcast %182 : vector<1x1x8xf32> to vector<16x16x8xf32>
    %184 = arith.mulf %179, %183 : vector<16x16x8xf32>
    %185 = arith.addf %178, %184 : vector<16x16x8xf32>
    %186 = vector.extract_strided_slice %171 {offsets = [7, 9, 0], sizes = [16, 16, 8], strides = [1, 1, 1]} : vector<32x32x8xf32> to vector<16x16x8xf32>
    %187 = vector.extract_strided_slice %172 {offsets = [0, 2, 0], sizes = [1, 1, 8], strides = [1, 1, 1]} : vector<3x3x8xf32> to vector<1x1x8xf32>
    %188 = vector.shape_cast %187 : vector<1x1x8xf32> to vector<8xf32>
    %189 = vector.shape_cast %188 : vector<8xf32> to vector<1x1x8xf32>
    %190 = vector.broadcast %189 : vector<1x1x8xf32> to vector<16x16x8xf32>
    %191 = arith.mulf %186, %190 : vector<16x16x8xf32>
    %192 = arith.addf %185, %191 : vector<16x16x8xf32>
    %193 = vector.extract_strided_slice %171 {offsets = [8, 7, 0], sizes = [16, 16, 8], strides = [1, 1, 1]} : vector<32x32x8xf32> to vector<16x16x8xf32>
    %194 = vector.extract_strided_slice %172 {offsets = [1, 0, 0], sizes = [1, 1, 8], strides = [1, 1, 1]} : vector<3x3x8xf32> to vector<1x1x8xf32>
    %195 = vector.shape_cast %194 : vector<1x1x8xf32> to vector<8xf32>
    %196 = vector.shape_cast %195 : vector<8xf32> to vector<1x1x8xf32>
    %197 = vector.broadcast %196 : vector<1x1x8xf32> to vector<16x16x8xf32>
    %198 = arith.mulf %193, %197 : vector<16x16x8xf32>
    %199 = arith.addf %192, %198 : vector<16x16x8xf32>
    %200 = vector.extract_strided_slice %171 {offsets = [8, 8, 0], sizes = [16, 16, 8], strides = [1, 1, 1]} : vector<32x32x8xf32> to vector<16x16x8xf32>
    %201 = vector.extract_strided_slice %172 {offsets = [1, 1, 0], sizes = [1, 1, 8], strides = [1, 1, 1]} : vector<3x3x8xf32> to vector<1x1x8xf32>
    %202 = vector.shape_cast %201 : vector<1x1x8xf32> to vector<8xf32>
    %203 = vector.shape_cast %202 : vector<8xf32> to vector<1x1x8xf32>
    %204 = vector.broadcast %203 : vector<1x1x8xf32> to vector<16x16x8xf32>
    %205 = arith.mulf %200, %204 : vector<16x16x8xf32>
    %206 = arith.addf %199, %205 : vector<16x16x8xf32>
    %207 = vector.extract_strided_slice %171 {offsets = [8, 9, 0], sizes = [16, 16, 8], strides = [1, 1, 1]} : vector<32x32x8xf32> to vector<16x16x8xf32>
    %208 = vector.extract_strided_slice %172 {offsets = [1, 2, 0], sizes = [1, 1, 8], strides = [1, 1, 1]} : vector<3x3x8xf32> to vector<1x1x8xf32>
    %209 = vector.shape_cast %208 : vector<1x1x8xf32> to vector<8xf32>
    %210 = vector.shape_cast %209 : vector<8xf32> to vector<1x1x8xf32>
    %211 = vector.broadcast %210 : vector<1x1x8xf32> to vector<16x16x8xf32>
    %212 = arith.mulf %207, %211 : vector<16x16x8xf32>
    %213 = arith.addf %206, %212 : vector<16x16x8xf32>
    %214 = vector.extract_strided_slice %171 {offsets = [9, 7, 0], sizes = [16, 16, 8], strides = [1, 1, 1]} : vector<32x32x8xf32> to vector<16x16x8xf32>
    %215 = vector.extract_strided_slice %172 {offsets = [2, 0, 0], sizes = [1, 1, 8], strides = [1, 1, 1]} : vector<3x3x8xf32> to vector<1x1x8xf32>
    %216 = vector.shape_cast %215 : vector<1x1x8xf32> to vector<8xf32>
    %217 = vector.shape_cast %216 : vector<8xf32> to vector<1x1x8xf32>
    %218 = vector.broadcast %217 : vector<1x1x8xf32> to vector<16x16x8xf32>
    %219 = arith.mulf %214, %218 : vector<16x16x8xf32>
    %220 = arith.addf %213, %219 : vector<16x16x8xf32>
    %221 = vector.extract_strided_slice %171 {offsets = [9, 8, 0], sizes = [16, 16, 8], strides = [1, 1, 1]} : vector<32x32x8xf32> to vector<16x16x8xf32>
    %222 = vector.extract_strided_slice %172 {offsets = [2, 1, 0], sizes = [1, 1, 8], strides = [1, 1, 1]} : vector<3x3x8xf32> to vector<1x1x8xf32>
    %223 = vector.shape_cast %222 : vector<1x1x8xf32> to vector<8xf32>
    %224 = vector.shape_cast %223 : vector<8xf32> to vector<1x1x8xf32>
    %225 = vector.broadcast %224 : vector<1x1x8xf32> to vector<16x16x8xf32>
    %226 = arith.mulf %221, %225 : vector<16x16x8xf32>
    %227 = arith.addf %220, %226 : vector<16x16x8xf32>
    %228 = vector.extract_strided_slice %171 {offsets = [9, 9, 0], sizes = [16, 16, 8], strides = [1, 1, 1]} : vector<32x32x8xf32> to vector<16x16x8xf32>
    %229 = vector.extract_strided_slice %172 {offsets = [2, 2, 0], sizes = [1, 1, 8], strides = [1, 1, 1]} : vector<3x3x8xf32> to vector<1x1x8xf32>
    %230 = vector.shape_cast %229 : vector<1x1x8xf32> to vector<8xf32>
    %231 = vector.shape_cast %230 : vector<8xf32> to vector<1x1x8xf32>
    %232 = vector.broadcast %231 : vector<1x1x8xf32> to vector<16x16x8xf32>
    %233 = arith.mulf %228, %232 : vector<16x16x8xf32>
    %234 = arith.addf %227, %233 : vector<16x16x8xf32>
    %235 = vector.shape_cast %234 : vector<16x16x8xf32> to vector<256x8xf32>
    %c0_60 = arith.constant 0 : index
    %c0_61 = arith.constant 0 : index
    %236 = vector.load %arg13[%c0_60, %c0_61] : memref<1x8xf32, #tpu.memory_space<vmem>>, vector<1x8xf32>
    %237 = vector.broadcast %236 : vector<1x8xf32> to vector<256x8xf32>
    %238 = arith.mulf %235, %237 : vector<256x8xf32>
    %c0_62 = arith.constant 0 : index
    %c0_63 = arith.constant 0 : index
    %239 = vector.load %arg14[%c0_62, %c0_63] : memref<1x8xf32, #tpu.memory_space<vmem>>, vector<1x8xf32>
    %240 = vector.broadcast %239 : vector<1x8xf32> to vector<256x8xf32>
    %241 = arith.addf %238, %240 : vector<256x8xf32>
    %cst_64 = arith.constant dense<0.000000e+00> : vector<64x8xf32>
    %242 = tpu.matmul %3, %241, %cst_64 {dimension_numbers = #tpu.dot_dimension_numbers<[1], [0], [0], [1], [0, 0, 1, 1], [], []>} : vector<64x256xf32>, vector<256x8xf32>, vector<64x8xf32> -> vector<64x8xf32>
    %cst_65 = arith.constant 1.562500e-02 : f32
    %243 = vector.broadcast %cst_65 : f32 to vector<1x64xf32>
    %cst_66 = arith.constant dense<0.000000e+00> : vector<1x8xf32>
    %244 = tpu.matmul %243, %166, %cst_66 {dimension_numbers = #tpu.dot_dimension_numbers<[1], [0], [0], [1], [0, 0, 1, 1], [], []>} : vector<1x64xf32>, vector<64x8xf32>, vector<1x8xf32> -> vector<1x8xf32>
    %cst_67 = arith.constant dense<0.000000e+00> : vector<1x8xf32>
    %245 = tpu.matmul %243, %242, %cst_67 {dimension_numbers = #tpu.dot_dimension_numbers<[1], [0], [0], [1], [0, 0, 1, 1], [], []>} : vector<1x64xf32>, vector<64x8xf32>, vector<1x8xf32> -> vector<1x8xf32>
    %c0_68 = arith.constant 0 : index
    %c0_69 = arith.constant 0 : index
    %246 = vector.load %arg15[%c0_68, %c0_69] : memref<8x4xf32, #tpu.memory_space<vmem>>, vector<8x4xf32>
    %cst_70 = arith.constant dense<0.000000e+00> : vector<1x4xf32>
    %247 = tpu.matmul %244, %246, %cst_70 {dimension_numbers = #tpu.dot_dimension_numbers<[1], [0], [0], [1], [0, 0, 1, 1], [], []>} : vector<1x8xf32>, vector<8x4xf32>, vector<1x4xf32> -> vector<1x4xf32>
    %c0_71 = arith.constant 0 : index
    %c0_72 = arith.constant 0 : index
    %248 = vector.load %arg16[%c0_71, %c0_72] : memref<8x4xf32, #tpu.memory_space<vmem>>, vector<8x4xf32>
    %cst_73 = arith.constant dense<0.000000e+00> : vector<1x4xf32>
    %249 = tpu.matmul %245, %248, %cst_73 {dimension_numbers = #tpu.dot_dimension_numbers<[1], [0], [0], [1], [0, 0, 1, 1], [], []>} : vector<1x8xf32>, vector<8x4xf32>, vector<1x4xf32> -> vector<1x4xf32>
    %250 = arith.addf %247, %249 : vector<1x4xf32>
    %c0_74 = arith.constant 0 : index
    %c0_75 = arith.constant 0 : index
    %251 = vector.load %arg17[%c0_74, %c0_75] : memref<1x4xf32, #tpu.memory_space<vmem>>, vector<1x4xf32>
    %252 = arith.addf %250, %251 : vector<1x4xf32>
    %cst_76 = arith.constant 0.000000e+00 : f32
    %253 = vector.broadcast %cst_76 : f32 to vector<1x4xf32>
    %254 = arith.maximumf %252, %253 : vector<1x4xf32>
    %c0_77 = arith.constant 0 : index
    %c0_78 = arith.constant 0 : index
    %255 = vector.load %arg18[%c0_77, %c0_78] : memref<4x8xf32, #tpu.memory_space<vmem>>, vector<4x8xf32>
    %cst_79 = arith.constant dense<0.000000e+00> : vector<1x8xf32>
    %256 = tpu.matmul %254, %255, %cst_79 {dimension_numbers = #tpu.dot_dimension_numbers<[1], [0], [0], [1], [0, 0, 1, 1], [], []>} : vector<1x4xf32>, vector<4x8xf32>, vector<1x8xf32> -> vector<1x8xf32>
    %c0_80 = arith.constant 0 : index
    %c0_81 = arith.constant 0 : index
    %257 = vector.load %arg19[%c0_80, %c0_81] : memref<1x8xf32, #tpu.memory_space<vmem>>, vector<1x8xf32>
    %258 = arith.addf %256, %257 : vector<1x8xf32>
    %cst_82 = arith.constant 0.000000e+00 : f32
    %cst_83 = arith.constant 1.000000e+00 : f32
    %259 = vector.broadcast %cst_82 : f32 to vector<1x8xf32>
    %260 = arith.maximumf %259, %258 : vector<1x8xf32>
    %261 = vector.broadcast %cst_83 : f32 to vector<1x8xf32>
    %262 = arith.minimumf %261, %260 : vector<1x8xf32>
    %c0_84 = arith.constant 0 : index
    %c0_85 = arith.constant 0 : index
    %263 = vector.load %arg20[%c0_84, %c0_85] : memref<4x8xf32, #tpu.memory_space<vmem>>, vector<4x8xf32>
    %cst_86 = arith.constant dense<0.000000e+00> : vector<1x8xf32>
    %264 = tpu.matmul %254, %263, %cst_86 {dimension_numbers = #tpu.dot_dimension_numbers<[1], [0], [0], [1], [0, 0, 1, 1], [], []>} : vector<1x4xf32>, vector<4x8xf32>, vector<1x8xf32> -> vector<1x8xf32>
    %c0_87 = arith.constant 0 : index
    %c0_88 = arith.constant 0 : index
    %265 = vector.load %arg21[%c0_87, %c0_88] : memref<1x8xf32, #tpu.memory_space<vmem>>, vector<1x8xf32>
    %266 = arith.addf %264, %265 : vector<1x8xf32>
    %cst_89 = arith.constant 0.000000e+00 : f32
    %cst_90 = arith.constant 1.000000e+00 : f32
    %267 = vector.broadcast %cst_89 : f32 to vector<1x8xf32>
    %268 = arith.maximumf %267, %266 : vector<1x8xf32>
    %269 = vector.broadcast %cst_90 : f32 to vector<1x8xf32>
    %270 = arith.minimumf %269, %268 : vector<1x8xf32>
    %271 = vector.broadcast %262 : vector<1x8xf32> to vector<64x8xf32>
    %272 = arith.mulf %166, %271 : vector<64x8xf32>
    %273 = vector.broadcast %270 : vector<1x8xf32> to vector<64x8xf32>
    %274 = arith.mulf %242, %273 : vector<64x8xf32>
    %c0_91 = arith.constant 0 : index
    %c0_92 = arith.constant 0 : index
    %275 = vector.load %arg22[%c0_91, %c0_92] : memref<8x6xf32, #tpu.memory_space<vmem>>, vector<8x6xf32>
    %cst_93 = arith.constant dense<0.000000e+00> : vector<64x6xf32>
    %276 = tpu.matmul %272, %275, %cst_93 {dimension_numbers = #tpu.dot_dimension_numbers<[1], [0], [0], [1], [0, 0, 1, 1], [], []>} : vector<64x8xf32>, vector<8x6xf32>, vector<64x6xf32> -> vector<64x6xf32>
    %c0_94 = arith.constant 0 : index
    %c0_95 = arith.constant 0 : index
    %277 = vector.load %arg23[%c0_94, %c0_95] : memref<8x6xf32, #tpu.memory_space<vmem>>, vector<8x6xf32>
    %cst_96 = arith.constant dense<0.000000e+00> : vector<64x6xf32>
    %278 = tpu.matmul %274, %277, %cst_96 {dimension_numbers = #tpu.dot_dimension_numbers<[1], [0], [0], [1], [0, 0, 1, 1], [], []>} : vector<64x8xf32>, vector<8x6xf32>, vector<64x6xf32> -> vector<64x6xf32>
    %279 = arith.addf %276, %278 : vector<64x6xf32>
    %c0_97 = arith.constant 0 : index
    %c0_98 = arith.constant 0 : index
    %280 = vector.load %arg24[%c0_97, %c0_98] : memref<1x6xf32, #tpu.memory_space<vmem>>, vector<1x6xf32>
    %281 = vector.broadcast %280 : vector<1x6xf32> to vector<64x6xf32>
    %282 = arith.mulf %279, %281 : vector<64x6xf32>
    %c0_99 = arith.constant 0 : index
    %c0_100 = arith.constant 0 : index
    %283 = vector.load %arg25[%c0_99, %c0_100] : memref<1x6xf32, #tpu.memory_space<vmem>>, vector<1x6xf32>
    %284 = vector.broadcast %283 : vector<1x6xf32> to vector<64x6xf32>
    %285 = arith.addf %282, %284 : vector<64x6xf32>
    %cst_101 = arith.constant 0.000000e+00 : f32
    %286 = vector.broadcast %cst_101 : f32 to vector<24x24x6xf32>
    %c0_102 = arith.constant 0 : index
    %c0_103 = arith.constant 0 : index
    %c0_104 = arith.constant 0 : index
    %287 = vector.load %arg44[%c0_102, %c0_103, %c0_104] : memref<24x24x6xf32, #tpu.memory_space<vmem>>, vector<24x24x6xf32>
    tpu.vector_store %arg44[%c0_102, %c0_103, %c0_104], %286 {strides = array<i32>} : memref<24x24x6xf32, #tpu.memory_space<vmem>>, vector<24x24x6xf32>,
    %288 = vector.shape_cast %285 : vector<64x6xf32> to vector<8x8x6xf32>
    %c8_105 = arith.constant 8 : index
    %c8_106 = arith.constant 8 : index
    %c0_107 = arith.constant 0 : index
    %289 = vector.load %arg44[%c8_105, %c8_106, %c0_107] : memref<24x24x6xf32, #tpu.memory_space<vmem>>, vector<8x8x6xf32>
    tpu.vector_store %arg44[%c8_105, %c8_106, %c0_107], %288 {strides = array<i32>} : memref<24x24x6xf32, #tpu.memory_space<vmem>>, vector<8x8x6xf32>,
    %c0_108 = arith.constant 0 : index
    %c0_109 = arith.constant 0 : index
    %c0_110 = arith.constant 0 : index
    %290 = vector.load %arg44[%c0_108, %c0_109, %c0_110] : memref<24x24x6xf32, #tpu.memory_space<vmem>>, vector<24x24x6xf32>
    %c0_111 = arith.constant 0 : index
    %c0_112 = arith.constant 0 : index
    %c0_113 = arith.constant 0 : index
    %291 = vector.load %arg26[%c0_111, %c0_112, %c0_113] : memref<3x3x6xf32, #tpu.memory_space<vmem>>, vector<3x3x6xf32>
    %292 = vector.extract_strided_slice %290 {offsets = [7, 7, 0], sizes = [8, 8, 6], strides = [1, 1, 1]} : vector<24x24x6xf32> to vector<8x8x6xf32>
    %293 = vector.extract_strided_slice %291 {offsets = [0, 0, 0], sizes = [1, 1, 6], strides = [1, 1, 1]} : vector<3x3x6xf32> to vector<1x1x6xf32>
    %294 = vector.shape_cast %293 : vector<1x1x6xf32> to vector<6xf32>
    %295 = vector.shape_cast %294 : vector<6xf32> to vector<1x1x6xf32>
    %296 = vector.broadcast %295 : vector<1x1x6xf32> to vector<8x8x6xf32>
    %297 = arith.mulf %292, %296 : vector<8x8x6xf32>
    %298 = vector.extract_strided_slice %290 {offsets = [7, 8, 0], sizes = [8, 8, 6], strides = [1, 1, 1]} : vector<24x24x6xf32> to vector<8x8x6xf32>
    %299 = vector.extract_strided_slice %291 {offsets = [0, 1, 0], sizes = [1, 1, 6], strides = [1, 1, 1]} : vector<3x3x6xf32> to vector<1x1x6xf32>
    %300 = vector.shape_cast %299 : vector<1x1x6xf32> to vector<6xf32>
    %301 = vector.shape_cast %300 : vector<6xf32> to vector<1x1x6xf32>
    %302 = vector.broadcast %301 : vector<1x1x6xf32> to vector<8x8x6xf32>
    %303 = arith.mulf %298, %302 : vector<8x8x6xf32>
    %304 = arith.addf %297, %303 : vector<8x8x6xf32>
    %305 = vector.extract_strided_slice %290 {offsets = [7, 9, 0], sizes = [8, 8, 6], strides = [1, 1, 1]} : vector<24x24x6xf32> to vector<8x8x6xf32>
    %306 = vector.extract_strided_slice %291 {offsets = [0, 2, 0], sizes = [1, 1, 6], strides = [1, 1, 1]} : vector<3x3x6xf32> to vector<1x1x6xf32>
    %307 = vector.shape_cast %306 : vector<1x1x6xf32> to vector<6xf32>
    %308 = vector.shape_cast %307 : vector<6xf32> to vector<1x1x6xf32>
    %309 = vector.broadcast %308 : vector<1x1x6xf32> to vector<8x8x6xf32>
    %310 = arith.mulf %305, %309 : vector<8x8x6xf32>
    %311 = arith.addf %304, %310 : vector<8x8x6xf32>
    %312 = vector.extract_strided_slice %290 {offsets = [8, 7, 0], sizes = [8, 8, 6], strides = [1, 1, 1]} : vector<24x24x6xf32> to vector<8x8x6xf32>
    %313 = vector.extract_strided_slice %291 {offsets = [1, 0, 0], sizes = [1, 1, 6], strides = [1, 1, 1]} : vector<3x3x6xf32> to vector<1x1x6xf32>
    %314 = vector.shape_cast %313 : vector<1x1x6xf32> to vector<6xf32>
    %315 = vector.shape_cast %314 : vector<6xf32> to vector<1x1x6xf32>
    %316 = vector.broadcast %315 : vector<1x1x6xf32> to vector<8x8x6xf32>
    %317 = arith.mulf %312, %316 : vector<8x8x6xf32>
    %318 = arith.addf %311, %317 : vector<8x8x6xf32>
    %319 = vector.extract_strided_slice %290 {offsets = [8, 8, 0], sizes = [8, 8, 6], strides = [1, 1, 1]} : vector<24x24x6xf32> to vector<8x8x6xf32>
    %320 = vector.extract_strided_slice %291 {offsets = [1, 1, 0], sizes = [1, 1, 6], strides = [1, 1, 1]} : vector<3x3x6xf32> to vector<1x1x6xf32>
    %321 = vector.shape_cast %320 : vector<1x1x6xf32> to vector<6xf32>
    %322 = vector.shape_cast %321 : vector<6xf32> to vector<1x1x6xf32>
    %323 = vector.broadcast %322 : vector<1x1x6xf32> to vector<8x8x6xf32>
    %324 = arith.mulf %319, %323 : vector<8x8x6xf32>
    %325 = arith.addf %318, %324 : vector<8x8x6xf32>
    %326 = vector.extract_strided_slice %290 {offsets = [8, 9, 0], sizes = [8, 8, 6], strides = [1, 1, 1]} : vector<24x24x6xf32> to vector<8x8x6xf32>
    %327 = vector.extract_strided_slice %291 {offsets = [1, 2, 0], sizes = [1, 1, 6], strides = [1, 1, 1]} : vector<3x3x6xf32> to vector<1x1x6xf32>
    %328 = vector.shape_cast %327 : vector<1x1x6xf32> to vector<6xf32>
    %329 = vector.shape_cast %328 : vector<6xf32> to vector<1x1x6xf32>
    %330 = vector.broadcast %329 : vector<1x1x6xf32> to vector<8x8x6xf32>
    %331 = arith.mulf %326, %330 : vector<8x8x6xf32>
    %332 = arith.addf %325, %331 : vector<8x8x6xf32>
    %333 = vector.extract_strided_slice %290 {offsets = [9, 7, 0], sizes = [8, 8, 6], strides = [1, 1, 1]} : vector<24x24x6xf32> to vector<8x8x6xf32>
    %334 = vector.extract_strided_slice %291 {offsets = [2, 0, 0], sizes = [1, 1, 6], strides = [1, 1, 1]} : vector<3x3x6xf32> to vector<1x1x6xf32>
    %335 = vector.shape_cast %334 : vector<1x1x6xf32> to vector<6xf32>
    %336 = vector.shape_cast %335 : vector<6xf32> to vector<1x1x6xf32>
    %337 = vector.broadcast %336 : vector<1x1x6xf32> to vector<8x8x6xf32>
    %338 = arith.mulf %333, %337 : vector<8x8x6xf32>
    %339 = arith.addf %332, %338 : vector<8x8x6xf32>
    %340 = vector.extract_strided_slice %290 {offsets = [9, 8, 0], sizes = [8, 8, 6], strides = [1, 1, 1]} : vector<24x24x6xf32> to vector<8x8x6xf32>
    %341 = vector.extract_strided_slice %291 {offsets = [2, 1, 0], sizes = [1, 1, 6], strides = [1, 1, 1]} : vector<3x3x6xf32> to vector<1x1x6xf32>
    %342 = vector.shape_cast %341 : vector<1x1x6xf32> to vector<6xf32>
    %343 = vector.shape_cast %342 : vector<6xf32> to vector<1x1x6xf32>
    %344 = vector.broadcast %343 : vector<1x1x6xf32> to vector<8x8x6xf32>
    %345 = arith.mulf %340, %344 : vector<8x8x6xf32>
    %346 = arith.addf %339, %345 : vector<8x8x6xf32>
    %347 = vector.extract_strided_slice %290 {offsets = [9, 9, 0], sizes = [8, 8, 6], strides = [1, 1, 1]} : vector<24x24x6xf32> to vector<8x8x6xf32>
    %348 = vector.extract_strided_slice %291 {offsets = [2, 2, 0], sizes = [1, 1, 6], strides = [1, 1, 1]} : vector<3x3x6xf32> to vector<1x1x6xf32>
    %349 = vector.shape_cast %348 : vector<1x1x6xf32> to vector<6xf32>
    %350 = vector.shape_cast %349 : vector<6xf32> to vector<1x1x6xf32>
    %351 = vector.broadcast %350 : vector<1x1x6xf32> to vector<8x8x6xf32>
    %352 = arith.mulf %347, %351 : vector<8x8x6xf32>
    %353 = arith.addf %346, %352 : vector<8x8x6xf32>
    %354 = vector.shape_cast %353 : vector<8x8x6xf32> to vector<64x6xf32>
    %c0_114 = arith.constant 0 : index
    %c0_115 = arith.constant 0 : index
    %355 = vector.load %arg27[%c0_114, %c0_115] : memref<1x6xf32, #tpu.memory_space<vmem>>, vector<1x6xf32>
    %356 = vector.broadcast %355 : vector<1x6xf32> to vector<64x6xf32>
    %357 = arith.mulf %354, %356 : vector<64x6xf32>
    %c0_116 = arith.constant 0 : index
    %c0_117 = arith.constant 0 : index
    %358 = vector.load %arg28[%c0_116, %c0_117] : memref<1x6xf32, #tpu.memory_space<vmem>>, vector<1x6xf32>
    %359 = vector.broadcast %358 : vector<1x6xf32> to vector<64x6xf32>
    %360 = arith.addf %357, %359 : vector<64x6xf32>
    %cst_118 = arith.constant 0.000000e+00 : f32
    %361 = vector.broadcast %cst_118 : f32 to vector<32x32x8xf32>
    %c0_119 = arith.constant 0 : index
    %c0_120 = arith.constant 0 : index
    %c0_121 = arith.constant 0 : index
    %362 = vector.load %arg43[%c0_119, %c0_120, %c0_121] : memref<32x32x8xf32, #tpu.memory_space<vmem>>, vector<32x32x8xf32>
    tpu.vector_store %arg43[%c0_119, %c0_120, %c0_121], %361 {strides = array<i32>} : memref<32x32x8xf32, #tpu.memory_space<vmem>>, vector<32x32x8xf32>,
    %363 = vector.shape_cast %2 : vector<256x8xf32> to vector<16x16x8xf32>
    %c8_122 = arith.constant 8 : index
    %c8_123 = arith.constant 8 : index
    %c0_124 = arith.constant 0 : index
    %364 = vector.load %arg43[%c8_122, %c8_123, %c0_124] : memref<32x32x8xf32, #tpu.memory_space<vmem>>, vector<16x16x8xf32>
    tpu.vector_store %arg43[%c8_122, %c8_123, %c0_124], %363 {strides = array<i32>} : memref<32x32x8xf32, #tpu.memory_space<vmem>>, vector<16x16x8xf32>,
    %c0_125 = arith.constant 0 : index
    %c0_126 = arith.constant 0 : index
    %c0_127 = arith.constant 0 : index
    %365 = vector.load %arg43[%c0_125, %c0_126, %c0_127] : memref<32x32x8xf32, #tpu.memory_space<vmem>>, vector<32x32x8xf32>
    %c0_128 = arith.constant 0 : index
    %c0_129 = arith.constant 0 : index
    %c0_130 = arith.constant 0 : index
    %366 = vector.load %arg29[%c0_128, %c0_129, %c0_130] : memref<3x3x8xf32, #tpu.memory_space<vmem>>, vector<3x3x8xf32>
    %367 = vector.extract_strided_slice %365 {offsets = [7, 7, 0], sizes = [16, 16, 8], strides = [1, 1, 1]} : vector<32x32x8xf32> to vector<16x16x8xf32>
    %368 = vector.extract_strided_slice %366 {offsets = [0, 0, 0], sizes = [1, 1, 8], strides = [1, 1, 1]} : vector<3x3x8xf32> to vector<1x1x8xf32>
    %369 = vector.shape_cast %368 : vector<1x1x8xf32> to vector<8xf32>
    %370 = vector.shape_cast %369 : vector<8xf32> to vector<1x1x8xf32>
    %371 = vector.broadcast %370 : vector<1x1x8xf32> to vector<16x16x8xf32>
    %372 = arith.mulf %367, %371 : vector<16x16x8xf32>
    %373 = vector.extract_strided_slice %365 {offsets = [7, 8, 0], sizes = [16, 16, 8], strides = [1, 1, 1]} : vector<32x32x8xf32> to vector<16x16x8xf32>
    %374 = vector.extract_strided_slice %366 {offsets = [0, 1, 0], sizes = [1, 1, 8], strides = [1, 1, 1]} : vector<3x3x8xf32> to vector<1x1x8xf32>
    %375 = vector.shape_cast %374 : vector<1x1x8xf32> to vector<8xf32>
    %376 = vector.shape_cast %375 : vector<8xf32> to vector<1x1x8xf32>
    %377 = vector.broadcast %376 : vector<1x1x8xf32> to vector<16x16x8xf32>
    %378 = arith.mulf %373, %377 : vector<16x16x8xf32>
    %379 = arith.addf %372, %378 : vector<16x16x8xf32>
    %380 = vector.extract_strided_slice %365 {offsets = [7, 9, 0], sizes = [16, 16, 8], strides = [1, 1, 1]} : vector<32x32x8xf32> to vector<16x16x8xf32>
    %381 = vector.extract_strided_slice %366 {offsets = [0, 2, 0], sizes = [1, 1, 8], strides = [1, 1, 1]} : vector<3x3x8xf32> to vector<1x1x8xf32>
    %382 = vector.shape_cast %381 : vector<1x1x8xf32> to vector<8xf32>
    %383 = vector.shape_cast %382 : vector<8xf32> to vector<1x1x8xf32>
    %384 = vector.broadcast %383 : vector<1x1x8xf32> to vector<16x16x8xf32>
    %385 = arith.mulf %380, %384 : vector<16x16x8xf32>
    %386 = arith.addf %379, %385 : vector<16x16x8xf32>
    %387 = vector.extract_strided_slice %365 {offsets = [8, 7, 0], sizes = [16, 16, 8], strides = [1, 1, 1]} : vector<32x32x8xf32> to vector<16x16x8xf32>
    %388 = vector.extract_strided_slice %366 {offsets = [1, 0, 0], sizes = [1, 1, 8], strides = [1, 1, 1]} : vector<3x3x8xf32> to vector<1x1x8xf32>
    %389 = vector.shape_cast %388 : vector<1x1x8xf32> to vector<8xf32>
    %390 = vector.shape_cast %389 : vector<8xf32> to vector<1x1x8xf32>
    %391 = vector.broadcast %390 : vector<1x1x8xf32> to vector<16x16x8xf32>
    %392 = arith.mulf %387, %391 : vector<16x16x8xf32>
    %393 = arith.addf %386, %392 : vector<16x16x8xf32>
    %394 = vector.extract_strided_slice %365 {offsets = [8, 8, 0], sizes = [16, 16, 8], strides = [1, 1, 1]} : vector<32x32x8xf32> to vector<16x16x8xf32>
    %395 = vector.extract_strided_slice %366 {offsets = [1, 1, 0], sizes = [1, 1, 8], strides = [1, 1, 1]} : vector<3x3x8xf32> to vector<1x1x8xf32>
    %396 = vector.shape_cast %395 : vector<1x1x8xf32> to vector<8xf32>
    %397 = vector.shape_cast %396 : vector<8xf32> to vector<1x1x8xf32>
    %398 = vector.broadcast %397 : vector<1x1x8xf32> to vector<16x16x8xf32>
    %399 = arith.mulf %394, %398 : vector<16x16x8xf32>
    %400 = arith.addf %393, %399 : vector<16x16x8xf32>
    %401 = vector.extract_strided_slice %365 {offsets = [8, 9, 0], sizes = [16, 16, 8], strides = [1, 1, 1]} : vector<32x32x8xf32> to vector<16x16x8xf32>
    %402 = vector.extract_strided_slice %366 {offsets = [1, 2, 0], sizes = [1, 1, 8], strides = [1, 1, 1]} : vector<3x3x8xf32> to vector<1x1x8xf32>
    %403 = vector.shape_cast %402 : vector<1x1x8xf32> to vector<8xf32>
    %404 = vector.shape_cast %403 : vector<8xf32> to vector<1x1x8xf32>
    %405 = vector.broadcast %404 : vector<1x1x8xf32> to vector<16x16x8xf32>
    %406 = arith.mulf %401, %405 : vector<16x16x8xf32>
    %407 = arith.addf %400, %406 : vector<16x16x8xf32>
    %408 = vector.extract_strided_slice %365 {offsets = [9, 7, 0], sizes = [16, 16, 8], strides = [1, 1, 1]} : vector<32x32x8xf32> to vector<16x16x8xf32>
    %409 = vector.extract_strided_slice %366 {offsets = [2, 0, 0], sizes = [1, 1, 8], strides = [1, 1, 1]} : vector<3x3x8xf32> to vector<1x1x8xf32>
    %410 = vector.shape_cast %409 : vector<1x1x8xf32> to vector<8xf32>
    %411 = vector.shape_cast %410 : vector<8xf32> to vector<1x1x8xf32>
    %412 = vector.broadcast %411 : vector<1x1x8xf32> to vector<16x16x8xf32>
    %413 = arith.mulf %408, %412 : vector<16x16x8xf32>
    %414 = arith.addf %407, %413 : vector<16x16x8xf32>
    %415 = vector.extract_strided_slice %365 {offsets = [9, 8, 0], sizes = [16, 16, 8], strides = [1, 1, 1]} : vector<32x32x8xf32> to vector<16x16x8xf32>
    %416 = vector.extract_strided_slice %366 {offsets = [2, 1, 0], sizes = [1, 1, 8], strides = [1, 1, 1]} : vector<3x3x8xf32> to vector<1x1x8xf32>
    %417 = vector.shape_cast %416 : vector<1x1x8xf32> to vector<8xf32>
    %418 = vector.shape_cast %417 : vector<8xf32> to vector<1x1x8xf32>
    %419 = vector.broadcast %418 : vector<1x1x8xf32> to vector<16x16x8xf32>
    %420 = arith.mulf %415, %419 : vector<16x16x8xf32>
    %421 = arith.addf %414, %420 : vector<16x16x8xf32>
    %422 = vector.extract_strided_slice %365 {offsets = [9, 9, 0], sizes = [16, 16, 8], strides = [1, 1, 1]} : vector<32x32x8xf32> to vector<16x16x8xf32>
    %423 = vector.extract_strided_slice %366 {offsets = [2, 2, 0], sizes = [1, 1, 8], strides = [1, 1, 1]} : vector<3x3x8xf32> to vector<1x1x8xf32>
    %424 = vector.shape_cast %423 : vector<1x1x8xf32> to vector<8xf32>
    %425 = vector.shape_cast %424 : vector<8xf32> to vector<1x1x8xf32>
    %426 = vector.broadcast %425 : vector<1x1x8xf32> to vector<16x16x8xf32>
    %427 = arith.mulf %422, %426 : vector<16x16x8xf32>
    %428 = arith.addf %421, %427 : vector<16x16x8xf32>
    %429 = vector.shape_cast %428 : vector<16x16x8xf32> to vector<256x8xf32>
    %c0_131 = arith.constant 0 : index
    %c0_132 = arith.constant 0 : index
    %430 = vector.load %arg30[%c0_131, %c0_132] : memref<1x8xf32, #tpu.memory_space<vmem>>, vector<1x8xf32>
    %431 = vector.broadcast %430 : vector<1x8xf32> to vector<256x8xf32>
    %432 = arith.mulf %429, %431 : vector<256x8xf32>
    %c0_133 = arith.constant 0 : index
    %c0_134 = arith.constant 0 : index
    %433 = vector.load %arg31[%c0_133, %c0_134] : memref<1x8xf32, #tpu.memory_space<vmem>>, vector<1x8xf32>
    %434 = vector.broadcast %433 : vector<1x8xf32> to vector<256x8xf32>
    %435 = arith.addf %432, %434 : vector<256x8xf32>
    %cst_135 = arith.constant dense<0.000000e+00> : vector<64x8xf32>
    %436 = tpu.matmul %3, %435, %cst_135 {dimension_numbers = #tpu.dot_dimension_numbers<[1], [0], [0], [1], [0, 0, 1, 1], [], []>} : vector<64x256xf32>, vector<256x8xf32>, vector<64x8xf32> -> vector<64x8xf32>
    %c0_136 = arith.constant 0 : index
    %c0_137 = arith.constant 0 : index
    %437 = vector.load %arg32[%c0_136, %c0_137] : memref<8x6xf32, #tpu.memory_space<vmem>>, vector<8x6xf32>
    %cst_138 = arith.constant dense<0.000000e+00> : vector<64x6xf32>
    %438 = tpu.matmul %436, %437, %cst_138 {dimension_numbers = #tpu.dot_dimension_numbers<[1], [0], [0], [1], [0, 0, 1, 1], [], []>} : vector<64x8xf32>, vector<8x6xf32>, vector<64x6xf32> -> vector<64x6xf32>
    %c0_139 = arith.constant 0 : index
    %c0_140 = arith.constant 0 : index
    %439 = vector.load %arg33[%c0_139, %c0_140] : memref<1x6xf32, #tpu.memory_space<vmem>>, vector<1x6xf32>
    %440 = vector.broadcast %439 : vector<1x6xf32> to vector<64x6xf32>
    %441 = arith.mulf %438, %440 : vector<64x6xf32>
    %c0_141 = arith.constant 0 : index
    %c0_142 = arith.constant 0 : index
    %442 = vector.load %arg34[%c0_141, %c0_142] : memref<1x6xf32, #tpu.memory_space<vmem>>, vector<1x6xf32>
    %443 = vector.broadcast %442 : vector<1x6xf32> to vector<64x6xf32>
    %444 = arith.addf %441, %443 : vector<64x6xf32>
    %c0_143 = arith.constant 0 : index
    %c0_144 = arith.constant 0 : index
    %445 = vector.load %arg35[%c0_143, %c0_144] : memref<8x6xf32, #tpu.memory_space<vmem>>, vector<8x6xf32>
    %cst_145 = arith.constant dense<0.000000e+00> : vector<64x6xf32>
    %446 = tpu.matmul %436, %445, %cst_145 {dimension_numbers = #tpu.dot_dimension_numbers<[1], [0], [0], [1], [0, 0, 1, 1], [], []>} : vector<64x8xf32>, vector<8x6xf32>, vector<64x6xf32> -> vector<64x6xf32>
    %c0_146 = arith.constant 0 : index
    %c0_147 = arith.constant 0 : index
    %447 = vector.load %arg36[%c0_146, %c0_147] : memref<1x6xf32, #tpu.memory_space<vmem>>, vector<1x6xf32>
    %448 = vector.broadcast %447 : vector<1x6xf32> to vector<64x6xf32>
    %449 = arith.mulf %446, %448 : vector<64x6xf32>
    %c0_148 = arith.constant 0 : index
    %c0_149 = arith.constant 0 : index
    %450 = vector.load %arg37[%c0_148, %c0_149] : memref<1x6xf32, #tpu.memory_space<vmem>>, vector<1x6xf32>
    %451 = vector.broadcast %450 : vector<1x6xf32> to vector<64x6xf32>
    %452 = arith.addf %449, %451 : vector<64x6xf32>
    %453 = arith.addf %285, %444 : vector<64x6xf32>
    %c0_150 = arith.constant 0 : index
    %c0_151 = arith.constant 0 : index
    %c0_152 = arith.constant 0 : index
    %454 = vector.load %arg38[%c0_150, %c0_151, %c0_152] : memref<1x64x6xf32, #tpu.memory_space<vmem>>, vector<1x64x6xf32>
    %455 = vector.shape_cast %454 : vector<1x64x6xf32> to vector<64x6xf32>
    %456 = vector.shape_cast %453 : vector<64x6xf32> to vector<1x64x6xf32>
    tpu.vector_store %arg38[%c0_150, %c0_151, %c0_152], %456 {strides = array<i32>} : memref<1x64x6xf32, #tpu.memory_space<vmem>>, vector<1x64x6xf32>,
    %457 = arith.addf %360, %452 : vector<64x6xf32>
    %c0_153 = arith.constant 0 : index
    %c0_154 = arith.constant 0 : index
    %c0_155 = arith.constant 0 : index
    %458 = vector.load %arg39[%c0_153, %c0_154, %c0_155] : memref<1x64x6xf32, #tpu.memory_space<vmem>>, vector<1x64x6xf32>
    %459 = vector.shape_cast %458 : vector<1x64x6xf32> to vector<64x6xf32>
    %460 = vector.shape_cast %457 : vector<64x6xf32> to vector<1x64x6xf32>
    tpu.vector_store %arg39[%c0_153, %c0_154, %c0_155], %460 {strides = array<i32>} : memref<1x64x6xf32, #tpu.memory_space<vmem>>, vector<1x64x6xf32>,
    return
  }
  func.func @transform_0(%arg0: i32) -> (i32, i32, i32, i32) {
    %c0_i32 = arith.constant 0 : i32
    %c0_i32_0 = arith.constant 0 : i32
    %c0_i32_1 = arith.constant 0 : i32
    %c0_i32_2 = arith.constant 0 : i32
    return %arg0, %c0_i32, %c0_i32_0, %c0_i32_1 : i32, i32, i32, i32
  }
  func.func @transform_1(%arg0: i32) -> (i32, i32) {
    %c0_i32 = arith.constant 0 : i32
    %c0_i32_0 = arith.constant 0 : i32
    %c0_i32_1 = arith.constant 0 : i32
    return %c0_i32, %c0_i32_0 : i32, i32
  }
  func.func @transform_2(%arg0: i32) -> (i32, i32) {
    %c0_i32 = arith.constant 0 : i32
    %c0_i32_0 = arith.constant 0 : i32
    %c0_i32_1 = arith.constant 0 : i32
    return %c0_i32, %c0_i32_0 : i32, i32
  }
  func.func @transform_3(%arg0: i32) -> (i32, i32) {
    %c0_i32 = arith.constant 0 : i32
    %c0_i32_0 = arith.constant 0 : i32
    %c0_i32_1 = arith.constant 0 : i32
    return %c0_i32, %c0_i32_0 : i32, i32
  }
  func.func @transform_4(%arg0: i32) -> (i32, i32) {
    %c0_i32 = arith.constant 0 : i32
    %c0_i32_0 = arith.constant 0 : i32
    %c0_i32_1 = arith.constant 0 : i32
    return %c0_i32, %c0_i32_0 : i32, i32
  }
  func.func @transform_5(%arg0: i32) -> (i32, i32, i32) {
    %c0_i32 = arith.constant 0 : i32
    %c0_i32_0 = arith.constant 0 : i32
    %c0_i32_1 = arith.constant 0 : i32
    %c0_i32_2 = arith.constant 0 : i32
    return %c0_i32, %c0_i32_0, %c0_i32_1 : i32, i32, i32
  }
  func.func @transform_6(%arg0: i32) -> (i32, i32) {
    %c0_i32 = arith.constant 0 : i32
    %c0_i32_0 = arith.constant 0 : i32
    %c0_i32_1 = arith.constant 0 : i32
    return %c0_i32, %c0_i32_0 : i32, i32
  }
  func.func @transform_7(%arg0: i32) -> (i32, i32) {
    %c0_i32 = arith.constant 0 : i32
    %c0_i32_0 = arith.constant 0 : i32
    %c0_i32_1 = arith.constant 0 : i32
    return %c0_i32, %c0_i32_0 : i32, i32
  }
  func.func @transform_8(%arg0: i32) -> (i32, i32, i32) {
    %c0_i32 = arith.constant 0 : i32
    %c0_i32_0 = arith.constant 0 : i32
    %c0_i32_1 = arith.constant 0 : i32
    %c0_i32_2 = arith.constant 0 : i32
    return %c0_i32, %c0_i32_0, %c0_i32_1 : i32, i32, i32
  }
  func.func @transform_9(%arg0: i32) -> (i32, i32) {
    %c0_i32 = arith.constant 0 : i32
    %c0_i32_0 = arith.constant 0 : i32
    %c0_i32_1 = arith.constant 0 : i32
    return %c0_i32, %c0_i32_0 : i32, i32
  }
  func.func @transform_10(%arg0: i32) -> (i32, i32) {
    %c0_i32 = arith.constant 0 : i32
    %c0_i32_0 = arith.constant 0 : i32
    %c0_i32_1 = arith.constant 0 : i32
    return %c0_i32, %c0_i32_0 : i32, i32
  }
  func.func @transform_11(%arg0: i32) -> (i32, i32, i32) {
    %c0_i32 = arith.constant 0 : i32
    %c0_i32_0 = arith.constant 0 : i32
    %c0_i32_1 = arith.constant 0 : i32
    %c0_i32_2 = arith.constant 0 : i32
    return %c0_i32, %c0_i32_0, %c0_i32_1 : i32, i32, i32
  }
  func.func @transform_12(%arg0: i32) -> (i32, i32) {
    %c0_i32 = arith.constant 0 : i32
    %c0_i32_0 = arith.constant 0 : i32
    %c0_i32_1 = arith.constant 0 : i32
    return %c0_i32, %c0_i32_0 : i32, i32
  }
  func.func @transform_13(%arg0: i32) -> (i32, i32) {
    %c0_i32 = arith.constant 0 : i32
    %c0_i32_0 = arith.constant 0 : i32
    %c0_i32_1 = arith.constant 0 : i32
    return %c0_i32, %c0_i32_0 : i32, i32
  }
  func.func @transform_14(%arg0: i32) -> (i32, i32) {
    %c0_i32 = arith.constant 0 : i32
    %c0_i32_0 = arith.constant 0 : i32
    %c0_i32_1 = arith.constant 0 : i32
    return %c0_i32, %c0_i32_0 : i32, i32
  }
  func.func @transform_15(%arg0: i32) -> (i32, i32) {
    %c0_i32 = arith.constant 0 : i32
    %c0_i32_0 = arith.constant 0 : i32
    %c0_i32_1 = arith.constant 0 : i32
    return %c0_i32, %c0_i32_0 : i32, i32
  }
  func.func @transform_16(%arg0: i32) -> (i32, i32) {
    %c0_i32 = arith.constant 0 : i32
    %c0_i32_0 = arith.constant 0 : i32
    %c0_i32_1 = arith.constant 0 : i32
    return %c0_i32, %c0_i32_0 : i32, i32
  }
  func.func @transform_17(%arg0: i32) -> (i32, i32) {
    %c0_i32 = arith.constant 0 : i32
    %c0_i32_0 = arith.constant 0 : i32
    %c0_i32_1 = arith.constant 0 : i32
    return %c0_i32, %c0_i32_0 : i32, i32
  }
  func.func @transform_18(%arg0: i32) -> (i32, i32) {
    %c0_i32 = arith.constant 0 : i32
    %c0_i32_0 = arith.constant 0 : i32
    %c0_i32_1 = arith.constant 0 : i32
    return %c0_i32, %c0_i32_0 : i32, i32
  }
  func.func @transform_19(%arg0: i32) -> (i32, i32) {
    %c0_i32 = arith.constant 0 : i32
    %c0_i32_0 = arith.constant 0 : i32
    %c0_i32_1 = arith.constant 0 : i32
    return %c0_i32, %c0_i32_0 : i32, i32
  }
  func.func @transform_20(%arg0: i32) -> (i32, i32) {
    %c0_i32 = arith.constant 0 : i32
    %c0_i32_0 = arith.constant 0 : i32
    %c0_i32_1 = arith.constant 0 : i32
    return %c0_i32, %c0_i32_0 : i32, i32
  }
  func.func @transform_21(%arg0: i32) -> (i32, i32) {
    %c0_i32 = arith.constant 0 : i32
    %c0_i32_0 = arith.constant 0 : i32
    %c0_i32_1 = arith.constant 0 : i32
    return %c0_i32, %c0_i32_0 : i32, i32
  }
  func.func @transform_22(%arg0: i32) -> (i32, i32) {
    %c0_i32 = arith.constant 0 : i32
    %c0_i32_0 = arith.constant 0 : i32
    %c0_i32_1 = arith.constant 0 : i32
    return %c0_i32, %c0_i32_0 : i32, i32
  }
  func.func @transform_23(%arg0: i32) -> (i32, i32) {
    %c0_i32 = arith.constant 0 : i32
    %c0_i32_0 = arith.constant 0 : i32
    %c0_i32_1 = arith.constant 0 : i32
    return %c0_i32, %c0_i32_0 : i32, i32
  }
  func.func @transform_24(%arg0: i32) -> (i32, i32) {
    %c0_i32 = arith.constant 0 : i32
    %c0_i32_0 = arith.constant 0 : i32
    %c0_i32_1 = arith.constant 0 : i32
    return %c0_i32, %c0_i32_0 : i32, i32
  }
  func.func @transform_25(%arg0: i32) -> (i32, i32, i32) {
    %c0_i32 = arith.constant 0 : i32
    %c0_i32_0 = arith.constant 0 : i32
    %c0_i32_1 = arith.constant 0 : i32
    %c0_i32_2 = arith.constant 0 : i32
    return %c0_i32, %c0_i32_0, %c0_i32_1 : i32, i32, i32
  }
  func.func @transform_26(%arg0: i32) -> (i32, i32) {
    %c0_i32 = arith.constant 0 : i32
    %c0_i32_0 = arith.constant 0 : i32
    %c0_i32_1 = arith.constant 0 : i32
    return %c0_i32, %c0_i32_0 : i32, i32
  }
  func.func @transform_27(%arg0: i32) -> (i32, i32) {
    %c0_i32 = arith.constant 0 : i32
    %c0_i32_0 = arith.constant 0 : i32
    %c0_i32_1 = arith.constant 0 : i32
    return %c0_i32, %c0_i32_0 : i32, i32
  }
  func.func @transform_28(%arg0: i32) -> (i32, i32, i32) {
    %c0_i32 = arith.constant 0 : i32
    %c0_i32_0 = arith.constant 0 : i32
    %c0_i32_1 = arith.constant 0 : i32
    %c0_i32_2 = arith.constant 0 : i32
    return %c0_i32, %c0_i32_0, %c0_i32_1 : i32, i32, i32
  }
  func.func @transform_29(%arg0: i32) -> (i32, i32) {
    %c0_i32 = arith.constant 0 : i32
    %c0_i32_0 = arith.constant 0 : i32
    %c0_i32_1 = arith.constant 0 : i32
    return %c0_i32, %c0_i32_0 : i32, i32
  }
  func.func @transform_30(%arg0: i32) -> (i32, i32) {
    %c0_i32 = arith.constant 0 : i32
    %c0_i32_0 = arith.constant 0 : i32
    %c0_i32_1 = arith.constant 0 : i32
    return %c0_i32, %c0_i32_0 : i32, i32
  }
  func.func @transform_31(%arg0: i32) -> (i32, i32) {
    %c0_i32 = arith.constant 0 : i32
    %c0_i32_0 = arith.constant 0 : i32
    %c0_i32_1 = arith.constant 0 : i32
    return %c0_i32, %c0_i32_0 : i32, i32
  }
  func.func @transform_32(%arg0: i32) -> (i32, i32) {
    %c0_i32 = arith.constant 0 : i32
    %c0_i32_0 = arith.constant 0 : i32
    %c0_i32_1 = arith.constant 0 : i32
    return %c0_i32, %c0_i32_0 : i32, i32
  }
  func.func @transform_33(%arg0: i32) -> (i32, i32) {
    %c0_i32 = arith.constant 0 : i32
    %c0_i32_0 = arith.constant 0 : i32
    %c0_i32_1 = arith.constant 0 : i32
    return %c0_i32, %c0_i32_0 : i32, i32
  }
  func.func @transform_34(%arg0: i32) -> (i32, i32) {
    %c0_i32 = arith.constant 0 : i32
    %c0_i32_0 = arith.constant 0 : i32
    %c0_i32_1 = arith.constant 0 : i32
    return %c0_i32, %c0_i32_0 : i32, i32
  }
  func.func @transform_35(%arg0: i32) -> (i32, i32) {
    %c0_i32 = arith.constant 0 : i32
    %c0_i32_0 = arith.constant 0 : i32
    %c0_i32_1 = arith.constant 0 : i32
    return %c0_i32, %c0_i32_0 : i32, i32
  }
  func.func @transform_36(%arg0: i32) -> (i32, i32) {
    %c0_i32 = arith.constant 0 : i32
    %c0_i32_0 = arith.constant 0 : i32
    %c0_i32_1 = arith.constant 0 : i32
    return %c0_i32, %c0_i32_0 : i32, i32
  }
  func.func @transform_37(%arg0: i32) -> (i32, i32, i32) {
    %c0_i32 = arith.constant 0 : i32
    %c0_i32_0 = arith.constant 0 : i32
    %c0_i32_1 = arith.constant 0 : i32
    return %arg0, %c0_i32, %c0_i32_0 : i32, i32, i32
  }
  func.func @transform_38(%arg0: i32) -> (i32, i32, i32) {
    %c0_i32 = arith.constant 0 : i32
    %c0_i32_0 = arith.constant 0 : i32
    %c0_i32_1 = arith.constant 0 : i32
    return %arg0, %c0_i32, %c0_i32_0 : i32, i32, i32
  }
}

</mosaic_0001>

<llo_original>
// kernel: tpu_custom_call.1
$region0: #{tpu_custom_call.1}
  #allocation0 [shape = 'u32[]', space=smem, size = 0x4, offset = 0x4, fixed_abs, tag = 'smem constant byte address 0x4 - core index']
  #allocation1 [shape = 'u32[72,128]{1,0:T(1,128)}', space=vmem, size = 0x9000, scoped, tag = 'internal scratch']
  #allocation2 [shape = 'f32[32,32,8]{2,1,0:T(8,128)}', space=vmem, size = 0x80000, scoped, tag = 'scratch operand']
  #allocation3 [shape = 'f32[32,32,8]{2,1,0:T(8,128)}', space=vmem, size = 0x80000, scoped, tag = 'scratch operand']
  #allocation4 [shape = 'f32[32,32,8]{2,1,0:T(8,128)}', space=vmem, size = 0x80000, scoped, tag = 'scratch operand']
  #allocation5 [shape = 'f32[32,32,8]{2,1,0:T(8,128)}', space=vmem, size = 0x80000, scoped, tag = 'scratch operand']
  #allocation6 [shape = 'f32[24,24,6]{2,1,0:T(8,128)}', space=vmem, size = 0x48000, scoped, tag = 'scratch operand']
  %s0 = inlined_call_operand.smem [shape: u32[39], index: -1, kind: input, shape index: {}]
  %s1 = sld [smem:[%s0]]
  %s2 = scalar_lea.smem %s0, 1
  %s3 = sld [smem:[%s2]]
  %s4 = scalar_lea.smem %s0, 2
  %s5 = sld [smem:[%s4]]
  %s6 = scalar_lea.smem %s0, 3
  %s7 = sld [smem:[%s6]]
  %s8 = scalar_lea.smem %s0, 4
  %s9 = sld [smem:[%s8]]
  %s10 = scalar_lea.smem %s0, 5
  %s11 = sld [smem:[%s10]]
  %s12 = scalar_lea.smem %s0, 6
  %s13 = sld [smem:[%s12]]
  %s14 = scalar_lea.smem %s0, 7
  %s15 = sld [smem:[%s14]]
  %s16 = scalar_lea.smem %s0, 8
  %s17 = sld [smem:[%s16]]
  %s18 = scalar_lea.smem %s0, 9
  %s19 = sld [smem:[%s18]]
  %s20 = scalar_lea.smem %s0, 10
  %s21 = sld [smem:[%s20]]
  %s22 = scalar_lea.smem %s0, 11
  %s23 = sld [smem:[%s22]]
  %s24 = scalar_lea.smem %s0, 12
  %s25 = sld [smem:[%s24]]
  %s26 = scalar_lea.smem %s0, 13
  %s27 = sld [smem:[%s26]]
  %s28 = scalar_lea.smem %s0, 14
  %s29 = sld [smem:[%s28]]
  %s30 = scalar_lea.smem %s0, 15
  %s31 = sld [smem:[%s30]]
  %s32 = scalar_lea.smem %s0, 16
  %s33 = sld [smem:[%s32]]
  %s34 = scalar_lea.smem %s0, 17
  %s35 = sld [smem:[%s34]]
  %s36 = scalar_lea.smem %s0, 18
  %s37 = sld [smem:[%s36]]
  %s38 = scalar_lea.smem %s0, 19
  %s39 = sld [smem:[%s38]]
  %s40 = scalar_lea.smem %s0, 20
  %s41 = sld [smem:[%s40]]
  %s42 = scalar_lea.smem %s0, 21
  %s43 = sld [smem:[%s42]]
  %s44 = scalar_lea.smem %s0, 22
  %s45 = sld [smem:[%s44]]
  %s46 = scalar_lea.smem %s0, 23
  %s47 = sld [smem:[%s46]]
  %s48 = scalar_lea.smem %s0, 24
  %s49 = sld [smem:[%s48]]
  %s50 = scalar_lea.smem %s0, 25
  %s51 = sld [smem:[%s50]]
  %s52 = scalar_lea.smem %s0, 26
  %s53 = sld [smem:[%s52]]
  %s54 = scalar_lea.smem %s0, 27
  %s55 = sld [smem:[%s54]]
  %s56 = scalar_lea.smem %s0, 28
  %s57 = sld [smem:[%s56]]
  %s58 = scalar_lea.smem %s0, 29
  %s59 = sld [smem:[%s58]]
  %s60 = scalar_lea.smem %s0, 30
  %s61 = sld [smem:[%s60]]
  %s62 = scalar_lea.smem %s0, 31
  %s63 = sld [smem:[%s62]]
  %s64 = scalar_lea.smem %s0, 32
  %s65 = sld [smem:[%s64]]
  %s66 = scalar_lea.smem %s0, 33
  %s67 = sld [smem:[%s66]]
  %s68 = scalar_lea.smem %s0, 34
  %s69 = sld [smem:[%s68]]
  %s70 = scalar_lea.smem %s0, 35
  %s71 = sld [smem:[%s70]]
  %s72 = scalar_lea.smem %s0, 36
  %s73 = sld [smem:[%s72]]
  %s74 = scalar_lea.smem %s0, 37
  %s75 = sld [smem:[%s74]]
  %s76 = scalar_lea.smem %s0, 38
  %s77 = sld [smem:[%s76]]
  %78 = xla_tuple %s75, %s77
  %s79 = sld [smem:[#allocation0]]
  $region189: #{tpu_custom_call.1} parent=0
    _
  %s81 = ssub.s32 1, %s79
  %s82 = scalar_select 0, %s81, %s79
  loop: start=0, step=1, limit=4
  $region2: #{tpu_custom_call.1} parent=0 // loop_pre_header
    _
  $region3: #{tpu_custom_call.1} parent=0 // loop_header
    %s84 = sphi 0, %s88
    %p85 = scmp.ge.s32.totalorder %s84, 4
    %s94 = sphi 0, %s96
    %s97 = sphi 0, %s94
    %s98 = sphi 0, %s97
    %s114 = sphi 0, %s98
    %s118 = sphi 0, %s118
    %s120 = sphi 0, %s118
    %s121 = sphi 0, %s120
    %s135 = sphi 0, %s121
    %s139 = sphi 0, %s139
    %s141 = sphi 0, %s139
    %s142 = sphi 0, %s141
    %s156 = sphi 0, %s142
    %s160 = sphi 0, %s160
    %s162 = sphi 0, %s160
    %s163 = sphi 0, %s162
    %s177 = sphi 0, %s163
    %s181 = sphi 0, %s181
    %s183 = sphi 0, %s181
    %s184 = sphi 0, %s183
    %s198 = sphi 0, %s184
    %s202 = sphi 0, %s202
    %s204 = sphi 0, %s202
    %s205 = sphi 0, %s204
    %s219 = sphi 0, %s205
    %s223 = sphi 0, %s223
    %s225 = sphi 0, %s223
    %s226 = sphi 0, %s225
    %s240 = sphi 0, %s226
    %s244 = sphi 0, %s244
    %s246 = sphi 0, %s244
    %s247 = sphi 0, %s246
    %s261 = sphi 0, %s247
    %s265 = sphi 0, %s265
    %s267 = sphi 0, %s265
    %s268 = sphi 0, %s267
    %s282 = sphi 0, %s268
    %s286 = sphi 0, %s286
    %s288 = sphi 0, %s286
    %s289 = sphi 0, %s288
    %s303 = sphi 0, %s289
    %s307 = sphi 0, %s307
    %s309 = sphi 0, %s307
    %s310 = sphi 0, %s309
    %s324 = sphi 0, %s310
    %s328 = sphi 0, %s328
    %s330 = sphi 0, %s328
    %s331 = sphi 0, %s330
    %s345 = sphi 0, %s331
    %s349 = sphi 0, %s349
    %s351 = sphi 0, %s349
    %s352 = sphi 0, %s351
    %s366 = sphi 0, %s352
    %s370 = sphi 0, %s370
    %s372 = sphi 0, %s370
    %s373 = sphi 0, %s372
    %s387 = sphi 0, %s373
    %s391 = sphi 0, %s391
    %s393 = sphi 0, %s391
    %s394 = sphi 0, %s393
    %s408 = sphi 0, %s394
    %s412 = sphi 0, %s412
    %s414 = sphi 0, %s412
    %s415 = sphi 0, %s414
    %s429 = sphi 0, %s415
    %s433 = sphi 0, %s433
    %s435 = sphi 0, %s433
    %s436 = sphi 0, %s435
    %s450 = sphi 0, %s436
    %s454 = sphi 0, %s454
    %s456 = sphi 0, %s454
    %s457 = sphi 0, %s456
    %s471 = sphi 0, %s457
    %s475 = sphi 0, %s475
    %s477 = sphi 0, %s475
    %s478 = sphi 0, %s477
    %s492 = sphi 0, %s478
    %s496 = sphi 0, %s496
    %s498 = sphi 0, %s496
    %s499 = sphi 0, %s498
    %s513 = sphi 0, %s499
    %s517 = sphi 0, %s517
    %s519 = sphi 0, %s517
    %s520 = sphi 0, %s519
    %s534 = sphi 0, %s520
    %s538 = sphi 0, %s538
    %s540 = sphi 0, %s538
    %s541 = sphi 0, %s540
    %s555 = sphi 0, %s541
    %s559 = sphi 0, %s559
    %s561 = sphi 0, %s559
    %s562 = sphi 0, %s561
    %s576 = sphi 0, %s562
    %s580 = sphi 0, %s580
    %s582 = sphi 0, %s580
    %s583 = sphi 0, %s582
    %s597 = sphi 0, %s583
    %s601 = sphi 0, %s601
    %s603 = sphi 0, %s601
    %s604 = sphi 0, %s603
    %s618 = sphi 0, %s604
    %s622 = sphi 0, %s622
    %s624 = sphi 0, %s622
    %s625 = sphi 0, %s624
    %s639 = sphi 0, %s625
    %s643 = sphi 0, %s643
    %s645 = sphi 0, %s643
    %s646 = sphi 0, %s645
    %s660 = sphi 0, %s646
    %s664 = sphi 0, %s664
    %s666 = sphi 0, %s664
    %s667 = sphi 0, %s666
    %s681 = sphi 0, %s667
    %s685 = sphi 0, %s685
    %s687 = sphi 0, %s685
    %s688 = sphi 0, %s687
    %s702 = sphi 0, %s688
    %s706 = sphi 0, %s706
    %s708 = sphi 0, %s706
    %s709 = sphi 0, %s708
    %s723 = sphi 0, %s709
    %s727 = sphi 0, %s727
    %s729 = sphi 0, %s727
    %s730 = sphi 0, %s729
    %s744 = sphi 0, %s730
    %s748 = sphi 0, %s748
    %s750 = sphi 0, %s748
    %s751 = sphi 0, %s750
    %s765 = sphi 0, %s751
    %s769 = sphi 0, %s769
    %s771 = sphi 0, %s769
    %s772 = sphi 0, %s771
    %s786 = sphi 0, %s772
    %s790 = sphi 0, %s790
    %s792 = sphi 0, %s790
    %s793 = sphi 0, %s792
    %s807 = sphi 0, %s793
    %s811 = sphi 0, %s811
    %s813 = sphi 0, %s811
    %s814 = sphi 0, %s813
    %s828 = sphi 0, %s814
    %s832 = sphi 0, %s832
    %s834 = sphi 0, %s832
    %s835 = sphi 0, %s834
    %s849 = sphi 0, %s835
    %s853 = sphi 0, %s853
    %s855 = sphi 0, %s853
    %s856 = sphi 0, %s855
    %s870 = sphi 0, %s856
    %s876 = sphi 0, %s878
    %s879 = sphi 0, %s876
    %s880 = sphi 0, %s879
    %s896 = sphi 0, %s880
    %s902 = sphi 0, %s904
    %s905 = sphi 0, %s902
    %s906 = sphi 0, %s905
    %s922 = sphi 0, %s906
  $region4: #{tpu_custom_call.1} parent=0 // loop_header_branch
    %87 = sbr.rel (%p85) target = $region8
  $region5: #{tpu_custom_call.1} parent=0 // loop_body
    %s89 = ssub.s32 %s84, 1
    %s90 = ssub.s32 %s84, 2
    %s91 = sadd.s32 %s84, 1
    %s92 = ssub.s32 %s84, %s91
    %p93 = scmp.eq.s32.totalorder %s92, 0
    %s95 = sadd.s32 %s94, 1
    %s96 = scalar_select %p93, %s94, %s95
    %p99 = pneg %p93
    %p100 = scmp.eq.s32.totalorder %s84, 1
    %p101 = por %p99, %p100
    %p102 = scmp.ne.s32.totalorder %s94, %s97
    %p103 = scmp.eq.s32.totalorder %s84, 0
    %p104 = por %p102, %p103
    %p105 = scmp.ne.s32.totalorder %s94, %s97
    %p106 = scmp.eq.s32.totalorder %s89, 1
    %p107 = por %p105, %p106
    %p108 = scmp.ne.s32.totalorder %s97, %s98
    %p109 = scmp.eq.s32.totalorder %s89, 0
    %p110 = por %p108, %p109
    %p111 = scmp.ne.s32.totalorder %s97, %s98
    %p112 = scmp.eq.s32.totalorder %s90, 1
    %p113 = por %p111, %p112
    %p115 = scmp.ne.s32.totalorder %s98, %s114
    %p116 = scmp.eq.s32.totalorder %s90, 0
    %p117 = por %p115, %p116
    %s119 = sadd.s32 %s118, 1
    %p122 = scmp.eq.s32.totalorder %s84, 1
    %p123 = scmp.ne.s32.totalorder %s118, %s120
    %p124 = scmp.eq.s32.totalorder %s84, 0
    %p125 = por %p123, %p124
    %p126 = scmp.ne.s32.totalorder %s118, %s120
    %p127 = scmp.eq.s32.totalorder %s89, 1
    %p128 = por %p126, %p127
    %p129 = scmp.ne.s32.totalorder %s120, %s121
    %p130 = scmp.eq.s32.totalorder %s89, 0
    %p131 = por %p129, %p130
    %p132 = scmp.ne.s32.totalorder %s120, %s121
    %p133 = scmp.eq.s32.totalorder %s90, 1
    %p134 = por %p132, %p133
    %p136 = scmp.ne.s32.totalorder %s121, %s135
    %p137 = scmp.eq.s32.totalorder %s90, 0
    %p138 = por %p136, %p137
    %s140 = sadd.s32 %s139, 1
    %p143 = scmp.eq.s32.totalorder %s84, 1
    %p144 = scmp.ne.s32.totalorder %s139, %s141
    %p145 = scmp.eq.s32.totalorder %s84, 0
    %p146 = por %p144, %p145
    %p147 = scmp.ne.s32.totalorder %s139, %s141
    %p148 = scmp.eq.s32.totalorder %s89, 1
    %p149 = por %p147, %p148
    %p150 = scmp.ne.s32.totalorder %s141, %s142
    %p151 = scmp.eq.s32.totalorder %s89, 0
    %p152 = por %p150, %p151
    %p153 = scmp.ne.s32.totalorder %s141, %s142
    %p154 = scmp.eq.s32.totalorder %s90, 1
    %p155 = por %p153, %p154
    %p157 = scmp.ne.s32.totalorder %s142, %s156
    %p158 = scmp.eq.s32.totalorder %s90, 0
    %p159 = por %p157, %p158
    %s161 = sadd.s32 %s160, 1
    %p164 = scmp.eq.s32.totalorder %s84, 1
    %p165 = scmp.ne.s32.totalorder %s160, %s162
    %p166 = scmp.eq.s32.totalorder %s84, 0
    %p167 = por %p165, %p166
    %p168 = scmp.ne.s32.totalorder %s160, %s162
    %p169 = scmp.eq.s32.totalorder %s89, 1
    %p170 = por %p168, %p169
    %p171 = scmp.ne.s32.totalorder %s162, %s163
    %p172 = scmp.eq.s32.totalorder %s89, 0
    %p173 = por %p171, %p172
    %p174 = scmp.ne.s32.totalorder %s162, %s163
    %p175 = scmp.eq.s32.totalorder %s90, 1
    %p176 = por %p174, %p175
    %p178 = scmp.ne.s32.totalorder %s163, %s177
    %p179 = scmp.eq.s32.totalorder %s90, 0
    %p180 = por %p178, %p179
    %s182 = sadd.s32 %s181, 1
    %p185 = scmp.eq.s32.totalorder %s84, 1
    %p186 = scmp.ne.s32.totalorder %s181, %s183
    %p187 = scmp.eq.s32.totalorder %s84, 0
    %p188 = por %p186, %p187
    %p189 = scmp.ne.s32.totalorder %s181, %s183
    %p190 = scmp.eq.s32.totalorder %s89, 1
    %p191 = por %p189, %p190
    %p192 = scmp.ne.s32.totalorder %s183, %s184
    %p193 = scmp.eq.s32.totalorder %s89, 0
    %p194 = por %p192, %p193
    %p195 = scmp.ne.s32.totalorder %s183, %s184
    %p196 = scmp.eq.s32.totalorder %s90, 1
    %p197 = por %p195, %p196
    %p199 = scmp.ne.s32.totalorder %s184, %s198
    %p200 = scmp.eq.s32.totalorder %s90, 0
    %p201 = por %p199, %p200
    %s203 = sadd.s32 %s202, 1
    %p206 = scmp.eq.s32.totalorder %s84, 1
    %p207 = scmp.ne.s32.totalorder %s202, %s204
    %p208 = scmp.eq.s32.totalorder %s84, 0
    %p209 = por %p207, %p208
    %p210 = scmp.ne.s32.totalorder %s202, %s204
    %p211 = scmp.eq.s32.totalorder %s89, 1
    %p212 = por %p210, %p211
    %p213 = scmp.ne.s32.totalorder %s204, %s205
    %p214 = scmp.eq.s32.totalorder %s89, 0
    %p215 = por %p213, %p214
    %p216 = scmp.ne.s32.totalorder %s204, %s205
    %p217 = scmp.eq.s32.totalorder %s90, 1
    %p218 = por %p216, %p217
    %p220 = scmp.ne.s32.totalorder %s205, %s219
    %p221 = scmp.eq.s32.totalorder %s90, 0
    %p222 = por %p220, %p221
    %s224 = sadd.s32 %s223, 1
    %p227 = scmp.eq.s32.totalorder %s84, 1
    %p228 = scmp.ne.s32.totalorder %s223, %s225
    %p229 = scmp.eq.s32.totalorder %s84, 0
    %p230 = por %p228, %p229
    %p231 = scmp.ne.s32.totalorder %s223, %s225
    %p232 = scmp.eq.s32.totalorder %s89, 1
    %p233 = por %p231, %p232
    %p234 = scmp.ne.s32.totalorder %s225, %s226
    %p235 = scmp.eq.s32.totalorder %s89, 0
    %p236 = por %p234, %p235
    %p237 = scmp.ne.s32.totalorder %s225, %s226
    %p238 = scmp.eq.s32.totalorder %s90, 1
    %p239 = por %p237, %p238
    %p241 = scmp.ne.s32.totalorder %s226, %s240
    %p242 = scmp.eq.s32.totalorder %s90, 0
    %p243 = por %p241, %p242
    %s245 = sadd.s32 %s244, 1
    %p248 = scmp.eq.s32.totalorder %s84, 1
    %p249 = scmp.ne.s32.totalorder %s244, %s246
    %p250 = scmp.eq.s32.totalorder %s84, 0
    %p251 = por %p249, %p250
    %p252 = scmp.ne.s32.totalorder %s244, %s246
    %p253 = scmp.eq.s32.totalorder %s89, 1
    %p254 = por %p252, %p253
    %p255 = scmp.ne.s32.totalorder %s246, %s247
    %p256 = scmp.eq.s32.totalorder %s89, 0
    %p257 = por %p255, %p256
    %p258 = scmp.ne.s32.totalorder %s246, %s247
    %p259 = scmp.eq.s32.totalorder %s90, 1
    %p260 = por %p258, %p259
    %p262 = scmp.ne.s32.totalorder %s247, %s261
    %p263 = scmp.eq.s32.totalorder %s90, 0
    %p264 = por %p262, %p263
    %s266 = sadd.s32 %s265, 1
    %p269 = scmp.eq.s32.totalorder %s84, 1
    %p270 = scmp.ne.s32.totalorder %s265, %s267
    %p271 = scmp.eq.s32.totalorder %s84, 0
    %p272 = por %p270, %p271
    %p273 = scmp.ne.s32.totalorder %s265, %s267
    %p274 = scmp.eq.s32.totalorder %s89, 1
    %p275 = por %p273, %p274
    %p276 = scmp.ne.s32.totalorder %s267, %s268
    %p277 = scmp.eq.s32.totalorder %s89, 0
    %p278 = por %p276, %p277
    %p279 = scmp.ne.s32.totalorder %s267, %s268
    %p280 = scmp.eq.s32.totalorder %s90, 1
    %p281 = por %p279, %p280
    %p283 = scmp.ne.s32.totalorder %s268, %s282
    %p284 = scmp.eq.s32.totalorder %s90, 0
    %p285 = por %p283, %p284
    %s287 = sadd.s32 %s286, 1
    %p290 = scmp.eq.s32.totalorder %s84, 1
    %p291 = scmp.ne.s32.totalorder %s286, %s288
    %p292 = scmp.eq.s32.totalorder %s84, 0
    %p293 = por %p291, %p292
    %p294 = scmp.ne.s32.totalorder %s286, %s288
    %p295 = scmp.eq.s32.totalorder %s89, 1
    %p296 = por %p294, %p295
    %p297 = scmp.ne.s32.totalorder %s288, %s289
    %p298 = scmp.eq.s32.totalorder %s89, 0
    %p299 = por %p297, %p298
    %p300 = scmp.ne.s32.totalorder %s288, %s289
    %p301 = scmp.eq.s32.totalorder %s90, 1
    %p302 = por %p300, %p301
    %p304 = scmp.ne.s32.totalorder %s289, %s303
    %p305 = scmp.eq.s32.totalorder %s90, 0
    %p306 = por %p304, %p305
    %s308 = sadd.s32 %s307, 1
    %p311 = scmp.eq.s32.totalorder %s84, 1
    %p312 = scmp.ne.s32.totalorder %s307, %s309
    %p313 = scmp.eq.s32.totalorder %s84, 0
    %p314 = por %p312, %p313
    %p315 = scmp.ne.s32.totalorder %s307, %s309
    %p316 = scmp.eq.s32.totalorder %s89, 1
    %p317 = por %p315, %p316
    %p318 = scmp.ne.s32.totalorder %s309, %s310
    %p319 = scmp.eq.s32.totalorder %s89, 0
    %p320 = por %p318, %p319
    %p321 = scmp.ne.s32.totalorder %s309, %s310
    %p322 = scmp.eq.s32.totalorder %s90, 1
    %p323 = por %p321, %p322
    %p325 = scmp.ne.s32.totalorder %s310, %s324
    %p326 = scmp.eq.s32.totalorder %s90, 0
    %p327 = por %p325, %p326
    %s329 = sadd.s32 %s328, 1
    %p332 = scmp.eq.s32.totalorder %s84, 1
    %p333 = scmp.ne.s32.totalorder %s328, %s330
    %p334 = scmp.eq.s32.totalorder %s84, 0
    %p335 = por %p333, %p334
    %p336 = scmp.ne.s32.totalorder %s328, %s330
    %p337 = scmp.eq.s32.totalorder %s89, 1
    %p338 = por %p336, %p337
    %p339 = scmp.ne.s32.totalorder %s330, %s331
    %p340 = scmp.eq.s32.totalorder %s89, 0
    %p341 = por %p339, %p340
    %p342 = scmp.ne.s32.totalorder %s330, %s331
    %p343 = scmp.eq.s32.totalorder %s90, 1
    %p344 = por %p342, %p343
    %p346 = scmp.ne.s32.totalorder %s331, %s345
    %p347 = scmp.eq.s32.totalorder %s90, 0
    %p348 = por %p346, %p347
    %s350 = sadd.s32 %s349, 1
    %p353 = scmp.eq.s32.totalorder %s84, 1
    %p354 = scmp.ne.s32.totalorder %s349, %s351
    %p355 = scmp.eq.s32.totalorder %s84, 0
    %p356 = por %p354, %p355
    %p357 = scmp.ne.s32.totalorder %s349, %s351
    %p358 = scmp.eq.s32.totalorder %s89, 1
    %p359 = por %p357, %p358
    %p360 = scmp.ne.s32.totalorder %s351, %s352
    %p361 = scmp.eq.s32.totalorder %s89, 0
    %p362 = por %p360, %p361
    %p363 = scmp.ne.s32.totalorder %s351, %s352
    %p364 = scmp.eq.s32.totalorder %s90, 1
    %p365 = por %p363, %p364
    %p367 = scmp.ne.s32.totalorder %s352, %s366
    %p368 = scmp.eq.s32.totalorder %s90, 0
    %p369 = por %p367, %p368
    %s371 = sadd.s32 %s370, 1
    %p374 = scmp.eq.s32.totalorder %s84, 1
    %p375 = scmp.ne.s32.totalorder %s370, %s372
    %p376 = scmp.eq.s32.totalorder %s84, 0
    %p377 = por %p375, %p376
    %p378 = scmp.ne.s32.totalorder %s370, %s372
    %p379 = scmp.eq.s32.totalorder %s89, 1
    %p380 = por %p378, %p379
    %p381 = scmp.ne.s32.totalorder %s372, %s373
    %p382 = scmp.eq.s32.totalorder %s89, 0
    %p383 = por %p381, %p382
    %p384 = scmp.ne.s32.totalorder %s372, %s373
    %p385 = scmp.eq.s32.totalorder %s90, 1
    %p386 = por %p384, %p385
    %p388 = scmp.ne.s32.totalorder %s373, %s387
    %p389 = scmp.eq.s32.totalorder %s90, 0
    %p390 = por %p388, %p389
    %s392 = sadd.s32 %s391, 1
    %p395 = scmp.eq.s32.totalorder %s84, 1
    %p396 = scmp.ne.s32.totalorder %s391, %s393
    %p397 = scmp.eq.s32.totalorder %s84, 0
    %p398 = por %p396, %p397
    %p399 = scmp.ne.s32.totalorder %s391, %s393
    %p400 = scmp.eq.s32.totalorder %s89, 1
    %p401 = por %p399, %p400
    %p402 = scmp.ne.s32.totalorder %s393, %s394
    %p403 = scmp.eq.s32.totalorder %s89, 0
    %p404 = por %p402, %p403
    %p405 = scmp.ne.s32.totalorder %s393, %s394
    %p406 = scmp.eq.s32.totalorder %s90, 1
    %p407 = por %p405, %p406
    %p409 = scmp.ne.s32.totalorder %s394, %s408
    %p410 = scmp.eq.s32.totalorder %s90, 0
    %p411 = por %p409, %p410
    %s413 = sadd.s32 %s412, 1
    %p416 = scmp.eq.s32.totalorder %s84, 1
    %p417 = scmp.ne.s32.totalorder %s412, %s414
    %p418 = scmp.eq.s32.totalorder %s84, 0
    %p419 = por %p417, %p418
    %p420 = scmp.ne.s32.totalorder %s412, %s414
    %p421 = scmp.eq.s32.totalorder %s89, 1
    %p422 = por %p420, %p421
    %p423 = scmp.ne.s32.totalorder %s414, %s415
    %p424 = scmp.eq.s32.totalorder %s89, 0
    %p425 = por %p423, %p424
    %p426 = scmp.ne.s32.totalorder %s414, %s415
    %p427 = scmp.eq.s32.totalorder %s90, 1
    %p428 = por %p426, %p427
    %p430 = scmp.ne.s32.totalorder %s415, %s429
    %p431 = scmp.eq.s32.totalorder %s90, 0
    %p432 = por %p430, %p431
    %s434 = sadd.s32 %s433, 1
    %p437 = scmp.eq.s32.totalorder %s84, 1
    %p438 = scmp.ne.s32.totalorder %s433, %s435
    %p439 = scmp.eq.s32.totalorder %s84, 0
    %p440 = por %p438, %p439
    %p441 = scmp.ne.s32.totalorder %s433, %s435
    %p442 = scmp.eq.s32.totalorder %s89, 1
    %p443 = por %p441, %p442
    %p444 = scmp.ne.s32.totalorder %s435, %s436
    %p445 = scmp.eq.s32.totalorder %s89, 0
    %p446 = por %p444, %p445
    %p447 = scmp.ne.s32.totalorder %s435, %s436
    %p448 = scmp.eq.s32.totalorder %s90, 1
    %p449 = por %p447, %p448
    %p451 = scmp.ne.s32.totalorder %s436, %s450
    %p452 = scmp.eq.s32.totalorder %s90, 0
    %p453 = por %p451, %p452
    %s455 = sadd.s32 %s454, 1
    %p458 = scmp.eq.s32.totalorder %s84, 1
    %p459 = scmp.ne.s32.totalorder %s454, %s456
    %p460 = scmp.eq.s32.totalorder %s84, 0
    %p461 = por %p459, %p460
    %p462 = scmp.ne.s32.totalorder %s454, %s456
    %p463 = scmp.eq.s32.totalorder %s89, 1
    %p464 = por %p462, %p463
    %p465 = scmp.ne.s32.totalorder %s456, %s457
    %p466 = scmp.eq.s32.totalorder %s89, 0
    %p467 = por %p465, %p466
    %p468 = scmp.ne.s32.totalorder %s456, %s457
    %p469 = scmp.eq.s32.totalorder %s90, 1
    %p470 = por %p468, %p469
    %p472 = scmp.ne.s32.totalorder %s457, %s471
    %p473 = scmp.eq.s32.totalorder %s90, 0
    %p474 = por %p472, %p473
    %s476 = sadd.s32 %s475, 1
    %p479 = scmp.eq.s32.totalorder %s84, 1
    %p480 = scmp.ne.s32.totalorder %s475, %s477
    %p481 = scmp.eq.s32.totalorder %s84, 0
    %p482 = por %p480, %p481
    %p483 = scmp.ne.s32.totalorder %s475, %s477
    %p484 = scmp.eq.s32.totalorder %s89, 1
    %p485 = por %p483, %p484
    %p486 = scmp.ne.s32.totalorder %s477, %s478
    %p487 = scmp.eq.s32.totalorder %s89, 0
    %p488 = por %p486, %p487
    %p489 = scmp.ne.s32.totalorder %s477, %s478
    %p490 = scmp.eq.s32.totalorder %s90, 1
    %p491 = por %p489, %p490
    %p493 = scmp.ne.s32.totalorder %s478, %s492
    %p494 = scmp.eq.s32.totalorder %s90, 0
    %p495 = por %p493, %p494
    %s497 = sadd.s32 %s496, 1
    %p500 = scmp.eq.s32.totalorder %s84, 1
    %p501 = scmp.ne.s32.totalorder %s496, %s498
    %p502 = scmp.eq.s32.totalorder %s84, 0
    %p503 = por %p501, %p502
    %p504 = scmp.ne.s32.totalorder %s496, %s498
    %p505 = scmp.eq.s32.totalorder %s89, 1
    %p506 = por %p504, %p505
    %p507 = scmp.ne.s32.totalorder %s498, %s499
    %p508 = scmp.eq.s32.totalorder %s89, 0
    %p509 = por %p507, %p508
    %p510 = scmp.ne.s32.totalorder %s498, %s499
    %p511 = scmp.eq.s32.totalorder %s90, 1
    %p512 = por %p510, %p511
    %p514 = scmp.ne.s32.totalorder %s499, %s513
    %p515 = scmp.eq.s32.totalorder %s90, 0
    %p516 = por %p514, %p515
    %s518 = sadd.s32 %s517, 1
    %p521 = scmp.eq.s32.totalorder %s84, 1
    %p522 = scmp.ne.s32.totalorder %s517, %s519
    %p523 = scmp.eq.s32.totalorder %s84, 0
    %p524 = por %p522, %p523
    %p525 = scmp.ne.s32.totalorder %s517, %s519
    %p526 = scmp.eq.s32.totalorder %s89, 1
    %p527 = por %p525, %p526
    %p528 = scmp.ne.s32.totalorder %s519, %s520
    %p529 = scmp.eq.s32.totalorder %s89, 0
    %p530 = por %p528, %p529
    %p531 = scmp.ne.s32.totalorder %s519, %s520
    %p532 = scmp.eq.s32.totalorder %s90, 1
    %p533 = por %p531, %p532
    %p535 = scmp.ne.s32.totalorder %s520, %s534
    %p536 = scmp.eq.s32.totalorder %s90, 0
    %p537 = por %p535, %p536
    %s539 = sadd.s32 %s538, 1
    %p542 = scmp.eq.s32.totalorder %s84, 1
    %p543 = scmp.ne.s32.totalorder %s538, %s540
    %p544 = scmp.eq.s32.totalorder %s84, 0
    %p545 = por %p543, %p544
    %p546 = scmp.ne.s32.totalorder %s538, %s540
    %p547 = scmp.eq.s32.totalorder %s89, 1
    %p548 = por %p546, %p547
    %p549 = scmp.ne.s32.totalorder %s540, %s541
    %p550 = scmp.eq.s32.totalorder %s89, 0
    %p551 = por %p549, %p550
    %p552 = scmp.ne.s32.totalorder %s540, %s541
    %p553 = scmp.eq.s32.totalorder %s90, 1
    %p554 = por %p552, %p553
    %p556 = scmp.ne.s32.totalorder %s541, %s555
    %p557 = scmp.eq.s32.totalorder %s90, 0
    %p558 = por %p556, %p557
    %s560 = sadd.s32 %s559, 1
    %p563 = scmp.eq.s32.totalorder %s84, 1
    %p564 = scmp.ne.s32.totalorder %s559, %s561
    %p565 = scmp.eq.s32.totalorder %s84, 0
    %p566 = por %p564, %p565
    %p567 = scmp.ne.s32.totalorder %s559, %s561
    %p568 = scmp.eq.s32.totalorder %s89, 1
    %p569 = por %p567, %p568
    %p570 = scmp.ne.s32.totalorder %s561, %s562
    %p571 = scmp.eq.s32.totalorder %s89, 0
    %p572 = por %p570, %p571
    %p573 = scmp.ne.s32.totalorder %s561, %s562
    %p574 = scmp.eq.s32.totalorder %s90, 1
    %p575 = por %p573, %p574
    %p577 = scmp.ne.s32.totalorder %s562, %s576
    %p578 = scmp.eq.s32.totalorder %s90, 0
    %p579 = por %p577, %p578
    %s581 = sadd.s32 %s580, 1
    %p584 = scmp.eq.s32.totalorder %s84, 1
    %p585 = scmp.ne.s32.totalorder %s580, %s582
    %p586 = scmp.eq.s32.totalorder %s84, 0
    %p587 = por %p585, %p586
    %p588 = scmp.ne.s32.totalorder %s580, %s582
    %p589 = scmp.eq.s32.totalorder %s89, 1
    %p590 = por %p588, %p589
    %p591 = scmp.ne.s32.totalorder %s582, %s583
    %p592 = scmp.eq.s32.totalorder %s89, 0
    %p593 = por %p591, %p592
    %p594 = scmp.ne.s32.totalorder %s582, %s583
    %p595 = scmp.eq.s32.totalorder %s90, 1
    %p596 = por %p594, %p595
    %p598 = scmp.ne.s32.totalorder %s583, %s597
    %p599 = scmp.eq.s32.totalorder %s90, 0
    %p600 = por %p598, %p599
    %s602 = sadd.s32 %s601, 1
    %p605 = scmp.eq.s32.totalorder %s84, 1
    %p606 = scmp.ne.s32.totalorder %s601, %s603
    %p607 = scmp.eq.s32.totalorder %s84, 0
    %p608 = por %p606, %p607
    %p609 = scmp.ne.s32.totalorder %s601, %s603
    %p610 = scmp.eq.s32.totalorder %s89, 1
    %p611 = por %p609, %p610
    %p612 = scmp.ne.s32.totalorder %s603, %s604
    %p613 = scmp.eq.s32.totalorder %s89, 0
    %p614 = por %p612, %p613
    %p615 = scmp.ne.s32.totalorder %s603, %s604
    %p616 = scmp.eq.s32.totalorder %s90, 1
    %p617 = por %p615, %p616
    %p619 = scmp.ne.s32.totalorder %s604, %s618
    %p620 = scmp.eq.s32.totalorder %s90, 0
    %p621 = por %p619, %p620
    %s623 = sadd.s32 %s622, 1
    %p626 = scmp.eq.s32.totalorder %s84, 1
    %p627 = scmp.ne.s32.totalorder %s622, %s624
    %p628 = scmp.eq.s32.totalorder %s84, 0
    %p629 = por %p627, %p628
    %p630 = scmp.ne.s32.totalorder %s622, %s624
    %p631 = scmp.eq.s32.totalorder %s89, 1
    %p632 = por %p630, %p631
    %p633 = scmp.ne.s32.totalorder %s624, %s625
    %p634 = scmp.eq.s32.totalorder %s89, 0
    %p635 = por %p633, %p634
    %p636 = scmp.ne.s32.totalorder %s624, %s625
    %p637 = scmp.eq.s32.totalorder %s90, 1
    %p638 = por %p636, %p637
    %p640 = scmp.ne.s32.totalorder %s625, %s639
    %p641 = scmp.eq.s32.totalorder %s90, 0
    %p642 = por %p640, %p641
    %s644 = sadd.s32 %s643, 1
    %p647 = scmp.eq.s32.totalorder %s84, 1
    %p648 = scmp.ne.s32.totalorder %s643, %s645
    %p649 = scmp.eq.s32.totalorder %s84, 0
    %p650 = por %p648, %p649
    %p651 = scmp.ne.s32.totalorder %s643, %s645
    %p652 = scmp.eq.s32.totalorder %s89, 1
    %p653 = por %p651, %p652
    %p654 = scmp.ne.s32.totalorder %s645, %s646
    %p655 = scmp.eq.s32.totalorder %s89, 0
    %p656 = por %p654, %p655
    %p657 = scmp.ne.s32.totalorder %s645, %s646
    %p658 = scmp.eq.s32.totalorder %s90, 1
    %p659 = por %p657, %p658
    %p661 = scmp.ne.s32.totalorder %s646, %s660
    %p662 = scmp.eq.s32.totalorder %s90, 0
    %p663 = por %p661, %p662
    %s665 = sadd.s32 %s664, 1
    %p668 = scmp.eq.s32.totalorder %s84, 1
    %p669 = scmp.ne.s32.totalorder %s664, %s666
    %p670 = scmp.eq.s32.totalorder %s84, 0
    %p671 = por %p669, %p670
    %p672 = scmp.ne.s32.totalorder %s664, %s666
    %p673 = scmp.eq.s32.totalorder %s89, 1
    %p674 = por %p672, %p673
    %p675 = scmp.ne.s32.totalorder %s666, %s667
    %p676 = scmp.eq.s32.totalorder %s89, 0
    %p677 = por %p675, %p676
    %p678 = scmp.ne.s32.totalorder %s666, %s667
    %p679 = scmp.eq.s32.totalorder %s90, 1
    %p680 = por %p678, %p679
    %p682 = scmp.ne.s32.totalorder %s667, %s681
    %p683 = scmp.eq.s32.totalorder %s90, 0
    %p684 = por %p682, %p683
    %s686 = sadd.s32 %s685, 1
    %p689 = scmp.eq.s32.totalorder %s84, 1
    %p690 = scmp.ne.s32.totalorder %s685, %s687
    %p691 = scmp.eq.s32.totalorder %s84, 0
    %p692 = por %p690, %p691
    %p693 = scmp.ne.s32.totalorder %s685, %s687
    %p694 = scmp.eq.s32.totalorder %s89, 1
    %p695 = por %p693, %p694
    %p696 = scmp.ne.s32.totalorder %s687, %s688
    %p697 = scmp.eq.s32.totalorder %s89, 0
    %p698 = por %p696, %p697
    %p699 = scmp.ne.s32.totalorder %s687, %s688
    %p700 = scmp.eq.s32.totalorder %s90, 1
    %p701 = por %p699, %p700
    %p703 = scmp.ne.s32.totalorder %s688, %s702
    %p704 = scmp.eq.s32.totalorder %s90, 0
    %p705 = por %p703, %p704
    %s707 = sadd.s32 %s706, 1
    %p710 = scmp.eq.s32.totalorder %s84, 1
    %p711 = scmp.ne.s32.totalorder %s706, %s708
    %p712 = scmp.eq.s32.totalorder %s84, 0
    %p713 = por %p711, %p712
    %p714 = scmp.ne.s32.totalorder %s706, %s708
    %p715 = scmp.eq.s32.totalorder %s89, 1
    %p716 = por %p714, %p715
    %p717 = scmp.ne.s32.totalorder %s708, %s709
    %p718 = scmp.eq.s32.totalorder %s89, 0
    %p719 = por %p717, %p718
    %p720 = scmp.ne.s32.totalorder %s708, %s709
    %p721 = scmp.eq.s32.totalorder %s90, 1
    %p722 = por %p720, %p721
    %p724 = scmp.ne.s32.totalorder %s709, %s723
    %p725 = scmp.eq.s32.totalorder %s90, 0
    %p726 = por %p724, %p725
    %s728 = sadd.s32 %s727, 1
    %p731 = scmp.eq.s32.totalorder %s84, 1
    %p732 = scmp.ne.s32.totalorder %s727, %s729
    %p733 = scmp.eq.s32.totalorder %s84, 0
    %p734 = por %p732, %p733
    %p735 = scmp.ne.s32.totalorder %s727, %s729
    %p736 = scmp.eq.s32.totalorder %s89, 1
    %p737 = por %p735, %p736
    %p738 = scmp.ne.s32.totalorder %s729, %s730
    %p739 = scmp.eq.s32.totalorder %s89, 0
    %p740 = por %p738, %p739
    %p741 = scmp.ne.s32.totalorder %s729, %s730
    %p742 = scmp.eq.s32.totalorder %s90, 1
    %p743 = por %p741, %p742
    %p745 = scmp.ne.s32.totalorder %s730, %s744
    %p746 = scmp.eq.s32.totalorder %s90, 0
    %p747 = por %p745, %p746
    %s749 = sadd.s32 %s748, 1
    %p752 = scmp.eq.s32.totalorder %s84, 1
    %p753 = scmp.ne.s32.totalorder %s748, %s750
    %p754 = scmp.eq.s32.totalorder %s84, 0
    %p755 = por %p753, %p754
    %p756 = scmp.ne.s32.totalorder %s748, %s750
    %p757 = scmp.eq.s32.totalorder %s89, 1
    %p758 = por %p756, %p757
    %p759 = scmp.ne.s32.totalorder %s750, %s751
    %p760 = scmp.eq.s32.totalorder %s89, 0
    %p761 = por %p759, %p760
    %p762 = scmp.ne.s32.totalorder %s750, %s751
    %p763 = scmp.eq.s32.totalorder %s90, 1
    %p764 = por %p762, %p763
    %p766 = scmp.ne.s32.totalorder %s751, %s765
    %p767 = scmp.eq.s32.totalorder %s90, 0
    %p768 = por %p766, %p767
    %s770 = sadd.s32 %s769, 1
    %p773 = scmp.eq.s32.totalorder %s84, 1
    %p774 = scmp.ne.s32.totalorder %s769, %s771
    %p775 = scmp.eq.s32.totalorder %s84, 0
    %p776 = por %p774, %p775
    %p777 = scmp.ne.s32.totalorder %s769, %s771
    %p778 = scmp.eq.s32.totalorder %s89, 1
    %p779 = por %p777, %p778
    %p780 = scmp.ne.s32.totalorder %s771, %s772
    %p781 = scmp.eq.s32.totalorder %s89, 0
    %p782 = por %p780, %p781
    %p783 = scmp.ne.s32.totalorder %s771, %s772
    %p784 = scmp.eq.s32.totalorder %s90, 1
    %p785 = por %p783, %p784
    %p787 = scmp.ne.s32.totalorder %s772, %s786
    %p788 = scmp.eq.s32.totalorder %s90, 0
    %p789 = por %p787, %p788
    %s791 = sadd.s32 %s790, 1
    %p794 = scmp.eq.s32.totalorder %s84, 1
    %p795 = scmp.ne.s32.totalorder %s790, %s792
    %p796 = scmp.eq.s32.totalorder %s84, 0
    %p797 = por %p795, %p796
    %p798 = scmp.ne.s32.totalorder %s790, %s792
    %p799 = scmp.eq.s32.totalorder %s89, 1
    %p800 = por %p798, %p799
    %p801 = scmp.ne.s32.totalorder %s792, %s793
    %p802 = scmp.eq.s32.totalorder %s89, 0
    %p803 = por %p801, %p802
    %p804 = scmp.ne.s32.totalorder %s792, %s793
    %p805 = scmp.eq.s32.totalorder %s90, 1
    %p806 = por %p804, %p805
    %p808 = scmp.ne.s32.totalorder %s793, %s807
    %p809 = scmp.eq.s32.totalorder %s90, 0
    %p810 = por %p808, %p809
    %s812 = sadd.s32 %s811, 1
    %p815 = scmp.eq.s32.totalorder %s84, 1
    %p816 = scmp.ne.s32.totalorder %s811, %s813
    %p817 = scmp.eq.s32.totalorder %s84, 0
    %p818 = por %p816, %p817
    %p819 = scmp.ne.s32.totalorder %s811, %s813
    %p820 = scmp.eq.s32.totalorder %s89, 1
    %p821 = por %p819, %p820
    %p822 = scmp.ne.s32.totalorder %s813, %s814
    %p823 = scmp.eq.s32.totalorder %s89, 0
    %p824 = por %p822, %p823
    %p825 = scmp.ne.s32.totalorder %s813, %s814
    %p826 = scmp.eq.s32.totalorder %s90, 1
    %p827 = por %p825, %p826
    %p829 = scmp.ne.s32.totalorder %s814, %s828
    %p830 = scmp.eq.s32.totalorder %s90, 0
    %p831 = por %p829, %p830
    %s833 = sadd.s32 %s832, 1
    %p836 = scmp.eq.s32.totalorder %s84, 1
    %p837 = scmp.ne.s32.totalorder %s832, %s834
    %p838 = scmp.eq.s32.totalorder %s84, 0
    %p839 = por %p837, %p838
    %p840 = scmp.ne.s32.totalorder %s832, %s834
    %p841 = scmp.eq.s32.totalorder %s89, 1
    %p842 = por %p840, %p841
    %p843 = scmp.ne.s32.totalorder %s834, %s835
    %p844 = scmp.eq.s32.totalorder %s89, 0
    %p845 = por %p843, %p844
    %p846 = scmp.ne.s32.totalorder %s834, %s835
    %p847 = scmp.eq.s32.totalorder %s90, 1
    %p848 = por %p846, %p847
    %p850 = scmp.ne.s32.totalorder %s835, %s849
    %p851 = scmp.eq.s32.totalorder %s90, 0
    %p852 = por %p850, %p851
    %s854 = sadd.s32 %s853, 1
    %p857 = scmp.eq.s32.totalorder %s84, 1
    %p858 = scmp.ne.s32.totalorder %s853, %s855
    %p859 = scmp.eq.s32.totalorder %s84, 0
    %p860 = por %p858, %p859
    %p861 = scmp.ne.s32.totalorder %s853, %s855
    %p862 = scmp.eq.s32.totalorder %s89, 1
    %p863 = por %p861, %p862
    %p864 = scmp.ne.s32.totalorder %s855, %s856
    %p865 = scmp.eq.s32.totalorder %s89, 0
    %p866 = por %p864, %p865
    %p867 = scmp.ne.s32.totalorder %s855, %s856
    %p868 = scmp.eq.s32.totalorder %s90, 1
    %p869 = por %p867, %p868
    %p871 = scmp.ne.s32.totalorder %s856, %s870
    %p872 = scmp.eq.s32.totalorder %s90, 0
    %p873 = por %p871, %p872
    %s874 = ssub.s32 %s84, %s91
    %p875 = scmp.eq.s32.totalorder %s874, 0
    %s877 = sadd.s32 %s876, 1
    %s878 = scalar_select %p875, %s876, %s877
    %p881 = pneg %p875
    %p882 = scmp.eq.s32.totalorder %s84, 1
    %p883 = por %p881, %p882
    %p884 = scmp.ne.s32.totalorder %s876, %s879
    %p885 = scmp.eq.s32.totalorder %s84, 0
    %p886 = por %p884, %p885
    %p887 = scmp.ne.s32.totalorder %s876, %s879
    %p888 = scmp.eq.s32.totalorder %s89, 1
    %p889 = por %p887, %p888
    %p890 = scmp.ne.s32.totalorder %s879, %s880
    %p891 = scmp.eq.s32.totalorder %s89, 0
    %p892 = por %p890, %p891
    %p893 = scmp.ne.s32.totalorder %s879, %s880
    %p894 = scmp.eq.s32.totalorder %s90, 1
    %p895 = por %p893, %p894
    %p897 = scmp.ne.s32.totalorder %s880, %s896
    %p898 = scmp.eq.s32.totalorder %s90, 0
    %p899 = por %p897, %p898
    %s900 = ssub.s32 %s84, %s91
    %p901 = scmp.eq.s32.totalorder %s900, 0
    %s903 = sadd.s32 %s902, 1
    %s904 = scalar_select %p901, %s902, %s903
    %p907 = pneg %p901
    %p908 = scmp.eq.s32.totalorder %s84, 1
    %p909 = por %p907, %p908
    %p910 = scmp.ne.s32.totalorder %s902, %s905
    %p911 = scmp.eq.s32.totalorder %s84, 0
    %p912 = por %p910, %p911
    %p913 = scmp.ne.s32.totalorder %s902, %s905
    %p914 = scmp.eq.s32.totalorder %s89, 1
    %p915 = por %p913, %p914
    %p916 = scmp.ne.s32.totalorder %s905, %s906
    %p917 = scmp.eq.s32.totalorder %s89, 0
    %p918 = por %p916, %p917
    %p919 = scmp.ne.s32.totalorder %s905, %s906
    %p920 = scmp.eq.s32.totalorder %s90, 1
    %p921 = por %p919, %p920
    %p923 = scmp.ne.s32.totalorder %s906, %s922
    %p924 = scmp.eq.s32.totalorder %s90, 0
    %p925 = por %p923, %p924
    %p926 = scmp.le.s32.totalorder 1, %s84
    %p927 = scmp.lt.s32.totalorder %s84, 3
    %p928 = pnand %p926, %p927
    %p929 = pneg %p928
    // Predicated region
    $region9: #{tpu_custom_call.1} parent=5 // pred_check
      _
    $region10: #{tpu_custom_call.1} parent=5 // pred_check_branch
      %931 = sbr.rel (%p928) target = $region12
    $region11: #{tpu_custom_call.1} parent=5 // pred_region
      %s932 = ssub.s32 %s84, 1
      // Predicated region
      $region13: #{tpu_custom_call.1} parent=11 // pred_check
        %p933 = pneg %p131
      $region14: #{tpu_custom_call.1} parent=11 // pred_check_branch
        %935 = sbr.rel (%p933) target = $region16
      $region15: #{tpu_custom_call.1} parent=11 // pred_region
        _
      $region16: #{tpu_custom_call.1} parent=11 // pred_fallthru
        _
      // Predicated region
      $region17: #{tpu_custom_call.1} parent=11 // pred_check
        %p936 = pneg %p152
      $region18: #{tpu_custom_call.1} parent=11 // pred_check_branch
        %938 = sbr.rel (%p936) target = $region20
      $region19: #{tpu_custom_call.1} parent=11 // pred_region
        _
      $region20: #{tpu_custom_call.1} parent=11 // pred_fallthru
        _
      // Predicated region
      $region21: #{tpu_custom_call.1} parent=11 // pred_check
        %p939 = pneg %p173
      $region22: #{tpu_custom_call.1} parent=11 // pred_check_branch
        %941 = sbr.rel (%p939) target = $region24
      $region23: #{tpu_custom_call.1} parent=11 // pred_region
        _
      $region24: #{tpu_custom_call.1} parent=11 // pred_fallthru
        _
      // Predicated region
      $region25: #{tpu_custom_call.1} parent=11 // pred_check
        %p942 = pneg %p194
      $region26: #{tpu_custom_call.1} parent=11 // pred_check_branch
        %944 = sbr.rel (%p942) target = $region28
      $region27: #{tpu_custom_call.1} parent=11 // pred_region
        _
      $region28: #{tpu_custom_call.1} parent=11 // pred_fallthru
        _
      // Predicated region
      $region29: #{tpu_custom_call.1} parent=11 // pred_check
        %p945 = pneg %p215
      $region30: #{tpu_custom_call.1} parent=11 // pred_check_branch
        %947 = sbr.rel (%p945) target = $region32
      $region31: #{tpu_custom_call.1} parent=11 // pred_region
        _
      $region32: #{tpu_custom_call.1} parent=11 // pred_fallthru
        _
      // Predicated region
      $region33: #{tpu_custom_call.1} parent=11 // pred_check
        %p948 = pneg %p236
      $region34: #{tpu_custom_call.1} parent=11 // pred_check_branch
        %950 = sbr.rel (%p948) target = $region36
      $region35: #{tpu_custom_call.1} parent=11 // pred_region
        _
      $region36: #{tpu_custom_call.1} parent=11 // pred_fallthru
        _
      // Predicated region
      $region37: #{tpu_custom_call.1} parent=11 // pred_check
        %p951 = pneg %p257
      $region38: #{tpu_custom_call.1} parent=11 // pred_check_branch
        %953 = sbr.rel (%p951) target = $region40
      $region39: #{tpu_custom_call.1} parent=11 // pred_region
        _
      $region40: #{tpu_custom_call.1} parent=11 // pred_fallthru
        _
      // Predicated region
      $region41: #{tpu_custom_call.1} parent=11 // pred_check
        %p954 = pneg %p278
      $region42: #{tpu_custom_call.1} parent=11 // pred_check_branch
        %956 = sbr.rel (%p954) target = $region44
      $region43: #{tpu_custom_call.1} parent=11 // pred_region
        _
      $region44: #{tpu_custom_call.1} parent=11 // pred_fallthru
        _
      // Predicated region
      $region45: #{tpu_custom_call.1} parent=11 // pred_check
        %p957 = pneg %p299
      $region46: #{tpu_custom_call.1} parent=11 // pred_check_branch
        %959 = sbr.rel (%p957) target = $region48
      $region47: #{tpu_custom_call.1} parent=11 // pred_region
        _
      $region48: #{tpu_custom_call.1} parent=11 // pred_fallthru
        _
      // Predicated region
      $region49: #{tpu_custom_call.1} parent=11 // pred_check
        %p960 = pneg %p320
      $region50: #{tpu_custom_call.1} parent=11 // pred_check_branch
        %962 = sbr.rel (%p960) target = $region52
      $region51: #{tpu_custom_call.1} parent=11 // pred_region
        _
      $region52: #{tpu_custom_call.1} parent=11 // pred_fallthru
        _
      // Predicated region
      $region53: #{tpu_custom_call.1} parent=11 // pred_check
        %p963 = pneg %p341
      $region54: #{tpu_custom_call.1} parent=11 // pred_check_branch
        %965 = sbr.rel (%p963) target = $region56
      $region55: #{tpu_custom_call.1} parent=11 // pred_region
        _
      $region56: #{tpu_custom_call.1} parent=11 // pred_fallthru
        _
      // Predicated region
      $region57: #{tpu_custom_call.1} parent=11 // pred_check
        %p966 = pneg %p362
      $region58: #{tpu_custom_call.1} parent=11 // pred_check_branch
        %968 = sbr.rel (%p966) target = $region60
      $region59: #{tpu_custom_call.1} parent=11 // pred_region
        _
      $region60: #{tpu_custom_call.1} parent=11 // pred_fallthru
        _
      // Predicated region
      $region61: #{tpu_custom_call.1} parent=11 // pred_check
        %p969 = pneg %p383
      $region62: #{tpu_custom_call.1} parent=11 // pred_check_branch
        %971 = sbr.rel (%p969) target = $region64
      $region63: #{tpu_custom_call.1} parent=11 // pred_region
        _
      $region64: #{tpu_custom_call.1} parent=11 // pred_fallthru
        _
      // Predicated region
      $region65: #{tpu_custom_call.1} parent=11 // pred_check
        %p972 = pneg %p404
      $region66: #{tpu_custom_call.1} parent=11 // pred_check_branch
        %974 = sbr.rel (%p972) target = $region68
      $region67: #{tpu_custom_call.1} parent=11 // pred_region
        _
      $region68: #{tpu_custom_call.1} parent=11 // pred_fallthru
        _
      // Predicated region
      $region69: #{tpu_custom_call.1} parent=11 // pred_check
        %p975 = pneg %p425
      $region70: #{tpu_custom_call.1} parent=11 // pred_check_branch
        %977 = sbr.rel (%p975) target = $region72
      $region71: #{tpu_custom_call.1} parent=11 // pred_region
        _
      $region72: #{tpu_custom_call.1} parent=11 // pred_fallthru
        _
      // Predicated region
      $region73: #{tpu_custom_call.1} parent=11 // pred_check
        %p978 = pneg %p446
      $region74: #{tpu_custom_call.1} parent=11 // pred_check_branch
        %980 = sbr.rel (%p978) target = $region76
      $region75: #{tpu_custom_call.1} parent=11 // pred_region
        _
      $region76: #{tpu_custom_call.1} parent=11 // pred_fallthru
        _
      // Predicated region
      $region77: #{tpu_custom_call.1} parent=11 // pred_check
        %p981 = pneg %p467
      $region78: #{tpu_custom_call.1} parent=11 // pred_check_branch
        %983 = sbr.rel (%p981) target = $region80
      $region79: #{tpu_custom_call.1} parent=11 // pred_region
        _
      $region80: #{tpu_custom_call.1} parent=11 // pred_fallthru
        _
      // Predicated region
      $region81: #{tpu_custom_call.1} parent=11 // pred_check
        %p984 = pneg %p488
      $region82: #{tpu_custom_call.1} parent=11 // pred_check_branch
        %986 = sbr.rel (%p984) target = $region84
      $region83: #{tpu_custom_call.1} parent=11 // pred_region
        _
      $region84: #{tpu_custom_call.1} parent=11 // pred_fallthru
        _
      // Predicated region
      $region85: #{tpu_custom_call.1} parent=11 // pred_check
        %p987 = pneg %p509
      $region86: #{tpu_custom_call.1} parent=11 // pred_check_branch
        %989 = sbr.rel (%p987) target = $region88
      $region87: #{tpu_custom_call.1} parent=11 // pred_region
        _
      $region88: #{tpu_custom_call.1} parent=11 // pred_fallthru
        _
      // Predicated region
      $region89: #{tpu_custom_call.1} parent=11 // pred_check
        %p990 = pneg %p530
      $region90: #{tpu_custom_call.1} parent=11 // pred_check_branch
        %992 = sbr.rel (%p990) target = $region92
      $region91: #{tpu_custom_call.1} parent=11 // pred_region
        _
      $region92: #{tpu_custom_call.1} parent=11 // pred_fallthru
        _
      // Predicated region
      $region93: #{tpu_custom_call.1} parent=11 // pred_check
        %p993 = pneg %p551
      $region94: #{tpu_custom_call.1} parent=11 // pred_check_branch
        %995 = sbr.rel (%p993) target = $region96
      $region95: #{tpu_custom_call.1} parent=11 // pred_region
        _
      $region96: #{tpu_custom_call.1} parent=11 // pred_fallthru
        _
      // Predicated region
      $region97: #{tpu_custom_call.1} parent=11 // pred_check
        %p996 = pneg %p572
      $region98: #{tpu_custom_call.1} parent=11 // pred_check_branch
        %998 = sbr.rel (%p996) target = $region100
      $region99: #{tpu_custom_call.1} parent=11 // pred_region
        _
      $region100: #{tpu_custom_call.1} parent=11 // pred_fallthru
        _
      // Predicated region
      $region101: #{tpu_custom_call.1} parent=11 // pred_check
        %p999 = pneg %p593
      $region102: #{tpu_custom_call.1} parent=11 // pred_check_branch
        %1001 = sbr.rel (%p999) target = $region104
      $region103: #{tpu_custom_call.1} parent=11 // pred_region
        _
      $region104: #{tpu_custom_call.1} parent=11 // pred_fallthru
        _
      // Predicated region
      $region105: #{tpu_custom_call.1} parent=11 // pred_check
        %p1002 = pneg %p614
      $region106: #{tpu_custom_call.1} parent=11 // pred_check_branch
        %1004 = sbr.rel (%p1002) target = $region108
      $region107: #{tpu_custom_call.1} parent=11 // pred_region
        _
      $region108: #{tpu_custom_call.1} parent=11 // pred_fallthru
        _
      // Predicated region
      $region109: #{tpu_custom_call.1} parent=11 // pred_check
        %p1005 = pneg %p635
      $region110: #{tpu_custom_call.1} parent=11 // pred_check_branch
        %1007 = sbr.rel (%p1005) target = $region112
      $region111: #{tpu_custom_call.1} parent=11 // pred_region
        _
      $region112: #{tpu_custom_call.1} parent=11 // pred_fallthru
        _
      // Predicated region
      $region113: #{tpu_custom_call.1} parent=11 // pred_check
        %p1008 = pneg %p656
      $region114: #{tpu_custom_call.1} parent=11 // pred_check_branch
        %1010 = sbr.rel (%p1008) target = $region116
      $region115: #{tpu_custom_call.1} parent=11 // pred_region
        _
      $region116: #{tpu_custom_call.1} parent=11 // pred_fallthru
        _
      // Predicated region
      $region117: #{tpu_custom_call.1} parent=11 // pred_check
        %p1011 = pneg %p677
      $region118: #{tpu_custom_call.1} parent=11 // pred_check_branch
        %1013 = sbr.rel (%p1011) target = $region120
      $region119: #{tpu_custom_call.1} parent=11 // pred_region
        _
      $region120: #{tpu_custom_call.1} parent=11 // pred_fallthru
        _
      // Predicated region
      $region121: #{tpu_custom_call.1} parent=11 // pred_check
        %p1014 = pneg %p698
      $region122: #{tpu_custom_call.1} parent=11 // pred_check_branch
        %1016 = sbr.rel (%p1014) target = $region124
      $region123: #{tpu_custom_call.1} parent=11 // pred_region
        _
      $region124: #{tpu_custom_call.1} parent=11 // pred_fallthru
        _
      // Predicated region
      $region125: #{tpu_custom_call.1} parent=11 // pred_check
        %p1017 = pneg %p719
      $region126: #{tpu_custom_call.1} parent=11 // pred_check_branch
        %1019 = sbr.rel (%p1017) target = $region128
      $region127: #{tpu_custom_call.1} parent=11 // pred_region
        _
      $region128: #{tpu_custom_call.1} parent=11 // pred_fallthru
        _
      // Predicated region
      $region129: #{tpu_custom_call.1} parent=11 // pred_check
        %p1020 = pneg %p740
      $region130: #{tpu_custom_call.1} parent=11 // pred_check_branch
        %1022 = sbr.rel (%p1020) target = $region132
      $region131: #{tpu_custom_call.1} parent=11 // pred_region
        _
      $region132: #{tpu_custom_call.1} parent=11 // pred_fallthru
        _
      // Predicated region
      $region133: #{tpu_custom_call.1} parent=11 // pred_check
        %p1023 = pneg %p761
      $region134: #{tpu_custom_call.1} parent=11 // pred_check_branch
        %1025 = sbr.rel (%p1023) target = $region136
      $region135: #{tpu_custom_call.1} parent=11 // pred_region
        _
      $region136: #{tpu_custom_call.1} parent=11 // pred_fallthru
        _
      // Predicated region
      $region137: #{tpu_custom_call.1} parent=11 // pred_check
        %p1026 = pneg %p782
      $region138: #{tpu_custom_call.1} parent=11 // pred_check_branch
        %1028 = sbr.rel (%p1026) target = $region140
      $region139: #{tpu_custom_call.1} parent=11 // pred_region
        _
      $region140: #{tpu_custom_call.1} parent=11 // pred_fallthru
        _
      // Predicated region
      $region141: #{tpu_custom_call.1} parent=11 // pred_check
        %p1029 = pneg %p803
      $region142: #{tpu_custom_call.1} parent=11 // pred_check_branch
        %1031 = sbr.rel (%p1029) target = $region144
      $region143: #{tpu_custom_call.1} parent=11 // pred_region
        _
      $region144: #{tpu_custom_call.1} parent=11 // pred_fallthru
        _
      // Predicated region
      $region145: #{tpu_custom_call.1} parent=11 // pred_check
        %p1032 = pneg %p824
      $region146: #{tpu_custom_call.1} parent=11 // pred_check_branch
        %1034 = sbr.rel (%p1032) target = $region148
      $region147: #{tpu_custom_call.1} parent=11 // pred_region
        _
      $region148: #{tpu_custom_call.1} parent=11 // pred_fallthru
        _
      // Predicated region
      $region149: #{tpu_custom_call.1} parent=11 // pred_check
        %p1035 = pneg %p845
      $region150: #{tpu_custom_call.1} parent=11 // pred_check_branch
        %1037 = sbr.rel (%p1035) target = $region152
      $region151: #{tpu_custom_call.1} parent=11 // pred_region
        _
      $region152: #{tpu_custom_call.1} parent=11 // pred_fallthru
        _
      // Predicated region
      $region153: #{tpu_custom_call.1} parent=11 // pred_check
        %p1038 = pneg %p866
      $region154: #{tpu_custom_call.1} parent=11 // pred_check_branch
        %1040 = sbr.rel (%p1038) target = $region156
      $region155: #{tpu_custom_call.1} parent=11 // pred_region
        _
      $region156: #{tpu_custom_call.1} parent=11 // pred_fallthru
        _
    $region12: #{tpu_custom_call.1} parent=5 // pred_fallthru
      _
    %p1041 = scmp.lt.s32.totalorder %s84, 2
    // Predicated region
    $region157: #{tpu_custom_call.1} parent=5 // pred_check
      %p1042 = pneg %p1041
    $region158: #{tpu_custom_call.1} parent=5 // pred_check_branch
      %1044 = sbr.rel (%p1042) target = $region160
    $region159: #{tpu_custom_call.1} parent=5 // pred_region
      // Predicated region
      $region161: #{tpu_custom_call.1} parent=159 // pred_check
        %p1045 = pneg %p104
      $region162: #{tpu_custom_call.1} parent=159 // pred_check_branch
        %1047 = sbr.rel (%p1045) target = $region164
      $region163: #{tpu_custom_call.1} parent=159 // pred_region
        %p1048 = scmp.lt.s32.totalorder %s84, 1
        %s1049 = scalar_select %p1048, %s84, 1
        %s1050 = smul.addr %s1049, 32
        %s1051 = smul.addr %s1050, 8
        %s1052 = scalar_lea.vmem %s1, %s1051
      $region164: #{tpu_custom_call.1} parent=159 // pred_fallthru
        _
    $region160: #{tpu_custom_call.1} parent=5 // pred_fallthru
      _
    %p1053 = scmp.le.s32.totalorder 1, %s84
    %p1054 = scmp.lt.s32.totalorder %s84, 3
    %p1055 = pnand %p1053, %p1054
    %p1056 = pneg %p1055
    // Predicated region
    $region165: #{tpu_custom_call.1} parent=5 // pred_check
      _
    $region166: #{tpu_custom_call.1} parent=5 // pred_check_branch
      %1058 = sbr.rel (%p1055) target = $region168
    $region167: #{tpu_custom_call.1} parent=5 // pred_region
      %s1059 = ssub.s32 %s84, 1
      %p1060 = scmp.lt.s32.totalorder %s89, 1
      %s1061 = scalar_select %p1060, %s89, 1
      %s1062 = smul.addr %s1061, 32
      %s1063 = smul.addr %s1062, 8
      %s1064 = scalar_lea.vmem %s1, %s1063
      %p1065 = pneg %p110
      %p1066 = pneg %p107
      %p1067 = pneg %p131
      %p1068 = pneg %p128
      %p1069 = pneg %p152
      %p1070 = pneg %p149
      %p1071 = pneg %p173
      %p1072 = pneg %p170
      %p1073 = pneg %p194
      %p1074 = pneg %p191
      %p1075 = pneg %p215
      %p1076 = pneg %p212
      %p1077 = pneg %p236
      %p1078 = pneg %p233
      %p1079 = pneg %p257
      %p1080 = pneg %p254
      %p1081 = pneg %p278
      %p1082 = pneg %p275
      %p1083 = pneg %p299
      %p1084 = pneg %p296
      %p1085 = pneg %p320
      %p1086 = pneg %p317
      %p1087 = pneg %p341
      %p1088 = pneg %p338
      %p1089 = pneg %p362
      %p1090 = pneg %p359
      %p1091 = pneg %p383
      %p1092 = pneg %p380
      %p1093 = pneg %p404
      %p1094 = pneg %p401
      %p1095 = pneg %p425
      %p1096 = pneg %p422
      %p1097 = pneg %p446
      %p1098 = pneg %p443
      %p1099 = pneg %p467
      %p1100 = pneg %p464
      %p1101 = pneg %p488
      %p1102 = pneg %p485
      %p1103 = pneg %p509
      %p1104 = pneg %p506
      %p1105 = pneg %p530
      %p1106 = pneg %p527
      %p1107 = pneg %p551
      %p1108 = pneg %p548
      %p1109 = pneg %p572
      %p1110 = pneg %p569
      %p1111 = pneg %p593
      %p1112 = pneg %p590
      %p1113 = pneg %p614
      %p1114 = pneg %p611
      %p1115 = pneg %p635
      %p1116 = pneg %p632
      %p1117 = pneg %p656
      %p1118 = pneg %p653
      %p1119 = pneg %p677
      %p1120 = pneg %p674
      %p1121 = pneg %p698
      %p1122 = pneg %p695
      %p1123 = pneg %p719
      %p1124 = pneg %p716
      %p1125 = pneg %p740
      %p1126 = pneg %p737
      %p1127 = pneg %p761
      %p1128 = pneg %p758
      %p1129 = pneg %p782
      %p1130 = pneg %p779
      %p1131 = pneg %p803
      %p1132 = pneg %p800
      %p1133 = pneg %p824
      %p1134 = pneg %p821
      %p1135 = pneg %p845
      %p1136 = pneg %p842
      %p1137 = pneg %p866
      %p1138 = pneg %p863
      %p1139 = pneg %p892
      %p1140 = pneg %p889
      %p1141 = scmp.lt.s32.totalorder %s89, 1
      %s1142 = scalar_select %p1141, %s89, 1
      %s1143 = smul.addr %s1142, 8
      %s1144 = smul.addr %s1143, 8
      %s1145 = scalar_lea.vmem %s75, %s1144
      %p1146 = pneg %p918
      %p1147 = pneg %p915
      %p1148 = scmp.lt.s32.totalorder %s89, 1
      %s1149 = scalar_select %p1148, %s89, 1
      %s1150 = smul.addr %s1149, 8
      %s1151 = smul.addr %s1150, 8
      %s1152 = scalar_lea.vmem %s77, %s1151
      %p1153 = scmp.lt.s32.totalorder %s89, 1
      %s1154 = scalar_select %p1153, %s89, 1
      %s1155 = smul.addr %s1154, 32
      %s1156 = smul.addr %s1155, 8
      %s1157 = scalar_lea.vmem %s1, %s1156
      %p1158 = scmp.lt.s32.totalorder %s89, 1
      %s1159 = scalar_select %p1158, %s89, 1
      %s1160 = smul.addr %s1159, 8
      %s1161 = smul.addr %s1160, 8
      %s1162 = scalar_lea.vmem %s75, %s1161
      %p1163 = scmp.lt.s32.totalorder %s89, 1
      %s1164 = scalar_select %p1163, %s89, 1
      %s1165 = smul.addr %s1164, 8
      %s1166 = smul.addr %s1165, 8
      %s1167 = scalar_lea.vmem %s77, %s1166
      %v1168 = vld [vmem:[%s1157] sm:$0xff]
      %v1169 = vld [vmem:[%s1157 + $0x8] sm:$0xff]
      %v1170 = vld [vmem:[%s1157 + $0x10] sm:$0xff]
      %v1171 = vld [vmem:[%s1157 + $0x18] sm:$0xff]
      %v1172 = vld [vmem:[%s1157 + $0x20] sm:$0xff]
      %v1173 = vld [vmem:[%s1157 + $0x28] sm:$0xff]
      %v1174 = vld [vmem:[%s1157 + $0x30] sm:$0xff]
      %v1175 = vld [vmem:[%s1157 + $0x38] sm:$0xff]
      %v1176 = vld [vmem:[%s1157 + $0x40] sm:$0xff]
      %v1177 = vld [vmem:[%s1157 + $0x48] sm:$0xff]
      %v1178 = vld [vmem:[%s1157 + $0x50] sm:$0xff]
      %v1179 = vld [vmem:[%s1157 + $0x58] sm:$0xff]
      %v1180 = vld [vmem:[%s1157 + $0x60] sm:$0xff]
      %v1181 = vld [vmem:[%s1157 + $0x68] sm:$0xff]
      %v1182 = vld [vmem:[%s1157 + $0x70] sm:$0xff]
      %v1183 = vld [vmem:[%s1157 + $0x78] sm:$0xff]
      %v1184 = vld [vmem:[%s1157 + $0x80] sm:$0xff]
      %v1185 = vld [vmem:[%s1157 + $0x88] sm:$0xff]
      %v1186 = vld [vmem:[%s1157 + $0x90] sm:$0xff]
      %v1187 = vld [vmem:[%s1157 + $0x98] sm:$0xff]
      %v1188 = vld [vmem:[%s1157 + $0xa0] sm:$0xff]
      %v1189 = vld [vmem:[%s1157 + $0xa8] sm:$0xff]
      %v1190 = vld [vmem:[%s1157 + $0xb0] sm:$0xff]
      %v1191 = vld [vmem:[%s1157 + $0xb8] sm:$0xff]
      %v1192 = vld [vmem:[%s1157 + $0xc0] sm:$0xff]
      %v1193 = vld [vmem:[%s1157 + $0xc8] sm:$0xff]
      %v1194 = vld [vmem:[%s1157 + $0xd0] sm:$0xff]
      %v1195 = vld [vmem:[%s1157 + $0xd8] sm:$0xff]
      %v1196 = vld [vmem:[%s1157 + $0xe0] sm:$0xff]
      %v1197 = vld [vmem:[%s1157 + $0xe8] sm:$0xff]
      %v1198 = vld [vmem:[%s1157 + $0xf0] sm:$0xff]
      %v1199 = vld [vmem:[%s1157 + $0xf8] sm:$0xff]
      %v1200 = vld [vmem:[%s3] sm:$0xff]
      %v1201 = vld [vmem:[%s3 + $0x8] sm:$0xff]
      %v1202 = vld [vmem:[%s3 + $0x10] sm:$0xff]
      %v1203 = vld [vmem:[%s3 + $0x18] sm:$0xff]
      %v1204 = vld [vmem:[%s3 + $0x20] sm:$0xff]
      %v1205 = vld [vmem:[%s3 + $0x28] sm:$0xff]
      %v1206 = vld [vmem:[%s3 + $0x30] sm:$0xff]
      %v1207 = vld [vmem:[%s3 + $0x38] sm:$0xff]
      %v1208 = vld [vmem:[%s3 + $0x40] sm:$0xff]
      %v1209 = vld [vmem:[%s3 + $0x48] sm:$0xff]
      %v1210 = vld [vmem:[%s3 + $0x50] sm:$0xff]
      %v1211 = vld [vmem:[%s3 + $0x58] sm:$0xff]
      %v1212 = vld [vmem:[%s3 + $0x60] sm:$0xff]
      %v1213 = vld [vmem:[%s3 + $0x68] sm:$0xff]
      %v1214 = vld [vmem:[%s3 + $0x70] sm:$0xff]
      %v1215 = vld [vmem:[%s3 + $0x78] sm:$0xff]
      %v1216 = vld [vmem:[%s5] sm:$0xff]
      %vm1217 = vcmask 64512
      %v1219 = vsel %vm1217, %v1168, 0
      %v1222 = vsel %vm1217, %v1169, 0
      %v1225 = vsel %vm1217, %v1170, 0
      %v1228 = vsel %vm1217, %v1171, 0
      %v1231 = vsel %vm1217, %v1172, 0
      %v1234 = vsel %vm1217, %v1173, 0
      %v1237 = vsel %vm1217, %v1174, 0
      %v1240 = vsel %vm1217, %v1175, 0
      %v1243 = vsel %vm1217, %v1176, 0
      %v1246 = vsel %vm1217, %v1177, 0
      %v1249 = vsel %vm1217, %v1178, 0
      %v1252 = vsel %vm1217, %v1179, 0
      %v1255 = vsel %vm1217, %v1180, 0
      %v1258 = vsel %vm1217, %v1181, 0
      %v1261 = vsel %vm1217, %v1182, 0
      %v1264 = vsel %vm1217, %v1183, 0
      %v1267 = vsel %vm1217, %v1184, 0
      %v1270 = vsel %vm1217, %v1185, 0
      %v1273 = vsel %vm1217, %v1186, 0
      %v1276 = vsel %vm1217, %v1187, 0
      %v1279 = vsel %vm1217, %v1188, 0
      %v1282 = vsel %vm1217, %v1189, 0
      %v1285 = vsel %vm1217, %v1190, 0
      %v1288 = vsel %vm1217, %v1191, 0
      %v1291 = vsel %vm1217, %v1192, 0
      %v1294 = vsel %vm1217, %v1193, 0
      %v1297 = vsel %vm1217, %v1194, 0
      %v1300 = vsel %vm1217, %v1195, 0
      %v1303 = vsel %vm1217, %v1196, 0
      %v1306 = vsel %vm1217, %v1197, 0
      %v1309 = vsel %vm1217, %v1198, 0
      %v1312 = vsel %vm1217, %v1199, 0
      %1314 = vmatpush.msra.mxu0 0.0
      %1315 = vmatpush.msra.mxu0 0.0
      %1316 = vmatpush.msra.mxu0 0.0
      %1317 = vmatpush.msra.mxu0 0.0
      %1318 = vmatpush.msra.mxu0 0.0
      %1319 = vmatpush.msra.mxu0 0.0
      %1320 = vmatpush.msra.mxu0 0.0
      %1321 = vmatpush.msra.mxu0 0.0
      %1322 = vmatpush.msra.mxu0 0.0
      %1323 = vmatpush.msra.mxu0 0.0
      %1324 = vmatpush.msra.mxu0 0.0
      %1325 = vmatpush.msra.mxu0 0.0
      %1326 = vmatpush.msra.mxu0 0.0
      %1327 = vmatpush.msra.mxu0 0.0
      %1328 = vmatpush.msra.mxu0 0.0
      %1329 = vmatpush.msra.mxu0 %v1216
      %1330 = vmatmul.f32.gmra.mxu0 %v1219
      %v1331 = vpop.f32.mrf.mxu0
      %v1332 = vadd.f32 0.0, %v1331
      %1333 = vmatmul.f32.gmra.mxu0 %v1222
      %v1334 = vpop.f32.mrf.mxu0
      %v1335 = vadd.f32 0.0, %v1334
      %1336 = vmatmul.f32.gmra.mxu0 %v1225
      %v1337 = vpop.f32.mrf.mxu0
      %v1338 = vadd.f32 0.0, %v1337
      %1339 = vmatmul.f32.gmra.mxu0 %v1228
      %v1340 = vpop.f32.mrf.mxu0
      %v1341 = vadd.f32 0.0, %v1340
      %1342 = vmatmul.f32.gmra.mxu0 %v1231
      %v1343 = vpop.f32.mrf.mxu0
      %v1344 = vadd.f32 0.0, %v1343
      %1345 = vmatmul.f32.gmra.mxu0 %v1234
      %v1346 = vpop.f32.mrf.mxu0
      %v1347 = vadd.f32 0.0, %v1346
      %1348 = vmatmul.f32.gmra.mxu0 %v1237
      %v1349 = vpop.f32.mrf.mxu0
      %v1350 = vadd.f32 0.0, %v1349
      %1351 = vmatmul.f32.gmra.mxu0 %v1240
      %v1352 = vpop.f32.mrf.mxu0
      %v1353 = vadd.f32 0.0, %v1352
      %1354 = vmatmul.f32.gmra.mxu0 %v1243
      %v1355 = vpop.f32.mrf.mxu0
      %v1356 = vadd.f32 0.0, %v1355
      %1357 = vmatmul.f32.gmra.mxu0 %v1246
      %v1358 = vpop.f32.mrf.mxu0
      %v1359 = vadd.f32 0.0, %v1358
      %1360 = vmatmul.f32.gmra.mxu0 %v1249
      %v1361 = vpop.f32.mrf.mxu0
      %v1362 = vadd.f32 0.0, %v1361
      %1363 = vmatmul.f32.gmra.mxu0 %v1252
      %v1364 = vpop.f32.mrf.mxu0
      %v1365 = vadd.f32 0.0, %v1364
      %1366 = vmatmul.f32.gmra.mxu0 %v1255
      %v1367 = vpop.f32.mrf.mxu0
      %v1368 = vadd.f32 0.0, %v1367
      %1369 = vmatmul.f32.gmra.mxu0 %v1258
      %v1370 = vpop.f32.mrf.mxu0
      %v1371 = vadd.f32 0.0, %v1370
      %1372 = vmatmul.f32.gmra.mxu0 %v1261
      %v1373 = vpop.f32.mrf.mxu0
      %v1374 = vadd.f32 0.0, %v1373
      %1375 = vmatmul.f32.gmra.mxu0 %v1264
      %v1376 = vpop.f32.mrf.mxu0
      %v1377 = vadd.f32 0.0, %v1376
      %1378 = vmatmul.f32.gmra.mxu0 %v1267
      %v1379 = vpop.f32.mrf.mxu0
      %v1380 = vadd.f32 0.0, %v1379
      %1381 = vmatmul.f32.gmra.mxu0 %v1270
      %v1382 = vpop.f32.mrf.mxu0
      %v1383 = vadd.f32 0.0, %v1382
      %1384 = vmatmul.f32.gmra.mxu0 %v1273
      %v1385 = vpop.f32.mrf.mxu0
      %v1386 = vadd.f32 0.0, %v1385
      %1387 = vmatmul.f32.gmra.mxu0 %v1276
      %v1388 = vpop.f32.mrf.mxu0
      %v1389 = vadd.f32 0.0, %v1388
      %1390 = vmatmul.f32.gmra.mxu0 %v1279
      %v1391 = vpop.f32.mrf.mxu0
      %v1392 = vadd.f32 0.0, %v1391
      %1393 = vmatmul.f32.gmra.mxu0 %v1282
      %v1394 = vpop.f32.mrf.mxu0
      %v1395 = vadd.f32 0.0, %v1394
      %1396 = vmatmul.f32.gmra.mxu0 %v1285
      %v1397 = vpop.f32.mrf.mxu0
      %v1398 = vadd.f32 0.0, %v1397
      %1399 = vmatmul.f32.gmra.mxu0 %v1288
      %v1400 = vpop.f32.mrf.mxu0
      %v1401 = vadd.f32 0.0, %v1400
      %1402 = vmatmul.f32.gmra.mxu0 %v1291
      %v1403 = vpop.f32.mrf.mxu0
      %v1404 = vadd.f32 0.0, %v1403
      %1405 = vmatmul.f32.gmra.mxu0 %v1294
      %v1406 = vpop.f32.mrf.mxu0
      %v1407 = vadd.f32 0.0, %v1406
      %1408 = vmatmul.f32.gmra.mxu0 %v1297
      %v1409 = vpop.f32.mrf.mxu0
      %v1410 = vadd.f32 0.0, %v1409
      %1411 = vmatmul.f32.gmra.mxu0 %v1300
      %v1412 = vpop.f32.mrf.mxu0
      %v1413 = vadd.f32 0.0, %v1412
      %1414 = vmatmul.f32.gmra.mxu0 %v1303
      %v1415 = vpop.f32.mrf.mxu0
      %v1416 = vadd.f32 0.0, %v1415
      %1417 = vmatmul.f32.gmra.mxu0 %v1306
      %v1418 = vpop.f32.mrf.mxu0
      %v1419 = vadd.f32 0.0, %v1418
      %1420 = vmatmul.f32.gmra.mxu0 %v1309
      %v1421 = vpop.f32.mrf.mxu0
      %v1422 = vadd.f32 0.0, %v1421
      %1423 = vmatmul.f32.gmra.mxu0 %v1312
      %v1424 = vpop.f32.mrf.mxu0
      %v1425 = vadd.f32 0.0, %v1424
      %1426 = vdwg.mxu0
      %v1427 = vld [vmem:[%s7] sm:$0x1]
      %v1429 = vperm.slane %v1427, 0
      %v1431 = vmul.f32 %v1332, %v1429
      %v1432 = vmul.f32 %v1335, %v1429
      %v1433 = vmul.f32 %v1338, %v1429
      %v1434 = vmul.f32 %v1341, %v1429
      %v1435 = vmul.f32 %v1344, %v1429
      %v1436 = vmul.f32 %v1347, %v1429
      %v1437 = vmul.f32 %v1350, %v1429
      %v1438 = vmul.f32 %v1353, %v1429
      %v1439 = vmul.f32 %v1356, %v1429
      %v1440 = vmul.f32 %v1359, %v1429
      %v1441 = vmul.f32 %v1362, %v1429
      %v1442 = vmul.f32 %v1365, %v1429
      %v1443 = vmul.f32 %v1368, %v1429
      %v1444 = vmul.f32 %v1371, %v1429
      %v1445 = vmul.f32 %v1374, %v1429
      %v1446 = vmul.f32 %v1377, %v1429
      %v1447 = vmul.f32 %v1380, %v1429
      %v1448 = vmul.f32 %v1383, %v1429
      %v1449 = vmul.f32 %v1386, %v1429
      %v1450 = vmul.f32 %v1389, %v1429
      %v1451 = vmul.f32 %v1392, %v1429
      %v1452 = vmul.f32 %v1395, %v1429
      %v1453 = vmul.f32 %v1398, %v1429
      %v1454 = vmul.f32 %v1401, %v1429
      %v1455 = vmul.f32 %v1404, %v1429
      %v1456 = vmul.f32 %v1407, %v1429
      %v1457 = vmul.f32 %v1410, %v1429
      %v1458 = vmul.f32 %v1413, %v1429
      %v1459 = vmul.f32 %v1416, %v1429
      %v1460 = vmul.f32 %v1419, %v1429
      %v1461 = vmul.f32 %v1422, %v1429
      %v1462 = vmul.f32 %v1425, %v1429
      %v1463 = vld [vmem:[%s9] sm:$0x1]
      %v1465 = vperm.slane %v1463, 0
      %v1467 = vadd.f32 %v1431, %v1465
      %v1468 = vadd.f32 %v1432, %v1465
      %v1469 = vadd.f32 %v1433, %v1465
      %v1470 = vadd.f32 %v1434, %v1465
      %v1471 = vadd.f32 %v1435, %v1465
      %v1472 = vadd.f32 %v1436, %v1465
      %v1473 = vadd.f32 %v1437, %v1465
      %v1474 = vadd.f32 %v1438, %v1465
      %v1475 = vadd.f32 %v1439, %v1465
      %v1476 = vadd.f32 %v1440, %v1465
      %v1477 = vadd.f32 %v1441, %v1465
      %v1478 = vadd.f32 %v1442, %v1465
      %v1479 = vadd.f32 %v1443, %v1465
      %v1480 = vadd.f32 %v1444, %v1465
      %v1481 = vadd.f32 %v1445, %v1465
      %v1482 = vadd.f32 %v1446, %v1465
      %v1483 = vadd.f32 %v1447, %v1465
      %v1484 = vadd.f32 %v1448, %v1465
      %v1485 = vadd.f32 %v1449, %v1465
      %v1486 = vadd.f32 %v1450, %v1465
      %v1487 = vadd.f32 %v1451, %v1465
      %v1488 = vadd.f32 %v1452, %v1465
      %v1489 = vadd.f32 %v1453, %v1465
      %v1490 = vadd.f32 %v1454, %v1465
      %v1491 = vadd.f32 %v1455, %v1465
      %v1492 = vadd.f32 %v1456, %v1465
      %v1493 = vadd.f32 %v1457, %v1465
      %v1494 = vadd.f32 %v1458, %v1465
      %v1495 = vadd.f32 %v1459, %v1465
      %v1496 = vadd.f32 %v1460, %v1465
      %v1497 = vadd.f32 %v1461, %v1465
      %v1498 = vadd.f32 %v1462, %v1465
      %v1499 = vmax.f32 %v1467, 0.0
      %v1500 = vmax.f32 %v1468, 0.0
      %v1501 = vmax.f32 %v1469, 0.0
      %v1502 = vmax.f32 %v1470, 0.0
      %v1503 = vmax.f32 %v1471, 0.0
      %v1504 = vmax.f32 %v1472, 0.0
      %v1505 = vmax.f32 %v1473, 0.0
      %v1506 = vmax.f32 %v1474, 0.0
      %v1507 = vmax.f32 %v1475, 0.0
      %v1508 = vmax.f32 %v1476, 0.0
      %v1509 = vmax.f32 %v1477, 0.0
      %v1510 = vmax.f32 %v1478, 0.0
      %v1511 = vmax.f32 %v1479, 0.0
      %v1512 = vmax.f32 %v1480, 0.0
      %v1513 = vmax.f32 %v1481, 0.0
      %v1514 = vmax.f32 %v1482, 0.0
      %v1515 = vmax.f32 %v1483, 0.0
      %v1516 = vmax.f32 %v1484, 0.0
      %v1517 = vmax.f32 %v1485, 0.0
      %v1518 = vmax.f32 %v1486, 0.0
      %v1519 = vmax.f32 %v1487, 0.0
      %v1520 = vmax.f32 %v1488, 0.0
      %v1521 = vmax.f32 %v1489, 0.0
      %v1522 = vmax.f32 %v1490, 0.0
      %v1523 = vmax.f32 %v1491, 0.0
      %v1524 = vmax.f32 %v1492, 0.0
      %v1525 = vmax.f32 %v1493, 0.0
      %v1526 = vmax.f32 %v1494, 0.0
      %v1527 = vmax.f32 %v1495, 0.0
      %v1528 = vmax.f32 %v1496, 0.0
      %v1529 = vmax.f32 %v1497, 0.0
      %v1530 = vmax.f32 %v1498, 0.0
      %1531 = vst.msk [vmem:[#allocation2] sm:$0xff] %vm1217, 0.0
      %1532 = vst.msk [vmem:[#allocation2 + $0x8] sm:$0xff] %vm1217, 0.0
      %1533 = vst.msk [vmem:[#allocation2 + $0x10] sm:$0xff] %vm1217, 0.0
      %1534 = vst.msk [vmem:[#allocation2 + $0x18] sm:$0xff] %vm1217, 0.0
      %1535 = vst.msk [vmem:[#allocation2 + $0x20] sm:$0xff] %vm1217, 0.0
      %1536 = vst.msk [vmem:[#allocation2 + $0x28] sm:$0xff] %vm1217, 0.0
      %1537 = vst.msk [vmem:[#allocation2 + $0x30] sm:$0xff] %vm1217, 0.0
      %1538 = vst.msk [vmem:[#allocation2 + $0x38] sm:$0xff] %vm1217, 0.0
      %1539 = vst.msk [vmem:[#allocation2 + $0x40] sm:$0xff] %vm1217, 0.0
      %1540 = vst.msk [vmem:[#allocation2 + $0x48] sm:$0xff] %vm1217, 0.0
      %1541 = vst.msk [vmem:[#allocation2 + $0x50] sm:$0xff] %vm1217, 0.0
      %1542 = vst.msk [vmem:[#allocation2 + $0x58] sm:$0xff] %vm1217, 0.0
      %1543 = vst.msk [vmem:[#allocation2 + $0x60] sm:$0xff] %vm1217, 0.0
      %1544 = vst.msk [vmem:[#allocation2 + $0x68] sm:$0xff] %vm1217, 0.0
      %1545 = vst.msk [vmem:[#allocation2 + $0x70] sm:$0xff] %vm1217, 0.0
      %1546 = vst.msk [vmem:[#allocation2 + $0x78] sm:$0xff] %vm1217, 0.0
      %1547 = vst.msk [vmem:[#allocation2 + $0x80] sm:$0xff] %vm1217, 0.0
      %1548 = vst.msk [vmem:[#allocation2 + $0x88] sm:$0xff] %vm1217, 0.0
      %1549 = vst.msk [vmem:[#allocation2 + $0x90] sm:$0xff] %vm1217, 0.0
      %1550 = vst.msk [vmem:[#allocation2 + $0x98] sm:$0xff] %vm1217, 0.0
      %1551 = vst.msk [vmem:[#allocation2 + $0xa0] sm:$0xff] %vm1217, 0.0
      %1552 = vst.msk [vmem:[#allocation2 + $0xa8] sm:$0xff] %vm1217, 0.0
      %1553 = vst.msk [vmem:[#allocation2 + $0xb0] sm:$0xff] %vm1217, 0.0
      %1554 = vst.msk [vmem:[#allocation2 + $0xb8] sm:$0xff] %vm1217, 0.0
      %1555 = vst.msk [vmem:[#allocation2 + $0xc0] sm:$0xff] %vm1217, 0.0
      %1556 = vst.msk [vmem:[#allocation2 + $0xc8] sm:$0xff] %vm1217, 0.0
      %1557 = vst.msk [vmem:[#allocation2 + $0xd0] sm:$0xff] %vm1217, 0.0
      %1558 = vst.msk [vmem:[#allocation2 + $0xd8] sm:$0xff] %vm1217, 0.0
      %1559 = vst.msk [vmem:[#allocation2 + $0xe0] sm:$0xff] %vm1217, 0.0
      %1560 = vst.msk [vmem:[#allocation2 + $0xe8] sm:$0xff] %vm1217, 0.0
      %1561 = vst.msk [vmem:[#allocation2 + $0xf0] sm:$0xff] %vm1217, 0.0
      %1562 = vst.msk [vmem:[#allocation2 + $0xf8] sm:$0xff] %vm1217, 0.0
      %1563 = vst.msk [vmem:[#allocation2 + $0x100] sm:$0xff] %vm1217, 0.0
      %1564 = vst.msk [vmem:[#allocation2 + $0x108] sm:$0xff] %vm1217, 0.0
      %1565 = vst.msk [vmem:[#allocation2 + $0x110] sm:$0xff] %vm1217, 0.0
      %1566 = vst.msk [vmem:[#allocation2 + $0x118] sm:$0xff] %vm1217, 0.0
      %1567 = vst.msk [vmem:[#allocation2 + $0x120] sm:$0xff] %vm1217, 0.0
      %1568 = vst.msk [vmem:[#allocation2 + $0x128] sm:$0xff] %vm1217, 0.0
      %1569 = vst.msk [vmem:[#allocation2 + $0x130] sm:$0xff] %vm1217, 0.0
      %1570 = vst.msk [vmem:[#allocation2 + $0x138] sm:$0xff] %vm1217, 0.0
      %1571 = vst.msk [vmem:[#allocation2 + $0x140] sm:$0xff] %vm1217, 0.0
      %1572 = vst.msk [vmem:[#allocation2 + $0x148] sm:$0xff] %vm1217, 0.0
      %1573 = vst.msk [vmem:[#allocation2 + $0x150] sm:$0xff] %vm1217, 0.0
      %1574 = vst.msk [vmem:[#allocation2 + $0x158] sm:$0xff] %vm1217, 0.0
      %1575 = vst.msk [vmem:[#allocation2 + $0x160] sm:$0xff] %vm1217, 0.0
      %1576 = vst.msk [vmem:[#allocation2 + $0x168] sm:$0xff] %vm1217, 0.0
      %1577 = vst.msk [vmem:[#allocation2 + $0x170] sm:$0xff] %vm1217, 0.0
      %1578 = vst.msk [vmem:[#allocation2 + $0x178] sm:$0xff] %vm1217, 0.0
      %1579 = vst.msk [vmem:[#allocation2 + $0x180] sm:$0xff] %vm1217, 0.0
      %1580 = vst.msk [vmem:[#allocation2 + $0x188] sm:$0xff] %vm1217, 0.0
      %1581 = vst.msk [vmem:[#allocation2 + $0x190] sm:$0xff] %vm1217, 0.0
      %1582 = vst.msk [vmem:[#allocation2 + $0x198] sm:$0xff] %vm1217, 0.0
      %1583 = vst.msk [vmem:[#allocation2 + $0x1a0] sm:$0xff] %vm1217, 0.0
      %1584 = vst.msk [vmem:[#allocation2 + $0x1a8] sm:$0xff] %vm1217, 0.0
      %1585 = vst.msk [vmem:[#allocation2 + $0x1b0] sm:$0xff] %vm1217, 0.0
      %1586 = vst.msk [vmem:[#allocation2 + $0x1b8] sm:$0xff] %vm1217, 0.0
      %1587 = vst.msk [vmem:[#allocation2 + $0x1c0] sm:$0xff] %vm1217, 0.0
      %1588 = vst.msk [vmem:[#allocation2 + $0x1c8] sm:$0xff] %vm1217, 0.0
      %1589 = vst.msk [vmem:[#allocation2 + $0x1d0] sm:$0xff] %vm1217, 0.0
      %1590 = vst.msk [vmem:[#allocation2 + $0x1d8] sm:$0xff] %vm1217, 0.0
      %1591 = vst.msk [vmem:[#allocation2 + $0x1e0] sm:$0xff] %vm1217, 0.0
      %1592 = vst.msk [vmem:[#allocation2 + $0x1e8] sm:$0xff] %vm1217, 0.0
      %1593 = vst.msk [vmem:[#allocation2 + $0x1f0] sm:$0xff] %vm1217, 0.0
      %1594 = vst.msk [vmem:[#allocation2 + $0x1f8] sm:$0xff] %vm1217, 0.0
      %1595 = vst.msk [vmem:[#allocation2 + $0x200] sm:$0xff] %vm1217, 0.0
      %1596 = vst.msk [vmem:[#allocation2 + $0x208] sm:$0xff] %vm1217, 0.0
      %1597 = vst.msk [vmem:[#allocation2 + $0x210] sm:$0xff] %vm1217, 0.0
      %1598 = vst.msk [vmem:[#allocation2 + $0x218] sm:$0xff] %vm1217, 0.0
      %1599 = vst.msk [vmem:[#allocation2 + $0x220] sm:$0xff] %vm1217, 0.0
      %1600 = vst.msk [vmem:[#allocation2 + $0x228] sm:$0xff] %vm1217, 0.0
      %1601 = vst.msk [vmem:[#allocation2 + $0x230] sm:$0xff] %vm1217, 0.0
      %1602 = vst.msk [vmem:[#allocation2 + $0x238] sm:$0xff] %vm1217, 0.0
      %1603 = vst.msk [vmem:[#allocation2 + $0x240] sm:$0xff] %vm1217, 0.0
      %1604 = vst.msk [vmem:[#allocation2 + $0x248] sm:$0xff] %vm1217, 0.0
      %1605 = vst.msk [vmem:[#allocation2 + $0x250] sm:$0xff] %vm1217, 0.0
      %1606 = vst.msk [vmem:[#allocation2 + $0x258] sm:$0xff] %vm1217, 0.0
      %1607 = vst.msk [vmem:[#allocation2 + $0x260] sm:$0xff] %vm1217, 0.0
      %1608 = vst.msk [vmem:[#allocation2 + $0x268] sm:$0xff] %vm1217, 0.0
      %1609 = vst.msk [vmem:[#allocation2 + $0x270] sm:$0xff] %vm1217, 0.0
      %1610 = vst.msk [vmem:[#allocation2 + $0x278] sm:$0xff] %vm1217, 0.0
      %1611 = vst.msk [vmem:[#allocation2 + $0x280] sm:$0xff] %vm1217, 0.0
      %1612 = vst.msk [vmem:[#allocation2 + $0x288] sm:$0xff] %vm1217, 0.0
      %1613 = vst.msk [vmem:[#allocation2 + $0x290] sm:$0xff] %vm1217, 0.0
      %1614 = vst.msk [vmem:[#allocation2 + $0x298] sm:$0xff] %vm1217, 0.0
      %1615 = vst.msk [vmem:[#allocation2 + $0x2a0] sm:$0xff] %vm1217, 0.0
      %1616 = vst.msk [vmem:[#allocation2 + $0x2a8] sm:$0xff] %vm1217, 0.0
      %1617 = vst.msk [vmem:[#allocation2 + $0x2b0] sm:$0xff] %vm1217, 0.0
      %1618 = vst.msk [vmem:[#allocation2 + $0x2b8] sm:$0xff] %vm1217, 0.0
      %1619 = vst.msk [vmem:[#allocation2 + $0x2c0] sm:$0xff] %vm1217, 0.0
      %1620 = vst.msk [vmem:[#allocation2 + $0x2c8] sm:$0xff] %vm1217, 0.0
      %1621 = vst.msk [vmem:[#allocation2 + $0x2d0] sm:$0xff] %vm1217, 0.0
      %1622 = vst.msk [vmem:[#allocation2 + $0x2d8] sm:$0xff] %vm1217, 0.0
      %1623 = vst.msk [vmem:[#allocation2 + $0x2e0] sm:$0xff] %vm1217, 0.0
      %1624 = vst.msk [vmem:[#allocation2 + $0x2e8] sm:$0xff] %vm1217, 0.0
      %1625 = vst.msk [vmem:[#allocation2 + $0x2f0] sm:$0xff] %vm1217, 0.0
      %1626 = vst.msk [vmem:[#allocation2 + $0x2f8] sm:$0xff] %vm1217, 0.0
      %1627 = vst.msk [vmem:[#allocation2 + $0x300] sm:$0xff] %vm1217, 0.0
      %1628 = vst.msk [vmem:[#allocation2 + $0x308] sm:$0xff] %vm1217, 0.0
      %1629 = vst.msk [vmem:[#allocation2 + $0x310] sm:$0xff] %vm1217, 0.0
      %1630 = vst.msk [vmem:[#allocation2 + $0x318] sm:$0xff] %vm1217, 0.0
      %1631 = vst.msk [vmem:[#allocation2 + $0x320] sm:$0xff] %vm1217, 0.0
      %1632 = vst.msk [vmem:[#allocation2 + $0x328] sm:$0xff] %vm1217, 0.0
      %1633 = vst.msk [vmem:[#allocation2 + $0x330] sm:$0xff] %vm1217, 0.0
      %1634 = vst.msk [vmem:[#allocation2 + $0x338] sm:$0xff] %vm1217, 0.0
      %1635 = vst.msk [vmem:[#allocation2 + $0x340] sm:$0xff] %vm1217, 0.0
      %1636 = vst.msk [vmem:[#allocation2 + $0x348] sm:$0xff] %vm1217, 0.0
      %1637 = vst.msk [vmem:[#allocation2 + $0x350] sm:$0xff] %vm1217, 0.0
      %1638 = vst.msk [vmem:[#allocation2 + $0x358] sm:$0xff] %vm1217, 0.0
      %1639 = vst.msk [vmem:[#allocation2 + $0x360] sm:$0xff] %vm1217, 0.0
      %1640 = vst.msk [vmem:[#allocation2 + $0x368] sm:$0xff] %vm1217, 0.0
      %1641 = vst.msk [vmem:[#allocation2 + $0x370] sm:$0xff] %vm1217, 0.0
      %1642 = vst.msk [vmem:[#allocation2 + $0x378] sm:$0xff] %vm1217, 0.0
      %1643 = vst.msk [vmem:[#allocation2 + $0x380] sm:$0xff] %vm1217, 0.0
      %1644 = vst.msk [vmem:[#allocation2 + $0x388] sm:$0xff] %vm1217, 0.0
      %1645 = vst.msk [vmem:[#allocation2 + $0x390] sm:$0xff] %vm1217, 0.0
      %1646 = vst.msk [vmem:[#allocation2 + $0x398] sm:$0xff] %vm1217, 0.0
      %1647 = vst.msk [vmem:[#allocation2 + $0x3a0] sm:$0xff] %vm1217, 0.0
      %1648 = vst.msk [vmem:[#allocation2 + $0x3a8] sm:$0xff] %vm1217, 0.0
      %1649 = vst.msk [vmem:[#allocation2 + $0x3b0] sm:$0xff] %vm1217, 0.0
      %1650 = vst.msk [vmem:[#allocation2 + $0x3b8] sm:$0xff] %vm1217, 0.0
      %1651 = vst.msk [vmem:[#allocation2 + $0x3c0] sm:$0xff] %vm1217, 0.0
      %1652 = vst.msk [vmem:[#allocation2 + $0x3c8] sm:$0xff] %vm1217, 0.0
      %1653 = vst.msk [vmem:[#allocation2 + $0x3d0] sm:$0xff] %vm1217, 0.0
      %1654 = vst.msk [vmem:[#allocation2 + $0x3d8] sm:$0xff] %vm1217, 0.0
      %1655 = vst.msk [vmem:[#allocation2 + $0x3e0] sm:$0xff] %vm1217, 0.0
      %1656 = vst.msk [vmem:[#allocation2 + $0x3e8] sm:$0xff] %vm1217, 0.0
      %1657 = vst.msk [vmem:[#allocation2 + $0x3f0] sm:$0xff] %vm1217, 0.0
      %1658 = vst.msk [vmem:[#allocation2 + $0x3f8] sm:$0xff] %vm1217, 0.0
      %s1659 = scalar_lea.vmem [#allocation2], 256
      %1660 = vst.msk [vmem:[%s1659 + $0x8] sm:$0xff] %vm1217, %v1499
      %1661 = vst.msk [vmem:[%s1659 + $0x10] sm:$0xff] %vm1217, %v1500
      %1662 = vst.msk [vmem:[%s1659 + $0x28] sm:$0xff] %vm1217, %v1501
      %1663 = vst.msk [vmem:[%s1659 + $0x30] sm:$0xff] %vm1217, %v1502
      %1664 = vst.msk [vmem:[%s1659 + $0x48] sm:$0xff] %vm1217, %v1503
      %1665 = vst.msk [vmem:[%s1659 + $0x50] sm:$0xff] %vm1217, %v1504
      %1666 = vst.msk [vmem:[%s1659 + $0x68] sm:$0xff] %vm1217, %v1505
      %1667 = vst.msk [vmem:[%s1659 + $0x70] sm:$0xff] %vm1217, %v1506
      %1668 = vst.msk [vmem:[%s1659 + $0x88] sm:$0xff] %vm1217, %v1507
      %1669 = vst.msk [vmem:[%s1659 + $0x90] sm:$0xff] %vm1217, %v1508
      %1670 = vst.msk [vmem:[%s1659 + $0xa8] sm:$0xff] %vm1217, %v1509
      %1671 = vst.msk [vmem:[%s1659 + $0xb0] sm:$0xff] %vm1217, %v1510
      %1672 = vst.msk [vmem:[%s1659 + $0xc8] sm:$0xff] %vm1217, %v1511
      %1673 = vst.msk [vmem:[%s1659 + $0xd0] sm:$0xff] %vm1217, %v1512
      %1674 = vst.msk [vmem:[%s1659 + $0xe8] sm:$0xff] %vm1217, %v1513
      %1675 = vst.msk [vmem:[%s1659 + $0xf0] sm:$0xff] %vm1217, %v1514
      %1676 = vst.msk [vmem:[%s1659 + $0x108] sm:$0xff] %vm1217, %v1515
      %1677 = vst.msk [vmem:[%s1659 + $0x110] sm:$0xff] %vm1217, %v1516
      %1678 = vst.msk [vmem:[%s1659 + $0x128] sm:$0xff] %vm1217, %v1517
      %1679 = vst.msk [vmem:[%s1659 + $0x130] sm:$0xff] %vm1217, %v1518
      %1680 = vst.msk [vmem:[%s1659 + $0x148] sm:$0xff] %vm1217, %v1519
      %1681 = vst.msk [vmem:[%s1659 + $0x150] sm:$0xff] %vm1217, %v1520
      %1682 = vst.msk [vmem:[%s1659 + $0x168] sm:$0xff] %vm1217, %v1521
      %1683 = vst.msk [vmem:[%s1659 + $0x170] sm:$0xff] %vm1217, %v1522
      %1684 = vst.msk [vmem:[%s1659 + $0x188] sm:$0xff] %vm1217, %v1523
      %1685 = vst.msk [vmem:[%s1659 + $0x190] sm:$0xff] %vm1217, %v1524
      %1686 = vst.msk [vmem:[%s1659 + $0x1a8] sm:$0xff] %vm1217, %v1525
      %1687 = vst.msk [vmem:[%s1659 + $0x1b0] sm:$0xff] %vm1217, %v1526
      %1688 = vst.msk [vmem:[%s1659 + $0x1c8] sm:$0xff] %vm1217, %v1527
      %1689 = vst.msk [vmem:[%s1659 + $0x1d0] sm:$0xff] %vm1217, %v1528
      %1690 = vst.msk [vmem:[%s1659 + $0x1e8] sm:$0xff] %vm1217, %v1529
      %1691 = vst.msk [vmem:[%s1659 + $0x1f0] sm:$0xff] %vm1217, %v1530
      %v1692 = vld [vmem:[#allocation2 + $0xe0] sm:$0xff]
      %v1693 = vld [vmem:[#allocation2 + $0xe8] sm:$0xff]
      %v1694 = vld [vmem:[#allocation2 + $0xf0] sm:$0xff]
      %v1695 = vld [vmem:[#allocation2 + $0xf8] sm:$0xff]
      %v1696 = vld [vmem:[#allocation2 + $0x100] sm:$0xff]
      %v1697 = vld [vmem:[#allocation2 + $0x108] sm:$0xff]
      %v1698 = vld [vmem:[#allocation2 + $0x110] sm:$0xff]
      %v1699 = vld [vmem:[#allocation2 + $0x118] sm:$0xff]
      %v1700 = vld [vmem:[#allocation2 + $0x120] sm:$0xff]
      %v1701 = vld [vmem:[#allocation2 + $0x128] sm:$0xff]
      %v1702 = vld [vmem:[#allocation2 + $0x130] sm:$0xff]
      %v1703 = vld [vmem:[#allocation2 + $0x138] sm:$0xff]
      %v1704 = vld [vmem:[#allocation2 + $0x140] sm:$0xff]
      %v1705 = vld [vmem:[#allocation2 + $0x148] sm:$0xff]
      %v1706 = vld [vmem:[#allocation2 + $0x150] sm:$0xff]
      %v1707 = vld [vmem:[#allocation2 + $0x158] sm:$0xff]
      %v1708 = vld [vmem:[#allocation2 + $0x160] sm:$0xff]
      %v1709 = vld [vmem:[#allocation2 + $0x168] sm:$0xff]
      %v1710 = vld [vmem:[#allocation2 + $0x170] sm:$0xff]
      %v1711 = vld [vmem:[#allocation2 + $0x178] sm:$0xff]
      %v1712 = vld [vmem:[#allocation2 + $0x180] sm:$0xff]
      %v1713 = vld [vmem:[#allocation2 + $0x188] sm:$0xff]
      %v1714 = vld [vmem:[#allocation2 + $0x190] sm:$0xff]
      %v1715 = vld [vmem:[#allocation2 + $0x198] sm:$0xff]
      %v1716 = vld [vmem:[#allocation2 + $0x1a0] sm:$0xff]
      %v1717 = vld [vmem:[#allocation2 + $0x1a8] sm:$0xff]
      %v1718 = vld [vmem:[#allocation2 + $0x1b0] sm:$0xff]
      %v1719 = vld [vmem:[#allocation2 + $0x1b8] sm:$0xff]
      %v1720 = vld [vmem:[#allocation2 + $0x1c0] sm:$0xff]
      %v1721 = vld [vmem:[#allocation2 + $0x1c8] sm:$0xff]
      %v1722 = vld [vmem:[#allocation2 + $0x1d0] sm:$0xff]
      %v1723 = vld [vmem:[#allocation2 + $0x1d8] sm:$0xff]
      %v1724 = vld [vmem:[#allocation2 + $0x1e0] sm:$0xff]
      %v1725 = vld [vmem:[#allocation2 + $0x1e8] sm:$0xff]
      %v1726 = vld [vmem:[#allocation2 + $0x1f0] sm:$0xff]
      %v1727 = vld [vmem:[#allocation2 + $0x1f8] sm:$0xff]
      %v1728 = vld [vmem:[#allocation2 + $0x200] sm:$0xff]
      %v1729 = vld [vmem:[#allocation2 + $0x208] sm:$0xff]
      %v1730 = vld [vmem:[#allocation2 + $0x210] sm:$0xff]
      %v1731 = vld [vmem:[#allocation2 + $0x218] sm:$0xff]
      %v1732 = vld [vmem:[#allocation2 + $0x220] sm:$0xff]
      %v1733 = vld [vmem:[#allocation2 + $0x228] sm:$0xff]
      %v1734 = vld [vmem:[#allocation2 + $0x230] sm:$0xff]
      %v1735 = vld [vmem:[#allocation2 + $0x238] sm:$0xff]
      %v1736 = vld [vmem:[#allocation2 + $0x240] sm:$0xff]
      %v1737 = vld [vmem:[#allocation2 + $0x248] sm:$0xff]
      %v1738 = vld [vmem:[#allocation2 + $0x250] sm:$0xff]
      %v1739 = vld [vmem:[#allocation2 + $0x258] sm:$0xff]
      %v1740 = vld [vmem:[#allocation2 + $0x260] sm:$0xff]
      %v1741 = vld [vmem:[#allocation2 + $0x268] sm:$0xff]
      %v1742 = vld [vmem:[#allocation2 + $0x270] sm:$0xff]
      %v1743 = vld [vmem:[#allocation2 + $0x278] sm:$0xff]
      %v1744 = vld [vmem:[#allocation2 + $0x280] sm:$0xff]
      %v1745 = vld [vmem:[#allocation2 + $0x288] sm:$0xff]
      %v1746 = vld [vmem:[#allocation2 + $0x290] sm:$0xff]
      %v1747 = vld [vmem:[#allocation2 + $0x298] sm:$0xff]
      %v1748 = vld [vmem:[#allocation2 + $0x2a0] sm:$0xff]
      %v1749 = vld [vmem:[#allocation2 + $0x2a8] sm:$0xff]
      %v1750 = vld [vmem:[#allocation2 + $0x2b0] sm:$0xff]
      %v1751 = vld [vmem:[#allocation2 + $0x2b8] sm:$0xff]
      %v1752 = vld [vmem:[#allocation2 + $0x2c0] sm:$0xff]
      %v1753 = vld [vmem:[#allocation2 + $0x2c8] sm:$0xff]
      %v1754 = vld [vmem:[#allocation2 + $0x2d0] sm:$0xff]
      %v1755 = vld [vmem:[#allocation2 + $0x2d8] sm:$0xff]
      %v1756 = vld [vmem:[#allocation2 + $0x2e0] sm:$0xff]
      %v1757 = vld [vmem:[#allocation2 + $0x2e8] sm:$0xff]
      %v1758 = vld [vmem:[#allocation2 + $0x2f0] sm:$0xff]
      %v1759 = vld [vmem:[#allocation2 + $0x2f8] sm:$0xff]
      %v1760 = vld [vmem:[#allocation2 + $0x300] sm:$0xff]
      %v1761 = vld [vmem:[#allocation2 + $0x308] sm:$0xff]
      %v1762 = vld [vmem:[#allocation2 + $0x310] sm:$0xff]
      %v1763 = vld [vmem:[#allocation2 + $0x318] sm:$0xff]
      %v1764 = vld [vmem:[%s11] sm:$0x7]
      %v1765 = vld [vmem:[%s11 + $0x4] sm:$0x7]
      %v1766 = vld [vmem:[%s11 + $0x8] sm:$0x7]
      %v1767 = vperm.slane %v1764, 0
      %v1768 = vmul.f32 %v1692, %v1767
      %v1769 = vmul.f32 %v1693, %v1767
      %v1770 = vmul.f32 %v1694, %v1767
      %v1771 = vmul.f32 %v1696, %v1767
      %v1772 = vmul.f32 %v1697, %v1767
      %v1773 = vmul.f32 %v1698, %v1767
      %v1774 = vmul.f32 %v1700, %v1767
      %v1775 = vmul.f32 %v1701, %v1767
      %v1776 = vmul.f32 %v1702, %v1767
      %v1777 = vmul.f32 %v1704, %v1767
      %v1778 = vmul.f32 %v1705, %v1767
      %v1779 = vmul.f32 %v1706, %v1767
      %v1780 = vmul.f32 %v1708, %v1767
      %v1781 = vmul.f32 %v1709, %v1767
      %v1782 = vmul.f32 %v1710, %v1767
      %v1783 = vmul.f32 %v1712, %v1767
      %v1784 = vmul.f32 %v1713, %v1767
      %v1785 = vmul.f32 %v1714, %v1767
      %v1786 = vmul.f32 %v1716, %v1767
      %v1787 = vmul.f32 %v1717, %v1767
      %v1788 = vmul.f32 %v1718, %v1767
      %v1789 = vmul.f32 %v1720, %v1767
      %v1790 = vmul.f32 %v1721, %v1767
      %v1791 = vmul.f32 %v1722, %v1767
      %v1792 = vmul.f32 %v1724, %v1767
      %v1793 = vmul.f32 %v1725, %v1767
      %v1794 = vmul.f32 %v1726, %v1767
      %v1795 = vmul.f32 %v1728, %v1767
      %v1796 = vmul.f32 %v1729, %v1767
      %v1797 = vmul.f32 %v1730, %v1767
      %v1798 = vmul.f32 %v1732, %v1767
      %v1799 = vmul.f32 %v1733, %v1767
      %v1800 = vmul.f32 %v1734, %v1767
      %v1801 = vmul.f32 %v1736, %v1767
      %v1802 = vmul.f32 %v1737, %v1767
      %v1803 = vmul.f32 %v1738, %v1767
      %v1804 = vmul.f32 %v1740, %v1767
      %v1805 = vmul.f32 %v1741, %v1767
      %v1806 = vmul.f32 %v1742, %v1767
      %v1807 = vmul.f32 %v1744, %v1767
      %v1808 = vmul.f32 %v1745, %v1767
      %v1809 = vmul.f32 %v1746, %v1767
      %v1810 = vmul.f32 %v1748, %v1767
      %v1811 = vmul.f32 %v1749, %v1767
      %v1812 = vmul.f32 %v1750, %v1767
      %v1813 = vmul.f32 %v1752, %v1767
      %v1814 = vmul.f32 %v1753, %v1767
      %v1815 = vmul.f32 %v1754, %v1767
      %v1816 = vperm.slane %v1764, 1
      %v1817 = vmul.f32 %v1693, %v1816
      %v1818 = vmul.f32 %v1694, %v1816
      %v1819 = vmul.f32 %v1697, %v1816
      %v1820 = vmul.f32 %v1698, %v1816
      %v1821 = vmul.f32 %v1701, %v1816
      %v1822 = vmul.f32 %v1702, %v1816
      %v1823 = vmul.f32 %v1705, %v1816
      %v1824 = vmul.f32 %v1706, %v1816
      %v1825 = vmul.f32 %v1709, %v1816
      %v1826 = vmul.f32 %v1710, %v1816
      %v1827 = vmul.f32 %v1713, %v1816
      %v1828 = vmul.f32 %v1714, %v1816
      %v1829 = vmul.f32 %v1717, %v1816
      %v1830 = vmul.f32 %v1718, %v1816
      %v1831 = vmul.f32 %v1721, %v1816
      %v1832 = vmul.f32 %v1722, %v1816
      %v1833 = vmul.f32 %v1725, %v1816
      %v1834 = vmul.f32 %v1726, %v1816
      %v1835 = vmul.f32 %v1729, %v1816
      %v1836 = vmul.f32 %v1730, %v1816
      %v1837 = vmul.f32 %v1733, %v1816
      %v1838 = vmul.f32 %v1734, %v1816
      %v1839 = vmul.f32 %v1737, %v1816
      %v1840 = vmul.f32 %v1738, %v1816
      %v1841 = vmul.f32 %v1741, %v1816
      %v1842 = vmul.f32 %v1742, %v1816
      %v1843 = vmul.f32 %v1745, %v1816
      %v1844 = vmul.f32 %v1746, %v1816
      %v1845 = vmul.f32 %v1749, %v1816
      %v1846 = vmul.f32 %v1750, %v1816
      %v1847 = vmul.f32 %v1753, %v1816
      %v1848 = vmul.f32 %v1754, %v1816
      %vm1881 = vcmask 1046528
      %v1882 = vrot.slane %v1817, 1
      %v1883 = vrot.slane %v1818, 1
      %v1884 = vsel %vm1881, %v1882, %v1883
      %v1885 = vrot.slane %v1819, 1
      %v1886 = vrot.slane %v1820, 1
      %v1887 = vsel %vm1881, %v1885, %v1886
      %v1888 = vrot.slane %v1821, 1
      %v1889 = vrot.slane %v1822, 1
      %v1890 = vsel %vm1881, %v1888, %v1889
      %v1891 = vrot.slane %v1823, 1
      %v1892 = vrot.slane %v1824, 1
      %v1893 = vsel %vm1881, %v1891, %v1892
      %v1894 = vrot.slane %v1825, 1
      %v1895 = vrot.slane %v1826, 1
      %v1896 = vsel %vm1881, %v1894, %v1895
      %v1897 = vrot.slane %v1827, 1
      %v1898 = vrot.slane %v1828, 1
      %v1899 = vsel %vm1881, %v1897, %v1898
      %v1900 = vrot.slane %v1829, 1
      %v1901 = vrot.slane %v1830, 1
      %v1902 = vsel %vm1881, %v1900, %v1901
      %v1903 = vrot.slane %v1831, 1
      %v1904 = vrot.slane %v1832, 1
      %v1905 = vsel %vm1881, %v1903, %v1904
      %v1906 = vrot.slane %v1833, 1
      %v1907 = vrot.slane %v1834, 1
      %v1908 = vsel %vm1881, %v1906, %v1907
      %v1909 = vrot.slane %v1835, 1
      %v1910 = vrot.slane %v1836, 1
      %v1911 = vsel %vm1881, %v1909, %v1910
      %v1912 = vrot.slane %v1837, 1
      %v1913 = vrot.slane %v1838, 1
      %v1914 = vsel %vm1881, %v1912, %v1913
      %v1915 = vrot.slane %v1839, 1
      %v1916 = vrot.slane %v1840, 1
      %v1917 = vsel %vm1881, %v1915, %v1916
      %v1918 = vrot.slane %v1841, 1
      %v1919 = vrot.slane %v1842, 1
      %v1920 = vsel %vm1881, %v1918, %v1919
      %v1921 = vrot.slane %v1843, 1
      %v1922 = vrot.slane %v1844, 1
      %v1923 = vsel %vm1881, %v1921, %v1922
      %v1924 = vrot.slane %v1845, 1
      %v1925 = vrot.slane %v1846, 1
      %v1926 = vsel %vm1881, %v1924, %v1925
      %v1927 = vrot.slane %v1847, 1
      %v1928 = vrot.slane %v1848, 1
      %v1929 = vsel %vm1881, %v1927, %v1928
      %v1978 = vadd.f32 %v1768, %v1882
      %v1979 = vadd.f32 %v1769, %v1884
      %v1980 = vadd.f32 %v1770, %v1883
      %v1981 = vadd.f32 %v1771, %v1885
      %v1982 = vadd.f32 %v1772, %v1887
      %v1983 = vadd.f32 %v1773, %v1886
      %v1984 = vadd.f32 %v1774, %v1888
      %v1985 = vadd.f32 %v1775, %v1890
      %v1986 = vadd.f32 %v1776, %v1889
      %v1987 = vadd.f32 %v1777, %v1891
      %v1988 = vadd.f32 %v1778, %v1893
      %v1989 = vadd.f32 %v1779, %v1892
      %v1990 = vadd.f32 %v1780, %v1894
      %v1991 = vadd.f32 %v1781, %v1896
      %v1992 = vadd.f32 %v1782, %v1895
      %v1993 = vadd.f32 %v1783, %v1897
      %v1994 = vadd.f32 %v1784, %v1899
      %v1995 = vadd.f32 %v1785, %v1898
      %v1996 = vadd.f32 %v1786, %v1900
      %v1997 = vadd.f32 %v1787, %v1902
      %v1998 = vadd.f32 %v1788, %v1901
      %v1999 = vadd.f32 %v1789, %v1903
      %v2000 = vadd.f32 %v1790, %v1905
      %v2001 = vadd.f32 %v1791, %v1904
      %v2002 = vadd.f32 %v1792, %v1906
      %v2003 = vadd.f32 %v1793, %v1908
      %v2004 = vadd.f32 %v1794, %v1907
      %v2005 = vadd.f32 %v1795, %v1909
      %v2006 = vadd.f32 %v1796, %v1911
      %v2007 = vadd.f32 %v1797, %v1910
      %v2008 = vadd.f32 %v1798, %v1912
      %v2009 = vadd.f32 %v1799, %v1914
      %v2010 = vadd.f32 %v1800, %v1913
      %v2011 = vadd.f32 %v1801, %v1915
      %v2012 = vadd.f32 %v1802, %v1917
      %v2013 = vadd.f32 %v1803, %v1916
      %v2014 = vadd.f32 %v1804, %v1918
      %v2015 = vadd.f32 %v1805, %v1920
      %v2016 = vadd.f32 %v1806, %v1919
      %v2017 = vadd.f32 %v1807, %v1921
      %v2018 = vadd.f32 %v1808, %v1923
      %v2019 = vadd.f32 %v1809, %v1922
      %v2020 = vadd.f32 %v1810, %v1924
      %v2021 = vadd.f32 %v1811, %v1926
      %v2022 = vadd.f32 %v1812, %v1925
      %v2023 = vadd.f32 %v1813, %v1927
      %v2024 = vadd.f32 %v1814, %v1929
      %v2025 = vadd.f32 %v1815, %v1928
      %v2026 = vperm.slane %v1764, 2
      %v2027 = vmul.f32 %v1693, %v2026
      %v2028 = vmul.f32 %v1694, %v2026
      %v2029 = vmul.f32 %v1695, %v2026
      %v2030 = vmul.f32 %v1697, %v2026
      %v2031 = vmul.f32 %v1698, %v2026
      %v2032 = vmul.f32 %v1699, %v2026
      %v2033 = vmul.f32 %v1701, %v2026
      %v2034 = vmul.f32 %v1702, %v2026
      %v2035 = vmul.f32 %v1703, %v2026
      %v2036 = vmul.f32 %v1705, %v2026
      %v2037 = vmul.f32 %v1706, %v2026
      %v2038 = vmul.f32 %v1707, %v2026
      %v2039 = vmul.f32 %v1709, %v2026
      %v2040 = vmul.f32 %v1710, %v2026
      %v2041 = vmul.f32 %v1711, %v2026
      %v2042 = vmul.f32 %v1713, %v2026
      %v2043 = vmul.f32 %v1714, %v2026
      %v2044 = vmul.f32 %v1715, %v2026
      %v2045 = vmul.f32 %v1717, %v2026
      %v2046 = vmul.f32 %v1718, %v2026
      %v2047 = vmul.f32 %v1719, %v2026
      %v2048 = vmul.f32 %v1721, %v2026
      %v2049 = vmul.f32 %v1722, %v2026
      %v2050 = vmul.f32 %v1723, %v2026
      %v2051 = vmul.f32 %v1725, %v2026
      %v2052 = vmul.f32 %v1726, %v2026
      %v2053 = vmul.f32 %v1727, %v2026
      %v2054 = vmul.f32 %v1729, %v2026
      %v2055 = vmul.f32 %v1730, %v2026
      %v2056 = vmul.f32 %v1731, %v2026
      %v2057 = vmul.f32 %v1733, %v2026
      %v2058 = vmul.f32 %v1734, %v2026
      %v2059 = vmul.f32 %v1735, %v2026
      %v2060 = vmul.f32 %v1737, %v2026
      %v2061 = vmul.f32 %v1738, %v2026
      %v2062 = vmul.f32 %v1739, %v2026
      %v2063 = vmul.f32 %v1741, %v2026
      %v2064 = vmul.f32 %v1742, %v2026
      %v2065 = vmul.f32 %v1743, %v2026
      %v2066 = vmul.f32 %v1745, %v2026
      %v2067 = vmul.f32 %v1746, %v2026
      %v2068 = vmul.f32 %v1747, %v2026
      %v2069 = vmul.f32 %v1749, %v2026
      %v2070 = vmul.f32 %v1750, %v2026
      %v2071 = vmul.f32 %v1751, %v2026
      %v2072 = vmul.f32 %v1753, %v2026
      %v2073 = vmul.f32 %v1754, %v2026
      %v2074 = vmul.f32 %v1755, %v2026
      %vm2123 = vcmask 1045504
      %v2124 = vrot.slane %v2027, 2
      %v2125 = vrot.slane %v2028, 2
      %v2126 = vsel %vm2123, %v2124, %v2125
      %v2127 = vrot.slane %v2029, 2
      %v2128 = vsel %vm2123, %v2125, %v2127
      %v2129 = vrot.slane %v2030, 2
      %v2130 = vrot.slane %v2031, 2
      %v2131 = vsel %vm2123, %v2129, %v2130
      %v2132 = vrot.slane %v2032, 2
      %v2133 = vsel %vm2123, %v2130, %v2132
      %v2134 = vrot.slane %v2033, 2
      %v2135 = vrot.slane %v2034, 2
      %v2136 = vsel %vm2123, %v2134, %v2135
      %v2137 = vrot.slane %v2035, 2
      %v2138 = vsel %vm2123, %v2135, %v2137
      %v2139 = vrot.slane %v2036, 2
      %v2140 = vrot.slane %v2037, 2
      %v2141 = vsel %vm2123, %v2139, %v2140
      %v2142 = vrot.slane %v2038, 2
      %v2143 = vsel %vm2123, %v2140, %v2142
      %v2144 = vrot.slane %v2039, 2
      %v2145 = vrot.slane %v2040, 2
      %v2146 = vsel %vm2123, %v2144, %v2145
      %v2147 = vrot.slane %v2041, 2
      %v2148 = vsel %vm2123, %v2145, %v2147
      %v2149 = vrot.slane %v2042, 2
      %v2150 = vrot.slane %v2043, 2
      %v2151 = vsel %vm2123, %v2149, %v2150
      %v2152 = vrot.slane %v2044, 2
      %v2153 = vsel %vm2123, %v2150, %v2152
      %v2154 = vrot.slane %v2045, 2
      %v2155 = vrot.slane %v2046, 2
      %v2156 = vsel %vm2123, %v2154, %v2155
      %v2157 = vrot.slane %v2047, 2
      %v2158 = vsel %vm2123, %v2155, %v2157
      %v2159 = vrot.slane %v2048, 2
      %v2160 = vrot.slane %v2049, 2
      %v2161 = vsel %vm2123, %v2159, %v2160
      %v2162 = vrot.slane %v2050, 2
      %v2163 = vsel %vm2123, %v2160, %v2162
      %v2164 = vrot.slane %v2051, 2
      %v2165 = vrot.slane %v2052, 2
      %v2166 = vsel %vm2123, %v2164, %v2165
      %v2167 = vrot.slane %v2053, 2
      %v2168 = vsel %vm2123, %v2165, %v2167
      %v2169 = vrot.slane %v2054, 2
      %v2170 = vrot.slane %v2055, 2
      %v2171 = vsel %vm2123, %v2169, %v2170
      %v2172 = vrot.slane %v2056, 2
      %v2173 = vsel %vm2123, %v2170, %v2172
      %v2174 = vrot.slane %v2057, 2
      %v2175 = vrot.slane %v2058, 2
      %v2176 = vsel %vm2123, %v2174, %v2175
      %v2177 = vrot.slane %v2059, 2
      %v2178 = vsel %vm2123, %v2175, %v2177
      %v2179 = vrot.slane %v2060, 2
      %v2180 = vrot.slane %v2061, 2
      %v2181 = vsel %vm2123, %v2179, %v2180
      %v2182 = vrot.slane %v2062, 2
      %v2183 = vsel %vm2123, %v2180, %v2182
      %v2184 = vrot.slane %v2063, 2
      %v2185 = vrot.slane %v2064, 2
      %v2186 = vsel %vm2123, %v2184, %v2185
      %v2187 = vrot.slane %v2065, 2
      %v2188 = vsel %vm2123, %v2185, %v2187
      %v2189 = vrot.slane %v2066, 2
      %v2190 = vrot.slane %v2067, 2
      %v2191 = vsel %vm2123, %v2189, %v2190
      %v2192 = vrot.slane %v2068, 2
      %v2193 = vsel %vm2123, %v2190, %v2192
      %v2194 = vrot.slane %v2069, 2
      %v2195 = vrot.slane %v2070, 2
      %v2196 = vsel %vm2123, %v2194, %v2195
      %v2197 = vrot.slane %v2071, 2
      %v2198 = vsel %vm2123, %v2195, %v2197
      %v2199 = vrot.slane %v2072, 2
      %v2200 = vrot.slane %v2073, 2
      %v2201 = vsel %vm2123, %v2199, %v2200
      %v2202 = vrot.slane %v2074, 2
      %v2203 = vsel %vm2123, %v2200, %v2202
      %v2252 = vadd.f32 %v1978, %v2124
      %v2253 = vadd.f32 %v1979, %v2126
      %v2254 = vadd.f32 %v1980, %v2128
      %v2255 = vadd.f32 %v1981, %v2129
      %v2256 = vadd.f32 %v1982, %v2131
      %v2257 = vadd.f32 %v1983, %v2133
      %v2258 = vadd.f32 %v1984, %v2134
      %v2259 = vadd.f32 %v1985, %v2136
      %v2260 = vadd.f32 %v1986, %v2138
      %v2261 = vadd.f32 %v1987, %v2139
      %v2262 = vadd.f32 %v1988, %v2141
      %v2263 = vadd.f32 %v1989, %v2143
      %v2264 = vadd.f32 %v1990, %v2144
      %v2265 = vadd.f32 %v1991, %v2146
      %v2266 = vadd.f32 %v1992, %v2148
      %v2267 = vadd.f32 %v1993, %v2149
      %v2268 = vadd.f32 %v1994, %v2151
      %v2269 = vadd.f32 %v1995, %v2153
      %v2270 = vadd.f32 %v1996, %v2154
      %v2271 = vadd.f32 %v1997, %v2156
      %v2272 = vadd.f32 %v1998, %v2158
      %v2273 = vadd.f32 %v1999, %v2159
      %v2274 = vadd.f32 %v2000, %v2161
      %v2275 = vadd.f32 %v2001, %v2163
      %v2276 = vadd.f32 %v2002, %v2164
      %v2277 = vadd.f32 %v2003, %v2166
      %v2278 = vadd.f32 %v2004, %v2168
      %v2279 = vadd.f32 %v2005, %v2169
      %v2280 = vadd.f32 %v2006, %v2171
      %v2281 = vadd.f32 %v2007, %v2173
      %v2282 = vadd.f32 %v2008, %v2174
      %v2283 = vadd.f32 %v2009, %v2176
      %v2284 = vadd.f32 %v2010, %v2178
      %v2285 = vadd.f32 %v2011, %v2179
      %v2286 = vadd.f32 %v2012, %v2181
      %v2287 = vadd.f32 %v2013, %v2183
      %v2288 = vadd.f32 %v2014, %v2184
      %v2289 = vadd.f32 %v2015, %v2186
      %v2290 = vadd.f32 %v2016, %v2188
      %v2291 = vadd.f32 %v2017, %v2189
      %v2292 = vadd.f32 %v2018, %v2191
      %v2293 = vadd.f32 %v2019, %v2193
      %v2294 = vadd.f32 %v2020, %v2194
      %v2295 = vadd.f32 %v2021, %v2196
      %v2296 = vadd.f32 %v2022, %v2198
      %v2297 = vadd.f32 %v2023, %v2199
      %v2298 = vadd.f32 %v2024, %v2201
      %v2299 = vadd.f32 %v2025, %v2203
      %v2300 = vperm.slane %v1765, 0
      %v2301 = vmul.f32 %v1696, %v2300
      %v2302 = vmul.f32 %v1697, %v2300
      %v2303 = vmul.f32 %v1698, %v2300
      %v2304 = vmul.f32 %v1700, %v2300
      %v2305 = vmul.f32 %v1701, %v2300
      %v2306 = vmul.f32 %v1702, %v2300
      %v2307 = vmul.f32 %v1704, %v2300
      %v2308 = vmul.f32 %v1705, %v2300
      %v2309 = vmul.f32 %v1706, %v2300
      %v2310 = vmul.f32 %v1708, %v2300
      %v2311 = vmul.f32 %v1709, %v2300
      %v2312 = vmul.f32 %v1710, %v2300
      %v2313 = vmul.f32 %v1712, %v2300
      %v2314 = vmul.f32 %v1713, %v2300
      %v2315 = vmul.f32 %v1714, %v2300
      %v2316 = vmul.f32 %v1716, %v2300
      %v2317 = vmul.f32 %v1717, %v2300
      %v2318 = vmul.f32 %v1718, %v2300
      %v2319 = vmul.f32 %v1720, %v2300
      %v2320 = vmul.f32 %v1721, %v2300
      %v2321 = vmul.f32 %v1722, %v2300
      %v2322 = vmul.f32 %v1724, %v2300
      %v2323 = vmul.f32 %v1725, %v2300
      %v2324 = vmul.f32 %v1726, %v2300
      %v2325 = vmul.f32 %v1728, %v2300
      %v2326 = vmul.f32 %v1729, %v2300
      %v2327 = vmul.f32 %v1730, %v2300
      %v2328 = vmul.f32 %v1732, %v2300
      %v2329 = vmul.f32 %v1733, %v2300
      %v2330 = vmul.f32 %v1734, %v2300
      %v2331 = vmul.f32 %v1736, %v2300
      %v2332 = vmul.f32 %v1737, %v2300
      %v2333 = vmul.f32 %v1738, %v2300
      %v2334 = vmul.f32 %v1740, %v2300
      %v2335 = vmul.f32 %v1741, %v2300
      %v2336 = vmul.f32 %v1742, %v2300
      %v2337 = vmul.f32 %v1744, %v2300
      %v2338 = vmul.f32 %v1745, %v2300
      %v2339 = vmul.f32 %v1746, %v2300
      %v2340 = vmul.f32 %v1748, %v2300
      %v2341 = vmul.f32 %v1749, %v2300
      %v2342 = vmul.f32 %v1750, %v2300
      %v2343 = vmul.f32 %v1752, %v2300
      %v2344 = vmul.f32 %v1753, %v2300
      %v2345 = vmul.f32 %v1754, %v2300
      %v2346 = vmul.f32 %v1756, %v2300
      %v2347 = vmul.f32 %v1757, %v2300
      %v2348 = vmul.f32 %v1758, %v2300
      %v2349 = vadd.f32 %v2252, %v2301
      %v2350 = vadd.f32 %v2253, %v2302
      %v2351 = vadd.f32 %v2254, %v2303
      %v2352 = vadd.f32 %v2255, %v2304
      %v2353 = vadd.f32 %v2256, %v2305
      %v2354 = vadd.f32 %v2257, %v2306
      %v2355 = vadd.f32 %v2258, %v2307
      %v2356 = vadd.f32 %v2259, %v2308
      %v2357 = vadd.f32 %v2260, %v2309
      %v2358 = vadd.f32 %v2261, %v2310
      %v2359 = vadd.f32 %v2262, %v2311
      %v2360 = vadd.f32 %v2263, %v2312
      %v2361 = vadd.f32 %v2264, %v2313
      %v2362 = vadd.f32 %v2265, %v2314
      %v2363 = vadd.f32 %v2266, %v2315
      %v2364 = vadd.f32 %v2267, %v2316
      %v2365 = vadd.f32 %v2268, %v2317
      %v2366 = vadd.f32 %v2269, %v2318
      %v2367 = vadd.f32 %v2270, %v2319
      %v2368 = vadd.f32 %v2271, %v2320
      %v2369 = vadd.f32 %v2272, %v2321
      %v2370 = vadd.f32 %v2273, %v2322
      %v2371 = vadd.f32 %v2274, %v2323
      %v2372 = vadd.f32 %v2275, %v2324
      %v2373 = vadd.f32 %v2276, %v2325
      %v2374 = vadd.f32 %v2277, %v2326
      %v2375 = vadd.f32 %v2278, %v2327
      %v2376 = vadd.f32 %v2279, %v2328
      %v2377 = vadd.f32 %v2280, %v2329
      %v2378 = vadd.f32 %v2281, %v2330
      %v2379 = vadd.f32 %v2282, %v2331
      %v2380 = vadd.f32 %v2283, %v2332
      %v2381 = vadd.f32 %v2284, %v2333
      %v2382 = vadd.f32 %v2285, %v2334
      %v2383 = vadd.f32 %v2286, %v2335
      %v2384 = vadd.f32 %v2287, %v2336
      %v2385 = vadd.f32 %v2288, %v2337
      %v2386 = vadd.f32 %v2289, %v2338
      %v2387 = vadd.f32 %v2290, %v2339
      %v2388 = vadd.f32 %v2291, %v2340
      %v2389 = vadd.f32 %v2292, %v2341
      %v2390 = vadd.f32 %v2293, %v2342
      %v2391 = vadd.f32 %v2294, %v2343
      %v2392 = vadd.f32 %v2295, %v2344
      %v2393 = vadd.f32 %v2296, %v2345
      %v2394 = vadd.f32 %v2297, %v2346
      %v2395 = vadd.f32 %v2298, %v2347
      %v2396 = vadd.f32 %v2299, %v2348
      %v2397 = vperm.slane %v1765, 1
      %v2398 = vmul.f32 %v1697, %v2397
      %v2399 = vmul.f32 %v1698, %v2397
      %v2400 = vmul.f32 %v1701, %v2397
      %v2401 = vmul.f32 %v1702, %v2397
      %v2402 = vmul.f32 %v1705, %v2397
      %v2403 = vmul.f32 %v1706, %v2397
      %v2404 = vmul.f32 %v1709, %v2397
      %v2405 = vmul.f32 %v1710, %v2397
      %v2406 = vmul.f32 %v1713, %v2397
      %v2407 = vmul.f32 %v1714, %v2397
      %v2408 = vmul.f32 %v1717, %v2397
      %v2409 = vmul.f32 %v1718, %v2397
      %v2410 = vmul.f32 %v1721, %v2397
      %v2411 = vmul.f32 %v1722, %v2397
      %v2412 = vmul.f32 %v1725, %v2397
      %v2413 = vmul.f32 %v1726, %v2397
      %v2414 = vmul.f32 %v1729, %v2397
      %v2415 = vmul.f32 %v1730, %v2397
      %v2416 = vmul.f32 %v1733, %v2397
      %v2417 = vmul.f32 %v1734, %v2397
      %v2418 = vmul.f32 %v1737, %v2397
      %v2419 = vmul.f32 %v1738, %v2397
      %v2420 = vmul.f32 %v1741, %v2397
      %v2421 = vmul.f32 %v1742, %v2397
      %v2422 = vmul.f32 %v1745, %v2397
      %v2423 = vmul.f32 %v1746, %v2397
      %v2424 = vmul.f32 %v1749, %v2397
      %v2425 = vmul.f32 %v1750, %v2397
      %v2426 = vmul.f32 %v1753, %v2397
      %v2427 = vmul.f32 %v1754, %v2397
      %v2428 = vmul.f32 %v1757, %v2397
      %v2429 = vmul.f32 %v1758, %v2397
      %v2462 = vrot.slane %v2398, 1
      %v2463 = vrot.slane %v2399, 1
      %v2464 = vsel %vm1881, %v2462, %v2463
      %v2465 = vrot.slane %v2400, 1
      %v2466 = vrot.slane %v2401, 1
      %v2467 = vsel %vm1881, %v2465, %v2466
      %v2468 = vrot.slane %v2402, 1
      %v2469 = vrot.slane %v2403, 1
      %v2470 = vsel %vm1881, %v2468, %v2469
      %v2471 = vrot.slane %v2404, 1
      %v2472 = vrot.slane %v2405, 1
      %v2473 = vsel %vm1881, %v2471, %v2472
      %v2474 = vrot.slane %v2406, 1
      %v2475 = vrot.slane %v2407, 1
      %v2476 = vsel %vm1881, %v2474, %v2475
      %v2477 = vrot.slane %v2408, 1
      %v2478 = vrot.slane %v2409, 1
      %v2479 = vsel %vm1881, %v2477, %v2478
      %v2480 = vrot.slane %v2410, 1
      %v2481 = vrot.slane %v2411, 1
      %v2482 = vsel %vm1881, %v2480, %v2481
      %v2483 = vrot.slane %v2412, 1
      %v2484 = vrot.slane %v2413, 1
      %v2485 = vsel %vm1881, %v2483, %v2484
      %v2486 = vrot.slane %v2414, 1
      %v2487 = vrot.slane %v2415, 1
      %v2488 = vsel %vm1881, %v2486, %v2487
      %v2489 = vrot.slane %v2416, 1
      %v2490 = vrot.slane %v2417, 1
      %v2491 = vsel %vm1881, %v2489, %v2490
      %v2492 = vrot.slane %v2418, 1
      %v2493 = vrot.slane %v2419, 1
      %v2494 = vsel %vm1881, %v2492, %v2493
      %v2495 = vrot.slane %v2420, 1
      %v2496 = vrot.slane %v2421, 1
      %v2497 = vsel %vm1881, %v2495, %v2496
      %v2498 = vrot.slane %v2422, 1
      %v2499 = vrot.slane %v2423, 1
      %v2500 = vsel %vm1881, %v2498, %v2499
      %v2501 = vrot.slane %v2424, 1
      %v2502 = vrot.slane %v2425, 1
      %v2503 = vsel %vm1881, %v2501, %v2502
      %v2504 = vrot.slane %v2426, 1
      %v2505 = vrot.slane %v2427, 1
      %v2506 = vsel %vm1881, %v2504, %v2505
      %v2507 = vrot.slane %v2428, 1
      %v2508 = vrot.slane %v2429, 1
      %v2509 = vsel %vm1881, %v2507, %v2508
      %v2558 = vadd.f32 %v2349, %v2462
      %v2559 = vadd.f32 %v2350, %v2464
      %v2560 = vadd.f32 %v2351, %v2463
      %v2561 = vadd.f32 %v2352, %v2465
      %v2562 = vadd.f32 %v2353, %v2467
      %v2563 = vadd.f32 %v2354, %v2466
      %v2564 = vadd.f32 %v2355, %v2468
      %v2565 = vadd.f32 %v2356, %v2470
      %v2566 = vadd.f32 %v2357, %v2469
      %v2567 = vadd.f32 %v2358, %v2471
      %v2568 = vadd.f32 %v2359, %v2473
      %v2569 = vadd.f32 %v2360, %v2472
      %v2570 = vadd.f32 %v2361, %v2474
      %v2571 = vadd.f32 %v2362, %v2476
      %v2572 = vadd.f32 %v2363, %v2475
      %v2573 = vadd.f32 %v2364, %v2477
      %v2574 = vadd.f32 %v2365, %v2479
      %v2575 = vadd.f32 %v2366, %v2478
      %v2576 = vadd.f32 %v2367, %v2480
      %v2577 = vadd.f32 %v2368, %v2482
      %v2578 = vadd.f32 %v2369, %v2481
      %v2579 = vadd.f32 %v2370, %v2483
      %v2580 = vadd.f32 %v2371, %v2485
      %v2581 = vadd.f32 %v2372, %v2484
      %v2582 = vadd.f32 %v2373, %v2486
      %v2583 = vadd.f32 %v2374, %v2488
      %v2584 = vadd.f32 %v2375, %v2487
      %v2585 = vadd.f32 %v2376, %v2489
      %v2586 = vadd.f32 %v2377, %v2491
      %v2587 = vadd.f32 %v2378, %v2490
      %v2588 = vadd.f32 %v2379, %v2492
      %v2589 = vadd.f32 %v2380, %v2494
      %v2590 = vadd.f32 %v2381, %v2493
      %v2591 = vadd.f32 %v2382, %v2495
      %v2592 = vadd.f32 %v2383, %v2497
      %v2593 = vadd.f32 %v2384, %v2496
      %v2594 = vadd.f32 %v2385, %v2498
      %v2595 = vadd.f32 %v2386, %v2500
      %v2596 = vadd.f32 %v2387, %v2499
      %v2597 = vadd.f32 %v2388, %v2501
      %v2598 = vadd.f32 %v2389, %v2503
      %v2599 = vadd.f32 %v2390, %v2502
      %v2600 = vadd.f32 %v2391, %v2504
      %v2601 = vadd.f32 %v2392, %v2506
      %v2602 = vadd.f32 %v2393, %v2505
      %v2603 = vadd.f32 %v2394, %v2507
      %v2604 = vadd.f32 %v2395, %v2509
      %v2605 = vadd.f32 %v2396, %v2508
      %v2606 = vperm.slane %v1765, 2
      %v2607 = vmul.f32 %v1697, %v2606
      %v2608 = vmul.f32 %v1698, %v2606
      %v2609 = vmul.f32 %v1699, %v2606
      %v2610 = vmul.f32 %v1701, %v2606
      %v2611 = vmul.f32 %v1702, %v2606
      %v2612 = vmul.f32 %v1703, %v2606
      %v2613 = vmul.f32 %v1705, %v2606
      %v2614 = vmul.f32 %v1706, %v2606
      %v2615 = vmul.f32 %v1707, %v2606
      %v2616 = vmul.f32 %v1709, %v2606
      %v2617 = vmul.f32 %v1710, %v2606
      %v2618 = vmul.f32 %v1711, %v2606
      %v2619 = vmul.f32 %v1713, %v2606
      %v2620 = vmul.f32 %v1714, %v2606
      %v2621 = vmul.f32 %v1715, %v2606
      %v2622 = vmul.f32 %v1717, %v2606
      %v2623 = vmul.f32 %v1718, %v2606
      %v2624 = vmul.f32 %v1719, %v2606
      %v2625 = vmul.f32 %v1721, %v2606
      %v2626 = vmul.f32 %v1722, %v2606
      %v2627 = vmul.f32 %v1723, %v2606
      %v2628 = vmul.f32 %v1725, %v2606
      %v2629 = vmul.f32 %v1726, %v2606
      %v2630 = vmul.f32 %v1727, %v2606
      %v2631 = vmul.f32 %v1729, %v2606
      %v2632 = vmul.f32 %v1730, %v2606
      %v2633 = vmul.f32 %v1731, %v2606
      %v2634 = vmul.f32 %v1733, %v2606
      %v2635 = vmul.f32 %v1734, %v2606
      %v2636 = vmul.f32 %v1735, %v2606
      %v2637 = vmul.f32 %v1737, %v2606
      %v2638 = vmul.f32 %v1738, %v2606
      %v2639 = vmul.f32 %v1739, %v2606
      %v2640 = vmul.f32 %v1741, %v2606
      %v2641 = vmul.f32 %v1742, %v2606
      %v2642 = vmul.f32 %v1743, %v2606
      %v2643 = vmul.f32 %v1745, %v2606
      %v2644 = vmul.f32 %v1746, %v2606
      %v2645 = vmul.f32 %v1747, %v2606
      %v2646 = vmul.f32 %v1749, %v2606
      %v2647 = vmul.f32 %v1750, %v2606
      %v2648 = vmul.f32 %v1751, %v2606
      %v2649 = vmul.f32 %v1753, %v2606
      %v2650 = vmul.f32 %v1754, %v2606
      %v2651 = vmul.f32 %v1755, %v2606
      %v2652 = vmul.f32 %v1757, %v2606
      %v2653 = vmul.f32 %v1758, %v2606
      %v2654 = vmul.f32 %v1759, %v2606
      %v2703 = vrot.slane %v2607, 2
      %v2704 = vrot.slane %v2608, 2
      %v2705 = vsel %vm2123, %v2703, %v2704
      %v2706 = vrot.slane %v2609, 2
      %v2707 = vsel %vm2123, %v2704, %v2706
      %v2708 = vrot.slane %v2610, 2
      %v2709 = vrot.slane %v2611, 2
      %v2710 = vsel %vm2123, %v2708, %v2709
      %v2711 = vrot.slane %v2612, 2
      %v2712 = vsel %vm2123, %v2709, %v2711
      %v2713 = vrot.slane %v2613, 2
      %v2714 = vrot.slane %v2614, 2
      %v2715 = vsel %vm2123, %v2713, %v2714
      %v2716 = vrot.slane %v2615, 2
      %v2717 = vsel %vm2123, %v2714, %v2716
      %v2718 = vrot.slane %v2616, 2
      %v2719 = vrot.slane %v2617, 2
      %v2720 = vsel %vm2123, %v2718, %v2719
      %v2721 = vrot.slane %v2618, 2
      %v2722 = vsel %vm2123, %v2719, %v2721
      %v2723 = vrot.slane %v2619, 2
      %v2724 = vrot.slane %v2620, 2
      %v2725 = vsel %vm2123, %v2723, %v2724
      %v2726 = vrot.slane %v2621, 2
      %v2727 = vsel %vm2123, %v2724, %v2726
      %v2728 = vrot.slane %v2622, 2
      %v2729 = vrot.slane %v2623, 2
      %v2730 = vsel %vm2123, %v2728, %v2729
      %v2731 = vrot.slane %v2624, 2
      %v2732 = vsel %vm2123, %v2729, %v2731
      %v2733 = vrot.slane %v2625, 2
      %v2734 = vrot.slane %v2626, 2
      %v2735 = vsel %vm2123, %v2733, %v2734
      %v2736 = vrot.slane %v2627, 2
      %v2737 = vsel %vm2123, %v2734, %v2736
      %v2738 = vrot.slane %v2628, 2
      %v2739 = vrot.slane %v2629, 2
      %v2740 = vsel %vm2123, %v2738, %v2739
      %v2741 = vrot.slane %v2630, 2
      %v2742 = vsel %vm2123, %v2739, %v2741
      %v2743 = vrot.slane %v2631, 2
      %v2744 = vrot.slane %v2632, 2
      %v2745 = vsel %vm2123, %v2743, %v2744
      %v2746 = vrot.slane %v2633, 2
      %v2747 = vsel %vm2123, %v2744, %v2746
      %v2748 = vrot.slane %v2634, 2
      %v2749 = vrot.slane %v2635, 2
      %v2750 = vsel %vm2123, %v2748, %v2749
      %v2751 = vrot.slane %v2636, 2
      %v2752 = vsel %vm2123, %v2749, %v2751
      %v2753 = vrot.slane %v2637, 2
      %v2754 = vrot.slane %v2638, 2
      %v2755 = vsel %vm2123, %v2753, %v2754
      %v2756 = vrot.slane %v2639, 2
      %v2757 = vsel %vm2123, %v2754, %v2756
      %v2758 = vrot.slane %v2640, 2
      %v2759 = vrot.slane %v2641, 2
      %v2760 = vsel %vm2123, %v2758, %v2759
      %v2761 = vrot.slane %v2642, 2
      %v2762 = vsel %vm2123, %v2759, %v2761
      %v2763 = vrot.slane %v2643, 2
      %v2764 = vrot.slane %v2644, 2
      %v2765 = vsel %vm2123, %v2763, %v2764
      %v2766 = vrot.slane %v2645, 2
      %v2767 = vsel %vm2123, %v2764, %v2766
      %v2768 = vrot.slane %v2646, 2
      %v2769 = vrot.slane %v2647, 2
      %v2770 = vsel %vm2123, %v2768, %v2769
      %v2771 = vrot.slane %v2648, 2
      %v2772 = vsel %vm2123, %v2769, %v2771
      %v2773 = vrot.slane %v2649, 2
      %v2774 = vrot.slane %v2650, 2
      %v2775 = vsel %vm2123, %v2773, %v2774
      %v2776 = vrot.slane %v2651, 2
      %v2777 = vsel %vm2123, %v2774, %v2776
      %v2778 = vrot.slane %v2652, 2
      %v2779 = vrot.slane %v2653, 2
      %v2780 = vsel %vm2123, %v2778, %v2779
      %v2781 = vrot.slane %v2654, 2
      %v2782 = vsel %vm2123, %v2779, %v2781
      %v2831 = vadd.f32 %v2558, %v2703
      %v2832 = vadd.f32 %v2559, %v2705
      %v2833 = vadd.f32 %v2560, %v2707
      %v2834 = vadd.f32 %v2561, %v2708
      %v2835 = vadd.f32 %v2562, %v2710
      %v2836 = vadd.f32 %v2563, %v2712
      %v2837 = vadd.f32 %v2564, %v2713
      %v2838 = vadd.f32 %v2565, %v2715
      %v2839 = vadd.f32 %v2566, %v2717
      %v2840 = vadd.f32 %v2567, %v2718
      %v2841 = vadd.f32 %v2568, %v2720
      %v2842 = vadd.f32 %v2569, %v2722
      %v2843 = vadd.f32 %v2570, %v2723
      %v2844 = vadd.f32 %v2571, %v2725
      %v2845 = vadd.f32 %v2572, %v2727
      %v2846 = vadd.f32 %v2573, %v2728
      %v2847 = vadd.f32 %v2574, %v2730
      %v2848 = vadd.f32 %v2575, %v2732
      %v2849 = vadd.f32 %v2576, %v2733
      %v2850 = vadd.f32 %v2577, %v2735
      %v2851 = vadd.f32 %v2578, %v2737
      %v2852 = vadd.f32 %v2579, %v2738
      %v2853 = vadd.f32 %v2580, %v2740
      %v2854 = vadd.f32 %v2581, %v2742
      %v2855 = vadd.f32 %v2582, %v2743
      %v2856 = vadd.f32 %v2583, %v2745
      %v2857 = vadd.f32 %v2584, %v2747
      %v2858 = vadd.f32 %v2585, %v2748
      %v2859 = vadd.f32 %v2586, %v2750
      %v2860 = vadd.f32 %v2587, %v2752
      %v2861 = vadd.f32 %v2588, %v2753
      %v2862 = vadd.f32 %v2589, %v2755
      %v2863 = vadd.f32 %v2590, %v2757
      %v2864 = vadd.f32 %v2591, %v2758
      %v2865 = vadd.f32 %v2592, %v2760
      %v2866 = vadd.f32 %v2593, %v2762
      %v2867 = vadd.f32 %v2594, %v2763
      %v2868 = vadd.f32 %v2595, %v2765
      %v2869 = vadd.f32 %v2596, %v2767
      %v2870 = vadd.f32 %v2597, %v2768
      %v2871 = vadd.f32 %v2598, %v2770
      %v2872 = vadd.f32 %v2599, %v2772
      %v2873 = vadd.f32 %v2600, %v2773
      %v2874 = vadd.f32 %v2601, %v2775
      %v2875 = vadd.f32 %v2602, %v2777
      %v2876 = vadd.f32 %v2603, %v2778
      %v2877 = vadd.f32 %v2604, %v2780
      %v2878 = vadd.f32 %v2605, %v2782
      %v2879 = vperm.slane %v1766, 0
      %v2880 = vmul.f32 %v1700, %v2879
      %v2881 = vmul.f32 %v1701, %v2879
      %v2882 = vmul.f32 %v1702, %v2879
      %v2883 = vmul.f32 %v1704, %v2879
      %v2884 = vmul.f32 %v1705, %v2879
      %v2885 = vmul.f32 %v1706, %v2879
      %v2886 = vmul.f32 %v1708, %v2879
      %v2887 = vmul.f32 %v1709, %v2879
      %v2888 = vmul.f32 %v1710, %v2879
      %v2889 = vmul.f32 %v1712, %v2879
      %v2890 = vmul.f32 %v1713, %v2879
      %v2891 = vmul.f32 %v1714, %v2879
      %v2892 = vmul.f32 %v1716, %v2879
      %v2893 = vmul.f32 %v1717, %v2879
      %v2894 = vmul.f32 %v1718, %v2879
      %v2895 = vmul.f32 %v1720, %v2879
      %v2896 = vmul.f32 %v1721, %v2879
      %v2897 = vmul.f32 %v1722, %v2879
      %v2898 = vmul.f32 %v1724, %v2879
      %v2899 = vmul.f32 %v1725, %v2879
      %v2900 = vmul.f32 %v1726, %v2879
      %v2901 = vmul.f32 %v1728, %v2879
      %v2902 = vmul.f32 %v1729, %v2879
      %v2903 = vmul.f32 %v1730, %v2879
      %v2904 = vmul.f32 %v1732, %v2879
      %v2905 = vmul.f32 %v1733, %v2879
      %v2906 = vmul.f32 %v1734, %v2879
      %v2907 = vmul.f32 %v1736, %v2879
      %v2908 = vmul.f32 %v1737, %v2879
      %v2909 = vmul.f32 %v1738, %v2879
      %v2910 = vmul.f32 %v1740, %v2879
      %v2911 = vmul.f32 %v1741, %v2879
      %v2912 = vmul.f32 %v1742, %v2879
      %v2913 = vmul.f32 %v1744, %v2879
      %v2914 = vmul.f32 %v1745, %v2879
      %v2915 = vmul.f32 %v1746, %v2879
      %v2916 = vmul.f32 %v1748, %v2879
      %v2917 = vmul.f32 %v1749, %v2879
      %v2918 = vmul.f32 %v1750, %v2879
      %v2919 = vmul.f32 %v1752, %v2879
      %v2920 = vmul.f32 %v1753, %v2879
      %v2921 = vmul.f32 %v1754, %v2879
      %v2922 = vmul.f32 %v1756, %v2879
      %v2923 = vmul.f32 %v1757, %v2879
      %v2924 = vmul.f32 %v1758, %v2879
      %v2925 = vmul.f32 %v1760, %v2879
      %v2926 = vmul.f32 %v1761, %v2879
      %v2927 = vmul.f32 %v1762, %v2879
      %v2928 = vadd.f32 %v2831, %v2880
      %v2929 = vadd.f32 %v2832, %v2881
      %v2930 = vadd.f32 %v2833, %v2882
      %v2931 = vadd.f32 %v2834, %v2883
      %v2932 = vadd.f32 %v2835, %v2884
      %v2933 = vadd.f32 %v2836, %v2885
      %v2934 = vadd.f32 %v2837, %v2886
      %v2935 = vadd.f32 %v2838, %v2887
      %v2936 = vadd.f32 %v2839, %v2888
      %v2937 = vadd.f32 %v2840, %v2889
      %v2938 = vadd.f32 %v2841, %v2890
      %v2939 = vadd.f32 %v2842, %v2891
      %v2940 = vadd.f32 %v2843, %v2892
      %v2941 = vadd.f32 %v2844, %v2893
      %v2942 = vadd.f32 %v2845, %v2894
      %v2943 = vadd.f32 %v2846, %v2895
      %v2944 = vadd.f32 %v2847, %v2896
      %v2945 = vadd.f32 %v2848, %v2897
      %v2946 = vadd.f32 %v2849, %v2898
      %v2947 = vadd.f32 %v2850, %v2899
      %v2948 = vadd.f32 %v2851, %v2900
      %v2949 = vadd.f32 %v2852, %v2901
      %v2950 = vadd.f32 %v2853, %v2902
      %v2951 = vadd.f32 %v2854, %v2903
      %v2952 = vadd.f32 %v2855, %v2904
      %v2953 = vadd.f32 %v2856, %v2905
      %v2954 = vadd.f32 %v2857, %v2906
      %v2955 = vadd.f32 %v2858, %v2907
      %v2956 = vadd.f32 %v2859, %v2908
      %v2957 = vadd.f32 %v2860, %v2909
      %v2958 = vadd.f32 %v2861, %v2910
      %v2959 = vadd.f32 %v2862, %v2911
      %v2960 = vadd.f32 %v2863, %v2912
      %v2961 = vadd.f32 %v2864, %v2913
      %v2962 = vadd.f32 %v2865, %v2914
      %v2963 = vadd.f32 %v2866, %v2915
      %v2964 = vadd.f32 %v2867, %v2916
      %v2965 = vadd.f32 %v2868, %v2917
      %v2966 = vadd.f32 %v2869, %v2918
      %v2967 = vadd.f32 %v2870, %v2919
      %v2968 = vadd.f32 %v2871, %v2920
      %v2969 = vadd.f32 %v2872, %v2921
      %v2970 = vadd.f32 %v2873, %v2922
      %v2971 = vadd.f32 %v2874, %v2923
      %v2972 = vadd.f32 %v2875, %v2924
      %v2973 = vadd.f32 %v2876, %v2925
      %v2974 = vadd.f32 %v2877, %v2926
      %v2975 = vadd.f32 %v2878, %v2927
      %v2976 = vperm.slane %v1766, 1
      %v2977 = vmul.f32 %v1701, %v2976
      %v2978 = vmul.f32 %v1702, %v2976
      %v2979 = vmul.f32 %v1705, %v2976
      %v2980 = vmul.f32 %v1706, %v2976
      %v2981 = vmul.f32 %v1709, %v2976
      %v2982 = vmul.f32 %v1710, %v2976
      %v2983 = vmul.f32 %v1713, %v2976
      %v2984 = vmul.f32 %v1714, %v2976
      %v2985 = vmul.f32 %v1717, %v2976
      %v2986 = vmul.f32 %v1718, %v2976
      %v2987 = vmul.f32 %v1721, %v2976
      %v2988 = vmul.f32 %v1722, %v2976
      %v2989 = vmul.f32 %v1725, %v2976
      %v2990 = vmul.f32 %v1726, %v2976
      %v2991 = vmul.f32 %v1729, %v2976
      %v2992 = vmul.f32 %v1730, %v2976
      %v2993 = vmul.f32 %v1733, %v2976
      %v2994 = vmul.f32 %v1734, %v2976
      %v2995 = vmul.f32 %v1737, %v2976
      %v2996 = vmul.f32 %v1738, %v2976
      %v2997 = vmul.f32 %v1741, %v2976
      %v2998 = vmul.f32 %v1742, %v2976
      %v2999 = vmul.f32 %v1745, %v2976
      %v3000 = vmul.f32 %v1746, %v2976
      %v3001 = vmul.f32 %v1749, %v2976
      %v3002 = vmul.f32 %v1750, %v2976
      %v3003 = vmul.f32 %v1753, %v2976
      %v3004 = vmul.f32 %v1754, %v2976
      %v3005 = vmul.f32 %v1757, %v2976
      %v3006 = vmul.f32 %v1758, %v2976
      %v3007 = vmul.f32 %v1761, %v2976
      %v3008 = vmul.f32 %v1762, %v2976
      %v3041 = vrot.slane %v2977, 1
      %v3042 = vrot.slane %v2978, 1
      %v3043 = vsel %vm1881, %v3041, %v3042
      %v3044 = vrot.slane %v2979, 1
      %v3045 = vrot.slane %v2980, 1
      %v3046 = vsel %vm1881, %v3044, %v3045
      %v3047 = vrot.slane %v2981, 1
      %v3048 = vrot.slane %v2982, 1
      %v3049 = vsel %vm1881, %v3047, %v3048
      %v3050 = vrot.slane %v2983, 1
      %v3051 = vrot.slane %v2984, 1
      %v3052 = vsel %vm1881, %v3050, %v3051
      %v3053 = vrot.slane %v2985, 1
      %v3054 = vrot.slane %v2986, 1
      %v3055 = vsel %vm1881, %v3053, %v3054
      %v3056 = vrot.slane %v2987, 1
      %v3057 = vrot.slane %v2988, 1
      %v3058 = vsel %vm1881, %v3056, %v3057
      %v3059 = vrot.slane %v2989, 1
      %v3060 = vrot.slane %v2990, 1
      %v3061 = vsel %vm1881, %v3059, %v3060
      %v3062 = vrot.slane %v2991, 1
      %v3063 = vrot.slane %v2992, 1
      %v3064 = vsel %vm1881, %v3062, %v3063
      %v3065 = vrot.slane %v2993, 1
      %v3066 = vrot.slane %v2994, 1
      %v3067 = vsel %vm1881, %v3065, %v3066
      %v3068 = vrot.slane %v2995, 1
      %v3069 = vrot.slane %v2996, 1
      %v3070 = vsel %vm1881, %v3068, %v3069
      %v3071 = vrot.slane %v2997, 1
      %v3072 = vrot.slane %v2998, 1
      %v3073 = vsel %vm1881, %v3071, %v3072
      %v3074 = vrot.slane %v2999, 1
      %v3075 = vrot.slane %v3000, 1
      %v3076 = vsel %vm1881, %v3074, %v3075
      %v3077 = vrot.slane %v3001, 1
      %v3078 = vrot.slane %v3002, 1
      %v3079 = vsel %vm1881, %v3077, %v3078
      %v3080 = vrot.slane %v3003, 1
      %v3081 = vrot.slane %v3004, 1
      %v3082 = vsel %vm1881, %v3080, %v3081
      %v3083 = vrot.slane %v3005, 1
      %v3084 = vrot.slane %v3006, 1
      %v3085 = vsel %vm1881, %v3083, %v3084
      %v3086 = vrot.slane %v3007, 1
      %v3087 = vrot.slane %v3008, 1
      %v3088 = vsel %vm1881, %v3086, %v3087
      %v3137 = vadd.f32 %v2928, %v3041
      %v3138 = vadd.f32 %v2929, %v3043
      %v3139 = vadd.f32 %v2930, %v3042
      %v3140 = vadd.f32 %v2931, %v3044
      %v3141 = vadd.f32 %v2932, %v3046
      %v3142 = vadd.f32 %v2933, %v3045
      %v3143 = vadd.f32 %v2934, %v3047
      %v3144 = vadd.f32 %v2935, %v3049
      %v3145 = vadd.f32 %v2936, %v3048
      %v3146 = vadd.f32 %v2937, %v3050
      %v3147 = vadd.f32 %v2938, %v3052
      %v3148 = vadd.f32 %v2939, %v3051
      %v3149 = vadd.f32 %v2940, %v3053
      %v3150 = vadd.f32 %v2941, %v3055
      %v3151 = vadd.f32 %v2942, %v3054
      %v3152 = vadd.f32 %v2943, %v3056
      %v3153 = vadd.f32 %v2944, %v3058
      %v3154 = vadd.f32 %v2945, %v3057
      %v3155 = vadd.f32 %v2946, %v3059
      %v3156 = vadd.f32 %v2947, %v3061
      %v3157 = vadd.f32 %v2948, %v3060
      %v3158 = vadd.f32 %v2949, %v3062
      %v3159 = vadd.f32 %v2950, %v3064
      %v3160 = vadd.f32 %v2951, %v3063
      %v3161 = vadd.f32 %v2952, %v3065
      %v3162 = vadd.f32 %v2953, %v3067
      %v3163 = vadd.f32 %v2954, %v3066
      %v3164 = vadd.f32 %v2955, %v3068
      %v3165 = vadd.f32 %v2956, %v3070
      %v3166 = vadd.f32 %v2957, %v3069
      %v3167 = vadd.f32 %v2958, %v3071
      %v3168 = vadd.f32 %v2959, %v3073
      %v3169 = vadd.f32 %v2960, %v3072
      %v3170 = vadd.f32 %v2961, %v3074
      %v3171 = vadd.f32 %v2962, %v3076
      %v3172 = vadd.f32 %v2963, %v3075
      %v3173 = vadd.f32 %v2964, %v3077
      %v3174 = vadd.f32 %v2965, %v3079
      %v3175 = vadd.f32 %v2966, %v3078
      %v3176 = vadd.f32 %v2967, %v3080
      %v3177 = vadd.f32 %v2968, %v3082
      %v3178 = vadd.f32 %v2969, %v3081
      %v3179 = vadd.f32 %v2970, %v3083
      %v3180 = vadd.f32 %v2971, %v3085
      %v3181 = vadd.f32 %v2972, %v3084
      %v3182 = vadd.f32 %v2973, %v3086
      %v3183 = vadd.f32 %v2974, %v3088
      %v3184 = vadd.f32 %v2975, %v3087
      %v3185 = vperm.slane %v1766, 2
      %v3186 = vmul.f32 %v1701, %v3185
      %v3187 = vmul.f32 %v1702, %v3185
      %v3188 = vmul.f32 %v1703, %v3185
      %v3189 = vmul.f32 %v1705, %v3185
      %v3190 = vmul.f32 %v1706, %v3185
      %v3191 = vmul.f32 %v1707, %v3185
      %v3192 = vmul.f32 %v1709, %v3185
      %v3193 = vmul.f32 %v1710, %v3185
      %v3194 = vmul.f32 %v1711, %v3185
      %v3195 = vmul.f32 %v1713, %v3185
      %v3196 = vmul.f32 %v1714, %v3185
      %v3197 = vmul.f32 %v1715, %v3185
      %v3198 = vmul.f32 %v1717, %v3185
      %v3199 = vmul.f32 %v1718, %v3185
      %v3200 = vmul.f32 %v1719, %v3185
      %v3201 = vmul.f32 %v1721, %v3185
      %v3202 = vmul.f32 %v1722, %v3185
      %v3203 = vmul.f32 %v1723, %v3185
      %v3204 = vmul.f32 %v1725, %v3185
      %v3205 = vmul.f32 %v1726, %v3185
      %v3206 = vmul.f32 %v1727, %v3185
      %v3207 = vmul.f32 %v1729, %v3185
      %v3208 = vmul.f32 %v1730, %v3185
      %v3209 = vmul.f32 %v1731, %v3185
      %v3210 = vmul.f32 %v1733, %v3185
      %v3211 = vmul.f32 %v1734, %v3185
      %v3212 = vmul.f32 %v1735, %v3185
      %v3213 = vmul.f32 %v1737, %v3185
      %v3214 = vmul.f32 %v1738, %v3185
      %v3215 = vmul.f32 %v1739, %v3185
      %v3216 = vmul.f32 %v1741, %v3185
      %v3217 = vmul.f32 %v1742, %v3185
      %v3218 = vmul.f32 %v1743, %v3185
      %v3219 = vmul.f32 %v1745, %v3185
      %v3220 = vmul.f32 %v1746, %v3185
      %v3221 = vmul.f32 %v1747, %v3185
      %v3222 = vmul.f32 %v1749, %v3185
      %v3223 = vmul.f32 %v1750, %v3185
      %v3224 = vmul.f32 %v1751, %v3185
      %v3225 = vmul.f32 %v1753, %v3185
      %v3226 = vmul.f32 %v1754, %v3185
      %v3227 = vmul.f32 %v1755, %v3185
      %v3228 = vmul.f32 %v1757, %v3185
      %v3229 = vmul.f32 %v1758, %v3185
      %v3230 = vmul.f32 %v1759, %v3185
      %v3231 = vmul.f32 %v1761, %v3185
      %v3232 = vmul.f32 %v1762, %v3185
      %v3233 = vmul.f32 %v1763, %v3185
      %v3282 = vrot.slane %v3186, 2
      %v3283 = vrot.slane %v3187, 2
      %v3284 = vsel %vm2123, %v3282, %v3283
      %v3285 = vrot.slane %v3188, 2
      %v3286 = vsel %vm2123, %v3283, %v3285
      %v3287 = vrot.slane %v3189, 2
      %v3288 = vrot.slane %v3190, 2
      %v3289 = vsel %vm2123, %v3287, %v3288
      %v3290 = vrot.slane %v3191, 2
      %v3291 = vsel %vm2123, %v3288, %v3290
      %v3292 = vrot.slane %v3192, 2
      %v3293 = vrot.slane %v3193, 2
      %v3294 = vsel %vm2123, %v3292, %v3293
      %v3295 = vrot.slane %v3194, 2
      %v3296 = vsel %vm2123, %v3293, %v3295
      %v3297 = vrot.slane %v3195, 2
      %v3298 = vrot.slane %v3196, 2
      %v3299 = vsel %vm2123, %v3297, %v3298
      %v3300 = vrot.slane %v3197, 2
      %v3301 = vsel %vm2123, %v3298, %v3300
      %v3302 = vrot.slane %v3198, 2
      %v3303 = vrot.slane %v3199, 2
      %v3304 = vsel %vm2123, %v3302, %v3303
      %v3305 = vrot.slane %v3200, 2
      %v3306 = vsel %vm2123, %v3303, %v3305
      %v3307 = vrot.slane %v3201, 2
      %v3308 = vrot.slane %v3202, 2
      %v3309 = vsel %vm2123, %v3307, %v3308
      %v3310 = vrot.slane %v3203, 2
      %v3311 = vsel %vm2123, %v3308, %v3310
      %v3312 = vrot.slane %v3204, 2
      %v3313 = vrot.slane %v3205, 2
      %v3314 = vsel %vm2123, %v3312, %v3313
      %v3315 = vrot.slane %v3206, 2
      %v3316 = vsel %vm2123, %v3313, %v3315
      %v3317 = vrot.slane %v3207, 2
      %v3318 = vrot.slane %v3208, 2
      %v3319 = vsel %vm2123, %v3317, %v3318
      %v3320 = vrot.slane %v3209, 2
      %v3321 = vsel %vm2123, %v3318, %v3320
      %v3322 = vrot.slane %v3210, 2
      %v3323 = vrot.slane %v3211, 2
      %v3324 = vsel %vm2123, %v3322, %v3323
      %v3325 = vrot.slane %v3212, 2
      %v3326 = vsel %vm2123, %v3323, %v3325
      %v3327 = vrot.slane %v3213, 2
      %v3328 = vrot.slane %v3214, 2
      %v3329 = vsel %vm2123, %v3327, %v3328
      %v3330 = vrot.slane %v3215, 2
      %v3331 = vsel %vm2123, %v3328, %v3330
      %v3332 = vrot.slane %v3216, 2
      %v3333 = vrot.slane %v3217, 2
      %v3334 = vsel %vm2123, %v3332, %v3333
      %v3335 = vrot.slane %v3218, 2
      %v3336 = vsel %vm2123, %v3333, %v3335
      %v3337 = vrot.slane %v3219, 2
      %v3338 = vrot.slane %v3220, 2
      %v3339 = vsel %vm2123, %v3337, %v3338
      %v3340 = vrot.slane %v3221, 2
      %v3341 = vsel %vm2123, %v3338, %v3340
      %v3342 = vrot.slane %v3222, 2
      %v3343 = vrot.slane %v3223, 2
      %v3344 = vsel %vm2123, %v3342, %v3343
      %v3345 = vrot.slane %v3224, 2
      %v3346 = vsel %vm2123, %v3343, %v3345
      %v3347 = vrot.slane %v3225, 2
      %v3348 = vrot.slane %v3226, 2
      %v3349 = vsel %vm2123, %v3347, %v3348
      %v3350 = vrot.slane %v3227, 2
      %v3351 = vsel %vm2123, %v3348, %v3350
      %v3352 = vrot.slane %v3228, 2
      %v3353 = vrot.slane %v3229, 2
      %v3354 = vsel %vm2123, %v3352, %v3353
      %v3355 = vrot.slane %v3230, 2
      %v3356 = vsel %vm2123, %v3353, %v3355
      %v3357 = vrot.slane %v3231, 2
      %v3358 = vrot.slane %v3232, 2
      %v3359 = vsel %vm2123, %v3357, %v3358
      %v3360 = vrot.slane %v3233, 2
      %v3361 = vsel %vm2123, %v3358, %v3360
      %v3410 = vadd.f32 %v3137, %v3282
      %v3411 = vadd.f32 %v3138, %v3284
      %v3412 = vadd.f32 %v3139, %v3286
      %v3413 = vadd.f32 %v3140, %v3287
      %v3414 = vadd.f32 %v3141, %v3289
      %v3415 = vadd.f32 %v3142, %v3291
      %v3416 = vadd.f32 %v3143, %v3292
      %v3417 = vadd.f32 %v3144, %v3294
      %v3418 = vadd.f32 %v3145, %v3296
      %v3419 = vadd.f32 %v3146, %v3297
      %v3420 = vadd.f32 %v3147, %v3299
      %v3421 = vadd.f32 %v3148, %v3301
      %v3422 = vadd.f32 %v3149, %v3302
      %v3423 = vadd.f32 %v3150, %v3304
      %v3424 = vadd.f32 %v3151, %v3306
      %v3425 = vadd.f32 %v3152, %v3307
      %v3426 = vadd.f32 %v3153, %v3309
      %v3427 = vadd.f32 %v3154, %v3311
      %v3428 = vadd.f32 %v3155, %v3312
      %v3429 = vadd.f32 %v3156, %v3314
      %v3430 = vadd.f32 %v3157, %v3316
      %v3431 = vadd.f32 %v3158, %v3317
      %v3432 = vadd.f32 %v3159, %v3319
      %v3433 = vadd.f32 %v3160, %v3321
      %v3434 = vadd.f32 %v3161, %v3322
      %v3435 = vadd.f32 %v3162, %v3324
      %v3436 = vadd.f32 %v3163, %v3326
      %v3437 = vadd.f32 %v3164, %v3327
      %v3438 = vadd.f32 %v3165, %v3329
      %v3439 = vadd.f32 %v3166, %v3331
      %v3440 = vadd.f32 %v3167, %v3332
      %v3441 = vadd.f32 %v3168, %v3334
      %v3442 = vadd.f32 %v3169, %v3336
      %v3443 = vadd.f32 %v3170, %v3337
      %v3444 = vadd.f32 %v3171, %v3339
      %v3445 = vadd.f32 %v3172, %v3341
      %v3446 = vadd.f32 %v3173, %v3342
      %v3447 = vadd.f32 %v3174, %v3344
      %v3448 = vadd.f32 %v3175, %v3346
      %v3449 = vadd.f32 %v3176, %v3347
      %v3450 = vadd.f32 %v3177, %v3349
      %v3451 = vadd.f32 %v3178, %v3351
      %v3452 = vadd.f32 %v3179, %v3352
      %v3453 = vadd.f32 %v3180, %v3354
      %v3454 = vadd.f32 %v3181, %v3356
      %v3455 = vadd.f32 %v3182, %v3357
      %v3456 = vadd.f32 %v3183, %v3359
      %v3457 = vadd.f32 %v3184, %v3361
      %vm3506 = vcmask 1040384
      %v3507 = vrot.slane %v3410, 7
      %v3508 = vrot.slane %v3411, 7
      %v3509 = vsel %vm3506, %v3507, %v3508
      %v3510 = vrot.slane %v3412, 7
      %v3511 = vsel %vm3506, %v3508, %v3510
      %v3512 = vrot.slane %v3413, 7
      %v3513 = vrot.slane %v3414, 7
      %v3514 = vsel %vm3506, %v3512, %v3513
      %v3515 = vrot.slane %v3415, 7
      %v3516 = vsel %vm3506, %v3513, %v3515
      %v3517 = vrot.slane %v3416, 7
      %v3518 = vrot.slane %v3417, 7
      %v3519 = vsel %vm3506, %v3517, %v3518
      %v3520 = vrot.slane %v3418, 7
      %v3521 = vsel %vm3506, %v3518, %v3520
      %v3522 = vrot.slane %v3419, 7
      %v3523 = vrot.slane %v3420, 7
      %v3524 = vsel %vm3506, %v3522, %v3523
      %v3525 = vrot.slane %v3421, 7
      %v3526 = vsel %vm3506, %v3523, %v3525
      %v3527 = vrot.slane %v3422, 7
      %v3528 = vrot.slane %v3423, 7
      %v3529 = vsel %vm3506, %v3527, %v3528
      %v3530 = vrot.slane %v3424, 7
      %v3531 = vsel %vm3506, %v3528, %v3530
      %v3532 = vrot.slane %v3425, 7
      %v3533 = vrot.slane %v3426, 7
      %v3534 = vsel %vm3506, %v3532, %v3533
      %v3535 = vrot.slane %v3427, 7
      %v3536 = vsel %vm3506, %v3533, %v3535
      %v3537 = vrot.slane %v3428, 7
      %v3538 = vrot.slane %v3429, 7
      %v3539 = vsel %vm3506, %v3537, %v3538
      %v3540 = vrot.slane %v3430, 7
      %v3541 = vsel %vm3506, %v3538, %v3540
      %v3542 = vrot.slane %v3431, 7
      %v3543 = vrot.slane %v3432, 7
      %v3544 = vsel %vm3506, %v3542, %v3543
      %v3545 = vrot.slane %v3433, 7
      %v3546 = vsel %vm3506, %v3543, %v3545
      %v3547 = vrot.slane %v3434, 7
      %v3548 = vrot.slane %v3435, 7
      %v3549 = vsel %vm3506, %v3547, %v3548
      %v3550 = vrot.slane %v3436, 7
      %v3551 = vsel %vm3506, %v3548, %v3550
      %v3552 = vrot.slane %v3437, 7
      %v3553 = vrot.slane %v3438, 7
      %v3554 = vsel %vm3506, %v3552, %v3553
      %v3555 = vrot.slane %v3439, 7
      %v3556 = vsel %vm3506, %v3553, %v3555
      %v3557 = vrot.slane %v3440, 7
      %v3558 = vrot.slane %v3441, 7
      %v3559 = vsel %vm3506, %v3557, %v3558
      %v3560 = vrot.slane %v3442, 7
      %v3561 = vsel %vm3506, %v3558, %v3560
      %v3562 = vrot.slane %v3443, 7
      %v3563 = vrot.slane %v3444, 7
      %v3564 = vsel %vm3506, %v3562, %v3563
      %v3565 = vrot.slane %v3445, 7
      %v3566 = vsel %vm3506, %v3563, %v3565
      %v3567 = vrot.slane %v3446, 7
      %v3568 = vrot.slane %v3447, 7
      %v3569 = vsel %vm3506, %v3567, %v3568
      %v3570 = vrot.slane %v3448, 7
      %v3571 = vsel %vm3506, %v3568, %v3570
      %v3572 = vrot.slane %v3449, 7
      %v3573 = vrot.slane %v3450, 7
      %v3574 = vsel %vm3506, %v3572, %v3573
      %v3575 = vrot.slane %v3451, 7
      %v3576 = vsel %vm3506, %v3573, %v3575
      %v3577 = vrot.slane %v3452, 7
      %v3578 = vrot.slane %v3453, 7
      %v3579 = vsel %vm3506, %v3577, %v3578
      %v3580 = vrot.slane %v3454, 7
      %v3581 = vsel %vm3506, %v3578, %v3580
      %v3582 = vrot.slane %v3455, 7
      %v3583 = vrot.slane %v3456, 7
      %v3584 = vsel %vm3506, %v3582, %v3583
      %v3585 = vrot.slane %v3457, 7
      %v3586 = vsel %vm3506, %v3583, %v3585
      %v3619 = vld [vmem:[%s13] sm:$0x1]
      %v3621 = vperm.slane %v3619, 0
      %v3623 = vmul.f32 %v3509, %v3621
      %v3624 = vmul.f32 %v3511, %v3621
      %v3625 = vmul.f32 %v3514, %v3621
      %v3626 = vmul.f32 %v3516, %v3621
      %v3627 = vmul.f32 %v3519, %v3621
      %v3628 = vmul.f32 %v3521, %v3621
      %v3629 = vmul.f32 %v3524, %v3621
      %v3630 = vmul.f32 %v3526, %v3621
      %v3631 = vmul.f32 %v3529, %v3621
      %v3632 = vmul.f32 %v3531, %v3621
      %v3633 = vmul.f32 %v3534, %v3621
      %v3634 = vmul.f32 %v3536, %v3621
      %v3635 = vmul.f32 %v3539, %v3621
      %v3636 = vmul.f32 %v3541, %v3621
      %v3637 = vmul.f32 %v3544, %v3621
      %v3638 = vmul.f32 %v3546, %v3621
      %v3639 = vmul.f32 %v3549, %v3621
      %v3640 = vmul.f32 %v3551, %v3621
      %v3641 = vmul.f32 %v3554, %v3621
      %v3642 = vmul.f32 %v3556, %v3621
      %v3643 = vmul.f32 %v3559, %v3621
      %v3644 = vmul.f32 %v3561, %v3621
      %v3645 = vmul.f32 %v3564, %v3621
      %v3646 = vmul.f32 %v3566, %v3621
      %v3647 = vmul.f32 %v3569, %v3621
      %v3648 = vmul.f32 %v3571, %v3621
      %v3649 = vmul.f32 %v3574, %v3621
      %v3650 = vmul.f32 %v3576, %v3621
      %v3651 = vmul.f32 %v3579, %v3621
      %v3652 = vmul.f32 %v3581, %v3621
      %v3653 = vmul.f32 %v3584, %v3621
      %v3654 = vmul.f32 %v3586, %v3621
      %v3655 = vld [vmem:[%s15] sm:$0x1]
      %v3657 = vperm.slane %v3655, 0
      %v3659 = vadd.f32 %v3623, %v3657
      %v3660 = vadd.f32 %v3624, %v3657
      %v3661 = vadd.f32 %v3625, %v3657
      %v3662 = vadd.f32 %v3626, %v3657
      %v3663 = vadd.f32 %v3627, %v3657
      %v3664 = vadd.f32 %v3628, %v3657
      %v3665 = vadd.f32 %v3629, %v3657
      %v3666 = vadd.f32 %v3630, %v3657
      %v3667 = vadd.f32 %v3631, %v3657
      %v3668 = vadd.f32 %v3632, %v3657
      %v3669 = vadd.f32 %v3633, %v3657
      %v3670 = vadd.f32 %v3634, %v3657
      %v3671 = vadd.f32 %v3635, %v3657
      %v3672 = vadd.f32 %v3636, %v3657
      %v3673 = vadd.f32 %v3637, %v3657
      %v3674 = vadd.f32 %v3638, %v3657
      %v3675 = vadd.f32 %v3639, %v3657
      %v3676 = vadd.f32 %v3640, %v3657
      %v3677 = vadd.f32 %v3641, %v3657
      %v3678 = vadd.f32 %v3642, %v3657
      %v3679 = vadd.f32 %v3643, %v3657
      %v3680 = vadd.f32 %v3644, %v3657
      %v3681 = vadd.f32 %v3645, %v3657
      %v3682 = vadd.f32 %v3646, %v3657
      %v3683 = vadd.f32 %v3647, %v3657
      %v3684 = vadd.f32 %v3648, %v3657
      %v3685 = vadd.f32 %v3649, %v3657
      %v3686 = vadd.f32 %v3650, %v3657
      %v3687 = vadd.f32 %v3651, %v3657
      %v3688 = vadd.f32 %v3652, %v3657
      %v3689 = vadd.f32 %v3653, %v3657
      %v3690 = vadd.f32 %v3654, %v3657
      %v3691 = vmax.f32 %v3659, 0.0
      %v3692 = vmax.f32 %v3660, 0.0
      %v3693 = vmax.f32 %v3661, 0.0
      %v3694 = vmax.f32 %v3662, 0.0
      %v3695 = vmax.f32 %v3663, 0.0
      %v3696 = vmax.f32 %v3664, 0.0
      %v3697 = vmax.f32 %v3665, 0.0
      %v3698 = vmax.f32 %v3666, 0.0
      %v3699 = vmax.f32 %v3667, 0.0
      %v3700 = vmax.f32 %v3668, 0.0
      %v3701 = vmax.f32 %v3669, 0.0
      %v3702 = vmax.f32 %v3670, 0.0
      %v3703 = vmax.f32 %v3671, 0.0
      %v3704 = vmax.f32 %v3672, 0.0
      %v3705 = vmax.f32 %v3673, 0.0
      %v3706 = vmax.f32 %v3674, 0.0
      %v3707 = vmax.f32 %v3675, 0.0
      %v3708 = vmax.f32 %v3676, 0.0
      %v3709 = vmax.f32 %v3677, 0.0
      %v3710 = vmax.f32 %v3678, 0.0
      %v3711 = vmax.f32 %v3679, 0.0
      %v3712 = vmax.f32 %v3680, 0.0
      %v3713 = vmax.f32 %v3681, 0.0
      %v3714 = vmax.f32 %v3682, 0.0
      %v3715 = vmax.f32 %v3683, 0.0
      %v3716 = vmax.f32 %v3684, 0.0
      %v3717 = vmax.f32 %v3685, 0.0
      %v3718 = vmax.f32 %v3686, 0.0
      %v3719 = vmax.f32 %v3687, 0.0
      %v3720 = vmax.f32 %v3688, 0.0
      %v3721 = vmax.f32 %v3689, 0.0
      %v3722 = vmax.f32 %v3690, 0.0
      %3723 = vst.msk [vmem:[#allocation3] sm:$0xff] %vm1217, 0.0
      %3724 = vst.msk [vmem:[#allocation3 + $0x8] sm:$0xff] %vm1217, 0.0
      %3725 = vst.msk [vmem:[#allocation3 + $0x10] sm:$0xff] %vm1217, 0.0
      %3726 = vst.msk [vmem:[#allocation3 + $0x18] sm:$0xff] %vm1217, 0.0
      %3727 = vst.msk [vmem:[#allocation3 + $0x20] sm:$0xff] %vm1217, 0.0
      %3728 = vst.msk [vmem:[#allocation3 + $0x28] sm:$0xff] %vm1217, 0.0
      %3729 = vst.msk [vmem:[#allocation3 + $0x30] sm:$0xff] %vm1217, 0.0
      %3730 = vst.msk [vmem:[#allocation3 + $0x38] sm:$0xff] %vm1217, 0.0
      %3731 = vst.msk [vmem:[#allocation3 + $0x40] sm:$0xff] %vm1217, 0.0
      %3732 = vst.msk [vmem:[#allocation3 + $0x48] sm:$0xff] %vm1217, 0.0
      %3733 = vst.msk [vmem:[#allocation3 + $0x50] sm:$0xff] %vm1217, 0.0
      %3734 = vst.msk [vmem:[#allocation3 + $0x58] sm:$0xff] %vm1217, 0.0
      %3735 = vst.msk [vmem:[#allocation3 + $0x60] sm:$0xff] %vm1217, 0.0
      %3736 = vst.msk [vmem:[#allocation3 + $0x68] sm:$0xff] %vm1217, 0.0
      %3737 = vst.msk [vmem:[#allocation3 + $0x70] sm:$0xff] %vm1217, 0.0
      %3738 = vst.msk [vmem:[#allocation3 + $0x78] sm:$0xff] %vm1217, 0.0
      %3739 = vst.msk [vmem:[#allocation3 + $0x80] sm:$0xff] %vm1217, 0.0
      %3740 = vst.msk [vmem:[#allocation3 + $0x88] sm:$0xff] %vm1217, 0.0
      %3741 = vst.msk [vmem:[#allocation3 + $0x90] sm:$0xff] %vm1217, 0.0
      %3742 = vst.msk [vmem:[#allocation3 + $0x98] sm:$0xff] %vm1217, 0.0
      %3743 = vst.msk [vmem:[#allocation3 + $0xa0] sm:$0xff] %vm1217, 0.0
      %3744 = vst.msk [vmem:[#allocation3 + $0xa8] sm:$0xff] %vm1217, 0.0
      %3745 = vst.msk [vmem:[#allocation3 + $0xb0] sm:$0xff] %vm1217, 0.0
      %3746 = vst.msk [vmem:[#allocation3 + $0xb8] sm:$0xff] %vm1217, 0.0
      %3747 = vst.msk [vmem:[#allocation3 + $0xc0] sm:$0xff] %vm1217, 0.0
      %3748 = vst.msk [vmem:[#allocation3 + $0xc8] sm:$0xff] %vm1217, 0.0
      %3749 = vst.msk [vmem:[#allocation3 + $0xd0] sm:$0xff] %vm1217, 0.0
      %3750 = vst.msk [vmem:[#allocation3 + $0xd8] sm:$0xff] %vm1217, 0.0
      %3751 = vst.msk [vmem:[#allocation3 + $0xe0] sm:$0xff] %vm1217, 0.0
      %3752 = vst.msk [vmem:[#allocation3 + $0xe8] sm:$0xff] %vm1217, 0.0
      %3753 = vst.msk [vmem:[#allocation3 + $0xf0] sm:$0xff] %vm1217, 0.0
      %3754 = vst.msk [vmem:[#allocation3 + $0xf8] sm:$0xff] %vm1217, 0.0
      %3755 = vst.msk [vmem:[#allocation3 + $0x100] sm:$0xff] %vm1217, 0.0
      %3756 = vst.msk [vmem:[#allocation3 + $0x108] sm:$0xff] %vm1217, 0.0
      %3757 = vst.msk [vmem:[#allocation3 + $0x110] sm:$0xff] %vm1217, 0.0
      %3758 = vst.msk [vmem:[#allocation3 + $0x118] sm:$0xff] %vm1217, 0.0
      %3759 = vst.msk [vmem:[#allocation3 + $0x120] sm:$0xff] %vm1217, 0.0
      %3760 = vst.msk [vmem:[#allocation3 + $0x128] sm:$0xff] %vm1217, 0.0
      %3761 = vst.msk [vmem:[#allocation3 + $0x130] sm:$0xff] %vm1217, 0.0
      %3762 = vst.msk [vmem:[#allocation3 + $0x138] sm:$0xff] %vm1217, 0.0
      %3763 = vst.msk [vmem:[#allocation3 + $0x140] sm:$0xff] %vm1217, 0.0
      %3764 = vst.msk [vmem:[#allocation3 + $0x148] sm:$0xff] %vm1217, 0.0
      %3765 = vst.msk [vmem:[#allocation3 + $0x150] sm:$0xff] %vm1217, 0.0
      %3766 = vst.msk [vmem:[#allocation3 + $0x158] sm:$0xff] %vm1217, 0.0
      %3767 = vst.msk [vmem:[#allocation3 + $0x160] sm:$0xff] %vm1217, 0.0
      %3768 = vst.msk [vmem:[#allocation3 + $0x168] sm:$0xff] %vm1217, 0.0
      %3769 = vst.msk [vmem:[#allocation3 + $0x170] sm:$0xff] %vm1217, 0.0
      %3770 = vst.msk [vmem:[#allocation3 + $0x178] sm:$0xff] %vm1217, 0.0
      %3771 = vst.msk [vmem:[#allocation3 + $0x180] sm:$0xff] %vm1217, 0.0
      %3772 = vst.msk [vmem:[#allocation3 + $0x188] sm:$0xff] %vm1217, 0.0
      %3773 = vst.msk [vmem:[#allocation3 + $0x190] sm:$0xff] %vm1217, 0.0
      %3774 = vst.msk [vmem:[#allocation3 + $0x198] sm:$0xff] %vm1217, 0.0
      %3775 = vst.msk [vmem:[#allocation3 + $0x1a0] sm:$0xff] %vm1217, 0.0
      %3776 = vst.msk [vmem:[#allocation3 + $0x1a8] sm:$0xff] %vm1217, 0.0
      %3777 = vst.msk [vmem:[#allocation3 + $0x1b0] sm:$0xff] %vm1217, 0.0
      %3778 = vst.msk [vmem:[#allocation3 + $0x1b8] sm:$0xff] %vm1217, 0.0
      %3779 = vst.msk [vmem:[#allocation3 + $0x1c0] sm:$0xff] %vm1217, 0.0
      %3780 = vst.msk [vmem:[#allocation3 + $0x1c8] sm:$0xff] %vm1217, 0.0
      %3781 = vst.msk [vmem:[#allocation3 + $0x1d0] sm:$0xff] %vm1217, 0.0
      %3782 = vst.msk [vmem:[#allocation3 + $0x1d8] sm:$0xff] %vm1217, 0.0
      %3783 = vst.msk [vmem:[#allocation3 + $0x1e0] sm:$0xff] %vm1217, 0.0
      %3784 = vst.msk [vmem:[#allocation3 + $0x1e8] sm:$0xff] %vm1217, 0.0
      %3785 = vst.msk [vmem:[#allocation3 + $0x1f0] sm:$0xff] %vm1217, 0.0
      %3786 = vst.msk [vmem:[#allocation3 + $0x1f8] sm:$0xff] %vm1217, 0.0
      %3787 = vst.msk [vmem:[#allocation3 + $0x200] sm:$0xff] %vm1217, 0.0
      %3788 = vst.msk [vmem:[#allocation3 + $0x208] sm:$0xff] %vm1217, 0.0
      %3789 = vst.msk [vmem:[#allocation3 + $0x210] sm:$0xff] %vm1217, 0.0
      %3790 = vst.msk [vmem:[#allocation3 + $0x218] sm:$0xff] %vm1217, 0.0
      %3791 = vst.msk [vmem:[#allocation3 + $0x220] sm:$0xff] %vm1217, 0.0
      %3792 = vst.msk [vmem:[#allocation3 + $0x228] sm:$0xff] %vm1217, 0.0
      %3793 = vst.msk [vmem:[#allocation3 + $0x230] sm:$0xff] %vm1217, 0.0
      %3794 = vst.msk [vmem:[#allocation3 + $0x238] sm:$0xff] %vm1217, 0.0
      %3795 = vst.msk [vmem:[#allocation3 + $0x240] sm:$0xff] %vm1217, 0.0
      %3796 = vst.msk [vmem:[#allocation3 + $0x248] sm:$0xff] %vm1217, 0.0
      %3797 = vst.msk [vmem:[#allocation3 + $0x250] sm:$0xff] %vm1217, 0.0
      %3798 = vst.msk [vmem:[#allocation3 + $0x258] sm:$0xff] %vm1217, 0.0
      %3799 = vst.msk [vmem:[#allocation3 + $0x260] sm:$0xff] %vm1217, 0.0
      %3800 = vst.msk [vmem:[#allocation3 + $0x268] sm:$0xff] %vm1217, 0.0
      %3801 = vst.msk [vmem:[#allocation3 + $0x270] sm:$0xff] %vm1217, 0.0
      %3802 = vst.msk [vmem:[#allocation3 + $0x278] sm:$0xff] %vm1217, 0.0
      %3803 = vst.msk [vmem:[#allocation3 + $0x280] sm:$0xff] %vm1217, 0.0
      %3804 = vst.msk [vmem:[#allocation3 + $0x288] sm:$0xff] %vm1217, 0.0
      %3805 = vst.msk [vmem:[#allocation3 + $0x290] sm:$0xff] %vm1217, 0.0
      %3806 = vst.msk [vmem:[#allocation3 + $0x298] sm:$0xff] %vm1217, 0.0
      %3807 = vst.msk [vmem:[#allocation3 + $0x2a0] sm:$0xff] %vm1217, 0.0
      %3808 = vst.msk [vmem:[#allocation3 + $0x2a8] sm:$0xff] %vm1217, 0.0
      %3809 = vst.msk [vmem:[#allocation3 + $0x2b0] sm:$0xff] %vm1217, 0.0
      %3810 = vst.msk [vmem:[#allocation3 + $0x2b8] sm:$0xff] %vm1217, 0.0
      %3811 = vst.msk [vmem:[#allocation3 + $0x2c0] sm:$0xff] %vm1217, 0.0
      %3812 = vst.msk [vmem:[#allocation3 + $0x2c8] sm:$0xff] %vm1217, 0.0
      %3813 = vst.msk [vmem:[#allocation3 + $0x2d0] sm:$0xff] %vm1217, 0.0
      %3814 = vst.msk [vmem:[#allocation3 + $0x2d8] sm:$0xff] %vm1217, 0.0
      %3815 = vst.msk [vmem:[#allocation3 + $0x2e0] sm:$0xff] %vm1217, 0.0
      %3816 = vst.msk [vmem:[#allocation3 + $0x2e8] sm:$0xff] %vm1217, 0.0
      %3817 = vst.msk [vmem:[#allocation3 + $0x2f0] sm:$0xff] %vm1217, 0.0
      %3818 = vst.msk [vmem:[#allocation3 + $0x2f8] sm:$0xff] %vm1217, 0.0
      %3819 = vst.msk [vmem:[#allocation3 + $0x300] sm:$0xff] %vm1217, 0.0
      %3820 = vst.msk [vmem:[#allocation3 + $0x308] sm:$0xff] %vm1217, 0.0
      %3821 = vst.msk [vmem:[#allocation3 + $0x310] sm:$0xff] %vm1217, 0.0
      %3822 = vst.msk [vmem:[#allocation3 + $0x318] sm:$0xff] %vm1217, 0.0
      %3823 = vst.msk [vmem:[#allocation3 + $0x320] sm:$0xff] %vm1217, 0.0
      %3824 = vst.msk [vmem:[#allocation3 + $0x328] sm:$0xff] %vm1217, 0.0
      %3825 = vst.msk [vmem:[#allocation3 + $0x330] sm:$0xff] %vm1217, 0.0
      %3826 = vst.msk [vmem:[#allocation3 + $0x338] sm:$0xff] %vm1217, 0.0
      %3827 = vst.msk [vmem:[#allocation3 + $0x340] sm:$0xff] %vm1217, 0.0
      %3828 = vst.msk [vmem:[#allocation3 + $0x348] sm:$0xff] %vm1217, 0.0
      %3829 = vst.msk [vmem:[#allocation3 + $0x350] sm:$0xff] %vm1217, 0.0
      %3830 = vst.msk [vmem:[#allocation3 + $0x358] sm:$0xff] %vm1217, 0.0
      %3831 = vst.msk [vmem:[#allocation3 + $0x360] sm:$0xff] %vm1217, 0.0
      %3832 = vst.msk [vmem:[#allocation3 + $0x368] sm:$0xff] %vm1217, 0.0
      %3833 = vst.msk [vmem:[#allocation3 + $0x370] sm:$0xff] %vm1217, 0.0
      %3834 = vst.msk [vmem:[#allocation3 + $0x378] sm:$0xff] %vm1217, 0.0
      %3835 = vst.msk [vmem:[#allocation3 + $0x380] sm:$0xff] %vm1217, 0.0
      %3836 = vst.msk [vmem:[#allocation3 + $0x388] sm:$0xff] %vm1217, 0.0
      %3837 = vst.msk [vmem:[#allocation3 + $0x390] sm:$0xff] %vm1217, 0.0
      %3838 = vst.msk [vmem:[#allocation3 + $0x398] sm:$0xff] %vm1217, 0.0
      %3839 = vst.msk [vmem:[#allocation3 + $0x3a0] sm:$0xff] %vm1217, 0.0
      %3840 = vst.msk [vmem:[#allocation3 + $0x3a8] sm:$0xff] %vm1217, 0.0
      %3841 = vst.msk [vmem:[#allocation3 + $0x3b0] sm:$0xff] %vm1217, 0.0
      %3842 = vst.msk [vmem:[#allocation3 + $0x3b8] sm:$0xff] %vm1217, 0.0
      %3843 = vst.msk [vmem:[#allocation3 + $0x3c0] sm:$0xff] %vm1217, 0.0
      %3844 = vst.msk [vmem:[#allocation3 + $0x3c8] sm:$0xff] %vm1217, 0.0
      %3845 = vst.msk [vmem:[#allocation3 + $0x3d0] sm:$0xff] %vm1217, 0.0
      %3846 = vst.msk [vmem:[#allocation3 + $0x3d8] sm:$0xff] %vm1217, 0.0
      %3847 = vst.msk [vmem:[#allocation3 + $0x3e0] sm:$0xff] %vm1217, 0.0
      %3848 = vst.msk [vmem:[#allocation3 + $0x3e8] sm:$0xff] %vm1217, 0.0
      %3849 = vst.msk [vmem:[#allocation3 + $0x3f0] sm:$0xff] %vm1217, 0.0
      %3850 = vst.msk [vmem:[#allocation3 + $0x3f8] sm:$0xff] %vm1217, 0.0
      %s3851 = scalar_lea.vmem [#allocation3], 256
      %3852 = vst.msk [vmem:[%s3851 + $0x8] sm:$0xff] %vm1217, %v1499
      %3853 = vst.msk [vmem:[%s3851 + $0x10] sm:$0xff] %vm1217, %v1500
      %3854 = vst.msk [vmem:[%s3851 + $0x28] sm:$0xff] %vm1217, %v1501
      %3855 = vst.msk [vmem:[%s3851 + $0x30] sm:$0xff] %vm1217, %v1502
      %3856 = vst.msk [vmem:[%s3851 + $0x48] sm:$0xff] %vm1217, %v1503
      %3857 = vst.msk [vmem:[%s3851 + $0x50] sm:$0xff] %vm1217, %v1504
      %3858 = vst.msk [vmem:[%s3851 + $0x68] sm:$0xff] %vm1217, %v1505
      %3859 = vst.msk [vmem:[%s3851 + $0x70] sm:$0xff] %vm1217, %v1506
      %3860 = vst.msk [vmem:[%s3851 + $0x88] sm:$0xff] %vm1217, %v1507
      %3861 = vst.msk [vmem:[%s3851 + $0x90] sm:$0xff] %vm1217, %v1508
      %3862 = vst.msk [vmem:[%s3851 + $0xa8] sm:$0xff] %vm1217, %v1509
      %3863 = vst.msk [vmem:[%s3851 + $0xb0] sm:$0xff] %vm1217, %v1510
      %3864 = vst.msk [vmem:[%s3851 + $0xc8] sm:$0xff] %vm1217, %v1511
      %3865 = vst.msk [vmem:[%s3851 + $0xd0] sm:$0xff] %vm1217, %v1512
      %3866 = vst.msk [vmem:[%s3851 + $0xe8] sm:$0xff] %vm1217, %v1513
      %3867 = vst.msk [vmem:[%s3851 + $0xf0] sm:$0xff] %vm1217, %v1514
      %3868 = vst.msk [vmem:[%s3851 + $0x108] sm:$0xff] %vm1217, %v1515
      %3869 = vst.msk [vmem:[%s3851 + $0x110] sm:$0xff] %vm1217, %v1516
      %3870 = vst.msk [vmem:[%s3851 + $0x128] sm:$0xff] %vm1217, %v1517
      %3871 = vst.msk [vmem:[%s3851 + $0x130] sm:$0xff] %vm1217, %v1518
      %3872 = vst.msk [vmem:[%s3851 + $0x148] sm:$0xff] %vm1217, %v1519
      %3873 = vst.msk [vmem:[%s3851 + $0x150] sm:$0xff] %vm1217, %v1520
      %3874 = vst.msk [vmem:[%s3851 + $0x168] sm:$0xff] %vm1217, %v1521
      %3875 = vst.msk [vmem:[%s3851 + $0x170] sm:$0xff] %vm1217, %v1522
      %3876 = vst.msk [vmem:[%s3851 + $0x188] sm:$0xff] %vm1217, %v1523
      %3877 = vst.msk [vmem:[%s3851 + $0x190] sm:$0xff] %vm1217, %v1524
      %3878 = vst.msk [vmem:[%s3851 + $0x1a8] sm:$0xff] %vm1217, %v1525
      %3879 = vst.msk [vmem:[%s3851 + $0x1b0] sm:$0xff] %vm1217, %v1526
      %3880 = vst.msk [vmem:[%s3851 + $0x1c8] sm:$0xff] %vm1217, %v1527
      %3881 = vst.msk [vmem:[%s3851 + $0x1d0] sm:$0xff] %vm1217, %v1528
      %3882 = vst.msk [vmem:[%s3851 + $0x1e8] sm:$0xff] %vm1217, %v1529
      %3883 = vst.msk [vmem:[%s3851 + $0x1f0] sm:$0xff] %vm1217, %v1530
      %v3884 = vld [vmem:[#allocation3 + $0xe0] sm:$0xff]
      %v3885 = vld [vmem:[#allocation3 + $0xe8] sm:$0xff]
      %v3886 = vld [vmem:[#allocation3 + $0xf0] sm:$0xff]
      %v3887 = vld [vmem:[#allocation3 + $0xf8] sm:$0xff]
      %v3888 = vld [vmem:[#allocation3 + $0x100] sm:$0xff]
      %v3889 = vld [vmem:[#allocation3 + $0x108] sm:$0xff]
      %v3890 = vld [vmem:[#allocation3 + $0x110] sm:$0xff]
      %v3891 = vld [vmem:[#allocation3 + $0x118] sm:$0xff]
      %v3892 = vld [vmem:[#allocation3 + $0x120] sm:$0xff]
      %v3893 = vld [vmem:[#allocation3 + $0x128] sm:$0xff]
      %v3894 = vld [vmem:[#allocation3 + $0x130] sm:$0xff]
      %v3895 = vld [vmem:[#allocation3 + $0x138] sm:$0xff]
      %v3896 = vld [vmem:[#allocation3 + $0x140] sm:$0xff]
      %v3897 = vld [vmem:[#allocation3 + $0x148] sm:$0xff]
      %v3898 = vld [vmem:[#allocation3 + $0x150] sm:$0xff]
      %v3899 = vld [vmem:[#allocation3 + $0x158] sm:$0xff]
      %v3900 = vld [vmem:[#allocation3 + $0x160] sm:$0xff]
      %v3901 = vld [vmem:[#allocation3 + $0x168] sm:$0xff]
      %v3902 = vld [vmem:[#allocation3 + $0x170] sm:$0xff]
      %v3903 = vld [vmem:[#allocation3 + $0x178] sm:$0xff]
      %v3904 = vld [vmem:[#allocation3 + $0x180] sm:$0xff]
      %v3905 = vld [vmem:[#allocation3 + $0x188] sm:$0xff]
      %v3906 = vld [vmem:[#allocation3 + $0x190] sm:$0xff]
      %v3907 = vld [vmem:[#allocation3 + $0x198] sm:$0xff]
      %v3908 = vld [vmem:[#allocation3 + $0x1a0] sm:$0xff]
      %v3909 = vld [vmem:[#allocation3 + $0x1a8] sm:$0xff]
      %v3910 = vld [vmem:[#allocation3 + $0x1b0] sm:$0xff]
      %v3911 = vld [vmem:[#allocation3 + $0x1b8] sm:$0xff]
      %v3912 = vld [vmem:[#allocation3 + $0x1c0] sm:$0xff]
      %v3913 = vld [vmem:[#allocation3 + $0x1c8] sm:$0xff]
      %v3914 = vld [vmem:[#allocation3 + $0x1d0] sm:$0xff]
      %v3915 = vld [vmem:[#allocation3 + $0x1d8] sm:$0xff]
      %v3916 = vld [vmem:[#allocation3 + $0x1e0] sm:$0xff]
      %v3917 = vld [vmem:[#allocation3 + $0x1e8] sm:$0xff]
      %v3918 = vld [vmem:[#allocation3 + $0x1f0] sm:$0xff]
      %v3919 = vld [vmem:[#allocation3 + $0x1f8] sm:$0xff]
      %v3920 = vld [vmem:[#allocation3 + $0x200] sm:$0xff]
      %v3921 = vld [vmem:[#allocation3 + $0x208] sm:$0xff]
      %v3922 = vld [vmem:[#allocation3 + $0x210] sm:$0xff]
      %v3923 = vld [vmem:[#allocation3 + $0x218] sm:$0xff]
      %v3924 = vld [vmem:[#allocation3 + $0x220] sm:$0xff]
      %v3925 = vld [vmem:[#allocation3 + $0x228] sm:$0xff]
      %v3926 = vld [vmem:[#allocation3 + $0x230] sm:$0xff]
      %v3927 = vld [vmem:[#allocation3 + $0x238] sm:$0xff]
      %v3928 = vld [vmem:[#allocation3 + $0x240] sm:$0xff]
      %v3929 = vld [vmem:[#allocation3 + $0x248] sm:$0xff]
      %v3930 = vld [vmem:[#allocation3 + $0x250] sm:$0xff]
      %v3931 = vld [vmem:[#allocation3 + $0x258] sm:$0xff]
      %v3932 = vld [vmem:[#allocation3 + $0x260] sm:$0xff]
      %v3933 = vld [vmem:[#allocation3 + $0x268] sm:$0xff]
      %v3934 = vld [vmem:[#allocation3 + $0x270] sm:$0xff]
      %v3935 = vld [vmem:[#allocation3 + $0x278] sm:$0xff]
      %v3936 = vld [vmem:[#allocation3 + $0x280] sm:$0xff]
      %v3937 = vld [vmem:[#allocation3 + $0x288] sm:$0xff]
      %v3938 = vld [vmem:[#allocation3 + $0x290] sm:$0xff]
      %v3939 = vld [vmem:[#allocation3 + $0x298] sm:$0xff]
      %v3940 = vld [vmem:[#allocation3 + $0x2a0] sm:$0xff]
      %v3941 = vld [vmem:[#allocation3 + $0x2a8] sm:$0xff]
      %v3942 = vld [vmem:[#allocation3 + $0x2b0] sm:$0xff]
      %v3943 = vld [vmem:[#allocation3 + $0x2b8] sm:$0xff]
      %v3944 = vld [vmem:[#allocation3 + $0x2c0] sm:$0xff]
      %v3945 = vld [vmem:[#allocation3 + $0x2c8] sm:$0xff]
      %v3946 = vld [vmem:[#allocation3 + $0x2d0] sm:$0xff]
      %v3947 = vld [vmem:[#allocation3 + $0x2d8] sm:$0xff]
      %v3948 = vld [vmem:[#allocation3 + $0x2e0] sm:$0xff]
      %v3949 = vld [vmem:[#allocation3 + $0x2e8] sm:$0xff]
      %v3950 = vld [vmem:[#allocation3 + $0x2f0] sm:$0xff]
      %v3951 = vld [vmem:[#allocation3 + $0x2f8] sm:$0xff]
      %v3952 = vld [vmem:[#allocation3 + $0x300] sm:$0xff]
      %v3953 = vld [vmem:[#allocation3 + $0x308] sm:$0xff]
      %v3954 = vld [vmem:[#allocation3 + $0x310] sm:$0xff]
      %v3955 = vld [vmem:[#allocation3 + $0x318] sm:$0xff]
      %v3956 = vld [vmem:[%s17] sm:$0x7]
      %v3957 = vld [vmem:[%s17 + $0x4] sm:$0x7]
      %v3958 = vld [vmem:[%s17 + $0x8] sm:$0x7]
      %v3959 = vperm.slane %v3956, 0
      %v3960 = vmul.f32 %v3884, %v3959
      %v3961 = vmul.f32 %v3885, %v3959
      %v3962 = vmul.f32 %v3886, %v3959
      %v3963 = vmul.f32 %v3888, %v3959
      %v3964 = vmul.f32 %v3889, %v3959
      %v3965 = vmul.f32 %v3890, %v3959
      %v3966 = vmul.f32 %v3892, %v3959
      %v3967 = vmul.f32 %v3893, %v3959
      %v3968 = vmul.f32 %v3894, %v3959
      %v3969 = vmul.f32 %v3896, %v3959
      %v3970 = vmul.f32 %v3897, %v3959
      %v3971 = vmul.f32 %v3898, %v3959
      %v3972 = vmul.f32 %v3900, %v3959
      %v3973 = vmul.f32 %v3901, %v3959
      %v3974 = vmul.f32 %v3902, %v3959
      %v3975 = vmul.f32 %v3904, %v3959
      %v3976 = vmul.f32 %v3905, %v3959
      %v3977 = vmul.f32 %v3906, %v3959
      %v3978 = vmul.f32 %v3908, %v3959
      %v3979 = vmul.f32 %v3909, %v3959
      %v3980 = vmul.f32 %v3910, %v3959
      %v3981 = vmul.f32 %v3912, %v3959
      %v3982 = vmul.f32 %v3913, %v3959
      %v3983 = vmul.f32 %v3914, %v3959
      %v3984 = vmul.f32 %v3916, %v3959
      %v3985 = vmul.f32 %v3917, %v3959
      %v3986 = vmul.f32 %v3918, %v3959
      %v3987 = vmul.f32 %v3920, %v3959
      %v3988 = vmul.f32 %v3921, %v3959
      %v3989 = vmul.f32 %v3922, %v3959
      %v3990 = vmul.f32 %v3924, %v3959
      %v3991 = vmul.f32 %v3925, %v3959
      %v3992 = vmul.f32 %v3926, %v3959
      %v3993 = vmul.f32 %v3928, %v3959
      %v3994 = vmul.f32 %v3929, %v3959
      %v3995 = vmul.f32 %v3930, %v3959
      %v3996 = vmul.f32 %v3932, %v3959
      %v3997 = vmul.f32 %v3933, %v3959
      %v3998 = vmul.f32 %v3934, %v3959
      %v3999 = vmul.f32 %v3936, %v3959
      %v4000 = vmul.f32 %v3937, %v3959
      %v4001 = vmul.f32 %v3938, %v3959
      %v4002 = vmul.f32 %v3940, %v3959
      %v4003 = vmul.f32 %v3941, %v3959
      %v4004 = vmul.f32 %v3942, %v3959
      %v4005 = vmul.f32 %v3944, %v3959
      %v4006 = vmul.f32 %v3945, %v3959
      %v4007 = vmul.f32 %v3946, %v3959
      %v4008 = vperm.slane %v3956, 1
      %v4009 = vmul.f32 %v3885, %v4008
      %v4010 = vmul.f32 %v3886, %v4008
      %v4011 = vmul.f32 %v3889, %v4008
      %v4012 = vmul.f32 %v3890, %v4008
      %v4013 = vmul.f32 %v3893, %v4008
      %v4014 = vmul.f32 %v3894, %v4008
      %v4015 = vmul.f32 %v3897, %v4008
      %v4016 = vmul.f32 %v3898, %v4008
      %v4017 = vmul.f32 %v3901, %v4008
      %v4018 = vmul.f32 %v3902, %v4008
      %v4019 = vmul.f32 %v3905, %v4008
      %v4020 = vmul.f32 %v3906, %v4008
      %v4021 = vmul.f32 %v3909, %v4008
      %v4022 = vmul.f32 %v3910, %v4008
      %v4023 = vmul.f32 %v3913, %v4008
      %v4024 = vmul.f32 %v3914, %v4008
      %v4025 = vmul.f32 %v3917, %v4008
      %v4026 = vmul.f32 %v3918, %v4008
      %v4027 = vmul.f32 %v3921, %v4008
      %v4028 = vmul.f32 %v3922, %v4008
      %v4029 = vmul.f32 %v3925, %v4008
      %v4030 = vmul.f32 %v3926, %v4008
      %v4031 = vmul.f32 %v3929, %v4008
      %v4032 = vmul.f32 %v3930, %v4008
      %v4033 = vmul.f32 %v3933, %v4008
      %v4034 = vmul.f32 %v3934, %v4008
      %v4035 = vmul.f32 %v3937, %v4008
      %v4036 = vmul.f32 %v3938, %v4008
      %v4037 = vmul.f32 %v3941, %v4008
      %v4038 = vmul.f32 %v3942, %v4008
      %v4039 = vmul.f32 %v3945, %v4008
      %v4040 = vmul.f32 %v3946, %v4008
      %v4073 = vrot.slane %v4009, 1
      %v4074 = vrot.slane %v4010, 1
      %v4075 = vsel %vm1881, %v4073, %v4074
      %v4076 = vrot.slane %v4011, 1
      %v4077 = vrot.slane %v4012, 1
      %v4078 = vsel %vm1881, %v4076, %v4077
      %v4079 = vrot.slane %v4013, 1
      %v4080 = vrot.slane %v4014, 1
      %v4081 = vsel %vm1881, %v4079, %v4080
      %v4082 = vrot.slane %v4015, 1
      %v4083 = vrot.slane %v4016, 1
      %v4084 = vsel %vm1881, %v4082, %v4083
      %v4085 = vrot.slane %v4017, 1
      %v4086 = vrot.slane %v4018, 1
      %v4087 = vsel %vm1881, %v4085, %v4086
      %v4088 = vrot.slane %v4019, 1
      %v4089 = vrot.slane %v4020, 1
      %v4090 = vsel %vm1881, %v4088, %v4089
      %v4091 = vrot.slane %v4021, 1
      %v4092 = vrot.slane %v4022, 1
      %v4093 = vsel %vm1881, %v4091, %v4092
      %v4094 = vrot.slane %v4023, 1
      %v4095 = vrot.slane %v4024, 1
      %v4096 = vsel %vm1881, %v4094, %v4095
      %v4097 = vrot.slane %v4025, 1
      %v4098 = vrot.slane %v4026, 1
      %v4099 = vsel %vm1881, %v4097, %v4098
      %v4100 = vrot.slane %v4027, 1
      %v4101 = vrot.slane %v4028, 1
      %v4102 = vsel %vm1881, %v4100, %v4101
      %v4103 = vrot.slane %v4029, 1
      %v4104 = vrot.slane %v4030, 1
      %v4105 = vsel %vm1881, %v4103, %v4104
      %v4106 = vrot.slane %v4031, 1
      %v4107 = vrot.slane %v4032, 1
      %v4108 = vsel %vm1881, %v4106, %v4107
      %v4109 = vrot.slane %v4033, 1
      %v4110 = vrot.slane %v4034, 1
      %v4111 = vsel %vm1881, %v4109, %v4110
      %v4112 = vrot.slane %v4035, 1
      %v4113 = vrot.slane %v4036, 1
      %v4114 = vsel %vm1881, %v4112, %v4113
      %v4115 = vrot.slane %v4037, 1
      %v4116 = vrot.slane %v4038, 1
      %v4117 = vsel %vm1881, %v4115, %v4116
      %v4118 = vrot.slane %v4039, 1
      %v4119 = vrot.slane %v4040, 1
      %v4120 = vsel %vm1881, %v4118, %v4119
      %v4169 = vadd.f32 %v3960, %v4073
      %v4170 = vadd.f32 %v3961, %v4075
      %v4171 = vadd.f32 %v3962, %v4074
      %v4172 = vadd.f32 %v3963, %v4076
      %v4173 = vadd.f32 %v3964, %v4078
      %v4174 = vadd.f32 %v3965, %v4077
      %v4175 = vadd.f32 %v3966, %v4079
      %v4176 = vadd.f32 %v3967, %v4081
      %v4177 = vadd.f32 %v3968, %v4080
      %v4178 = vadd.f32 %v3969, %v4082
      %v4179 = vadd.f32 %v3970, %v4084
      %v4180 = vadd.f32 %v3971, %v4083
      %v4181 = vadd.f32 %v3972, %v4085
      %v4182 = vadd.f32 %v3973, %v4087
      %v4183 = vadd.f32 %v3974, %v4086
      %v4184 = vadd.f32 %v3975, %v4088
      %v4185 = vadd.f32 %v3976, %v4090
      %v4186 = vadd.f32 %v3977, %v4089
      %v4187 = vadd.f32 %v3978, %v4091
      %v4188 = vadd.f32 %v3979, %v4093
      %v4189 = vadd.f32 %v3980, %v4092
      %v4190 = vadd.f32 %v3981, %v4094
      %v4191 = vadd.f32 %v3982, %v4096
      %v4192 = vadd.f32 %v3983, %v4095
      %v4193 = vadd.f32 %v3984, %v4097
      %v4194 = vadd.f32 %v3985, %v4099
      %v4195 = vadd.f32 %v3986, %v4098
      %v4196 = vadd.f32 %v3987, %v4100
      %v4197 = vadd.f32 %v3988, %v4102
      %v4198 = vadd.f32 %v3989, %v4101
      %v4199 = vadd.f32 %v3990, %v4103
      %v4200 = vadd.f32 %v3991, %v4105
      %v4201 = vadd.f32 %v3992, %v4104
      %v4202 = vadd.f32 %v3993, %v4106
      %v4203 = vadd.f32 %v3994, %v4108
      %v4204 = vadd.f32 %v3995, %v4107
      %v4205 = vadd.f32 %v3996, %v4109
      %v4206 = vadd.f32 %v3997, %v4111
      %v4207 = vadd.f32 %v3998, %v4110
      %v4208 = vadd.f32 %v3999, %v4112
      %v4209 = vadd.f32 %v4000, %v4114
      %v4210 = vadd.f32 %v4001, %v4113
      %v4211 = vadd.f32 %v4002, %v4115
      %v4212 = vadd.f32 %v4003, %v4117
      %v4213 = vadd.f32 %v4004, %v4116
      %v4214 = vadd.f32 %v4005, %v4118
      %v4215 = vadd.f32 %v4006, %v4120
      %v4216 = vadd.f32 %v4007, %v4119
      %v4217 = vperm.slane %v3956, 2
      %v4218 = vmul.f32 %v3885, %v4217
      %v4219 = vmul.f32 %v3886, %v4217
      %v4220 = vmul.f32 %v3887, %v4217
      %v4221 = vmul.f32 %v3889, %v4217
      %v4222 = vmul.f32 %v3890, %v4217
      %v4223 = vmul.f32 %v3891, %v4217
      %v4224 = vmul.f32 %v3893, %v4217
      %v4225 = vmul.f32 %v3894, %v4217
      %v4226 = vmul.f32 %v3895, %v4217
      %v4227 = vmul.f32 %v3897, %v4217
      %v4228 = vmul.f32 %v3898, %v4217
      %v4229 = vmul.f32 %v3899, %v4217
      %v4230 = vmul.f32 %v3901, %v4217
      %v4231 = vmul.f32 %v3902, %v4217
      %v4232 = vmul.f32 %v3903, %v4217
      %v4233 = vmul.f32 %v3905, %v4217
      %v4234 = vmul.f32 %v3906, %v4217
      %v4235 = vmul.f32 %v3907, %v4217
      %v4236 = vmul.f32 %v3909, %v4217
      %v4237 = vmul.f32 %v3910, %v4217
      %v4238 = vmul.f32 %v3911, %v4217
      %v4239 = vmul.f32 %v3913, %v4217
      %v4240 = vmul.f32 %v3914, %v4217
      %v4241 = vmul.f32 %v3915, %v4217
      %v4242 = vmul.f32 %v3917, %v4217
      %v4243 = vmul.f32 %v3918, %v4217
      %v4244 = vmul.f32 %v3919, %v4217
      %v4245 = vmul.f32 %v3921, %v4217
      %v4246 = vmul.f32 %v3922, %v4217
      %v4247 = vmul.f32 %v3923, %v4217
      %v4248 = vmul.f32 %v3925, %v4217
      %v4249 = vmul.f32 %v3926, %v4217
      %v4250 = vmul.f32 %v3927, %v4217
      %v4251 = vmul.f32 %v3929, %v4217
      %v4252 = vmul.f32 %v3930, %v4217
      %v4253 = vmul.f32 %v3931, %v4217
      %v4254 = vmul.f32 %v3933, %v4217
      %v4255 = vmul.f32 %v3934, %v4217
      %v4256 = vmul.f32 %v3935, %v4217
      %v4257 = vmul.f32 %v3937, %v4217
      %v4258 = vmul.f32 %v3938, %v4217
      %v4259 = vmul.f32 %v3939, %v4217
      %v4260 = vmul.f32 %v3941, %v4217
      %v4261 = vmul.f32 %v3942, %v4217
      %v4262 = vmul.f32 %v3943, %v4217
      %v4263 = vmul.f32 %v3945, %v4217
      %v4264 = vmul.f32 %v3946, %v4217
      %v4265 = vmul.f32 %v3947, %v4217
      %v4314 = vrot.slane %v4218, 2
      %v4315 = vrot.slane %v4219, 2
      %v4316 = vsel %vm2123, %v4314, %v4315
      %v4317 = vrot.slane %v4220, 2
      %v4318 = vsel %vm2123, %v4315, %v4317
      %v4319 = vrot.slane %v4221, 2
      %v4320 = vrot.slane %v4222, 2
      %v4321 = vsel %vm2123, %v4319, %v4320
      %v4322 = vrot.slane %v4223, 2
      %v4323 = vsel %vm2123, %v4320, %v4322
      %v4324 = vrot.slane %v4224, 2
      %v4325 = vrot.slane %v4225, 2
      %v4326 = vsel %vm2123, %v4324, %v4325
      %v4327 = vrot.slane %v4226, 2
      %v4328 = vsel %vm2123, %v4325, %v4327
      %v4329 = vrot.slane %v4227, 2
      %v4330 = vrot.slane %v4228, 2
      %v4331 = vsel %vm2123, %v4329, %v4330
      %v4332 = vrot.slane %v4229, 2
      %v4333 = vsel %vm2123, %v4330, %v4332
      %v4334 = vrot.slane %v4230, 2
      %v4335 = vrot.slane %v4231, 2
      %v4336 = vsel %vm2123, %v4334, %v4335
      %v4337 = vrot.slane %v4232, 2
      %v4338 = vsel %vm2123, %v4335, %v4337
      %v4339 = vrot.slane %v4233, 2
      %v4340 = vrot.slane %v4234, 2
      %v4341 = vsel %vm2123, %v4339, %v4340
      %v4342 = vrot.slane %v4235, 2
      %v4343 = vsel %vm2123, %v4340, %v4342
      %v4344 = vrot.slane %v4236, 2
      %v4345 = vrot.slane %v4237, 2
      %v4346 = vsel %vm2123, %v4344, %v4345
      %v4347 = vrot.slane %v4238, 2
      %v4348 = vsel %vm2123, %v4345, %v4347
      %v4349 = vrot.slane %v4239, 2
      %v4350 = vrot.slane %v4240, 2
      %v4351 = vsel %vm2123, %v4349, %v4350
      %v4352 = vrot.slane %v4241, 2
      %v4353 = vsel %vm2123, %v4350, %v4352
      %v4354 = vrot.slane %v4242, 2
      %v4355 = vrot.slane %v4243, 2
      %v4356 = vsel %vm2123, %v4354, %v4355
      %v4357 = vrot.slane %v4244, 2
      %v4358 = vsel %vm2123, %v4355, %v4357
      %v4359 = vrot.slane %v4245, 2
      %v4360 = vrot.slane %v4246, 2
      %v4361 = vsel %vm2123, %v4359, %v4360
      %v4362 = vrot.slane %v4247, 2
      %v4363 = vsel %vm2123, %v4360, %v4362
      %v4364 = vrot.slane %v4248, 2
      %v4365 = vrot.slane %v4249, 2
      %v4366 = vsel %vm2123, %v4364, %v4365
      %v4367 = vrot.slane %v4250, 2
      %v4368 = vsel %vm2123, %v4365, %v4367
      %v4369 = vrot.slane %v4251, 2
      %v4370 = vrot.slane %v4252, 2
      %v4371 = vsel %vm2123, %v4369, %v4370
      %v4372 = vrot.slane %v4253, 2
      %v4373 = vsel %vm2123, %v4370, %v4372
      %v4374 = vrot.slane %v4254, 2
      %v4375 = vrot.slane %v4255, 2
      %v4376 = vsel %vm2123, %v4374, %v4375
      %v4377 = vrot.slane %v4256, 2
      %v4378 = vsel %vm2123, %v4375, %v4377
      %v4379 = vrot.slane %v4257, 2
      %v4380 = vrot.slane %v4258, 2
      %v4381 = vsel %vm2123, %v4379, %v4380
      %v4382 = vrot.slane %v4259, 2
      %v4383 = vsel %vm2123, %v4380, %v4382
      %v4384 = vrot.slane %v4260, 2
      %v4385 = vrot.slane %v4261, 2
      %v4386 = vsel %vm2123, %v4384, %v4385
      %v4387 = vrot.slane %v4262, 2
      %v4388 = vsel %vm2123, %v4385, %v4387
      %v4389 = vrot.slane %v4263, 2
      %v4390 = vrot.slane %v4264, 2
      %v4391 = vsel %vm2123, %v4389, %v4390
      %v4392 = vrot.slane %v4265, 2
      %v4393 = vsel %vm2123, %v4390, %v4392
      %v4442 = vadd.f32 %v4169, %v4314
      %v4443 = vadd.f32 %v4170, %v4316
      %v4444 = vadd.f32 %v4171, %v4318
      %v4445 = vadd.f32 %v4172, %v4319
      %v4446 = vadd.f32 %v4173, %v4321
      %v4447 = vadd.f32 %v4174, %v4323
      %v4448 = vadd.f32 %v4175, %v4324
      %v4449 = vadd.f32 %v4176, %v4326
      %v4450 = vadd.f32 %v4177, %v4328
      %v4451 = vadd.f32 %v4178, %v4329
      %v4452 = vadd.f32 %v4179, %v4331
      %v4453 = vadd.f32 %v4180, %v4333
      %v4454 = vadd.f32 %v4181, %v4334
      %v4455 = vadd.f32 %v4182, %v4336
      %v4456 = vadd.f32 %v4183, %v4338
      %v4457 = vadd.f32 %v4184, %v4339
      %v4458 = vadd.f32 %v4185, %v4341
      %v4459 = vadd.f32 %v4186, %v4343
      %v4460 = vadd.f32 %v4187, %v4344
      %v4461 = vadd.f32 %v4188, %v4346
      %v4462 = vadd.f32 %v4189, %v4348
      %v4463 = vadd.f32 %v4190, %v4349
      %v4464 = vadd.f32 %v4191, %v4351
      %v4465 = vadd.f32 %v4192, %v4353
      %v4466 = vadd.f32 %v4193, %v4354
      %v4467 = vadd.f32 %v4194, %v4356
      %v4468 = vadd.f32 %v4195, %v4358
      %v4469 = vadd.f32 %v4196, %v4359
      %v4470 = vadd.f32 %v4197, %v4361
      %v4471 = vadd.f32 %v4198, %v4363
      %v4472 = vadd.f32 %v4199, %v4364
      %v4473 = vadd.f32 %v4200, %v4366
      %v4474 = vadd.f32 %v4201, %v4368
      %v4475 = vadd.f32 %v4202, %v4369
      %v4476 = vadd.f32 %v4203, %v4371
      %v4477 = vadd.f32 %v4204, %v4373
      %v4478 = vadd.f32 %v4205, %v4374
      %v4479 = vadd.f32 %v4206, %v4376
      %v4480 = vadd.f32 %v4207, %v4378
      %v4481 = vadd.f32 %v4208, %v4379
      %v4482 = vadd.f32 %v4209, %v4381
      %v4483 = vadd.f32 %v4210, %v4383
      %v4484 = vadd.f32 %v4211, %v4384
      %v4485 = vadd.f32 %v4212, %v4386
      %v4486 = vadd.f32 %v4213, %v4388
      %v4487 = vadd.f32 %v4214, %v4389
      %v4488 = vadd.f32 %v4215, %v4391
      %v4489 = vadd.f32 %v4216, %v4393
      %v4490 = vperm.slane %v3957, 0
      %v4491 = vmul.f32 %v3888, %v4490
      %v4492 = vmul.f32 %v3889, %v4490
      %v4493 = vmul.f32 %v3890, %v4490
      %v4494 = vmul.f32 %v3892, %v4490
      %v4495 = vmul.f32 %v3893, %v4490
      %v4496 = vmul.f32 %v3894, %v4490
      %v4497 = vmul.f32 %v3896, %v4490
      %v4498 = vmul.f32 %v3897, %v4490
      %v4499 = vmul.f32 %v3898, %v4490
      %v4500 = vmul.f32 %v3900, %v4490
      %v4501 = vmul.f32 %v3901, %v4490
      %v4502 = vmul.f32 %v3902, %v4490
      %v4503 = vmul.f32 %v3904, %v4490
      %v4504 = vmul.f32 %v3905, %v4490
      %v4505 = vmul.f32 %v3906, %v4490
      %v4506 = vmul.f32 %v3908, %v4490
      %v4507 = vmul.f32 %v3909, %v4490
      %v4508 = vmul.f32 %v3910, %v4490
      %v4509 = vmul.f32 %v3912, %v4490
      %v4510 = vmul.f32 %v3913, %v4490
      %v4511 = vmul.f32 %v3914, %v4490
      %v4512 = vmul.f32 %v3916, %v4490
      %v4513 = vmul.f32 %v3917, %v4490
      %v4514 = vmul.f32 %v3918, %v4490
      %v4515 = vmul.f32 %v3920, %v4490
      %v4516 = vmul.f32 %v3921, %v4490
      %v4517 = vmul.f32 %v3922, %v4490
      %v4518 = vmul.f32 %v3924, %v4490
      %v4519 = vmul.f32 %v3925, %v4490
      %v4520 = vmul.f32 %v3926, %v4490
      %v4521 = vmul.f32 %v3928, %v4490
      %v4522 = vmul.f32 %v3929, %v4490
      %v4523 = vmul.f32 %v3930, %v4490
      %v4524 = vmul.f32 %v3932, %v4490
      %v4525 = vmul.f32 %v3933, %v4490
      %v4526 = vmul.f32 %v3934, %v4490
      %v4527 = vmul.f32 %v3936, %v4490
      %v4528 = vmul.f32 %v3937, %v4490
      %v4529 = vmul.f32 %v3938, %v4490
      %v4530 = vmul.f32 %v3940, %v4490
      %v4531 = vmul.f32 %v3941, %v4490
      %v4532 = vmul.f32 %v3942, %v4490
      %v4533 = vmul.f32 %v3944, %v4490
      %v4534 = vmul.f32 %v3945, %v4490
      %v4535 = vmul.f32 %v3946, %v4490
      %v4536 = vmul.f32 %v3948, %v4490
      %v4537 = vmul.f32 %v3949, %v4490
      %v4538 = vmul.f32 %v3950, %v4490
      %v4539 = vadd.f32 %v4442, %v4491
      %v4540 = vadd.f32 %v4443, %v4492
      %v4541 = vadd.f32 %v4444, %v4493
      %v4542 = vadd.f32 %v4445, %v4494
      %v4543 = vadd.f32 %v4446, %v4495
      %v4544 = vadd.f32 %v4447, %v4496
      %v4545 = vadd.f32 %v4448, %v4497
      %v4546 = vadd.f32 %v4449, %v4498
      %v4547 = vadd.f32 %v4450, %v4499
      %v4548 = vadd.f32 %v4451, %v4500
      %v4549 = vadd.f32 %v4452, %v4501
      %v4550 = vadd.f32 %v4453, %v4502
      %v4551 = vadd.f32 %v4454, %v4503
      %v4552 = vadd.f32 %v4455, %v4504
      %v4553 = vadd.f32 %v4456, %v4505
      %v4554 = vadd.f32 %v4457, %v4506
      %v4555 = vadd.f32 %v4458, %v4507
      %v4556 = vadd.f32 %v4459, %v4508
      %v4557 = vadd.f32 %v4460, %v4509
      %v4558 = vadd.f32 %v4461, %v4510
      %v4559 = vadd.f32 %v4462, %v4511
      %v4560 = vadd.f32 %v4463, %v4512
      %v4561 = vadd.f32 %v4464, %v4513
      %v4562 = vadd.f32 %v4465, %v4514
      %v4563 = vadd.f32 %v4466, %v4515
      %v4564 = vadd.f32 %v4467, %v4516
      %v4565 = vadd.f32 %v4468, %v4517
      %v4566 = vadd.f32 %v4469, %v4518
      %v4567 = vadd.f32 %v4470, %v4519
      %v4568 = vadd.f32 %v4471, %v4520
      %v4569 = vadd.f32 %v4472, %v4521
      %v4570 = vadd.f32 %v4473, %v4522
      %v4571 = vadd.f32 %v4474, %v4523
      %v4572 = vadd.f32 %v4475, %v4524
      %v4573 = vadd.f32 %v4476, %v4525
      %v4574 = vadd.f32 %v4477, %v4526
      %v4575 = vadd.f32 %v4478, %v4527
      %v4576 = vadd.f32 %v4479, %v4528
      %v4577 = vadd.f32 %v4480, %v4529
      %v4578 = vadd.f32 %v4481, %v4530
      %v4579 = vadd.f32 %v4482, %v4531
      %v4580 = vadd.f32 %v4483, %v4532
      %v4581 = vadd.f32 %v4484, %v4533
      %v4582 = vadd.f32 %v4485, %v4534
      %v4583 = vadd.f32 %v4486, %v4535
      %v4584 = vadd.f32 %v4487, %v4536
      %v4585 = vadd.f32 %v4488, %v4537
      %v4586 = vadd.f32 %v4489, %v4538
      %v4587 = vperm.slane %v3957, 1
      %v4588 = vmul.f32 %v3889, %v4587
      %v4589 = vmul.f32 %v3890, %v4587
      %v4590 = vmul.f32 %v3893, %v4587
      %v4591 = vmul.f32 %v3894, %v4587
      %v4592 = vmul.f32 %v3897, %v4587
      %v4593 = vmul.f32 %v3898, %v4587
      %v4594 = vmul.f32 %v3901, %v4587
      %v4595 = vmul.f32 %v3902, %v4587
      %v4596 = vmul.f32 %v3905, %v4587
      %v4597 = vmul.f32 %v3906, %v4587
      %v4598 = vmul.f32 %v3909, %v4587
      %v4599 = vmul.f32 %v3910, %v4587
      %v4600 = vmul.f32 %v3913, %v4587
      %v4601 = vmul.f32 %v3914, %v4587
      %v4602 = vmul.f32 %v3917, %v4587
      %v4603 = vmul.f32 %v3918, %v4587
      %v4604 = vmul.f32 %v3921, %v4587
      %v4605 = vmul.f32 %v3922, %v4587
      %v4606 = vmul.f32 %v3925, %v4587
      %v4607 = vmul.f32 %v3926, %v4587
      %v4608 = vmul.f32 %v3929, %v4587
      %v4609 = vmul.f32 %v3930, %v4587
      %v4610 = vmul.f32 %v3933, %v4587
      %v4611 = vmul.f32 %v3934, %v4587
      %v4612 = vmul.f32 %v3937, %v4587
      %v4613 = vmul.f32 %v3938, %v4587
      %v4614 = vmul.f32 %v3941, %v4587
      %v4615 = vmul.f32 %v3942, %v4587
      %v4616 = vmul.f32 %v3945, %v4587
      %v4617 = vmul.f32 %v3946, %v4587
      %v4618 = vmul.f32 %v3949, %v4587
      %v4619 = vmul.f32 %v3950, %v4587
      %v4652 = vrot.slane %v4588, 1
      %v4653 = vrot.slane %v4589, 1
      %v4654 = vsel %vm1881, %v4652, %v4653
      %v4655 = vrot.slane %v4590, 1
      %v4656 = vrot.slane %v4591, 1
      %v4657 = vsel %vm1881, %v4655, %v4656
      %v4658 = vrot.slane %v4592, 1
      %v4659 = vrot.slane %v4593, 1
      %v4660 = vsel %vm1881, %v4658, %v4659
      %v4661 = vrot.slane %v4594, 1
      %v4662 = vrot.slane %v4595, 1
      %v4663 = vsel %vm1881, %v4661, %v4662
      %v4664 = vrot.slane %v4596, 1
      %v4665 = vrot.slane %v4597, 1
      %v4666 = vsel %vm1881, %v4664, %v4665
      %v4667 = vrot.slane %v4598, 1
      %v4668 = vrot.slane %v4599, 1
      %v4669 = vsel %vm1881, %v4667, %v4668
      %v4670 = vrot.slane %v4600, 1
      %v4671 = vrot.slane %v4601, 1
      %v4672 = vsel %vm1881, %v4670, %v4671
      %v4673 = vrot.slane %v4602, 1
      %v4674 = vrot.slane %v4603, 1
      %v4675 = vsel %vm1881, %v4673, %v4674
      %v4676 = vrot.slane %v4604, 1
      %v4677 = vrot.slane %v4605, 1
      %v4678 = vsel %vm1881, %v4676, %v4677
      %v4679 = vrot.slane %v4606, 1
      %v4680 = vrot.slane %v4607, 1
      %v4681 = vsel %vm1881, %v4679, %v4680
      %v4682 = vrot.slane %v4608, 1
      %v4683 = vrot.slane %v4609, 1
      %v4684 = vsel %vm1881, %v4682, %v4683
      %v4685 = vrot.slane %v4610, 1
      %v4686 = vrot.slane %v4611, 1
      %v4687 = vsel %vm1881, %v4685, %v4686
      %v4688 = vrot.slane %v4612, 1
      %v4689 = vrot.slane %v4613, 1
      %v4690 = vsel %vm1881, %v4688, %v4689
      %v4691 = vrot.slane %v4614, 1
      %v4692 = vrot.slane %v4615, 1
      %v4693 = vsel %vm1881, %v4691, %v4692
      %v4694 = vrot.slane %v4616, 1
      %v4695 = vrot.slane %v4617, 1
      %v4696 = vsel %vm1881, %v4694, %v4695
      %v4697 = vrot.slane %v4618, 1
      %v4698 = vrot.slane %v4619, 1
      %v4699 = vsel %vm1881, %v4697, %v4698
      %v4748 = vadd.f32 %v4539, %v4652
      %v4749 = vadd.f32 %v4540, %v4654
      %v4750 = vadd.f32 %v4541, %v4653
      %v4751 = vadd.f32 %v4542, %v4655
      %v4752 = vadd.f32 %v4543, %v4657
      %v4753 = vadd.f32 %v4544, %v4656
      %v4754 = vadd.f32 %v4545, %v4658
      %v4755 = vadd.f32 %v4546, %v4660
      %v4756 = vadd.f32 %v4547, %v4659
      %v4757 = vadd.f32 %v4548, %v4661
      %v4758 = vadd.f32 %v4549, %v4663
      %v4759 = vadd.f32 %v4550, %v4662
      %v4760 = vadd.f32 %v4551, %v4664
      %v4761 = vadd.f32 %v4552, %v4666
      %v4762 = vadd.f32 %v4553, %v4665
      %v4763 = vadd.f32 %v4554, %v4667
      %v4764 = vadd.f32 %v4555, %v4669
      %v4765 = vadd.f32 %v4556, %v4668
      %v4766 = vadd.f32 %v4557, %v4670
      %v4767 = vadd.f32 %v4558, %v4672
      %v4768 = vadd.f32 %v4559, %v4671
      %v4769 = vadd.f32 %v4560, %v4673
      %v4770 = vadd.f32 %v4561, %v4675
      %v4771 = vadd.f32 %v4562, %v4674
      %v4772 = vadd.f32 %v4563, %v4676
      %v4773 = vadd.f32 %v4564, %v4678
      %v4774 = vadd.f32 %v4565, %v4677
      %v4775 = vadd.f32 %v4566, %v4679
      %v4776 = vadd.f32 %v4567, %v4681
      %v4777 = vadd.f32 %v4568, %v4680
      %v4778 = vadd.f32 %v4569, %v4682
      %v4779 = vadd.f32 %v4570, %v4684
      %v4780 = vadd.f32 %v4571, %v4683
      %v4781 = vadd.f32 %v4572, %v4685
      %v4782 = vadd.f32 %v4573, %v4687
      %v4783 = vadd.f32 %v4574, %v4686
      %v4784 = vadd.f32 %v4575, %v4688
      %v4785 = vadd.f32 %v4576, %v4690
      %v4786 = vadd.f32 %v4577, %v4689
      %v4787 = vadd.f32 %v4578, %v4691
      %v4788 = vadd.f32 %v4579, %v4693
      %v4789 = vadd.f32 %v4580, %v4692
      %v4790 = vadd.f32 %v4581, %v4694
      %v4791 = vadd.f32 %v4582, %v4696
      %v4792 = vadd.f32 %v4583, %v4695
      %v4793 = vadd.f32 %v4584, %v4697
      %v4794 = vadd.f32 %v4585, %v4699
      %v4795 = vadd.f32 %v4586, %v4698
      %v4796 = vperm.slane %v3957, 2
      %v4797 = vmul.f32 %v3889, %v4796
      %v4798 = vmul.f32 %v3890, %v4796
      %v4799 = vmul.f32 %v3891, %v4796
      %v4800 = vmul.f32 %v3893, %v4796
      %v4801 = vmul.f32 %v3894, %v4796
      %v4802 = vmul.f32 %v3895, %v4796
      %v4803 = vmul.f32 %v3897, %v4796
      %v4804 = vmul.f32 %v3898, %v4796
      %v4805 = vmul.f32 %v3899, %v4796
      %v4806 = vmul.f32 %v3901, %v4796
      %v4807 = vmul.f32 %v3902, %v4796
      %v4808 = vmul.f32 %v3903, %v4796
      %v4809 = vmul.f32 %v3905, %v4796
      %v4810 = vmul.f32 %v3906, %v4796
      %v4811 = vmul.f32 %v3907, %v4796
      %v4812 = vmul.f32 %v3909, %v4796
      %v4813 = vmul.f32 %v3910, %v4796
      %v4814 = vmul.f32 %v3911, %v4796
      %v4815 = vmul.f32 %v3913, %v4796
      %v4816 = vmul.f32 %v3914, %v4796
      %v4817 = vmul.f32 %v3915, %v4796
      %v4818 = vmul.f32 %v3917, %v4796
      %v4819 = vmul.f32 %v3918, %v4796
      %v4820 = vmul.f32 %v3919, %v4796
      %v4821 = vmul.f32 %v3921, %v4796
      %v4822 = vmul.f32 %v3922, %v4796
      %v4823 = vmul.f32 %v3923, %v4796
      %v4824 = vmul.f32 %v3925, %v4796
      %v4825 = vmul.f32 %v3926, %v4796
      %v4826 = vmul.f32 %v3927, %v4796
      %v4827 = vmul.f32 %v3929, %v4796
      %v4828 = vmul.f32 %v3930, %v4796
      %v4829 = vmul.f32 %v3931, %v4796
      %v4830 = vmul.f32 %v3933, %v4796
      %v4831 = vmul.f32 %v3934, %v4796
      %v4832 = vmul.f32 %v3935, %v4796
      %v4833 = vmul.f32 %v3937, %v4796
      %v4834 = vmul.f32 %v3938, %v4796
      %v4835 = vmul.f32 %v3939, %v4796
      %v4836 = vmul.f32 %v3941, %v4796
      %v4837 = vmul.f32 %v3942, %v4796
      %v4838 = vmul.f32 %v3943, %v4796
      %v4839 = vmul.f32 %v3945, %v4796
      %v4840 = vmul.f32 %v3946, %v4796
      %v4841 = vmul.f32 %v3947, %v4796
      %v4842 = vmul.f32 %v3949, %v4796
      %v4843 = vmul.f32 %v3950, %v4796
      %v4844 = vmul.f32 %v3951, %v4796
      %v4893 = vrot.slane %v4797, 2
      %v4894 = vrot.slane %v4798, 2
      %v4895 = vsel %vm2123, %v4893, %v4894
      %v4896 = vrot.slane %v4799, 2
      %v4897 = vsel %vm2123, %v4894, %v4896
      %v4898 = vrot.slane %v4800, 2
      %v4899 = vrot.slane %v4801, 2
      %v4900 = vsel %vm2123, %v4898, %v4899
      %v4901 = vrot.slane %v4802, 2
      %v4902 = vsel %vm2123, %v4899, %v4901
      %v4903 = vrot.slane %v4803, 2
      %v4904 = vrot.slane %v4804, 2
      %v4905 = vsel %vm2123, %v4903, %v4904
      %v4906 = vrot.slane %v4805, 2
      %v4907 = vsel %vm2123, %v4904, %v4906
      %v4908 = vrot.slane %v4806, 2
      %v4909 = vrot.slane %v4807, 2
      %v4910 = vsel %vm2123, %v4908, %v4909
      %v4911 = vrot.slane %v4808, 2
      %v4912 = vsel %vm2123, %v4909, %v4911
      %v4913 = vrot.slane %v4809, 2
      %v4914 = vrot.slane %v4810, 2
      %v4915 = vsel %vm2123, %v4913, %v4914
      %v4916 = vrot.slane %v4811, 2
      %v4917 = vsel %vm2123, %v4914, %v4916
      %v4918 = vrot.slane %v4812, 2
      %v4919 = vrot.slane %v4813, 2
      %v4920 = vsel %vm2123, %v4918, %v4919
      %v4921 = vrot.slane %v4814, 2
      %v4922 = vsel %vm2123, %v4919, %v4921
      %v4923 = vrot.slane %v4815, 2
      %v4924 = vrot.slane %v4816, 2
      %v4925 = vsel %vm2123, %v4923, %v4924
      %v4926 = vrot.slane %v4817, 2
      %v4927 = vsel %vm2123, %v4924, %v4926
      %v4928 = vrot.slane %v4818, 2
      %v4929 = vrot.slane %v4819, 2
      %v4930 = vsel %vm2123, %v4928, %v4929
      %v4931 = vrot.slane %v4820, 2
      %v4932 = vsel %vm2123, %v4929, %v4931
      %v4933 = vrot.slane %v4821, 2
      %v4934 = vrot.slane %v4822, 2
      %v4935 = vsel %vm2123, %v4933, %v4934
      %v4936 = vrot.slane %v4823, 2
      %v4937 = vsel %vm2123, %v4934, %v4936
      %v4938 = vrot.slane %v4824, 2
      %v4939 = vrot.slane %v4825, 2
      %v4940 = vsel %vm2123, %v4938, %v4939
      %v4941 = vrot.slane %v4826, 2
      %v4942 = vsel %vm2123, %v4939, %v4941
      %v4943 = vrot.slane %v4827, 2
      %v4944 = vrot.slane %v4828, 2
      %v4945 = vsel %vm2123, %v4943, %v4944
      %v4946 = vrot.slane %v4829, 2
      %v4947 = vsel %vm2123, %v4944, %v4946
      %v4948 = vrot.slane %v4830, 2
      %v4949 = vrot.slane %v4831, 2
      %v4950 = vsel %vm2123, %v4948, %v4949
      %v4951 = vrot.slane %v4832, 2
      %v4952 = vsel %vm2123, %v4949, %v4951
      %v4953 = vrot.slane %v4833, 2
      %v4954 = vrot.slane %v4834, 2
      %v4955 = vsel %vm2123, %v4953, %v4954
      %v4956 = vrot.slane %v4835, 2
      %v4957 = vsel %vm2123, %v4954, %v4956
      %v4958 = vrot.slane %v4836, 2
      %v4959 = vrot.slane %v4837, 2
      %v4960 = vsel %vm2123, %v4958, %v4959
      %v4961 = vrot.slane %v4838, 2
      %v4962 = vsel %vm2123, %v4959, %v4961
      %v4963 = vrot.slane %v4839, 2
      %v4964 = vrot.slane %v4840, 2
      %v4965 = vsel %vm2123, %v4963, %v4964
      %v4966 = vrot.slane %v4841, 2
      %v4967 = vsel %vm2123, %v4964, %v4966
      %v4968 = vrot.slane %v4842, 2
      %v4969 = vrot.slane %v4843, 2
      %v4970 = vsel %vm2123, %v4968, %v4969
      %v4971 = vrot.slane %v4844, 2
      %v4972 = vsel %vm2123, %v4969, %v4971
      %v5021 = vadd.f32 %v4748, %v4893
      %v5022 = vadd.f32 %v4749, %v4895
      %v5023 = vadd.f32 %v4750, %v4897
      %v5024 = vadd.f32 %v4751, %v4898
      %v5025 = vadd.f32 %v4752, %v4900
      %v5026 = vadd.f32 %v4753, %v4902
      %v5027 = vadd.f32 %v4754, %v4903
      %v5028 = vadd.f32 %v4755, %v4905
      %v5029 = vadd.f32 %v4756, %v4907
      %v5030 = vadd.f32 %v4757, %v4908
      %v5031 = vadd.f32 %v4758, %v4910
      %v5032 = vadd.f32 %v4759, %v4912
      %v5033 = vadd.f32 %v4760, %v4913
      %v5034 = vadd.f32 %v4761, %v4915
      %v5035 = vadd.f32 %v4762, %v4917
      %v5036 = vadd.f32 %v4763, %v4918
      %v5037 = vadd.f32 %v4764, %v4920
      %v5038 = vadd.f32 %v4765, %v4922
      %v5039 = vadd.f32 %v4766, %v4923
      %v5040 = vadd.f32 %v4767, %v4925
      %v5041 = vadd.f32 %v4768, %v4927
      %v5042 = vadd.f32 %v4769, %v4928
      %v5043 = vadd.f32 %v4770, %v4930
      %v5044 = vadd.f32 %v4771, %v4932
      %v5045 = vadd.f32 %v4772, %v4933
      %v5046 = vadd.f32 %v4773, %v4935
      %v5047 = vadd.f32 %v4774, %v4937
      %v5048 = vadd.f32 %v4775, %v4938
      %v5049 = vadd.f32 %v4776, %v4940
      %v5050 = vadd.f32 %v4777, %v4942
      %v5051 = vadd.f32 %v4778, %v4943
      %v5052 = vadd.f32 %v4779, %v4945
      %v5053 = vadd.f32 %v4780, %v4947
      %v5054 = vadd.f32 %v4781, %v4948
      %v5055 = vadd.f32 %v4782, %v4950
      %v5056 = vadd.f32 %v4783, %v4952
      %v5057 = vadd.f32 %v4784, %v4953
      %v5058 = vadd.f32 %v4785, %v4955
      %v5059 = vadd.f32 %v4786, %v4957
      %v5060 = vadd.f32 %v4787, %v4958
      %v5061 = vadd.f32 %v4788, %v4960
      %v5062 = vadd.f32 %v4789, %v4962
      %v5063 = vadd.f32 %v4790, %v4963
      %v5064 = vadd.f32 %v4791, %v4965
      %v5065 = vadd.f32 %v4792, %v4967
      %v5066 = vadd.f32 %v4793, %v4968
      %v5067 = vadd.f32 %v4794, %v4970
      %v5068 = vadd.f32 %v4795, %v4972
      %v5069 = vperm.slane %v3958, 0
      %v5070 = vmul.f32 %v3892, %v5069
      %v5071 = vmul.f32 %v3893, %v5069
      %v5072 = vmul.f32 %v3894, %v5069
      %v5073 = vmul.f32 %v3896, %v5069
      %v5074 = vmul.f32 %v3897, %v5069
      %v5075 = vmul.f32 %v3898, %v5069
      %v5076 = vmul.f32 %v3900, %v5069
      %v5077 = vmul.f32 %v3901, %v5069
      %v5078 = vmul.f32 %v3902, %v5069
      %v5079 = vmul.f32 %v3904, %v5069
      %v5080 = vmul.f32 %v3905, %v5069
      %v5081 = vmul.f32 %v3906, %v5069
      %v5082 = vmul.f32 %v3908, %v5069
      %v5083 = vmul.f32 %v3909, %v5069
      %v5084 = vmul.f32 %v3910, %v5069
      %v5085 = vmul.f32 %v3912, %v5069
      %v5086 = vmul.f32 %v3913, %v5069
      %v5087 = vmul.f32 %v3914, %v5069
      %v5088 = vmul.f32 %v3916, %v5069
      %v5089 = vmul.f32 %v3917, %v5069
      %v5090 = vmul.f32 %v3918, %v5069
      %v5091 = vmul.f32 %v3920, %v5069
      %v5092 = vmul.f32 %v3921, %v5069
      %v5093 = vmul.f32 %v3922, %v5069
      %v5094 = vmul.f32 %v3924, %v5069
      %v5095 = vmul.f32 %v3925, %v5069
      %v5096 = vmul.f32 %v3926, %v5069
      %v5097 = vmul.f32 %v3928, %v5069
      %v5098 = vmul.f32 %v3929, %v5069
      %v5099 = vmul.f32 %v3930, %v5069
      %v5100 = vmul.f32 %v3932, %v5069
      %v5101 = vmul.f32 %v3933, %v5069
      %v5102 = vmul.f32 %v3934, %v5069
      %v5103 = vmul.f32 %v3936, %v5069
      %v5104 = vmul.f32 %v3937, %v5069
      %v5105 = vmul.f32 %v3938, %v5069
      %v5106 = vmul.f32 %v3940, %v5069
      %v5107 = vmul.f32 %v3941, %v5069
      %v5108 = vmul.f32 %v3942, %v5069
      %v5109 = vmul.f32 %v3944, %v5069
      %v5110 = vmul.f32 %v3945, %v5069
      %v5111 = vmul.f32 %v3946, %v5069
      %v5112 = vmul.f32 %v3948, %v5069
      %v5113 = vmul.f32 %v3949, %v5069
      %v5114 = vmul.f32 %v3950, %v5069
      %v5115 = vmul.f32 %v3952, %v5069
      %v5116 = vmul.f32 %v3953, %v5069
      %v5117 = vmul.f32 %v3954, %v5069
      %v5118 = vadd.f32 %v5021, %v5070
      %v5119 = vadd.f32 %v5022, %v5071
      %v5120 = vadd.f32 %v5023, %v5072
      %v5121 = vadd.f32 %v5024, %v5073
      %v5122 = vadd.f32 %v5025, %v5074
      %v5123 = vadd.f32 %v5026, %v5075
      %v5124 = vadd.f32 %v5027, %v5076
      %v5125 = vadd.f32 %v5028, %v5077
      %v5126 = vadd.f32 %v5029, %v5078
      %v5127 = vadd.f32 %v5030, %v5079
      %v5128 = vadd.f32 %v5031, %v5080
      %v5129 = vadd.f32 %v5032, %v5081
      %v5130 = vadd.f32 %v5033, %v5082
      %v5131 = vadd.f32 %v5034, %v5083
      %v5132 = vadd.f32 %v5035, %v5084
      %v5133 = vadd.f32 %v5036, %v5085
      %v5134 = vadd.f32 %v5037, %v5086
      %v5135 = vadd.f32 %v5038, %v5087
      %v5136 = vadd.f32 %v5039, %v5088
      %v5137 = vadd.f32 %v5040, %v5089
      %v5138 = vadd.f32 %v5041, %v5090
      %v5139 = vadd.f32 %v5042, %v5091
      %v5140 = vadd.f32 %v5043, %v5092
      %v5141 = vadd.f32 %v5044, %v5093
      %v5142 = vadd.f32 %v5045, %v5094
      %v5143 = vadd.f32 %v5046, %v5095
      %v5144 = vadd.f32 %v5047, %v5096
      %v5145 = vadd.f32 %v5048, %v5097
      %v5146 = vadd.f32 %v5049, %v5098
      %v5147 = vadd.f32 %v5050, %v5099
      %v5148 = vadd.f32 %v5051, %v5100
      %v5149 = vadd.f32 %v5052, %v5101
      %v5150 = vadd.f32 %v5053, %v5102
      %v5151 = vadd.f32 %v5054, %v5103
      %v5152 = vadd.f32 %v5055, %v5104
      %v5153 = vadd.f32 %v5056, %v5105
      %v5154 = vadd.f32 %v5057, %v5106
      %v5155 = vadd.f32 %v5058, %v5107
      %v5156 = vadd.f32 %v5059, %v5108
      %v5157 = vadd.f32 %v5060, %v5109
      %v5158 = vadd.f32 %v5061, %v5110
      %v5159 = vadd.f32 %v5062, %v5111
      %v5160 = vadd.f32 %v5063, %v5112
      %v5161 = vadd.f32 %v5064, %v5113
      %v5162 = vadd.f32 %v5065, %v5114
      %v5163 = vadd.f32 %v5066, %v5115
      %v5164 = vadd.f32 %v5067, %v5116
      %v5165 = vadd.f32 %v5068, %v5117
      %v5166 = vperm.slane %v3958, 1
      %v5167 = vmul.f32 %v3893, %v5166
      %v5168 = vmul.f32 %v3894, %v5166
      %v5169 = vmul.f32 %v3897, %v5166
      %v5170 = vmul.f32 %v3898, %v5166
      %v5171 = vmul.f32 %v3901, %v5166
      %v5172 = vmul.f32 %v3902, %v5166
      %v5173 = vmul.f32 %v3905, %v5166
      %v5174 = vmul.f32 %v3906, %v5166
      %v5175 = vmul.f32 %v3909, %v5166
      %v5176 = vmul.f32 %v3910, %v5166
      %v5177 = vmul.f32 %v3913, %v5166
      %v5178 = vmul.f32 %v3914, %v5166
      %v5179 = vmul.f32 %v3917, %v5166
      %v5180 = vmul.f32 %v3918, %v5166
      %v5181 = vmul.f32 %v3921, %v5166
      %v5182 = vmul.f32 %v3922, %v5166
      %v5183 = vmul.f32 %v3925, %v5166
      %v5184 = vmul.f32 %v3926, %v5166
      %v5185 = vmul.f32 %v3929, %v5166
      %v5186 = vmul.f32 %v3930, %v5166
      %v5187 = vmul.f32 %v3933, %v5166
      %v5188 = vmul.f32 %v3934, %v5166
      %v5189 = vmul.f32 %v3937, %v5166
      %v5190 = vmul.f32 %v3938, %v5166
      %v5191 = vmul.f32 %v3941, %v5166
      %v5192 = vmul.f32 %v3942, %v5166
      %v5193 = vmul.f32 %v3945, %v5166
      %v5194 = vmul.f32 %v3946, %v5166
      %v5195 = vmul.f32 %v3949, %v5166
      %v5196 = vmul.f32 %v3950, %v5166
      %v5197 = vmul.f32 %v3953, %v5166
      %v5198 = vmul.f32 %v3954, %v5166
      %v5231 = vrot.slane %v5167, 1
      %v5232 = vrot.slane %v5168, 1
      %v5233 = vsel %vm1881, %v5231, %v5232
      %v5234 = vrot.slane %v5169, 1
      %v5235 = vrot.slane %v5170, 1
      %v5236 = vsel %vm1881, %v5234, %v5235
      %v5237 = vrot.slane %v5171, 1
      %v5238 = vrot.slane %v5172, 1
      %v5239 = vsel %vm1881, %v5237, %v5238
      %v5240 = vrot.slane %v5173, 1
      %v5241 = vrot.slane %v5174, 1
      %v5242 = vsel %vm1881, %v5240, %v5241
      %v5243 = vrot.slane %v5175, 1
      %v5244 = vrot.slane %v5176, 1
      %v5245 = vsel %vm1881, %v5243, %v5244
      %v5246 = vrot.slane %v5177, 1
      %v5247 = vrot.slane %v5178, 1
      %v5248 = vsel %vm1881, %v5246, %v5247
      %v5249 = vrot.slane %v5179, 1
      %v5250 = vrot.slane %v5180, 1
      %v5251 = vsel %vm1881, %v5249, %v5250
      %v5252 = vrot.slane %v5181, 1
      %v5253 = vrot.slane %v5182, 1
      %v5254 = vsel %vm1881, %v5252, %v5253
      %v5255 = vrot.slane %v5183, 1
      %v5256 = vrot.slane %v5184, 1
      %v5257 = vsel %vm1881, %v5255, %v5256
      %v5258 = vrot.slane %v5185, 1
      %v5259 = vrot.slane %v5186, 1
      %v5260 = vsel %vm1881, %v5258, %v5259
      %v5261 = vrot.slane %v5187, 1
      %v5262 = vrot.slane %v5188, 1
      %v5263 = vsel %vm1881, %v5261, %v5262
      %v5264 = vrot.slane %v5189, 1
      %v5265 = vrot.slane %v5190, 1
      %v5266 = vsel %vm1881, %v5264, %v5265
      %v5267 = vrot.slane %v5191, 1
      %v5268 = vrot.slane %v5192, 1
      %v5269 = vsel %vm1881, %v5267, %v5268
      %v5270 = vrot.slane %v5193, 1
      %v5271 = vrot.slane %v5194, 1
      %v5272 = vsel %vm1881, %v5270, %v5271
      %v5273 = vrot.slane %v5195, 1
      %v5274 = vrot.slane %v5196, 1
      %v5275 = vsel %vm1881, %v5273, %v5274
      %v5276 = vrot.slane %v5197, 1
      %v5277 = vrot.slane %v5198, 1
      %v5278 = vsel %vm1881, %v5276, %v5277
      %v5327 = vadd.f32 %v5118, %v5231
      %v5328 = vadd.f32 %v5119, %v5233
      %v5329 = vadd.f32 %v5120, %v5232
      %v5330 = vadd.f32 %v5121, %v5234
      %v5331 = vadd.f32 %v5122, %v5236
      %v5332 = vadd.f32 %v5123, %v5235
      %v5333 = vadd.f32 %v5124, %v5237
      %v5334 = vadd.f32 %v5125, %v5239
      %v5335 = vadd.f32 %v5126, %v5238
      %v5336 = vadd.f32 %v5127, %v5240
      %v5337 = vadd.f32 %v5128, %v5242
      %v5338 = vadd.f32 %v5129, %v5241
      %v5339 = vadd.f32 %v5130, %v5243
      %v5340 = vadd.f32 %v5131, %v5245
      %v5341 = vadd.f32 %v5132, %v5244
      %v5342 = vadd.f32 %v5133, %v5246
      %v5343 = vadd.f32 %v5134, %v5248
      %v5344 = vadd.f32 %v5135, %v5247
      %v5345 = vadd.f32 %v5136, %v5249
      %v5346 = vadd.f32 %v5137, %v5251
      %v5347 = vadd.f32 %v5138, %v5250
      %v5348 = vadd.f32 %v5139, %v5252
      %v5349 = vadd.f32 %v5140, %v5254
      %v5350 = vadd.f32 %v5141, %v5253
      %v5351 = vadd.f32 %v5142, %v5255
      %v5352 = vadd.f32 %v5143, %v5257
      %v5353 = vadd.f32 %v5144, %v5256
      %v5354 = vadd.f32 %v5145, %v5258
      %v5355 = vadd.f32 %v5146, %v5260
      %v5356 = vadd.f32 %v5147, %v5259
      %v5357 = vadd.f32 %v5148, %v5261
      %v5358 = vadd.f32 %v5149, %v5263
      %v5359 = vadd.f32 %v5150, %v5262
      %v5360 = vadd.f32 %v5151, %v5264
      %v5361 = vadd.f32 %v5152, %v5266
      %v5362 = vadd.f32 %v5153, %v5265
      %v5363 = vadd.f32 %v5154, %v5267
      %v5364 = vadd.f32 %v5155, %v5269
      %v5365 = vadd.f32 %v5156, %v5268
      %v5366 = vadd.f32 %v5157, %v5270
      %v5367 = vadd.f32 %v5158, %v5272
      %v5368 = vadd.f32 %v5159, %v5271
      %v5369 = vadd.f32 %v5160, %v5273
      %v5370 = vadd.f32 %v5161, %v5275
      %v5371 = vadd.f32 %v5162, %v5274
      %v5372 = vadd.f32 %v5163, %v5276
      %v5373 = vadd.f32 %v5164, %v5278
      %v5374 = vadd.f32 %v5165, %v5277
      %v5375 = vperm.slane %v3958, 2
      %v5376 = vmul.f32 %v3893, %v5375
      %v5377 = vmul.f32 %v3894, %v5375
      %v5378 = vmul.f32 %v3895, %v5375
      %v5379 = vmul.f32 %v3897, %v5375
      %v5380 = vmul.f32 %v3898, %v5375
      %v5381 = vmul.f32 %v3899, %v5375
      %v5382 = vmul.f32 %v3901, %v5375
      %v5383 = vmul.f32 %v3902, %v5375
      %v5384 = vmul.f32 %v3903, %v5375
      %v5385 = vmul.f32 %v3905, %v5375
      %v5386 = vmul.f32 %v3906, %v5375
      %v5387 = vmul.f32 %v3907, %v5375
      %v5388 = vmul.f32 %v3909, %v5375
      %v5389 = vmul.f32 %v3910, %v5375
      %v5390 = vmul.f32 %v3911, %v5375
      %v5391 = vmul.f32 %v3913, %v5375
      %v5392 = vmul.f32 %v3914, %v5375
      %v5393 = vmul.f32 %v3915, %v5375
      %v5394 = vmul.f32 %v3917, %v5375
      %v5395 = vmul.f32 %v3918, %v5375
      %v5396 = vmul.f32 %v3919, %v5375
      %v5397 = vmul.f32 %v3921, %v5375
      %v5398 = vmul.f32 %v3922, %v5375
      %v5399 = vmul.f32 %v3923, %v5375
      %v5400 = vmul.f32 %v3925, %v5375
      %v5401 = vmul.f32 %v3926, %v5375
      %v5402 = vmul.f32 %v3927, %v5375
      %v5403 = vmul.f32 %v3929, %v5375
      %v5404 = vmul.f32 %v3930, %v5375
      %v5405 = vmul.f32 %v3931, %v5375
      %v5406 = vmul.f32 %v3933, %v5375
      %v5407 = vmul.f32 %v3934, %v5375
      %v5408 = vmul.f32 %v3935, %v5375
      %v5409 = vmul.f32 %v3937, %v5375
      %v5410 = vmul.f32 %v3938, %v5375
      %v5411 = vmul.f32 %v3939, %v5375
      %v5412 = vmul.f32 %v3941, %v5375
      %v5413 = vmul.f32 %v3942, %v5375
      %v5414 = vmul.f32 %v3943, %v5375
      %v5415 = vmul.f32 %v3945, %v5375
      %v5416 = vmul.f32 %v3946, %v5375
      %v5417 = vmul.f32 %v3947, %v5375
      %v5418 = vmul.f32 %v3949, %v5375
      %v5419 = vmul.f32 %v3950, %v5375
      %v5420 = vmul.f32 %v3951, %v5375
      %v5421 = vmul.f32 %v3953, %v5375
      %v5422 = vmul.f32 %v3954, %v5375
      %v5423 = vmul.f32 %v3955, %v5375
      %v5472 = vrot.slane %v5376, 2
      %v5473 = vrot.slane %v5377, 2
      %v5474 = vsel %vm2123, %v5472, %v5473
      %v5475 = vrot.slane %v5378, 2
      %v5476 = vsel %vm2123, %v5473, %v5475
      %v5477 = vrot.slane %v5379, 2
      %v5478 = vrot.slane %v5380, 2
      %v5479 = vsel %vm2123, %v5477, %v5478
      %v5480 = vrot.slane %v5381, 2
      %v5481 = vsel %vm2123, %v5478, %v5480
      %v5482 = vrot.slane %v5382, 2
      %v5483 = vrot.slane %v5383, 2
      %v5484 = vsel %vm2123, %v5482, %v5483
      %v5485 = vrot.slane %v5384, 2
      %v5486 = vsel %vm2123, %v5483, %v5485
      %v5487 = vrot.slane %v5385, 2
      %v5488 = vrot.slane %v5386, 2
      %v5489 = vsel %vm2123, %v5487, %v5488
      %v5490 = vrot.slane %v5387, 2
      %v5491 = vsel %vm2123, %v5488, %v5490
      %v5492 = vrot.slane %v5388, 2
      %v5493 = vrot.slane %v5389, 2
      %v5494 = vsel %vm2123, %v5492, %v5493
      %v5495 = vrot.slane %v5390, 2
      %v5496 = vsel %vm2123, %v5493, %v5495
      %v5497 = vrot.slane %v5391, 2
      %v5498 = vrot.slane %v5392, 2
      %v5499 = vsel %vm2123, %v5497, %v5498
      %v5500 = vrot.slane %v5393, 2
      %v5501 = vsel %vm2123, %v5498, %v5500
      %v5502 = vrot.slane %v5394, 2
      %v5503 = vrot.slane %v5395, 2
      %v5504 = vsel %vm2123, %v5502, %v5503
      %v5505 = vrot.slane %v5396, 2
      %v5506 = vsel %vm2123, %v5503, %v5505
      %v5507 = vrot.slane %v5397, 2
      %v5508 = vrot.slane %v5398, 2
      %v5509 = vsel %vm2123, %v5507, %v5508
      %v5510 = vrot.slane %v5399, 2
      %v5511 = vsel %vm2123, %v5508, %v5510
      %v5512 = vrot.slane %v5400, 2
      %v5513 = vrot.slane %v5401, 2
      %v5514 = vsel %vm2123, %v5512, %v5513
      %v5515 = vrot.slane %v5402, 2
      %v5516 = vsel %vm2123, %v5513, %v5515
      %v5517 = vrot.slane %v5403, 2
      %v5518 = vrot.slane %v5404, 2
      %v5519 = vsel %vm2123, %v5517, %v5518
      %v5520 = vrot.slane %v5405, 2
      %v5521 = vsel %vm2123, %v5518, %v5520
      %v5522 = vrot.slane %v5406, 2
      %v5523 = vrot.slane %v5407, 2
      %v5524 = vsel %vm2123, %v5522, %v5523
      %v5525 = vrot.slane %v5408, 2
      %v5526 = vsel %vm2123, %v5523, %v5525
      %v5527 = vrot.slane %v5409, 2
      %v5528 = vrot.slane %v5410, 2
      %v5529 = vsel %vm2123, %v5527, %v5528
      %v5530 = vrot.slane %v5411, 2
      %v5531 = vsel %vm2123, %v5528, %v5530
      %v5532 = vrot.slane %v5412, 2
      %v5533 = vrot.slane %v5413, 2
      %v5534 = vsel %vm2123, %v5532, %v5533
      %v5535 = vrot.slane %v5414, 2
      %v5536 = vsel %vm2123, %v5533, %v5535
      %v5537 = vrot.slane %v5415, 2
      %v5538 = vrot.slane %v5416, 2
      %v5539 = vsel %vm2123, %v5537, %v5538
      %v5540 = vrot.slane %v5417, 2
      %v5541 = vsel %vm2123, %v5538, %v5540
      %v5542 = vrot.slane %v5418, 2
      %v5543 = vrot.slane %v5419, 2
      %v5544 = vsel %vm2123, %v5542, %v5543
      %v5545 = vrot.slane %v5420, 2
      %v5546 = vsel %vm2123, %v5543, %v5545
      %v5547 = vrot.slane %v5421, 2
      %v5548 = vrot.slane %v5422, 2
      %v5549 = vsel %vm2123, %v5547, %v5548
      %v5550 = vrot.slane %v5423, 2
      %v5551 = vsel %vm2123, %v5548, %v5550
      %v5600 = vadd.f32 %v5327, %v5472
      %v5601 = vadd.f32 %v5328, %v5474
      %v5602 = vadd.f32 %v5329, %v5476
      %v5603 = vadd.f32 %v5330, %v5477
      %v5604 = vadd.f32 %v5331, %v5479
      %v5605 = vadd.f32 %v5332, %v5481
      %v5606 = vadd.f32 %v5333, %v5482
      %v5607 = vadd.f32 %v5334, %v5484
      %v5608 = vadd.f32 %v5335, %v5486
      %v5609 = vadd.f32 %v5336, %v5487
      %v5610 = vadd.f32 %v5337, %v5489
      %v5611 = vadd.f32 %v5338, %v5491
      %v5612 = vadd.f32 %v5339, %v5492
      %v5613 = vadd.f32 %v5340, %v5494
      %v5614 = vadd.f32 %v5341, %v5496
      %v5615 = vadd.f32 %v5342, %v5497
      %v5616 = vadd.f32 %v5343, %v5499
      %v5617 = vadd.f32 %v5344, %v5501
      %v5618 = vadd.f32 %v5345, %v5502
      %v5619 = vadd.f32 %v5346, %v5504
      %v5620 = vadd.f32 %v5347, %v5506
      %v5621 = vadd.f32 %v5348, %v5507
      %v5622 = vadd.f32 %v5349, %v5509
      %v5623 = vadd.f32 %v5350, %v5511
      %v5624 = vadd.f32 %v5351, %v5512
      %v5625 = vadd.f32 %v5352, %v5514
      %v5626 = vadd.f32 %v5353, %v5516
      %v5627 = vadd.f32 %v5354, %v5517
      %v5628 = vadd.f32 %v5355, %v5519
      %v5629 = vadd.f32 %v5356, %v5521
      %v5630 = vadd.f32 %v5357, %v5522
      %v5631 = vadd.f32 %v5358, %v5524
      %v5632 = vadd.f32 %v5359, %v5526
      %v5633 = vadd.f32 %v5360, %v5527
      %v5634 = vadd.f32 %v5361, %v5529
      %v5635 = vadd.f32 %v5362, %v5531
      %v5636 = vadd.f32 %v5363, %v5532
      %v5637 = vadd.f32 %v5364, %v5534
      %v5638 = vadd.f32 %v5365, %v5536
      %v5639 = vadd.f32 %v5366, %v5537
      %v5640 = vadd.f32 %v5367, %v5539
      %v5641 = vadd.f32 %v5368, %v5541
      %v5642 = vadd.f32 %v5369, %v5542
      %v5643 = vadd.f32 %v5370, %v5544
      %v5644 = vadd.f32 %v5371, %v5546
      %v5645 = vadd.f32 %v5372, %v5547
      %v5646 = vadd.f32 %v5373, %v5549
      %v5647 = vadd.f32 %v5374, %v5551
      %v5696 = vrot.slane %v5600, 7
      %v5697 = vrot.slane %v5601, 7
      %v5698 = vsel %vm3506, %v5696, %v5697
      %v5699 = vrot.slane %v5602, 7
      %v5700 = vsel %vm3506, %v5697, %v5699
      %v5701 = vrot.slane %v5603, 7
      %v5702 = vrot.slane %v5604, 7
      %v5703 = vsel %vm3506, %v5701, %v5702
      %v5704 = vrot.slane %v5605, 7
      %v5705 = vsel %vm3506, %v5702, %v5704
      %v5706 = vrot.slane %v5606, 7
      %v5707 = vrot.slane %v5607, 7
      %v5708 = vsel %vm3506, %v5706, %v5707
      %v5709 = vrot.slane %v5608, 7
      %v5710 = vsel %vm3506, %v5707, %v5709
      %v5711 = vrot.slane %v5609, 7
      %v5712 = vrot.slane %v5610, 7
      %v5713 = vsel %vm3506, %v5711, %v5712
      %v5714 = vrot.slane %v5611, 7
      %v5715 = vsel %vm3506, %v5712, %v5714
      %v5716 = vrot.slane %v5612, 7
      %v5717 = vrot.slane %v5613, 7
      %v5718 = vsel %vm3506, %v5716, %v5717
      %v5719 = vrot.slane %v5614, 7
      %v5720 = vsel %vm3506, %v5717, %v5719
      %v5721 = vrot.slane %v5615, 7
      %v5722 = vrot.slane %v5616, 7
      %v5723 = vsel %vm3506, %v5721, %v5722
      %v5724 = vrot.slane %v5617, 7
      %v5725 = vsel %vm3506, %v5722, %v5724
      %v5726 = vrot.slane %v5618, 7
      %v5727 = vrot.slane %v5619, 7
      %v5728 = vsel %vm3506, %v5726, %v5727
      %v5729 = vrot.slane %v5620, 7
      %v5730 = vsel %vm3506, %v5727, %v5729
      %v5731 = vrot.slane %v5621, 7
      %v5732 = vrot.slane %v5622, 7
      %v5733 = vsel %vm3506, %v5731, %v5732
      %v5734 = vrot.slane %v5623, 7
      %v5735 = vsel %vm3506, %v5732, %v5734
      %v5736 = vrot.slane %v5624, 7
      %v5737 = vrot.slane %v5625, 7
      %v5738 = vsel %vm3506, %v5736, %v5737
      %v5739 = vrot.slane %v5626, 7
      %v5740 = vsel %vm3506, %v5737, %v5739
      %v5741 = vrot.slane %v5627, 7
      %v5742 = vrot.slane %v5628, 7
      %v5743 = vsel %vm3506, %v5741, %v5742
      %v5744 = vrot.slane %v5629, 7
      %v5745 = vsel %vm3506, %v5742, %v5744
      %v5746 = vrot.slane %v5630, 7
      %v5747 = vrot.slane %v5631, 7
      %v5748 = vsel %vm3506, %v5746, %v5747
      %v5749 = vrot.slane %v5632, 7
      %v5750 = vsel %vm3506, %v5747, %v5749
      %v5751 = vrot.slane %v5633, 7
      %v5752 = vrot.slane %v5634, 7
      %v5753 = vsel %vm3506, %v5751, %v5752
      %v5754 = vrot.slane %v5635, 7
      %v5755 = vsel %vm3506, %v5752, %v5754
      %v5756 = vrot.slane %v5636, 7
      %v5757 = vrot.slane %v5637, 7
      %v5758 = vsel %vm3506, %v5756, %v5757
      %v5759 = vrot.slane %v5638, 7
      %v5760 = vsel %vm3506, %v5757, %v5759
      %v5761 = vrot.slane %v5639, 7
      %v5762 = vrot.slane %v5640, 7
      %v5763 = vsel %vm3506, %v5761, %v5762
      %v5764 = vrot.slane %v5641, 7
      %v5765 = vsel %vm3506, %v5762, %v5764
      %v5766 = vrot.slane %v5642, 7
      %v5767 = vrot.slane %v5643, 7
      %v5768 = vsel %vm3506, %v5766, %v5767
      %v5769 = vrot.slane %v5644, 7
      %v5770 = vsel %vm3506, %v5767, %v5769
      %v5771 = vrot.slane %v5645, 7
      %v5772 = vrot.slane %v5646, 7
      %v5773 = vsel %vm3506, %v5771, %v5772
      %v5774 = vrot.slane %v5647, 7
      %v5775 = vsel %vm3506, %v5772, %v5774
      %v5808 = vld [vmem:[%s19] sm:$0x1]
      %v5810 = vperm.slane %v5808, 0
      %v5812 = vmul.f32 %v5698, %v5810
      %v5813 = vmul.f32 %v5700, %v5810
      %v5814 = vmul.f32 %v5703, %v5810
      %v5815 = vmul.f32 %v5705, %v5810
      %v5816 = vmul.f32 %v5708, %v5810
      %v5817 = vmul.f32 %v5710, %v5810
      %v5818 = vmul.f32 %v5713, %v5810
      %v5819 = vmul.f32 %v5715, %v5810
      %v5820 = vmul.f32 %v5718, %v5810
      %v5821 = vmul.f32 %v5720, %v5810
      %v5822 = vmul.f32 %v5723, %v5810
      %v5823 = vmul.f32 %v5725, %v5810
      %v5824 = vmul.f32 %v5728, %v5810
      %v5825 = vmul.f32 %v5730, %v5810
      %v5826 = vmul.f32 %v5733, %v5810
      %v5827 = vmul.f32 %v5735, %v5810
      %v5828 = vmul.f32 %v5738, %v5810
      %v5829 = vmul.f32 %v5740, %v5810
      %v5830 = vmul.f32 %v5743, %v5810
      %v5831 = vmul.f32 %v5745, %v5810
      %v5832 = vmul.f32 %v5748, %v5810
      %v5833 = vmul.f32 %v5750, %v5810
      %v5834 = vmul.f32 %v5753, %v5810
      %v5835 = vmul.f32 %v5755, %v5810
      %v5836 = vmul.f32 %v5758, %v5810
      %v5837 = vmul.f32 %v5760, %v5810
      %v5838 = vmul.f32 %v5763, %v5810
      %v5839 = vmul.f32 %v5765, %v5810
      %v5840 = vmul.f32 %v5768, %v5810
      %v5841 = vmul.f32 %v5770, %v5810
      %v5842 = vmul.f32 %v5773, %v5810
      %v5843 = vmul.f32 %v5775, %v5810
      %v5844 = vld [vmem:[%s21] sm:$0x1]
      %v5846 = vperm.slane %v5844, 0
      %v5848 = vadd.f32 %v5812, %v5846
      %v5849 = vadd.f32 %v5813, %v5846
      %v5850 = vadd.f32 %v5814, %v5846
      %v5851 = vadd.f32 %v5815, %v5846
      %v5852 = vadd.f32 %v5816, %v5846
      %v5853 = vadd.f32 %v5817, %v5846
      %v5854 = vadd.f32 %v5818, %v5846
      %v5855 = vadd.f32 %v5819, %v5846
      %v5856 = vadd.f32 %v5820, %v5846
      %v5857 = vadd.f32 %v5821, %v5846
      %v5858 = vadd.f32 %v5822, %v5846
      %v5859 = vadd.f32 %v5823, %v5846
      %v5860 = vadd.f32 %v5824, %v5846
      %v5861 = vadd.f32 %v5825, %v5846
      %v5862 = vadd.f32 %v5826, %v5846
      %v5863 = vadd.f32 %v5827, %v5846
      %v5864 = vadd.f32 %v5828, %v5846
      %v5865 = vadd.f32 %v5829, %v5846
      %v5866 = vadd.f32 %v5830, %v5846
      %v5867 = vadd.f32 %v5831, %v5846
      %v5868 = vadd.f32 %v5832, %v5846
      %v5869 = vadd.f32 %v5833, %v5846
      %v5870 = vadd.f32 %v5834, %v5846
      %v5871 = vadd.f32 %v5835, %v5846
      %v5872 = vadd.f32 %v5836, %v5846
      %v5873 = vadd.f32 %v5837, %v5846
      %v5874 = vadd.f32 %v5838, %v5846
      %v5875 = vadd.f32 %v5839, %v5846
      %v5876 = vadd.f32 %v5840, %v5846
      %v5877 = vadd.f32 %v5841, %v5846
      %v5878 = vadd.f32 %v5842, %v5846
      %v5879 = vadd.f32 %v5843, %v5846
      %5880 = vmatpush.msra.mxu0 %v5863
      %5881 = vmatpush.msra.mxu0 %v5862
      %5882 = vmatpush.msra.mxu0 %v5861
      %5883 = vmatpush.msra.mxu0 %v5860
      %5884 = vmatpush.msra.mxu0 %v5859
      %5885 = vmatpush.msra.mxu0 %v5858
      %5886 = vmatpush.msra.mxu0 %v5857
      %5887 = vmatpush.msra.mxu0 %v5856
      %5888 = vmatpush.msra.mxu0 %v5855
      %5889 = vmatpush.msra.mxu0 %v5854
      %5890 = vmatpush.msra.mxu0 %v5853
      %5891 = vmatpush.msra.mxu0 %v5852
      %5892 = vmatpush.msra.mxu0 %v5851
      %5893 = vmatpush.msra.mxu0 %v5850
      %5894 = vmatpush.msra.mxu0 %v5849
      %5895 = vmatpush.msra.mxu0 %v5848
      %5896 = vmatmul.f32.gmra.mxu0 %v1200
      %v5897 = vpop.f32.mrf.mxu0
      %v5898 = vadd.f32 0.0, %v5897
      %5899 = vmatmul.f32.gmra.mxu0 %v1202
      %v5900 = vpop.f32.mrf.mxu0
      %v5901 = vadd.f32 0.0, %v5900
      %5902 = vmatmul.f32.gmra.mxu0 %v1204
      %v5903 = vpop.f32.mrf.mxu0
      %v5904 = vadd.f32 0.0, %v5903
      %5905 = vmatmul.f32.gmra.mxu0 %v1206
      %v5906 = vpop.f32.mrf.mxu0
      %v5907 = vadd.f32 0.0, %v5906
      %5908 = vmatmul.f32.gmra.mxu0 %v1208
      %v5909 = vpop.f32.mrf.mxu0
      %v5910 = vadd.f32 0.0, %v5909
      %5911 = vmatmul.f32.gmra.mxu0 %v1210
      %v5912 = vpop.f32.mrf.mxu0
      %v5913 = vadd.f32 0.0, %v5912
      %5914 = vmatmul.f32.gmra.mxu0 %v1212
      %v5915 = vpop.f32.mrf.mxu0
      %v5916 = vadd.f32 0.0, %v5915
      %5917 = vmatmul.f32.gmra.mxu0 %v1214
      %v5918 = vpop.f32.mrf.mxu0
      %v5919 = vadd.f32 0.0, %v5918
      %5920 = vdwg.mxu0
      %5921 = vmatpush.msra.mxu0 %v5879
      %5922 = vmatpush.msra.mxu0 %v5878
      %5923 = vmatpush.msra.mxu0 %v5877
      %5924 = vmatpush.msra.mxu0 %v5876
      %5925 = vmatpush.msra.mxu0 %v5875
      %5926 = vmatpush.msra.mxu0 %v5874
      %5927 = vmatpush.msra.mxu0 %v5873
      %5928 = vmatpush.msra.mxu0 %v5872
      %5929 = vmatpush.msra.mxu0 %v5871
      %5930 = vmatpush.msra.mxu0 %v5870
      %5931 = vmatpush.msra.mxu0 %v5869
      %5932 = vmatpush.msra.mxu0 %v5868
      %5933 = vmatpush.msra.mxu0 %v5867
      %5934 = vmatpush.msra.mxu0 %v5866
      %5935 = vmatpush.msra.mxu0 %v5865
      %5936 = vmatpush.msra.mxu0 %v5864
      %5937 = vmatmul.f32.gmra.mxu0 %v1201
      %v5938 = vpop.f32.mrf.mxu0
      %v5939 = vadd.f32 %v5898, %v5938
      %5940 = vmatmul.f32.gmra.mxu0 %v1203
      %v5941 = vpop.f32.mrf.mxu0
      %v5942 = vadd.f32 %v5901, %v5941
      %5943 = vmatmul.f32.gmra.mxu0 %v1205
      %v5944 = vpop.f32.mrf.mxu0
      %v5945 = vadd.f32 %v5904, %v5944
      %5946 = vmatmul.f32.gmra.mxu0 %v1207
      %v5947 = vpop.f32.mrf.mxu0
      %v5948 = vadd.f32 %v5907, %v5947
      %5949 = vmatmul.f32.gmra.mxu0 %v1209
      %v5950 = vpop.f32.mrf.mxu0
      %v5951 = vadd.f32 %v5910, %v5950
      %5952 = vmatmul.f32.gmra.mxu0 %v1211
      %v5953 = vpop.f32.mrf.mxu0
      %v5954 = vadd.f32 %v5913, %v5953
      %5955 = vmatmul.f32.gmra.mxu0 %v1213
      %v5956 = vpop.f32.mrf.mxu0
      %v5957 = vadd.f32 %v5916, %v5956
      %5958 = vmatmul.f32.gmra.mxu0 %v1215
      %v5959 = vpop.f32.mrf.mxu0
      %v5960 = vadd.f32 %v5919, %v5959
      %5961 = vdwg.mxu0
      %5962 = vst.msk [vmem:[#allocation4] sm:$0xff] %vm1217, 0.0
      %5963 = vst.msk [vmem:[#allocation4 + $0x8] sm:$0xff] %vm1217, 0.0
      %5964 = vst.msk [vmem:[#allocation4 + $0x10] sm:$0xff] %vm1217, 0.0
      %5965 = vst.msk [vmem:[#allocation4 + $0x18] sm:$0xff] %vm1217, 0.0
      %5966 = vst.msk [vmem:[#allocation4 + $0x20] sm:$0xff] %vm1217, 0.0
      %5967 = vst.msk [vmem:[#allocation4 + $0x28] sm:$0xff] %vm1217, 0.0
      %5968 = vst.msk [vmem:[#allocation4 + $0x30] sm:$0xff] %vm1217, 0.0
      %5969 = vst.msk [vmem:[#allocation4 + $0x38] sm:$0xff] %vm1217, 0.0
      %5970 = vst.msk [vmem:[#allocation4 + $0x40] sm:$0xff] %vm1217, 0.0
      %5971 = vst.msk [vmem:[#allocation4 + $0x48] sm:$0xff] %vm1217, 0.0
      %5972 = vst.msk [vmem:[#allocation4 + $0x50] sm:$0xff] %vm1217, 0.0
      %5973 = vst.msk [vmem:[#allocation4 + $0x58] sm:$0xff] %vm1217, 0.0
      %5974 = vst.msk [vmem:[#allocation4 + $0x60] sm:$0xff] %vm1217, 0.0
      %5975 = vst.msk [vmem:[#allocation4 + $0x68] sm:$0xff] %vm1217, 0.0
      %5976 = vst.msk [vmem:[#allocation4 + $0x70] sm:$0xff] %vm1217, 0.0
      %5977 = vst.msk [vmem:[#allocation4 + $0x78] sm:$0xff] %vm1217, 0.0
      %5978 = vst.msk [vmem:[#allocation4 + $0x80] sm:$0xff] %vm1217, 0.0
      %5979 = vst.msk [vmem:[#allocation4 + $0x88] sm:$0xff] %vm1217, 0.0
      %5980 = vst.msk [vmem:[#allocation4 + $0x90] sm:$0xff] %vm1217, 0.0
      %5981 = vst.msk [vmem:[#allocation4 + $0x98] sm:$0xff] %vm1217, 0.0
      %5982 = vst.msk [vmem:[#allocation4 + $0xa0] sm:$0xff] %vm1217, 0.0
      %5983 = vst.msk [vmem:[#allocation4 + $0xa8] sm:$0xff] %vm1217, 0.0
      %5984 = vst.msk [vmem:[#allocation4 + $0xb0] sm:$0xff] %vm1217, 0.0
      %5985 = vst.msk [vmem:[#allocation4 + $0xb8] sm:$0xff] %vm1217, 0.0
      %5986 = vst.msk [vmem:[#allocation4 + $0xc0] sm:$0xff] %vm1217, 0.0
      %5987 = vst.msk [vmem:[#allocation4 + $0xc8] sm:$0xff] %vm1217, 0.0
      %5988 = vst.msk [vmem:[#allocation4 + $0xd0] sm:$0xff] %vm1217, 0.0
      %5989 = vst.msk [vmem:[#allocation4 + $0xd8] sm:$0xff] %vm1217, 0.0
      %5990 = vst.msk [vmem:[#allocation4 + $0xe0] sm:$0xff] %vm1217, 0.0
      %5991 = vst.msk [vmem:[#allocation4 + $0xe8] sm:$0xff] %vm1217, 0.0
      %5992 = vst.msk [vmem:[#allocation4 + $0xf0] sm:$0xff] %vm1217, 0.0
      %5993 = vst.msk [vmem:[#allocation4 + $0xf8] sm:$0xff] %vm1217, 0.0
      %5994 = vst.msk [vmem:[#allocation4 + $0x100] sm:$0xff] %vm1217, 0.0
      %5995 = vst.msk [vmem:[#allocation4 + $0x108] sm:$0xff] %vm1217, 0.0
      %5996 = vst.msk [vmem:[#allocation4 + $0x110] sm:$0xff] %vm1217, 0.0
      %5997 = vst.msk [vmem:[#allocation4 + $0x118] sm:$0xff] %vm1217, 0.0
      %5998 = vst.msk [vmem:[#allocation4 + $0x120] sm:$0xff] %vm1217, 0.0
      %5999 = vst.msk [vmem:[#allocation4 + $0x128] sm:$0xff] %vm1217, 0.0
      %6000 = vst.msk [vmem:[#allocation4 + $0x130] sm:$0xff] %vm1217, 0.0
      %6001 = vst.msk [vmem:[#allocation4 + $0x138] sm:$0xff] %vm1217, 0.0
      %6002 = vst.msk [vmem:[#allocation4 + $0x140] sm:$0xff] %vm1217, 0.0
      %6003 = vst.msk [vmem:[#allocation4 + $0x148] sm:$0xff] %vm1217, 0.0
      %6004 = vst.msk [vmem:[#allocation4 + $0x150] sm:$0xff] %vm1217, 0.0
      %6005 = vst.msk [vmem:[#allocation4 + $0x158] sm:$0xff] %vm1217, 0.0
      %6006 = vst.msk [vmem:[#allocation4 + $0x160] sm:$0xff] %vm1217, 0.0
      %6007 = vst.msk [vmem:[#allocation4 + $0x168] sm:$0xff] %vm1217, 0.0
      %6008 = vst.msk [vmem:[#allocation4 + $0x170] sm:$0xff] %vm1217, 0.0
      %6009 = vst.msk [vmem:[#allocation4 + $0x178] sm:$0xff] %vm1217, 0.0
      %6010 = vst.msk [vmem:[#allocation4 + $0x180] sm:$0xff] %vm1217, 0.0
      %6011 = vst.msk [vmem:[#allocation4 + $0x188] sm:$0xff] %vm1217, 0.0
      %6012 = vst.msk [vmem:[#allocation4 + $0x190] sm:$0xff] %vm1217, 0.0
      %6013 = vst.msk [vmem:[#allocation4 + $0x198] sm:$0xff] %vm1217, 0.0
      %6014 = vst.msk [vmem:[#allocation4 + $0x1a0] sm:$0xff] %vm1217, 0.0
      %6015 = vst.msk [vmem:[#allocation4 + $0x1a8] sm:$0xff] %vm1217, 0.0
      %6016 = vst.msk [vmem:[#allocation4 + $0x1b0] sm:$0xff] %vm1217, 0.0
      %6017 = vst.msk [vmem:[#allocation4 + $0x1b8] sm:$0xff] %vm1217, 0.0
      %6018 = vst.msk [vmem:[#allocation4 + $0x1c0] sm:$0xff] %vm1217, 0.0
      %6019 = vst.msk [vmem:[#allocation4 + $0x1c8] sm:$0xff] %vm1217, 0.0
      %6020 = vst.msk [vmem:[#allocation4 + $0x1d0] sm:$0xff] %vm1217, 0.0
      %6021 = vst.msk [vmem:[#allocation4 + $0x1d8] sm:$0xff] %vm1217, 0.0
      %6022 = vst.msk [vmem:[#allocation4 + $0x1e0] sm:$0xff] %vm1217, 0.0
      %6023 = vst.msk [vmem:[#allocation4 + $0x1e8] sm:$0xff] %vm1217, 0.0
      %6024 = vst.msk [vmem:[#allocation4 + $0x1f0] sm:$0xff] %vm1217, 0.0
      %6025 = vst.msk [vmem:[#allocation4 + $0x1f8] sm:$0xff] %vm1217, 0.0
      %6026 = vst.msk [vmem:[#allocation4 + $0x200] sm:$0xff] %vm1217, 0.0
      %6027 = vst.msk [vmem:[#allocation4 + $0x208] sm:$0xff] %vm1217, 0.0
      %6028 = vst.msk [vmem:[#allocation4 + $0x210] sm:$0xff] %vm1217, 0.0
      %6029 = vst.msk [vmem:[#allocation4 + $0x218] sm:$0xff] %vm1217, 0.0
      %6030 = vst.msk [vmem:[#allocation4 + $0x220] sm:$0xff] %vm1217, 0.0
      %6031 = vst.msk [vmem:[#allocation4 + $0x228] sm:$0xff] %vm1217, 0.0
      %6032 = vst.msk [vmem:[#allocation4 + $0x230] sm:$0xff] %vm1217, 0.0
      %6033 = vst.msk [vmem:[#allocation4 + $0x238] sm:$0xff] %vm1217, 0.0
      %6034 = vst.msk [vmem:[#allocation4 + $0x240] sm:$0xff] %vm1217, 0.0
      %6035 = vst.msk [vmem:[#allocation4 + $0x248] sm:$0xff] %vm1217, 0.0
      %6036 = vst.msk [vmem:[#allocation4 + $0x250] sm:$0xff] %vm1217, 0.0
      %6037 = vst.msk [vmem:[#allocation4 + $0x258] sm:$0xff] %vm1217, 0.0
      %6038 = vst.msk [vmem:[#allocation4 + $0x260] sm:$0xff] %vm1217, 0.0
      %6039 = vst.msk [vmem:[#allocation4 + $0x268] sm:$0xff] %vm1217, 0.0
      %6040 = vst.msk [vmem:[#allocation4 + $0x270] sm:$0xff] %vm1217, 0.0
      %6041 = vst.msk [vmem:[#allocation4 + $0x278] sm:$0xff] %vm1217, 0.0
      %6042 = vst.msk [vmem:[#allocation4 + $0x280] sm:$0xff] %vm1217, 0.0
      %6043 = vst.msk [vmem:[#allocation4 + $0x288] sm:$0xff] %vm1217, 0.0
      %6044 = vst.msk [vmem:[#allocation4 + $0x290] sm:$0xff] %vm1217, 0.0
      %6045 = vst.msk [vmem:[#allocation4 + $0x298] sm:$0xff] %vm1217, 0.0
      %6046 = vst.msk [vmem:[#allocation4 + $0x2a0] sm:$0xff] %vm1217, 0.0
      %6047 = vst.msk [vmem:[#allocation4 + $0x2a8] sm:$0xff] %vm1217, 0.0
      %6048 = vst.msk [vmem:[#allocation4 + $0x2b0] sm:$0xff] %vm1217, 0.0
      %6049 = vst.msk [vmem:[#allocation4 + $0x2b8] sm:$0xff] %vm1217, 0.0
      %6050 = vst.msk [vmem:[#allocation4 + $0x2c0] sm:$0xff] %vm1217, 0.0
      %6051 = vst.msk [vmem:[#allocation4 + $0x2c8] sm:$0xff] %vm1217, 0.0
      %6052 = vst.msk [vmem:[#allocation4 + $0x2d0] sm:$0xff] %vm1217, 0.0
      %6053 = vst.msk [vmem:[#allocation4 + $0x2d8] sm:$0xff] %vm1217, 0.0
      %6054 = vst.msk [vmem:[#allocation4 + $0x2e0] sm:$0xff] %vm1217, 0.0
      %6055 = vst.msk [vmem:[#allocation4 + $0x2e8] sm:$0xff] %vm1217, 0.0
      %6056 = vst.msk [vmem:[#allocation4 + $0x2f0] sm:$0xff] %vm1217, 0.0
      %6057 = vst.msk [vmem:[#allocation4 + $0x2f8] sm:$0xff] %vm1217, 0.0
      %6058 = vst.msk [vmem:[#allocation4 + $0x300] sm:$0xff] %vm1217, 0.0
      %6059 = vst.msk [vmem:[#allocation4 + $0x308] sm:$0xff] %vm1217, 0.0
      %6060 = vst.msk [vmem:[#allocation4 + $0x310] sm:$0xff] %vm1217, 0.0
      %6061 = vst.msk [vmem:[#allocation4 + $0x318] sm:$0xff] %vm1217, 0.0
      %6062 = vst.msk [vmem:[#allocation4 + $0x320] sm:$0xff] %vm1217, 0.0
      %6063 = vst.msk [vmem:[#allocation4 + $0x328] sm:$0xff] %vm1217, 0.0
      %6064 = vst.msk [vmem:[#allocation4 + $0x330] sm:$0xff] %vm1217, 0.0
      %6065 = vst.msk [vmem:[#allocation4 + $0x338] sm:$0xff] %vm1217, 0.0
      %6066 = vst.msk [vmem:[#allocation4 + $0x340] sm:$0xff] %vm1217, 0.0
      %6067 = vst.msk [vmem:[#allocation4 + $0x348] sm:$0xff] %vm1217, 0.0
      %6068 = vst.msk [vmem:[#allocation4 + $0x350] sm:$0xff] %vm1217, 0.0
      %6069 = vst.msk [vmem:[#allocation4 + $0x358] sm:$0xff] %vm1217, 0.0
      %6070 = vst.msk [vmem:[#allocation4 + $0x360] sm:$0xff] %vm1217, 0.0
      %6071 = vst.msk [vmem:[#allocation4 + $0x368] sm:$0xff] %vm1217, 0.0
      %6072 = vst.msk [vmem:[#allocation4 + $0x370] sm:$0xff] %vm1217, 0.0
      %6073 = vst.msk [vmem:[#allocation4 + $0x378] sm:$0xff] %vm1217, 0.0
      %6074 = vst.msk [vmem:[#allocation4 + $0x380] sm:$0xff] %vm1217, 0.0
      %6075 = vst.msk [vmem:[#allocation4 + $0x388] sm:$0xff] %vm1217, 0.0
      %6076 = vst.msk [vmem:[#allocation4 + $0x390] sm:$0xff] %vm1217, 0.0
      %6077 = vst.msk [vmem:[#allocation4 + $0x398] sm:$0xff] %vm1217, 0.0
      %6078 = vst.msk [vmem:[#allocation4 + $0x3a0] sm:$0xff] %vm1217, 0.0
      %6079 = vst.msk [vmem:[#allocation4 + $0x3a8] sm:$0xff] %vm1217, 0.0
      %6080 = vst.msk [vmem:[#allocation4 + $0x3b0] sm:$0xff] %vm1217, 0.0
      %6081 = vst.msk [vmem:[#allocation4 + $0x3b8] sm:$0xff] %vm1217, 0.0
      %6082 = vst.msk [vmem:[#allocation4 + $0x3c0] sm:$0xff] %vm1217, 0.0
      %6083 = vst.msk [vmem:[#allocation4 + $0x3c8] sm:$0xff] %vm1217, 0.0
      %6084 = vst.msk [vmem:[#allocation4 + $0x3d0] sm:$0xff] %vm1217, 0.0
      %6085 = vst.msk [vmem:[#allocation4 + $0x3d8] sm:$0xff] %vm1217, 0.0
      %6086 = vst.msk [vmem:[#allocation4 + $0x3e0] sm:$0xff] %vm1217, 0.0
      %6087 = vst.msk [vmem:[#allocation4 + $0x3e8] sm:$0xff] %vm1217, 0.0
      %6088 = vst.msk [vmem:[#allocation4 + $0x3f0] sm:$0xff] %vm1217, 0.0
      %6089 = vst.msk [vmem:[#allocation4 + $0x3f8] sm:$0xff] %vm1217, 0.0
      %s6090 = scalar_lea.vmem [#allocation4], 256
      %6091 = vst.msk [vmem:[%s6090 + $0x8] sm:$0xff] %vm1217, %v3691
      %6092 = vst.msk [vmem:[%s6090 + $0x10] sm:$0xff] %vm1217, %v3692
      %6093 = vst.msk [vmem:[%s6090 + $0x28] sm:$0xff] %vm1217, %v3693
      %6094 = vst.msk [vmem:[%s6090 + $0x30] sm:$0xff] %vm1217, %v3694
      %6095 = vst.msk [vmem:[%s6090 + $0x48] sm:$0xff] %vm1217, %v3695
      %6096 = vst.msk [vmem:[%s6090 + $0x50] sm:$0xff] %vm1217, %v3696
      %6097 = vst.msk [vmem:[%s6090 + $0x68] sm:$0xff] %vm1217, %v3697
      %6098 = vst.msk [vmem:[%s6090 + $0x70] sm:$0xff] %vm1217, %v3698
      %6099 = vst.msk [vmem:[%s6090 + $0x88] sm:$0xff] %vm1217, %v3699
      %6100 = vst.msk [vmem:[%s6090 + $0x90] sm:$0xff] %vm1217, %v3700
      %6101 = vst.msk [vmem:[%s6090 + $0xa8] sm:$0xff] %vm1217, %v3701
      %6102 = vst.msk [vmem:[%s6090 + $0xb0] sm:$0xff] %vm1217, %v3702
      %6103 = vst.msk [vmem:[%s6090 + $0xc8] sm:$0xff] %vm1217, %v3703
      %6104 = vst.msk [vmem:[%s6090 + $0xd0] sm:$0xff] %vm1217, %v3704
      %6105 = vst.msk [vmem:[%s6090 + $0xe8] sm:$0xff] %vm1217, %v3705
      %6106 = vst.msk [vmem:[%s6090 + $0xf0] sm:$0xff] %vm1217, %v3706
      %6107 = vst.msk [vmem:[%s6090 + $0x108] sm:$0xff] %vm1217, %v3707
      %6108 = vst.msk [vmem:[%s6090 + $0x110] sm:$0xff] %vm1217, %v3708
      %6109 = vst.msk [vmem:[%s6090 + $0x128] sm:$0xff] %vm1217, %v3709
      %6110 = vst.msk [vmem:[%s6090 + $0x130] sm:$0xff] %vm1217, %v3710
      %6111 = vst.msk [vmem:[%s6090 + $0x148] sm:$0xff] %vm1217, %v3711
      %6112 = vst.msk [vmem:[%s6090 + $0x150] sm:$0xff] %vm1217, %v3712
      %6113 = vst.msk [vmem:[%s6090 + $0x168] sm:$0xff] %vm1217, %v3713
      %6114 = vst.msk [vmem:[%s6090 + $0x170] sm:$0xff] %vm1217, %v3714
      %6115 = vst.msk [vmem:[%s6090 + $0x188] sm:$0xff] %vm1217, %v3715
      %6116 = vst.msk [vmem:[%s6090 + $0x190] sm:$0xff] %vm1217, %v3716
      %6117 = vst.msk [vmem:[%s6090 + $0x1a8] sm:$0xff] %vm1217, %v3717
      %6118 = vst.msk [vmem:[%s6090 + $0x1b0] sm:$0xff] %vm1217, %v3718
      %6119 = vst.msk [vmem:[%s6090 + $0x1c8] sm:$0xff] %vm1217, %v3719
      %6120 = vst.msk [vmem:[%s6090 + $0x1d0] sm:$0xff] %vm1217, %v3720
      %6121 = vst.msk [vmem:[%s6090 + $0x1e8] sm:$0xff] %vm1217, %v3721
      %6122 = vst.msk [vmem:[%s6090 + $0x1f0] sm:$0xff] %vm1217, %v3722
      %v6123 = vld [vmem:[#allocation4 + $0xe0] sm:$0xff]
      %v6124 = vld [vmem:[#allocation4 + $0xe8] sm:$0xff]
      %v6125 = vld [vmem:[#allocation4 + $0xf0] sm:$0xff]
      %v6126 = vld [vmem:[#allocation4 + $0xf8] sm:$0xff]
      %v6127 = vld [vmem:[#allocation4 + $0x100] sm:$0xff]
      %v6128 = vld [vmem:[#allocation4 + $0x108] sm:$0xff]
      %v6129 = vld [vmem:[#allocation4 + $0x110] sm:$0xff]
      %v6130 = vld [vmem:[#allocation4 + $0x118] sm:$0xff]
      %v6131 = vld [vmem:[#allocation4 + $0x120] sm:$0xff]
      %v6132 = vld [vmem:[#allocation4 + $0x128] sm:$0xff]
      %v6133 = vld [vmem:[#allocation4 + $0x130] sm:$0xff]
      %v6134 = vld [vmem:[#allocation4 + $0x138] sm:$0xff]
      %v6135 = vld [vmem:[#allocation4 + $0x140] sm:$0xff]
      %v6136 = vld [vmem:[#allocation4 + $0x148] sm:$0xff]
      %v6137 = vld [vmem:[#allocation4 + $0x150] sm:$0xff]
      %v6138 = vld [vmem:[#allocation4 + $0x158] sm:$0xff]
      %v6139 = vld [vmem:[#allocation4 + $0x160] sm:$0xff]
      %v6140 = vld [vmem:[#allocation4 + $0x168] sm:$0xff]
      %v6141 = vld [vmem:[#allocation4 + $0x170] sm:$0xff]
      %v6142 = vld [vmem:[#allocation4 + $0x178] sm:$0xff]
      %v6143 = vld [vmem:[#allocation4 + $0x180] sm:$0xff]
      %v6144 = vld [vmem:[#allocation4 + $0x188] sm:$0xff]
      %v6145 = vld [vmem:[#allocation4 + $0x190] sm:$0xff]
      %v6146 = vld [vmem:[#allocation4 + $0x198] sm:$0xff]
      %v6147 = vld [vmem:[#allocation4 + $0x1a0] sm:$0xff]
      %v6148 = vld [vmem:[#allocation4 + $0x1a8] sm:$0xff]
      %v6149 = vld [vmem:[#allocation4 + $0x1b0] sm:$0xff]
      %v6150 = vld [vmem:[#allocation4 + $0x1b8] sm:$0xff]
      %v6151 = vld [vmem:[#allocation4 + $0x1c0] sm:$0xff]
      %v6152 = vld [vmem:[#allocation4 + $0x1c8] sm:$0xff]
      %v6153 = vld [vmem:[#allocation4 + $0x1d0] sm:$0xff]
      %v6154 = vld [vmem:[#allocation4 + $0x1d8] sm:$0xff]
      %v6155 = vld [vmem:[#allocation4 + $0x1e0] sm:$0xff]
      %v6156 = vld [vmem:[#allocation4 + $0x1e8] sm:$0xff]
      %v6157 = vld [vmem:[#allocation4 + $0x1f0] sm:$0xff]
      %v6158 = vld [vmem:[#allocation4 + $0x1f8] sm:$0xff]
      %v6159 = vld [vmem:[#allocation4 + $0x200] sm:$0xff]
      %v6160 = vld [vmem:[#allocation4 + $0x208] sm:$0xff]
      %v6161 = vld [vmem:[#allocation4 + $0x210] sm:$0xff]
      %v6162 = vld [vmem:[#allocation4 + $0x218] sm:$0xff]
      %v6163 = vld [vmem:[#allocation4 + $0x220] sm:$0xff]
      %v6164 = vld [vmem:[#allocation4 + $0x228] sm:$0xff]
      %v6165 = vld [vmem:[#allocation4 + $0x230] sm:$0xff]
      %v6166 = vld [vmem:[#allocation4 + $0x238] sm:$0xff]
      %v6167 = vld [vmem:[#allocation4 + $0x240] sm:$0xff]
      %v6168 = vld [vmem:[#allocation4 + $0x248] sm:$0xff]
      %v6169 = vld [vmem:[#allocation4 + $0x250] sm:$0xff]
      %v6170 = vld [vmem:[#allocation4 + $0x258] sm:$0xff]
      %v6171 = vld [vmem:[#allocation4 + $0x260] sm:$0xff]
      %v6172 = vld [vmem:[#allocation4 + $0x268] sm:$0xff]
      %v6173 = vld [vmem:[#allocation4 + $0x270] sm:$0xff]
      %v6174 = vld [vmem:[#allocation4 + $0x278] sm:$0xff]
      %v6175 = vld [vmem:[#allocation4 + $0x280] sm:$0xff]
      %v6176 = vld [vmem:[#allocation4 + $0x288] sm:$0xff]
      %v6177 = vld [vmem:[#allocation4 + $0x290] sm:$0xff]
      %v6178 = vld [vmem:[#allocation4 + $0x298] sm:$0xff]
      %v6179 = vld [vmem:[#allocation4 + $0x2a0] sm:$0xff]
      %v6180 = vld [vmem:[#allocation4 + $0x2a8] sm:$0xff]
      %v6181 = vld [vmem:[#allocation4 + $0x2b0] sm:$0xff]
      %v6182 = vld [vmem:[#allocation4 + $0x2b8] sm:$0xff]
      %v6183 = vld [vmem:[#allocation4 + $0x2c0] sm:$0xff]
      %v6184 = vld [vmem:[#allocation4 + $0x2c8] sm:$0xff]
      %v6185 = vld [vmem:[#allocation4 + $0x2d0] sm:$0xff]
      %v6186 = vld [vmem:[#allocation4 + $0x2d8] sm:$0xff]
      %v6187 = vld [vmem:[#allocation4 + $0x2e0] sm:$0xff]
      %v6188 = vld [vmem:[#allocation4 + $0x2e8] sm:$0xff]
      %v6189 = vld [vmem:[#allocation4 + $0x2f0] sm:$0xff]
      %v6190 = vld [vmem:[#allocation4 + $0x2f8] sm:$0xff]
      %v6191 = vld [vmem:[#allocation4 + $0x300] sm:$0xff]
      %v6192 = vld [vmem:[#allocation4 + $0x308] sm:$0xff]
      %v6193 = vld [vmem:[#allocation4 + $0x310] sm:$0xff]
      %v6194 = vld [vmem:[#allocation4 + $0x318] sm:$0xff]
      %v6195 = vld [vmem:[%s23] sm:$0x7]
      %v6196 = vld [vmem:[%s23 + $0x4] sm:$0x7]
      %v6197 = vld [vmem:[%s23 + $0x8] sm:$0x7]
      %v6198 = vperm.slane %v6195, 0
      %v6199 = vmul.f32 %v6123, %v6198
      %v6200 = vmul.f32 %v6124, %v6198
      %v6201 = vmul.f32 %v6125, %v6198
      %v6202 = vmul.f32 %v6127, %v6198
      %v6203 = vmul.f32 %v6128, %v6198
      %v6204 = vmul.f32 %v6129, %v6198
      %v6205 = vmul.f32 %v6131, %v6198
      %v6206 = vmul.f32 %v6132, %v6198
      %v6207 = vmul.f32 %v6133, %v6198
      %v6208 = vmul.f32 %v6135, %v6198
      %v6209 = vmul.f32 %v6136, %v6198
      %v6210 = vmul.f32 %v6137, %v6198
      %v6211 = vmul.f32 %v6139, %v6198
      %v6212 = vmul.f32 %v6140, %v6198
      %v6213 = vmul.f32 %v6141, %v6198
      %v6214 = vmul.f32 %v6143, %v6198
      %v6215 = vmul.f32 %v6144, %v6198
      %v6216 = vmul.f32 %v6145, %v6198
      %v6217 = vmul.f32 %v6147, %v6198
      %v6218 = vmul.f32 %v6148, %v6198
      %v6219 = vmul.f32 %v6149, %v6198
      %v6220 = vmul.f32 %v6151, %v6198
      %v6221 = vmul.f32 %v6152, %v6198
      %v6222 = vmul.f32 %v6153, %v6198
      %v6223 = vmul.f32 %v6155, %v6198
      %v6224 = vmul.f32 %v6156, %v6198
      %v6225 = vmul.f32 %v6157, %v6198
      %v6226 = vmul.f32 %v6159, %v6198
      %v6227 = vmul.f32 %v6160, %v6198
      %v6228 = vmul.f32 %v6161, %v6198
      %v6229 = vmul.f32 %v6163, %v6198
      %v6230 = vmul.f32 %v6164, %v6198
      %v6231 = vmul.f32 %v6165, %v6198
      %v6232 = vmul.f32 %v6167, %v6198
      %v6233 = vmul.f32 %v6168, %v6198
      %v6234 = vmul.f32 %v6169, %v6198
      %v6235 = vmul.f32 %v6171, %v6198
      %v6236 = vmul.f32 %v6172, %v6198
      %v6237 = vmul.f32 %v6173, %v6198
      %v6238 = vmul.f32 %v6175, %v6198
      %v6239 = vmul.f32 %v6176, %v6198
      %v6240 = vmul.f32 %v6177, %v6198
      %v6241 = vmul.f32 %v6179, %v6198
      %v6242 = vmul.f32 %v6180, %v6198
      %v6243 = vmul.f32 %v6181, %v6198
      %v6244 = vmul.f32 %v6183, %v6198
      %v6245 = vmul.f32 %v6184, %v6198
      %v6246 = vmul.f32 %v6185, %v6198
      %v6247 = vperm.slane %v6195, 1
      %v6248 = vmul.f32 %v6124, %v6247
      %v6249 = vmul.f32 %v6125, %v6247
      %v6250 = vmul.f32 %v6128, %v6247
      %v6251 = vmul.f32 %v6129, %v6247
      %v6252 = vmul.f32 %v6132, %v6247
      %v6253 = vmul.f32 %v6133, %v6247
      %v6254 = vmul.f32 %v6136, %v6247
      %v6255 = vmul.f32 %v6137, %v6247
      %v6256 = vmul.f32 %v6140, %v6247
      %v6257 = vmul.f32 %v6141, %v6247
      %v6258 = vmul.f32 %v6144, %v6247
      %v6259 = vmul.f32 %v6145, %v6247
      %v6260 = vmul.f32 %v6148, %v6247
      %v6261 = vmul.f32 %v6149, %v6247
      %v6262 = vmul.f32 %v6152, %v6247
      %v6263 = vmul.f32 %v6153, %v6247
      %v6264 = vmul.f32 %v6156, %v6247
      %v6265 = vmul.f32 %v6157, %v6247
      %v6266 = vmul.f32 %v6160, %v6247
      %v6267 = vmul.f32 %v6161, %v6247
      %v6268 = vmul.f32 %v6164, %v6247
      %v6269 = vmul.f32 %v6165, %v6247
      %v6270 = vmul.f32 %v6168, %v6247
      %v6271 = vmul.f32 %v6169, %v6247
      %v6272 = vmul.f32 %v6172, %v6247
      %v6273 = vmul.f32 %v6173, %v6247
      %v6274 = vmul.f32 %v6176, %v6247
      %v6275 = vmul.f32 %v6177, %v6247
      %v6276 = vmul.f32 %v6180, %v6247
      %v6277 = vmul.f32 %v6181, %v6247
      %v6278 = vmul.f32 %v6184, %v6247
      %v6279 = vmul.f32 %v6185, %v6247
      %v6312 = vrot.slane %v6248, 1
      %v6313 = vrot.slane %v6249, 1
      %v6314 = vsel %vm1881, %v6312, %v6313
      %v6315 = vrot.slane %v6250, 1
      %v6316 = vrot.slane %v6251, 1
      %v6317 = vsel %vm1881, %v6315, %v6316
      %v6318 = vrot.slane %v6252, 1
      %v6319 = vrot.slane %v6253, 1
      %v6320 = vsel %vm1881, %v6318, %v6319
      %v6321 = vrot.slane %v6254, 1
      %v6322 = vrot.slane %v6255, 1
      %v6323 = vsel %vm1881, %v6321, %v6322
      %v6324 = vrot.slane %v6256, 1
      %v6325 = vrot.slane %v6257, 1
      %v6326 = vsel %vm1881, %v6324, %v6325
      %v6327 = vrot.slane %v6258, 1
      %v6328 = vrot.slane %v6259, 1
      %v6329 = vsel %vm1881, %v6327, %v6328
      %v6330 = vrot.slane %v6260, 1
      %v6331 = vrot.slane %v6261, 1
      %v6332 = vsel %vm1881, %v6330, %v6331
      %v6333 = vrot.slane %v6262, 1
      %v6334 = vrot.slane %v6263, 1
      %v6335 = vsel %vm1881, %v6333, %v6334
      %v6336 = vrot.slane %v6264, 1
      %v6337 = vrot.slane %v6265, 1
      %v6338 = vsel %vm1881, %v6336, %v6337
      %v6339 = vrot.slane %v6266, 1
      %v6340 = vrot.slane %v6267, 1
      %v6341 = vsel %vm1881, %v6339, %v6340
      %v6342 = vrot.slane %v6268, 1
      %v6343 = vrot.slane %v6269, 1
      %v6344 = vsel %vm1881, %v6342, %v6343
      %v6345 = vrot.slane %v6270, 1
      %v6346 = vrot.slane %v6271, 1
      %v6347 = vsel %vm1881, %v6345, %v6346
      %v6348 = vrot.slane %v6272, 1
      %v6349 = vrot.slane %v6273, 1
      %v6350 = vsel %vm1881, %v6348, %v6349
      %v6351 = vrot.slane %v6274, 1
      %v6352 = vrot.slane %v6275, 1
      %v6353 = vsel %vm1881, %v6351, %v6352
      %v6354 = vrot.slane %v6276, 1
      %v6355 = vrot.slane %v6277, 1
      %v6356 = vsel %vm1881, %v6354, %v6355
      %v6357 = vrot.slane %v6278, 1
      %v6358 = vrot.slane %v6279, 1
      %v6359 = vsel %vm1881, %v6357, %v6358
      %v6408 = vadd.f32 %v6199, %v6312
      %v6409 = vadd.f32 %v6200, %v6314
      %v6410 = vadd.f32 %v6201, %v6313
      %v6411 = vadd.f32 %v6202, %v6315
      %v6412 = vadd.f32 %v6203, %v6317
      %v6413 = vadd.f32 %v6204, %v6316
      %v6414 = vadd.f32 %v6205, %v6318
      %v6415 = vadd.f32 %v6206, %v6320
      %v6416 = vadd.f32 %v6207, %v6319
      %v6417 = vadd.f32 %v6208, %v6321
      %v6418 = vadd.f32 %v6209, %v6323
      %v6419 = vadd.f32 %v6210, %v6322
      %v6420 = vadd.f32 %v6211, %v6324
      %v6421 = vadd.f32 %v6212, %v6326
      %v6422 = vadd.f32 %v6213, %v6325
      %v6423 = vadd.f32 %v6214, %v6327
      %v6424 = vadd.f32 %v6215, %v6329
      %v6425 = vadd.f32 %v6216, %v6328
      %v6426 = vadd.f32 %v6217, %v6330
      %v6427 = vadd.f32 %v6218, %v6332
      %v6428 = vadd.f32 %v6219, %v6331
      %v6429 = vadd.f32 %v6220, %v6333
      %v6430 = vadd.f32 %v6221, %v6335
      %v6431 = vadd.f32 %v6222, %v6334
      %v6432 = vadd.f32 %v6223, %v6336
      %v6433 = vadd.f32 %v6224, %v6338
      %v6434 = vadd.f32 %v6225, %v6337
      %v6435 = vadd.f32 %v6226, %v6339
      %v6436 = vadd.f32 %v6227, %v6341
      %v6437 = vadd.f32 %v6228, %v6340
      %v6438 = vadd.f32 %v6229, %v6342
      %v6439 = vadd.f32 %v6230, %v6344
      %v6440 = vadd.f32 %v6231, %v6343
      %v6441 = vadd.f32 %v6232, %v6345
      %v6442 = vadd.f32 %v6233, %v6347
      %v6443 = vadd.f32 %v6234, %v6346
      %v6444 = vadd.f32 %v6235, %v6348
      %v6445 = vadd.f32 %v6236, %v6350
      %v6446 = vadd.f32 %v6237, %v6349
      %v6447 = vadd.f32 %v6238, %v6351
      %v6448 = vadd.f32 %v6239, %v6353
      %v6449 = vadd.f32 %v6240, %v6352
      %v6450 = vadd.f32 %v6241, %v6354
      %v6451 = vadd.f32 %v6242, %v6356
      %v6452 = vadd.f32 %v6243, %v6355
      %v6453 = vadd.f32 %v6244, %v6357
      %v6454 = vadd.f32 %v6245, %v6359
      %v6455 = vadd.f32 %v6246, %v6358
      %v6456 = vperm.slane %v6195, 2
      %v6457 = vmul.f32 %v6124, %v6456
      %v6458 = vmul.f32 %v6125, %v6456
      %v6459 = vmul.f32 %v6126, %v6456
      %v6460 = vmul.f32 %v6128, %v6456
      %v6461 = vmul.f32 %v6129, %v6456
      %v6462 = vmul.f32 %v6130, %v6456
      %v6463 = vmul.f32 %v6132, %v6456
      %v6464 = vmul.f32 %v6133, %v6456
      %v6465 = vmul.f32 %v6134, %v6456
      %v6466 = vmul.f32 %v6136, %v6456
      %v6467 = vmul.f32 %v6137, %v6456
      %v6468 = vmul.f32 %v6138, %v6456
      %v6469 = vmul.f32 %v6140, %v6456
      %v6470 = vmul.f32 %v6141, %v6456
      %v6471 = vmul.f32 %v6142, %v6456
      %v6472 = vmul.f32 %v6144, %v6456
      %v6473 = vmul.f32 %v6145, %v6456
      %v6474 = vmul.f32 %v6146, %v6456
      %v6475 = vmul.f32 %v6148, %v6456
      %v6476 = vmul.f32 %v6149, %v6456
      %v6477 = vmul.f32 %v6150, %v6456
      %v6478 = vmul.f32 %v6152, %v6456
      %v6479 = vmul.f32 %v6153, %v6456
      %v6480 = vmul.f32 %v6154, %v6456
      %v6481 = vmul.f32 %v6156, %v6456
      %v6482 = vmul.f32 %v6157, %v6456
      %v6483 = vmul.f32 %v6158, %v6456
      %v6484 = vmul.f32 %v6160, %v6456
      %v6485 = vmul.f32 %v6161, %v6456
      %v6486 = vmul.f32 %v6162, %v6456
      %v6487 = vmul.f32 %v6164, %v6456
      %v6488 = vmul.f32 %v6165, %v6456
      %v6489 = vmul.f32 %v6166, %v6456
      %v6490 = vmul.f32 %v6168, %v6456
      %v6491 = vmul.f32 %v6169, %v6456
      %v6492 = vmul.f32 %v6170, %v6456
      %v6493 = vmul.f32 %v6172, %v6456
      %v6494 = vmul.f32 %v6173, %v6456
      %v6495 = vmul.f32 %v6174, %v6456
      %v6496 = vmul.f32 %v6176, %v6456
      %v6497 = vmul.f32 %v6177, %v6456
      %v6498 = vmul.f32 %v6178, %v6456
      %v6499 = vmul.f32 %v6180, %v6456
      %v6500 = vmul.f32 %v6181, %v6456
      %v6501 = vmul.f32 %v6182, %v6456
      %v6502 = vmul.f32 %v6184, %v6456
      %v6503 = vmul.f32 %v6185, %v6456
      %v6504 = vmul.f32 %v6186, %v6456
      %v6553 = vrot.slane %v6457, 2
      %v6554 = vrot.slane %v6458, 2
      %v6555 = vsel %vm2123, %v6553, %v6554
      %v6556 = vrot.slane %v6459, 2
      %v6557 = vsel %vm2123, %v6554, %v6556
      %v6558 = vrot.slane %v6460, 2
      %v6559 = vrot.slane %v6461, 2
      %v6560 = vsel %vm2123, %v6558, %v6559
      %v6561 = vrot.slane %v6462, 2
      %v6562 = vsel %vm2123, %v6559, %v6561
      %v6563 = vrot.slane %v6463, 2
      %v6564 = vrot.slane %v6464, 2
      %v6565 = vsel %vm2123, %v6563, %v6564
      %v6566 = vrot.slane %v6465, 2
      %v6567 = vsel %vm2123, %v6564, %v6566
      %v6568 = vrot.slane %v6466, 2
      %v6569 = vrot.slane %v6467, 2
      %v6570 = vsel %vm2123, %v6568, %v6569
      %v6571 = vrot.slane %v6468, 2
      %v6572 = vsel %vm2123, %v6569, %v6571
      %v6573 = vrot.slane %v6469, 2
      %v6574 = vrot.slane %v6470, 2
      %v6575 = vsel %vm2123, %v6573, %v6574
      %v6576 = vrot.slane %v6471, 2
      %v6577 = vsel %vm2123, %v6574, %v6576
      %v6578 = vrot.slane %v6472, 2
      %v6579 = vrot.slane %v6473, 2
      %v6580 = vsel %vm2123, %v6578, %v6579
      %v6581 = vrot.slane %v6474, 2
      %v6582 = vsel %vm2123, %v6579, %v6581
      %v6583 = vrot.slane %v6475, 2
      %v6584 = vrot.slane %v6476, 2
      %v6585 = vsel %vm2123, %v6583, %v6584
      %v6586 = vrot.slane %v6477, 2
      %v6587 = vsel %vm2123, %v6584, %v6586
      %v6588 = vrot.slane %v6478, 2
      %v6589 = vrot.slane %v6479, 2
      %v6590 = vsel %vm2123, %v6588, %v6589
      %v6591 = vrot.slane %v6480, 2
      %v6592 = vsel %vm2123, %v6589, %v6591
      %v6593 = vrot.slane %v6481, 2
      %v6594 = vrot.slane %v6482, 2
      %v6595 = vsel %vm2123, %v6593, %v6594
      %v6596 = vrot.slane %v6483, 2
      %v6597 = vsel %vm2123, %v6594, %v6596
      %v6598 = vrot.slane %v6484, 2
      %v6599 = vrot.slane %v6485, 2
      %v6600 = vsel %vm2123, %v6598, %v6599
      %v6601 = vrot.slane %v6486, 2
      %v6602 = vsel %vm2123, %v6599, %v6601
      %v6603 = vrot.slane %v6487, 2
      %v6604 = vrot.slane %v6488, 2
      %v6605 = vsel %vm2123, %v6603, %v6604
      %v6606 = vrot.slane %v6489, 2
      %v6607 = vsel %vm2123, %v6604, %v6606
      %v6608 = vrot.slane %v6490, 2
      %v6609 = vrot.slane %v6491, 2
      %v6610 = vsel %vm2123, %v6608, %v6609
      %v6611 = vrot.slane %v6492, 2
      %v6612 = vsel %vm2123, %v6609, %v6611
      %v6613 = vrot.slane %v6493, 2
      %v6614 = vrot.slane %v6494, 2
      %v6615 = vsel %vm2123, %v6613, %v6614
      %v6616 = vrot.slane %v6495, 2
      %v6617 = vsel %vm2123, %v6614, %v6616
      %v6618 = vrot.slane %v6496, 2
      %v6619 = vrot.slane %v6497, 2
      %v6620 = vsel %vm2123, %v6618, %v6619
      %v6621 = vrot.slane %v6498, 2
      %v6622 = vsel %vm2123, %v6619, %v6621
      %v6623 = vrot.slane %v6499, 2
      %v6624 = vrot.slane %v6500, 2
      %v6625 = vsel %vm2123, %v6623, %v6624
      %v6626 = vrot.slane %v6501, 2
      %v6627 = vsel %vm2123, %v6624, %v6626
      %v6628 = vrot.slane %v6502, 2
      %v6629 = vrot.slane %v6503, 2
      %v6630 = vsel %vm2123, %v6628, %v6629
      %v6631 = vrot.slane %v6504, 2
      %v6632 = vsel %vm2123, %v6629, %v6631
      %v6681 = vadd.f32 %v6408, %v6553
      %v6682 = vadd.f32 %v6409, %v6555
      %v6683 = vadd.f32 %v6410, %v6557
      %v6684 = vadd.f32 %v6411, %v6558
      %v6685 = vadd.f32 %v6412, %v6560
      %v6686 = vadd.f32 %v6413, %v6562
      %v6687 = vadd.f32 %v6414, %v6563
      %v6688 = vadd.f32 %v6415, %v6565
      %v6689 = vadd.f32 %v6416, %v6567
      %v6690 = vadd.f32 %v6417, %v6568
      %v6691 = vadd.f32 %v6418, %v6570
      %v6692 = vadd.f32 %v6419, %v6572
      %v6693 = vadd.f32 %v6420, %v6573
      %v6694 = vadd.f32 %v6421, %v6575
      %v6695 = vadd.f32 %v6422, %v6577
      %v6696 = vadd.f32 %v6423, %v6578
      %v6697 = vadd.f32 %v6424, %v6580
      %v6698 = vadd.f32 %v6425, %v6582
      %v6699 = vadd.f32 %v6426, %v6583
      %v6700 = vadd.f32 %v6427, %v6585
      %v6701 = vadd.f32 %v6428, %v6587
      %v6702 = vadd.f32 %v6429, %v6588
      %v6703 = vadd.f32 %v6430, %v6590
      %v6704 = vadd.f32 %v6431, %v6592
      %v6705 = vadd.f32 %v6432, %v6593
      %v6706 = vadd.f32 %v6433, %v6595
      %v6707 = vadd.f32 %v6434, %v6597
      %v6708 = vadd.f32 %v6435, %v6598
      %v6709 = vadd.f32 %v6436, %v6600
      %v6710 = vadd.f32 %v6437, %v6602
      %v6711 = vadd.f32 %v6438, %v6603
      %v6712 = vadd.f32 %v6439, %v6605
      %v6713 = vadd.f32 %v6440, %v6607
      %v6714 = vadd.f32 %v6441, %v6608
      %v6715 = vadd.f32 %v6442, %v6610
      %v6716 = vadd.f32 %v6443, %v6612
      %v6717 = vadd.f32 %v6444, %v6613
      %v6718 = vadd.f32 %v6445, %v6615
      %v6719 = vadd.f32 %v6446, %v6617
      %v6720 = vadd.f32 %v6447, %v6618
      %v6721 = vadd.f32 %v6448, %v6620
      %v6722 = vadd.f32 %v6449, %v6622
      %v6723 = vadd.f32 %v6450, %v6623
      %v6724 = vadd.f32 %v6451, %v6625
      %v6725 = vadd.f32 %v6452, %v6627
      %v6726 = vadd.f32 %v6453, %v6628
      %v6727 = vadd.f32 %v6454, %v6630
      %v6728 = vadd.f32 %v6455, %v6632
      %v6729 = vperm.slane %v6196, 0
      %v6730 = vmul.f32 %v6127, %v6729
      %v6731 = vmul.f32 %v6128, %v6729
      %v6732 = vmul.f32 %v6129, %v6729
      %v6733 = vmul.f32 %v6131, %v6729
      %v6734 = vmul.f32 %v6132, %v6729
      %v6735 = vmul.f32 %v6133, %v6729
      %v6736 = vmul.f32 %v6135, %v6729
      %v6737 = vmul.f32 %v6136, %v6729
      %v6738 = vmul.f32 %v6137, %v6729
      %v6739 = vmul.f32 %v6139, %v6729
      %v6740 = vmul.f32 %v6140, %v6729
      %v6741 = vmul.f32 %v6141, %v6729
      %v6742 = vmul.f32 %v6143, %v6729
      %v6743 = vmul.f32 %v6144, %v6729
      %v6744 = vmul.f32 %v6145, %v6729
      %v6745 = vmul.f32 %v6147, %v6729
      %v6746 = vmul.f32 %v6148, %v6729
      %v6747 = vmul.f32 %v6149, %v6729
      %v6748 = vmul.f32 %v6151, %v6729
      %v6749 = vmul.f32 %v6152, %v6729
      %v6750 = vmul.f32 %v6153, %v6729
      %v6751 = vmul.f32 %v6155, %v6729
      %v6752 = vmul.f32 %v6156, %v6729
      %v6753 = vmul.f32 %v6157, %v6729
      %v6754 = vmul.f32 %v6159, %v6729
      %v6755 = vmul.f32 %v6160, %v6729
      %v6756 = vmul.f32 %v6161, %v6729
      %v6757 = vmul.f32 %v6163, %v6729
      %v6758 = vmul.f32 %v6164, %v6729
      %v6759 = vmul.f32 %v6165, %v6729
      %v6760 = vmul.f32 %v6167, %v6729
      %v6761 = vmul.f32 %v6168, %v6729
      %v6762 = vmul.f32 %v6169, %v6729
      %v6763 = vmul.f32 %v6171, %v6729
      %v6764 = vmul.f32 %v6172, %v6729
      %v6765 = vmul.f32 %v6173, %v6729
      %v6766 = vmul.f32 %v6175, %v6729
      %v6767 = vmul.f32 %v6176, %v6729
      %v6768 = vmul.f32 %v6177, %v6729
      %v6769 = vmul.f32 %v6179, %v6729
      %v6770 = vmul.f32 %v6180, %v6729
      %v6771 = vmul.f32 %v6181, %v6729
      %v6772 = vmul.f32 %v6183, %v6729
      %v6773 = vmul.f32 %v6184, %v6729
      %v6774 = vmul.f32 %v6185, %v6729
      %v6775 = vmul.f32 %v6187, %v6729
      %v6776 = vmul.f32 %v6188, %v6729
      %v6777 = vmul.f32 %v6189, %v6729
      %v6778 = vadd.f32 %v6681, %v6730
      %v6779 = vadd.f32 %v6682, %v6731
      %v6780 = vadd.f32 %v6683, %v6732
      %v6781 = vadd.f32 %v6684, %v6733
      %v6782 = vadd.f32 %v6685, %v6734
      %v6783 = vadd.f32 %v6686, %v6735
      %v6784 = vadd.f32 %v6687, %v6736
      %v6785 = vadd.f32 %v6688, %v6737
      %v6786 = vadd.f32 %v6689, %v6738
      %v6787 = vadd.f32 %v6690, %v6739
      %v6788 = vadd.f32 %v6691, %v6740
      %v6789 = vadd.f32 %v6692, %v6741
      %v6790 = vadd.f32 %v6693, %v6742
      %v6791 = vadd.f32 %v6694, %v6743
      %v6792 = vadd.f32 %v6695, %v6744
      %v6793 = vadd.f32 %v6696, %v6745
      %v6794 = vadd.f32 %v6697, %v6746
      %v6795 = vadd.f32 %v6698, %v6747
      %v6796 = vadd.f32 %v6699, %v6748
      %v6797 = vadd.f32 %v6700, %v6749
      %v6798 = vadd.f32 %v6701, %v6750
      %v6799 = vadd.f32 %v6702, %v6751
      %v6800 = vadd.f32 %v6703, %v6752
      %v6801 = vadd.f32 %v6704, %v6753
      %v6802 = vadd.f32 %v6705, %v6754
      %v6803 = vadd.f32 %v6706, %v6755
      %v6804 = vadd.f32 %v6707, %v6756
      %v6805 = vadd.f32 %v6708, %v6757
      %v6806 = vadd.f32 %v6709, %v6758
      %v6807 = vadd.f32 %v6710, %v6759
      %v6808 = vadd.f32 %v6711, %v6760
      %v6809 = vadd.f32 %v6712, %v6761
      %v6810 = vadd.f32 %v6713, %v6762
      %v6811 = vadd.f32 %v6714, %v6763
      %v6812 = vadd.f32 %v6715, %v6764
      %v6813 = vadd.f32 %v6716, %v6765
      %v6814 = vadd.f32 %v6717, %v6766
      %v6815 = vadd.f32 %v6718, %v6767
      %v6816 = vadd.f32 %v6719, %v6768
      %v6817 = vadd.f32 %v6720, %v6769
      %v6818 = vadd.f32 %v6721, %v6770
      %v6819 = vadd.f32 %v6722, %v6771
      %v6820 = vadd.f32 %v6723, %v6772
      %v6821 = vadd.f32 %v6724, %v6773
      %v6822 = vadd.f32 %v6725, %v6774
      %v6823 = vadd.f32 %v6726, %v6775
      %v6824 = vadd.f32 %v6727, %v6776
      %v6825 = vadd.f32 %v6728, %v6777
      %v6826 = vperm.slane %v6196, 1
      %v6827 = vmul.f32 %v6128, %v6826
      %v6828 = vmul.f32 %v6129, %v6826
      %v6829 = vmul.f32 %v6132, %v6826
      %v6830 = vmul.f32 %v6133, %v6826
      %v6831 = vmul.f32 %v6136, %v6826
      %v6832 = vmul.f32 %v6137, %v6826
      %v6833 = vmul.f32 %v6140, %v6826
      %v6834 = vmul.f32 %v6141, %v6826
      %v6835 = vmul.f32 %v6144, %v6826
      %v6836 = vmul.f32 %v6145, %v6826
      %v6837 = vmul.f32 %v6148, %v6826
      %v6838 = vmul.f32 %v6149, %v6826
      %v6839 = vmul.f32 %v6152, %v6826
      %v6840 = vmul.f32 %v6153, %v6826
      %v6841 = vmul.f32 %v6156, %v6826
      %v6842 = vmul.f32 %v6157, %v6826
      %v6843 = vmul.f32 %v6160, %v6826
      %v6844 = vmul.f32 %v6161, %v6826
      %v6845 = vmul.f32 %v6164, %v6826
      %v6846 = vmul.f32 %v6165, %v6826
      %v6847 = vmul.f32 %v6168, %v6826
      %v6848 = vmul.f32 %v6169, %v6826
      %v6849 = vmul.f32 %v6172, %v6826
      %v6850 = vmul.f32 %v6173, %v6826
      %v6851 = vmul.f32 %v6176, %v6826
      %v6852 = vmul.f32 %v6177, %v6826
      %v6853 = vmul.f32 %v6180, %v6826
      %v6854 = vmul.f32 %v6181, %v6826
      %v6855 = vmul.f32 %v6184, %v6826
      %v6856 = vmul.f32 %v6185, %v6826
      %v6857 = vmul.f32 %v6188, %v6826
      %v6858 = vmul.f32 %v6189, %v6826
      %v6891 = vrot.slane %v6827, 1
      %v6892 = vrot.slane %v6828, 1
      %v6893 = vsel %vm1881, %v6891, %v6892
      %v6894 = vrot.slane %v6829, 1
      %v6895 = vrot.slane %v6830, 1
      %v6896 = vsel %vm1881, %v6894, %v6895
      %v6897 = vrot.slane %v6831, 1
      %v6898 = vrot.slane %v6832, 1
      %v6899 = vsel %vm1881, %v6897, %v6898
      %v6900 = vrot.slane %v6833, 1
      %v6901 = vrot.slane %v6834, 1
      %v6902 = vsel %vm1881, %v6900, %v6901
      %v6903 = vrot.slane %v6835, 1
      %v6904 = vrot.slane %v6836, 1
      %v6905 = vsel %vm1881, %v6903, %v6904
      %v6906 = vrot.slane %v6837, 1
      %v6907 = vrot.slane %v6838, 1
      %v6908 = vsel %vm1881, %v6906, %v6907
      %v6909 = vrot.slane %v6839, 1
      %v6910 = vrot.slane %v6840, 1
      %v6911 = vsel %vm1881, %v6909, %v6910
      %v6912 = vrot.slane %v6841, 1
      %v6913 = vrot.slane %v6842, 1
      %v6914 = vsel %vm1881, %v6912, %v6913
      %v6915 = vrot.slane %v6843, 1
      %v6916 = vrot.slane %v6844, 1
      %v6917 = vsel %vm1881, %v6915, %v6916
      %v6918 = vrot.slane %v6845, 1
      %v6919 = vrot.slane %v6846, 1
      %v6920 = vsel %vm1881, %v6918, %v6919
      %v6921 = vrot.slane %v6847, 1
      %v6922 = vrot.slane %v6848, 1
      %v6923 = vsel %vm1881, %v6921, %v6922
      %v6924 = vrot.slane %v6849, 1
      %v6925 = vrot.slane %v6850, 1
      %v6926 = vsel %vm1881, %v6924, %v6925
      %v6927 = vrot.slane %v6851, 1
      %v6928 = vrot.slane %v6852, 1
      %v6929 = vsel %vm1881, %v6927, %v6928
      %v6930 = vrot.slane %v6853, 1
      %v6931 = vrot.slane %v6854, 1
      %v6932 = vsel %vm1881, %v6930, %v6931
      %v6933 = vrot.slane %v6855, 1
      %v6934 = vrot.slane %v6856, 1
      %v6935 = vsel %vm1881, %v6933, %v6934
      %v6936 = vrot.slane %v6857, 1
      %v6937 = vrot.slane %v6858, 1
      %v6938 = vsel %vm1881, %v6936, %v6937
      %v6987 = vadd.f32 %v6778, %v6891
      %v6988 = vadd.f32 %v6779, %v6893
      %v6989 = vadd.f32 %v6780, %v6892
      %v6990 = vadd.f32 %v6781, %v6894
      %v6991 = vadd.f32 %v6782, %v6896
      %v6992 = vadd.f32 %v6783, %v6895
      %v6993 = vadd.f32 %v6784, %v6897
      %v6994 = vadd.f32 %v6785, %v6899
      %v6995 = vadd.f32 %v6786, %v6898
      %v6996 = vadd.f32 %v6787, %v6900
      %v6997 = vadd.f32 %v6788, %v6902
      %v6998 = vadd.f32 %v6789, %v6901
      %v6999 = vadd.f32 %v6790, %v6903
      %v7000 = vadd.f32 %v6791, %v6905
      %v7001 = vadd.f32 %v6792, %v6904
      %v7002 = vadd.f32 %v6793, %v6906
      %v7003 = vadd.f32 %v6794, %v6908
      %v7004 = vadd.f32 %v6795, %v6907
      %v7005 = vadd.f32 %v6796, %v6909
      %v7006 = vadd.f32 %v6797, %v6911
      %v7007 = vadd.f32 %v6798, %v6910
      %v7008 = vadd.f32 %v6799, %v6912
      %v7009 = vadd.f32 %v6800, %v6914
      %v7010 = vadd.f32 %v6801, %v6913
      %v7011 = vadd.f32 %v6802, %v6915
      %v7012 = vadd.f32 %v6803, %v6917
      %v7013 = vadd.f32 %v6804, %v6916
      %v7014 = vadd.f32 %v6805, %v6918
      %v7015 = vadd.f32 %v6806, %v6920
      %v7016 = vadd.f32 %v6807, %v6919
      %v7017 = vadd.f32 %v6808, %v6921
      %v7018 = vadd.f32 %v6809, %v6923
      %v7019 = vadd.f32 %v6810, %v6922
      %v7020 = vadd.f32 %v6811, %v6924
      %v7021 = vadd.f32 %v6812, %v6926
      %v7022 = vadd.f32 %v6813, %v6925
      %v7023 = vadd.f32 %v6814, %v6927
      %v7024 = vadd.f32 %v6815, %v6929
      %v7025 = vadd.f32 %v6816, %v6928
      %v7026 = vadd.f32 %v6817, %v6930
      %v7027 = vadd.f32 %v6818, %v6932
      %v7028 = vadd.f32 %v6819, %v6931
      %v7029 = vadd.f32 %v6820, %v6933
      %v7030 = vadd.f32 %v6821, %v6935
      %v7031 = vadd.f32 %v6822, %v6934
      %v7032 = vadd.f32 %v6823, %v6936
      %v7033 = vadd.f32 %v6824, %v6938
      %v7034 = vadd.f32 %v6825, %v6937
      %v7035 = vperm.slane %v6196, 2
      %v7036 = vmul.f32 %v6128, %v7035
      %v7037 = vmul.f32 %v6129, %v7035
      %v7038 = vmul.f32 %v6130, %v7035
      %v7039 = vmul.f32 %v6132, %v7035
      %v7040 = vmul.f32 %v6133, %v7035
      %v7041 = vmul.f32 %v6134, %v7035
      %v7042 = vmul.f32 %v6136, %v7035
      %v7043 = vmul.f32 %v6137, %v7035
      %v7044 = vmul.f32 %v6138, %v7035
      %v7045 = vmul.f32 %v6140, %v7035
      %v7046 = vmul.f32 %v6141, %v7035
      %v7047 = vmul.f32 %v6142, %v7035
      %v7048 = vmul.f32 %v6144, %v7035
      %v7049 = vmul.f32 %v6145, %v7035
      %v7050 = vmul.f32 %v6146, %v7035
      %v7051 = vmul.f32 %v6148, %v7035
      %v7052 = vmul.f32 %v6149, %v7035
      %v7053 = vmul.f32 %v6150, %v7035
      %v7054 = vmul.f32 %v6152, %v7035
      %v7055 = vmul.f32 %v6153, %v7035
      %v7056 = vmul.f32 %v6154, %v7035
      %v7057 = vmul.f32 %v6156, %v7035
      %v7058 = vmul.f32 %v6157, %v7035
      %v7059 = vmul.f32 %v6158, %v7035
      %v7060 = vmul.f32 %v6160, %v7035
      %v7061 = vmul.f32 %v6161, %v7035
      %v7062 = vmul.f32 %v6162, %v7035
      %v7063 = vmul.f32 %v6164, %v7035
      %v7064 = vmul.f32 %v6165, %v7035
      %v7065 = vmul.f32 %v6166, %v7035
      %v7066 = vmul.f32 %v6168, %v7035
      %v7067 = vmul.f32 %v6169, %v7035
      %v7068 = vmul.f32 %v6170, %v7035
      %v7069 = vmul.f32 %v6172, %v7035
      %v7070 = vmul.f32 %v6173, %v7035
      %v7071 = vmul.f32 %v6174, %v7035
      %v7072 = vmul.f32 %v6176, %v7035
      %v7073 = vmul.f32 %v6177, %v7035
      %v7074 = vmul.f32 %v6178, %v7035
      %v7075 = vmul.f32 %v6180, %v7035
      %v7076 = vmul.f32 %v6181, %v7035
      %v7077 = vmul.f32 %v6182, %v7035
      %v7078 = vmul.f32 %v6184, %v7035
      %v7079 = vmul.f32 %v6185, %v7035
      %v7080 = vmul.f32 %v6186, %v7035
      %v7081 = vmul.f32 %v6188, %v7035
      %v7082 = vmul.f32 %v6189, %v7035
      %v7083 = vmul.f32 %v6190, %v7035
      %v7132 = vrot.slane %v7036, 2
      %v7133 = vrot.slane %v7037, 2
      %v7134 = vsel %vm2123, %v7132, %v7133
      %v7135 = vrot.slane %v7038, 2
      %v7136 = vsel %vm2123, %v7133, %v7135
      %v7137 = vrot.slane %v7039, 2
      %v7138 = vrot.slane %v7040, 2
      %v7139 = vsel %vm2123, %v7137, %v7138
      %v7140 = vrot.slane %v7041, 2
      %v7141 = vsel %vm2123, %v7138, %v7140
      %v7142 = vrot.slane %v7042, 2
      %v7143 = vrot.slane %v7043, 2
      %v7144 = vsel %vm2123, %v7142, %v7143
      %v7145 = vrot.slane %v7044, 2
      %v7146 = vsel %vm2123, %v7143, %v7145
      %v7147 = vrot.slane %v7045, 2
      %v7148 = vrot.slane %v7046, 2
      %v7149 = vsel %vm2123, %v7147, %v7148
      %v7150 = vrot.slane %v7047, 2
      %v7151 = vsel %vm2123, %v7148, %v7150
      %v7152 = vrot.slane %v7048, 2
      %v7153 = vrot.slane %v7049, 2
      %v7154 = vsel %vm2123, %v7152, %v7153
      %v7155 = vrot.slane %v7050, 2
      %v7156 = vsel %vm2123, %v7153, %v7155
      %v7157 = vrot.slane %v7051, 2
      %v7158 = vrot.slane %v7052, 2
      %v7159 = vsel %vm2123, %v7157, %v7158
      %v7160 = vrot.slane %v7053, 2
      %v7161 = vsel %vm2123, %v7158, %v7160
      %v7162 = vrot.slane %v7054, 2
      %v7163 = vrot.slane %v7055, 2
      %v7164 = vsel %vm2123, %v7162, %v7163
      %v7165 = vrot.slane %v7056, 2
      %v7166 = vsel %vm2123, %v7163, %v7165
      %v7167 = vrot.slane %v7057, 2
      %v7168 = vrot.slane %v7058, 2
      %v7169 = vsel %vm2123, %v7167, %v7168
      %v7170 = vrot.slane %v7059, 2
      %v7171 = vsel %vm2123, %v7168, %v7170
      %v7172 = vrot.slane %v7060, 2
      %v7173 = vrot.slane %v7061, 2
      %v7174 = vsel %vm2123, %v7172, %v7173
      %v7175 = vrot.slane %v7062, 2
      %v7176 = vsel %vm2123, %v7173, %v7175
      %v7177 = vrot.slane %v7063, 2
      %v7178 = vrot.slane %v7064, 2
      %v7179 = vsel %vm2123, %v7177, %v7178
      %v7180 = vrot.slane %v7065, 2
      %v7181 = vsel %vm2123, %v7178, %v7180
      %v7182 = vrot.slane %v7066, 2
      %v7183 = vrot.slane %v7067, 2
      %v7184 = vsel %vm2123, %v7182, %v7183
      %v7185 = vrot.slane %v7068, 2
      %v7186 = vsel %vm2123, %v7183, %v7185
      %v7187 = vrot.slane %v7069, 2
      %v7188 = vrot.slane %v7070, 2
      %v7189 = vsel %vm2123, %v7187, %v7188
      %v7190 = vrot.slane %v7071, 2
      %v7191 = vsel %vm2123, %v7188, %v7190
      %v7192 = vrot.slane %v7072, 2
      %v7193 = vrot.slane %v7073, 2
      %v7194 = vsel %vm2123, %v7192, %v7193
      %v7195 = vrot.slane %v7074, 2
      %v7196 = vsel %vm2123, %v7193, %v7195
      %v7197 = vrot.slane %v7075, 2
      %v7198 = vrot.slane %v7076, 2
      %v7199 = vsel %vm2123, %v7197, %v7198
      %v7200 = vrot.slane %v7077, 2
      %v7201 = vsel %vm2123, %v7198, %v7200
      %v7202 = vrot.slane %v7078, 2
      %v7203 = vrot.slane %v7079, 2
      %v7204 = vsel %vm2123, %v7202, %v7203
      %v7205 = vrot.slane %v7080, 2
      %v7206 = vsel %vm2123, %v7203, %v7205
      %v7207 = vrot.slane %v7081, 2
      %v7208 = vrot.slane %v7082, 2
      %v7209 = vsel %vm2123, %v7207, %v7208
      %v7210 = vrot.slane %v7083, 2
      %v7211 = vsel %vm2123, %v7208, %v7210
      %v7260 = vadd.f32 %v6987, %v7132
      %v7261 = vadd.f32 %v6988, %v7134
      %v7262 = vadd.f32 %v6989, %v7136
      %v7263 = vadd.f32 %v6990, %v7137
      %v7264 = vadd.f32 %v6991, %v7139
      %v7265 = vadd.f32 %v6992, %v7141
      %v7266 = vadd.f32 %v6993, %v7142
      %v7267 = vadd.f32 %v6994, %v7144
      %v7268 = vadd.f32 %v6995, %v7146
      %v7269 = vadd.f32 %v6996, %v7147
      %v7270 = vadd.f32 %v6997, %v7149
      %v7271 = vadd.f32 %v6998, %v7151
      %v7272 = vadd.f32 %v6999, %v7152
      %v7273 = vadd.f32 %v7000, %v7154
      %v7274 = vadd.f32 %v7001, %v7156
      %v7275 = vadd.f32 %v7002, %v7157
      %v7276 = vadd.f32 %v7003, %v7159
      %v7277 = vadd.f32 %v7004, %v7161
      %v7278 = vadd.f32 %v7005, %v7162
      %v7279 = vadd.f32 %v7006, %v7164
      %v7280 = vadd.f32 %v7007, %v7166
      %v7281 = vadd.f32 %v7008, %v7167
      %v7282 = vadd.f32 %v7009, %v7169
      %v7283 = vadd.f32 %v7010, %v7171
      %v7284 = vadd.f32 %v7011, %v7172
      %v7285 = vadd.f32 %v7012, %v7174
      %v7286 = vadd.f32 %v7013, %v7176
      %v7287 = vadd.f32 %v7014, %v7177
      %v7288 = vadd.f32 %v7015, %v7179
      %v7289 = vadd.f32 %v7016, %v7181
      %v7290 = vadd.f32 %v7017, %v7182
      %v7291 = vadd.f32 %v7018, %v7184
      %v7292 = vadd.f32 %v7019, %v7186
      %v7293 = vadd.f32 %v7020, %v7187
      %v7294 = vadd.f32 %v7021, %v7189
      %v7295 = vadd.f32 %v7022, %v7191
      %v7296 = vadd.f32 %v7023, %v7192
      %v7297 = vadd.f32 %v7024, %v7194
      %v7298 = vadd.f32 %v7025, %v7196
      %v7299 = vadd.f32 %v7026, %v7197
      %v7300 = vadd.f32 %v7027, %v7199
      %v7301 = vadd.f32 %v7028, %v7201
      %v7302 = vadd.f32 %v7029, %v7202
      %v7303 = vadd.f32 %v7030, %v7204
      %v7304 = vadd.f32 %v7031, %v7206
      %v7305 = vadd.f32 %v7032, %v7207
      %v7306 = vadd.f32 %v7033, %v7209
      %v7307 = vadd.f32 %v7034, %v7211
      %v7308 = vperm.slane %v6197, 0
      %v7309 = vmul.f32 %v6131, %v7308
      %v7310 = vmul.f32 %v6132, %v7308
      %v7311 = vmul.f32 %v6133, %v7308
      %v7312 = vmul.f32 %v6135, %v7308
      %v7313 = vmul.f32 %v6136, %v7308
      %v7314 = vmul.f32 %v6137, %v7308
      %v7315 = vmul.f32 %v6139, %v7308
      %v7316 = vmul.f32 %v6140, %v7308
      %v7317 = vmul.f32 %v6141, %v7308
      %v7318 = vmul.f32 %v6143, %v7308
      %v7319 = vmul.f32 %v6144, %v7308
      %v7320 = vmul.f32 %v6145, %v7308
      %v7321 = vmul.f32 %v6147, %v7308
      %v7322 = vmul.f32 %v6148, %v7308
      %v7323 = vmul.f32 %v6149, %v7308
      %v7324 = vmul.f32 %v6151, %v7308
      %v7325 = vmul.f32 %v6152, %v7308
      %v7326 = vmul.f32 %v6153, %v7308
      %v7327 = vmul.f32 %v6155, %v7308
      %v7328 = vmul.f32 %v6156, %v7308
      %v7329 = vmul.f32 %v6157, %v7308
      %v7330 = vmul.f32 %v6159, %v7308
      %v7331 = vmul.f32 %v6160, %v7308
      %v7332 = vmul.f32 %v6161, %v7308
      %v7333 = vmul.f32 %v6163, %v7308
      %v7334 = vmul.f32 %v6164, %v7308
      %v7335 = vmul.f32 %v6165, %v7308
      %v7336 = vmul.f32 %v6167, %v7308
      %v7337 = vmul.f32 %v6168, %v7308
      %v7338 = vmul.f32 %v6169, %v7308
      %v7339 = vmul.f32 %v6171, %v7308
      %v7340 = vmul.f32 %v6172, %v7308
      %v7341 = vmul.f32 %v6173, %v7308
      %v7342 = vmul.f32 %v6175, %v7308
      %v7343 = vmul.f32 %v6176, %v7308
      %v7344 = vmul.f32 %v6177, %v7308
      %v7345 = vmul.f32 %v6179, %v7308
      %v7346 = vmul.f32 %v6180, %v7308
      %v7347 = vmul.f32 %v6181, %v7308
      %v7348 = vmul.f32 %v6183, %v7308
      %v7349 = vmul.f32 %v6184, %v7308
      %v7350 = vmul.f32 %v6185, %v7308
      %v7351 = vmul.f32 %v6187, %v7308
      %v7352 = vmul.f32 %v6188, %v7308
      %v7353 = vmul.f32 %v6189, %v7308
      %v7354 = vmul.f32 %v6191, %v7308
      %v7355 = vmul.f32 %v6192, %v7308
      %v7356 = vmul.f32 %v6193, %v7308
      %v7357 = vadd.f32 %v7260, %v7309
      %v7358 = vadd.f32 %v7261, %v7310
      %v7359 = vadd.f32 %v7262, %v7311
      %v7360 = vadd.f32 %v7263, %v7312
      %v7361 = vadd.f32 %v7264, %v7313
      %v7362 = vadd.f32 %v7265, %v7314
      %v7363 = vadd.f32 %v7266, %v7315
      %v7364 = vadd.f32 %v7267, %v7316
      %v7365 = vadd.f32 %v7268, %v7317
      %v7366 = vadd.f32 %v7269, %v7318
      %v7367 = vadd.f32 %v7270, %v7319
      %v7368 = vadd.f32 %v7271, %v7320
      %v7369 = vadd.f32 %v7272, %v7321
      %v7370 = vadd.f32 %v7273, %v7322
      %v7371 = vadd.f32 %v7274, %v7323
      %v7372 = vadd.f32 %v7275, %v7324
      %v7373 = vadd.f32 %v7276, %v7325
      %v7374 = vadd.f32 %v7277, %v7326
      %v7375 = vadd.f32 %v7278, %v7327
      %v7376 = vadd.f32 %v7279, %v7328
      %v7377 = vadd.f32 %v7280, %v7329
      %v7378 = vadd.f32 %v7281, %v7330
      %v7379 = vadd.f32 %v7282, %v7331
      %v7380 = vadd.f32 %v7283, %v7332
      %v7381 = vadd.f32 %v7284, %v7333
      %v7382 = vadd.f32 %v7285, %v7334
      %v7383 = vadd.f32 %v7286, %v7335
      %v7384 = vadd.f32 %v7287, %v7336
      %v7385 = vadd.f32 %v7288, %v7337
      %v7386 = vadd.f32 %v7289, %v7338
      %v7387 = vadd.f32 %v7290, %v7339
      %v7388 = vadd.f32 %v7291, %v7340
      %v7389 = vadd.f32 %v7292, %v7341
      %v7390 = vadd.f32 %v7293, %v7342
      %v7391 = vadd.f32 %v7294, %v7343
      %v7392 = vadd.f32 %v7295, %v7344
      %v7393 = vadd.f32 %v7296, %v7345
      %v7394 = vadd.f32 %v7297, %v7346
      %v7395 = vadd.f32 %v7298, %v7347
      %v7396 = vadd.f32 %v7299, %v7348
      %v7397 = vadd.f32 %v7300, %v7349
      %v7398 = vadd.f32 %v7301, %v7350
      %v7399 = vadd.f32 %v7302, %v7351
      %v7400 = vadd.f32 %v7303, %v7352
      %v7401 = vadd.f32 %v7304, %v7353
      %v7402 = vadd.f32 %v7305, %v7354
      %v7403 = vadd.f32 %v7306, %v7355
      %v7404 = vadd.f32 %v7307, %v7356
      %v7405 = vperm.slane %v6197, 1
      %v7406 = vmul.f32 %v6132, %v7405
      %v7407 = vmul.f32 %v6133, %v7405
      %v7408 = vmul.f32 %v6136, %v7405
      %v7409 = vmul.f32 %v6137, %v7405
      %v7410 = vmul.f32 %v6140, %v7405
      %v7411 = vmul.f32 %v6141, %v7405
      %v7412 = vmul.f32 %v6144, %v7405
      %v7413 = vmul.f32 %v6145, %v7405
      %v7414 = vmul.f32 %v6148, %v7405
      %v7415 = vmul.f32 %v6149, %v7405
      %v7416 = vmul.f32 %v6152, %v7405
      %v7417 = vmul.f32 %v6153, %v7405
      %v7418 = vmul.f32 %v6156, %v7405
      %v7419 = vmul.f32 %v6157, %v7405
      %v7420 = vmul.f32 %v6160, %v7405
      %v7421 = vmul.f32 %v6161, %v7405
      %v7422 = vmul.f32 %v6164, %v7405
      %v7423 = vmul.f32 %v6165, %v7405
      %v7424 = vmul.f32 %v6168, %v7405
      %v7425 = vmul.f32 %v6169, %v7405
      %v7426 = vmul.f32 %v6172, %v7405
      %v7427 = vmul.f32 %v6173, %v7405
      %v7428 = vmul.f32 %v6176, %v7405
      %v7429 = vmul.f32 %v6177, %v7405
      %v7430 = vmul.f32 %v6180, %v7405
      %v7431 = vmul.f32 %v6181, %v7405
      %v7432 = vmul.f32 %v6184, %v7405
      %v7433 = vmul.f32 %v6185, %v7405
      %v7434 = vmul.f32 %v6188, %v7405
      %v7435 = vmul.f32 %v6189, %v7405
      %v7436 = vmul.f32 %v6192, %v7405
      %v7437 = vmul.f32 %v6193, %v7405
      %v7470 = vrot.slane %v7406, 1
      %v7471 = vrot.slane %v7407, 1
      %v7472 = vsel %vm1881, %v7470, %v7471
      %v7473 = vrot.slane %v7408, 1
      %v7474 = vrot.slane %v7409, 1
      %v7475 = vsel %vm1881, %v7473, %v7474
      %v7476 = vrot.slane %v7410, 1
      %v7477 = vrot.slane %v7411, 1
      %v7478 = vsel %vm1881, %v7476, %v7477
      %v7479 = vrot.slane %v7412, 1
      %v7480 = vrot.slane %v7413, 1
      %v7481 = vsel %vm1881, %v7479, %v7480
      %v7482 = vrot.slane %v7414, 1
      %v7483 = vrot.slane %v7415, 1
      %v7484 = vsel %vm1881, %v7482, %v7483
      %v7485 = vrot.slane %v7416, 1
      %v7486 = vrot.slane %v7417, 1
      %v7487 = vsel %vm1881, %v7485, %v7486
      %v7488 = vrot.slane %v7418, 1
      %v7489 = vrot.slane %v7419, 1
      %v7490 = vsel %vm1881, %v7488, %v7489
      %v7491 = vrot.slane %v7420, 1
      %v7492 = vrot.slane %v7421, 1
      %v7493 = vsel %vm1881, %v7491, %v7492
      %v7494 = vrot.slane %v7422, 1
      %v7495 = vrot.slane %v7423, 1
      %v7496 = vsel %vm1881, %v7494, %v7495
      %v7497 = vrot.slane %v7424, 1
      %v7498 = vrot.slane %v7425, 1
      %v7499 = vsel %vm1881, %v7497, %v7498
      %v7500 = vrot.slane %v7426, 1
      %v7501 = vrot.slane %v7427, 1
      %v7502 = vsel %vm1881, %v7500, %v7501
      %v7503 = vrot.slane %v7428, 1
      %v7504 = vrot.slane %v7429, 1
      %v7505 = vsel %vm1881, %v7503, %v7504
      %v7506 = vrot.slane %v7430, 1
      %v7507 = vrot.slane %v7431, 1
      %v7508 = vsel %vm1881, %v7506, %v7507
      %v7509 = vrot.slane %v7432, 1
      %v7510 = vrot.slane %v7433, 1
      %v7511 = vsel %vm1881, %v7509, %v7510
      %v7512 = vrot.slane %v7434, 1
      %v7513 = vrot.slane %v7435, 1
      %v7514 = vsel %vm1881, %v7512, %v7513
      %v7515 = vrot.slane %v7436, 1
      %v7516 = vrot.slane %v7437, 1
      %v7517 = vsel %vm1881, %v7515, %v7516
      %v7566 = vadd.f32 %v7357, %v7470
      %v7567 = vadd.f32 %v7358, %v7472
      %v7568 = vadd.f32 %v7359, %v7471
      %v7569 = vadd.f32 %v7360, %v7473
      %v7570 = vadd.f32 %v7361, %v7475
      %v7571 = vadd.f32 %v7362, %v7474
      %v7572 = vadd.f32 %v7363, %v7476
      %v7573 = vadd.f32 %v7364, %v7478
      %v7574 = vadd.f32 %v7365, %v7477
      %v7575 = vadd.f32 %v7366, %v7479
      %v7576 = vadd.f32 %v7367, %v7481
      %v7577 = vadd.f32 %v7368, %v7480
      %v7578 = vadd.f32 %v7369, %v7482
      %v7579 = vadd.f32 %v7370, %v7484
      %v7580 = vadd.f32 %v7371, %v7483
      %v7581 = vadd.f32 %v7372, %v7485
      %v7582 = vadd.f32 %v7373, %v7487
      %v7583 = vadd.f32 %v7374, %v7486
      %v7584 = vadd.f32 %v7375, %v7488
      %v7585 = vadd.f32 %v7376, %v7490
      %v7586 = vadd.f32 %v7377, %v7489
      %v7587 = vadd.f32 %v7378, %v7491
      %v7588 = vadd.f32 %v7379, %v7493
      %v7589 = vadd.f32 %v7380, %v7492
      %v7590 = vadd.f32 %v7381, %v7494
      %v7591 = vadd.f32 %v7382, %v7496
      %v7592 = vadd.f32 %v7383, %v7495
      %v7593 = vadd.f32 %v7384, %v7497
      %v7594 = vadd.f32 %v7385, %v7499
      %v7595 = vadd.f32 %v7386, %v7498
      %v7596 = vadd.f32 %v7387, %v7500
      %v7597 = vadd.f32 %v7388, %v7502
      %v7598 = vadd.f32 %v7389, %v7501
      %v7599 = vadd.f32 %v7390, %v7503
      %v7600 = vadd.f32 %v7391, %v7505
      %v7601 = vadd.f32 %v7392, %v7504
      %v7602 = vadd.f32 %v7393, %v7506
      %v7603 = vadd.f32 %v7394, %v7508
      %v7604 = vadd.f32 %v7395, %v7507
      %v7605 = vadd.f32 %v7396, %v7509
      %v7606 = vadd.f32 %v7397, %v7511
      %v7607 = vadd.f32 %v7398, %v7510
      %v7608 = vadd.f32 %v7399, %v7512
      %v7609 = vadd.f32 %v7400, %v7514
      %v7610 = vadd.f32 %v7401, %v7513
      %v7611 = vadd.f32 %v7402, %v7515
      %v7612 = vadd.f32 %v7403, %v7517
      %v7613 = vadd.f32 %v7404, %v7516
      %v7614 = vperm.slane %v6197, 2
      %v7615 = vmul.f32 %v6132, %v7614
      %v7616 = vmul.f32 %v6133, %v7614
      %v7617 = vmul.f32 %v6134, %v7614
      %v7618 = vmul.f32 %v6136, %v7614
      %v7619 = vmul.f32 %v6137, %v7614
      %v7620 = vmul.f32 %v6138, %v7614
      %v7621 = vmul.f32 %v6140, %v7614
      %v7622 = vmul.f32 %v6141, %v7614
      %v7623 = vmul.f32 %v6142, %v7614
      %v7624 = vmul.f32 %v6144, %v7614
      %v7625 = vmul.f32 %v6145, %v7614
      %v7626 = vmul.f32 %v6146, %v7614
      %v7627 = vmul.f32 %v6148, %v7614
      %v7628 = vmul.f32 %v6149, %v7614
      %v7629 = vmul.f32 %v6150, %v7614
      %v7630 = vmul.f32 %v6152, %v7614
      %v7631 = vmul.f32 %v6153, %v7614
      %v7632 = vmul.f32 %v6154, %v7614
      %v7633 = vmul.f32 %v6156, %v7614
      %v7634 = vmul.f32 %v6157, %v7614
      %v7635 = vmul.f32 %v6158, %v7614
      %v7636 = vmul.f32 %v6160, %v7614
      %v7637 = vmul.f32 %v6161, %v7614
      %v7638 = vmul.f32 %v6162, %v7614
      %v7639 = vmul.f32 %v6164, %v7614
      %v7640 = vmul.f32 %v6165, %v7614
      %v7641 = vmul.f32 %v6166, %v7614
      %v7642 = vmul.f32 %v6168, %v7614
      %v7643 = vmul.f32 %v6169, %v7614
      %v7644 = vmul.f32 %v6170, %v7614
      %v7645 = vmul.f32 %v6172, %v7614
      %v7646 = vmul.f32 %v6173, %v7614
      %v7647 = vmul.f32 %v6174, %v7614
      %v7648 = vmul.f32 %v6176, %v7614
      %v7649 = vmul.f32 %v6177, %v7614
      %v7650 = vmul.f32 %v6178, %v7614
      %v7651 = vmul.f32 %v6180, %v7614
      %v7652 = vmul.f32 %v6181, %v7614
      %v7653 = vmul.f32 %v6182, %v7614
      %v7654 = vmul.f32 %v6184, %v7614
      %v7655 = vmul.f32 %v6185, %v7614
      %v7656 = vmul.f32 %v6186, %v7614
      %v7657 = vmul.f32 %v6188, %v7614
      %v7658 = vmul.f32 %v6189, %v7614
      %v7659 = vmul.f32 %v6190, %v7614
      %v7660 = vmul.f32 %v6192, %v7614
      %v7661 = vmul.f32 %v6193, %v7614
      %v7662 = vmul.f32 %v6194, %v7614
      %v7711 = vrot.slane %v7615, 2
      %v7712 = vrot.slane %v7616, 2
      %v7713 = vsel %vm2123, %v7711, %v7712
      %v7714 = vrot.slane %v7617, 2
      %v7715 = vsel %vm2123, %v7712, %v7714
      %v7716 = vrot.slane %v7618, 2
      %v7717 = vrot.slane %v7619, 2
      %v7718 = vsel %vm2123, %v7716, %v7717
      %v7719 = vrot.slane %v7620, 2
      %v7720 = vsel %vm2123, %v7717, %v7719
      %v7721 = vrot.slane %v7621, 2
      %v7722 = vrot.slane %v7622, 2
      %v7723 = vsel %vm2123, %v7721, %v7722
      %v7724 = vrot.slane %v7623, 2
      %v7725 = vsel %vm2123, %v7722, %v7724
      %v7726 = vrot.slane %v7624, 2
      %v7727 = vrot.slane %v7625, 2
      %v7728 = vsel %vm2123, %v7726, %v7727
      %v7729 = vrot.slane %v7626, 2
      %v7730 = vsel %vm2123, %v7727, %v7729
      %v7731 = vrot.slane %v7627, 2
      %v7732 = vrot.slane %v7628, 2
      %v7733 = vsel %vm2123, %v7731, %v7732
      %v7734 = vrot.slane %v7629, 2
      %v7735 = vsel %vm2123, %v7732, %v7734
      %v7736 = vrot.slane %v7630, 2
      %v7737 = vrot.slane %v7631, 2
      %v7738 = vsel %vm2123, %v7736, %v7737
      %v7739 = vrot.slane %v7632, 2
      %v7740 = vsel %vm2123, %v7737, %v7739
      %v7741 = vrot.slane %v7633, 2
      %v7742 = vrot.slane %v7634, 2
      %v7743 = vsel %vm2123, %v7741, %v7742
      %v7744 = vrot.slane %v7635, 2
      %v7745 = vsel %vm2123, %v7742, %v7744
      %v7746 = vrot.slane %v7636, 2
      %v7747 = vrot.slane %v7637, 2
      %v7748 = vsel %vm2123, %v7746, %v7747
      %v7749 = vrot.slane %v7638, 2
      %v7750 = vsel %vm2123, %v7747, %v7749
      %v7751 = vrot.slane %v7639, 2
      %v7752 = vrot.slane %v7640, 2
      %v7753 = vsel %vm2123, %v7751, %v7752
      %v7754 = vrot.slane %v7641, 2
      %v7755 = vsel %vm2123, %v7752, %v7754
      %v7756 = vrot.slane %v7642, 2
      %v7757 = vrot.slane %v7643, 2
      %v7758 = vsel %vm2123, %v7756, %v7757
      %v7759 = vrot.slane %v7644, 2
      %v7760 = vsel %vm2123, %v7757, %v7759
      %v7761 = vrot.slane %v7645, 2
      %v7762 = vrot.slane %v7646, 2
      %v7763 = vsel %vm2123, %v7761, %v7762
      %v7764 = vrot.slane %v7647, 2
      %v7765 = vsel %vm2123, %v7762, %v7764
      %v7766 = vrot.slane %v7648, 2
      %v7767 = vrot.slane %v7649, 2
      %v7768 = vsel %vm2123, %v7766, %v7767
      %v7769 = vrot.slane %v7650, 2
      %v7770 = vsel %vm2123, %v7767, %v7769
      %v7771 = vrot.slane %v7651, 2
      %v7772 = vrot.slane %v7652, 2
      %v7773 = vsel %vm2123, %v7771, %v7772
      %v7774 = vrot.slane %v7653, 2
      %v7775 = vsel %vm2123, %v7772, %v7774
      %v7776 = vrot.slane %v7654, 2
      %v7777 = vrot.slane %v7655, 2
      %v7778 = vsel %vm2123, %v7776, %v7777
      %v7779 = vrot.slane %v7656, 2
      %v7780 = vsel %vm2123, %v7777, %v7779
      %v7781 = vrot.slane %v7657, 2
      %v7782 = vrot.slane %v7658, 2
      %v7783 = vsel %vm2123, %v7781, %v7782
      %v7784 = vrot.slane %v7659, 2
      %v7785 = vsel %vm2123, %v7782, %v7784
      %v7786 = vrot.slane %v7660, 2
      %v7787 = vrot.slane %v7661, 2
      %v7788 = vsel %vm2123, %v7786, %v7787
      %v7789 = vrot.slane %v7662, 2
      %v7790 = vsel %vm2123, %v7787, %v7789
      %v7839 = vadd.f32 %v7566, %v7711
      %v7840 = vadd.f32 %v7567, %v7713
      %v7841 = vadd.f32 %v7568, %v7715
      %v7842 = vadd.f32 %v7569, %v7716
      %v7843 = vadd.f32 %v7570, %v7718
      %v7844 = vadd.f32 %v7571, %v7720
      %v7845 = vadd.f32 %v7572, %v7721
      %v7846 = vadd.f32 %v7573, %v7723
      %v7847 = vadd.f32 %v7574, %v7725
      %v7848 = vadd.f32 %v7575, %v7726
      %v7849 = vadd.f32 %v7576, %v7728
      %v7850 = vadd.f32 %v7577, %v7730
      %v7851 = vadd.f32 %v7578, %v7731
      %v7852 = vadd.f32 %v7579, %v7733
      %v7853 = vadd.f32 %v7580, %v7735
      %v7854 = vadd.f32 %v7581, %v7736
      %v7855 = vadd.f32 %v7582, %v7738
      %v7856 = vadd.f32 %v7583, %v7740
      %v7857 = vadd.f32 %v7584, %v7741
      %v7858 = vadd.f32 %v7585, %v7743
      %v7859 = vadd.f32 %v7586, %v7745
      %v7860 = vadd.f32 %v7587, %v7746
      %v7861 = vadd.f32 %v7588, %v7748
      %v7862 = vadd.f32 %v7589, %v7750
      %v7863 = vadd.f32 %v7590, %v7751
      %v7864 = vadd.f32 %v7591, %v7753
      %v7865 = vadd.f32 %v7592, %v7755
      %v7866 = vadd.f32 %v7593, %v7756
      %v7867 = vadd.f32 %v7594, %v7758
      %v7868 = vadd.f32 %v7595, %v7760
      %v7869 = vadd.f32 %v7596, %v7761
      %v7870 = vadd.f32 %v7597, %v7763
      %v7871 = vadd.f32 %v7598, %v7765
      %v7872 = vadd.f32 %v7599, %v7766
      %v7873 = vadd.f32 %v7600, %v7768
      %v7874 = vadd.f32 %v7601, %v7770
      %v7875 = vadd.f32 %v7602, %v7771
      %v7876 = vadd.f32 %v7603, %v7773
      %v7877 = vadd.f32 %v7604, %v7775
      %v7878 = vadd.f32 %v7605, %v7776
      %v7879 = vadd.f32 %v7606, %v7778
      %v7880 = vadd.f32 %v7607, %v7780
      %v7881 = vadd.f32 %v7608, %v7781
      %v7882 = vadd.f32 %v7609, %v7783
      %v7883 = vadd.f32 %v7610, %v7785
      %v7884 = vadd.f32 %v7611, %v7786
      %v7885 = vadd.f32 %v7612, %v7788
      %v7886 = vadd.f32 %v7613, %v7790
      %v7935 = vrot.slane %v7839, 7
      %v7936 = vrot.slane %v7840, 7
      %v7937 = vsel %vm3506, %v7935, %v7936
      %v7938 = vrot.slane %v7841, 7
      %v7939 = vsel %vm3506, %v7936, %v7938
      %v7940 = vrot.slane %v7842, 7
      %v7941 = vrot.slane %v7843, 7
      %v7942 = vsel %vm3506, %v7940, %v7941
      %v7943 = vrot.slane %v7844, 7
      %v7944 = vsel %vm3506, %v7941, %v7943
      %v7945 = vrot.slane %v7845, 7
      %v7946 = vrot.slane %v7846, 7
      %v7947 = vsel %vm3506, %v7945, %v7946
      %v7948 = vrot.slane %v7847, 7
      %v7949 = vsel %vm3506, %v7946, %v7948
      %v7950 = vrot.slane %v7848, 7
      %v7951 = vrot.slane %v7849, 7
      %v7952 = vsel %vm3506, %v7950, %v7951
      %v7953 = vrot.slane %v7850, 7
      %v7954 = vsel %vm3506, %v7951, %v7953
      %v7955 = vrot.slane %v7851, 7
      %v7956 = vrot.slane %v7852, 7
      %v7957 = vsel %vm3506, %v7955, %v7956
      %v7958 = vrot.slane %v7853, 7
      %v7959 = vsel %vm3506, %v7956, %v7958
      %v7960 = vrot.slane %v7854, 7
      %v7961 = vrot.slane %v7855, 7
      %v7962 = vsel %vm3506, %v7960, %v7961
      %v7963 = vrot.slane %v7856, 7
      %v7964 = vsel %vm3506, %v7961, %v7963
      %v7965 = vrot.slane %v7857, 7
      %v7966 = vrot.slane %v7858, 7
      %v7967 = vsel %vm3506, %v7965, %v7966
      %v7968 = vrot.slane %v7859, 7
      %v7969 = vsel %vm3506, %v7966, %v7968
      %v7970 = vrot.slane %v7860, 7
      %v7971 = vrot.slane %v7861, 7
      %v7972 = vsel %vm3506, %v7970, %v7971
      %v7973 = vrot.slane %v7862, 7
      %v7974 = vsel %vm3506, %v7971, %v7973
      %v7975 = vrot.slane %v7863, 7
      %v7976 = vrot.slane %v7864, 7
      %v7977 = vsel %vm3506, %v7975, %v7976
      %v7978 = vrot.slane %v7865, 7
      %v7979 = vsel %vm3506, %v7976, %v7978
      %v7980 = vrot.slane %v7866, 7
      %v7981 = vrot.slane %v7867, 7
      %v7982 = vsel %vm3506, %v7980, %v7981
      %v7983 = vrot.slane %v7868, 7
      %v7984 = vsel %vm3506, %v7981, %v7983
      %v7985 = vrot.slane %v7869, 7
      %v7986 = vrot.slane %v7870, 7
      %v7987 = vsel %vm3506, %v7985, %v7986
      %v7988 = vrot.slane %v7871, 7
      %v7989 = vsel %vm3506, %v7986, %v7988
      %v7990 = vrot.slane %v7872, 7
      %v7991 = vrot.slane %v7873, 7
      %v7992 = vsel %vm3506, %v7990, %v7991
      %v7993 = vrot.slane %v7874, 7
      %v7994 = vsel %vm3506, %v7991, %v7993
      %v7995 = vrot.slane %v7875, 7
      %v7996 = vrot.slane %v7876, 7
      %v7997 = vsel %vm3506, %v7995, %v7996
      %v7998 = vrot.slane %v7877, 7
      %v7999 = vsel %vm3506, %v7996, %v7998
      %v8000 = vrot.slane %v7878, 7
      %v8001 = vrot.slane %v7879, 7
      %v8002 = vsel %vm3506, %v8000, %v8001
      %v8003 = vrot.slane %v7880, 7
      %v8004 = vsel %vm3506, %v8001, %v8003
      %v8005 = vrot.slane %v7881, 7
      %v8006 = vrot.slane %v7882, 7
      %v8007 = vsel %vm3506, %v8005, %v8006
      %v8008 = vrot.slane %v7883, 7
      %v8009 = vsel %vm3506, %v8006, %v8008
      %v8010 = vrot.slane %v7884, 7
      %v8011 = vrot.slane %v7885, 7
      %v8012 = vsel %vm3506, %v8010, %v8011
      %v8013 = vrot.slane %v7886, 7
      %v8014 = vsel %vm3506, %v8011, %v8013
      %v8047 = vld [vmem:[%s25] sm:$0x1]
      %v8049 = vperm.slane %v8047, 0
      %v8051 = vmul.f32 %v7937, %v8049
      %v8052 = vmul.f32 %v7939, %v8049
      %v8053 = vmul.f32 %v7942, %v8049
      %v8054 = vmul.f32 %v7944, %v8049
      %v8055 = vmul.f32 %v7947, %v8049
      %v8056 = vmul.f32 %v7949, %v8049
      %v8057 = vmul.f32 %v7952, %v8049
      %v8058 = vmul.f32 %v7954, %v8049
      %v8059 = vmul.f32 %v7957, %v8049
      %v8060 = vmul.f32 %v7959, %v8049
      %v8061 = vmul.f32 %v7962, %v8049
      %v8062 = vmul.f32 %v7964, %v8049
      %v8063 = vmul.f32 %v7967, %v8049
      %v8064 = vmul.f32 %v7969, %v8049
      %v8065 = vmul.f32 %v7972, %v8049
      %v8066 = vmul.f32 %v7974, %v8049
      %v8067 = vmul.f32 %v7977, %v8049
      %v8068 = vmul.f32 %v7979, %v8049
      %v8069 = vmul.f32 %v7982, %v8049
      %v8070 = vmul.f32 %v7984, %v8049
      %v8071 = vmul.f32 %v7987, %v8049
      %v8072 = vmul.f32 %v7989, %v8049
      %v8073 = vmul.f32 %v7992, %v8049
      %v8074 = vmul.f32 %v7994, %v8049
      %v8075 = vmul.f32 %v7997, %v8049
      %v8076 = vmul.f32 %v7999, %v8049
      %v8077 = vmul.f32 %v8002, %v8049
      %v8078 = vmul.f32 %v8004, %v8049
      %v8079 = vmul.f32 %v8007, %v8049
      %v8080 = vmul.f32 %v8009, %v8049
      %v8081 = vmul.f32 %v8012, %v8049
      %v8082 = vmul.f32 %v8014, %v8049
      %v8083 = vld [vmem:[%s27] sm:$0x1]
      %v8085 = vperm.slane %v8083, 0
      %v8087 = vadd.f32 %v8051, %v8085
      %v8088 = vadd.f32 %v8052, %v8085
      %v8089 = vadd.f32 %v8053, %v8085
      %v8090 = vadd.f32 %v8054, %v8085
      %v8091 = vadd.f32 %v8055, %v8085
      %v8092 = vadd.f32 %v8056, %v8085
      %v8093 = vadd.f32 %v8057, %v8085
      %v8094 = vadd.f32 %v8058, %v8085
      %v8095 = vadd.f32 %v8059, %v8085
      %v8096 = vadd.f32 %v8060, %v8085
      %v8097 = vadd.f32 %v8061, %v8085
      %v8098 = vadd.f32 %v8062, %v8085
      %v8099 = vadd.f32 %v8063, %v8085
      %v8100 = vadd.f32 %v8064, %v8085
      %v8101 = vadd.f32 %v8065, %v8085
      %v8102 = vadd.f32 %v8066, %v8085
      %v8103 = vadd.f32 %v8067, %v8085
      %v8104 = vadd.f32 %v8068, %v8085
      %v8105 = vadd.f32 %v8069, %v8085
      %v8106 = vadd.f32 %v8070, %v8085
      %v8107 = vadd.f32 %v8071, %v8085
      %v8108 = vadd.f32 %v8072, %v8085
      %v8109 = vadd.f32 %v8073, %v8085
      %v8110 = vadd.f32 %v8074, %v8085
      %v8111 = vadd.f32 %v8075, %v8085
      %v8112 = vadd.f32 %v8076, %v8085
      %v8113 = vadd.f32 %v8077, %v8085
      %v8114 = vadd.f32 %v8078, %v8085
      %v8115 = vadd.f32 %v8079, %v8085
      %v8116 = vadd.f32 %v8080, %v8085
      %v8117 = vadd.f32 %v8081, %v8085
      %v8118 = vadd.f32 %v8082, %v8085
      %8119 = vmatpush.msra.mxu0 %v8102
      %8120 = vmatpush.msra.mxu0 %v8101
      %8121 = vmatpush.msra.mxu0 %v8100
      %8122 = vmatpush.msra.mxu0 %v8099
      %8123 = vmatpush.msra.mxu0 %v8098
      %8124 = vmatpush.msra.mxu0 %v8097
      %8125 = vmatpush.msra.mxu0 %v8096
      %8126 = vmatpush.msra.mxu0 %v8095
      %8127 = vmatpush.msra.mxu0 %v8094
      %8128 = vmatpush.msra.mxu0 %v8093
      %8129 = vmatpush.msra.mxu0 %v8092
      %8130 = vmatpush.msra.mxu0 %v8091
      %8131 = vmatpush.msra.mxu0 %v8090
      %8132 = vmatpush.msra.mxu0 %v8089
      %8133 = vmatpush.msra.mxu0 %v8088
      %8134 = vmatpush.msra.mxu0 %v8087
      %8135 = vmatmul.f32.gmra.mxu0 %v1200
      %v8136 = vpop.f32.mrf.mxu0
      %v8137 = vadd.f32 0.0, %v8136
      %8138 = vmatmul.f32.gmra.mxu0 %v1202
      %v8139 = vpop.f32.mrf.mxu0
      %v8140 = vadd.f32 0.0, %v8139
      %8141 = vmatmul.f32.gmra.mxu0 %v1204
      %v8142 = vpop.f32.mrf.mxu0
      %v8143 = vadd.f32 0.0, %v8142
      %8144 = vmatmul.f32.gmra.mxu0 %v1206
      %v8145 = vpop.f32.mrf.mxu0
      %v8146 = vadd.f32 0.0, %v8145
      %8147 = vmatmul.f32.gmra.mxu0 %v1208
      %v8148 = vpop.f32.mrf.mxu0
      %v8149 = vadd.f32 0.0, %v8148
      %8150 = vmatmul.f32.gmra.mxu0 %v1210
      %v8151 = vpop.f32.mrf.mxu0
      %v8152 = vadd.f32 0.0, %v8151
      %8153 = vmatmul.f32.gmra.mxu0 %v1212
      %v8154 = vpop.f32.mrf.mxu0
      %v8155 = vadd.f32 0.0, %v8154
      %8156 = vmatmul.f32.gmra.mxu0 %v1214
      %v8157 = vpop.f32.mrf.mxu0
      %v8158 = vadd.f32 0.0, %v8157
      %8159 = vdwg.mxu0
      %8160 = vmatpush.msra.mxu0 %v8118
      %8161 = vmatpush.msra.mxu0 %v8117
      %8162 = vmatpush.msra.mxu0 %v8116
      %8163 = vmatpush.msra.mxu0 %v8115
      %8164 = vmatpush.msra.mxu0 %v8114
      %8165 = vmatpush.msra.mxu0 %v8113
      %8166 = vmatpush.msra.mxu0 %v8112
      %8167 = vmatpush.msra.mxu0 %v8111
      %8168 = vmatpush.msra.mxu0 %v8110
      %8169 = vmatpush.msra.mxu0 %v8109
      %8170 = vmatpush.msra.mxu0 %v8108
      %8171 = vmatpush.msra.mxu0 %v8107
      %8172 = vmatpush.msra.mxu0 %v8106
      %8173 = vmatpush.msra.mxu0 %v8105
      %8174 = vmatpush.msra.mxu0 %v8104
      %8175 = vmatpush.msra.mxu0 %v8103
      %8176 = vmatmul.f32.gmra.mxu0 %v1201
      %v8177 = vpop.f32.mrf.mxu0
      %v8178 = vadd.f32 %v8137, %v8177
      %8179 = vmatmul.f32.gmra.mxu0 %v1203
      %v8180 = vpop.f32.mrf.mxu0
      %v8181 = vadd.f32 %v8140, %v8180
      %8182 = vmatmul.f32.gmra.mxu0 %v1205
      %v8183 = vpop.f32.mrf.mxu0
      %v8184 = vadd.f32 %v8143, %v8183
      %8185 = vmatmul.f32.gmra.mxu0 %v1207
      %v8186 = vpop.f32.mrf.mxu0
      %v8187 = vadd.f32 %v8146, %v8186
      %8188 = vmatmul.f32.gmra.mxu0 %v1209
      %v8189 = vpop.f32.mrf.mxu0
      %v8190 = vadd.f32 %v8149, %v8189
      %8191 = vmatmul.f32.gmra.mxu0 %v1211
      %v8192 = vpop.f32.mrf.mxu0
      %v8193 = vadd.f32 %v8152, %v8192
      %8194 = vmatmul.f32.gmra.mxu0 %v1213
      %v8195 = vpop.f32.mrf.mxu0
      %v8196 = vadd.f32 %v8155, %v8195
      %8197 = vmatmul.f32.gmra.mxu0 %v1215
      %v8198 = vpop.f32.mrf.mxu0
      %v8199 = vadd.f32 %v8158, %v8198
      %8200 = vdwg.mxu0
      %vm8201 = vcmask 523264
      %v8203 = vsel %vm8201, 0.015625, 0
      %8205 = vmatpush.msra.mxu0 0.0
      %8206 = vmatpush.msra.mxu0 0.0
      %8207 = vmatpush.msra.mxu0 0.0
      %8208 = vmatpush.msra.mxu0 0.0
      %8209 = vmatpush.msra.mxu0 0.0
      %8210 = vmatpush.msra.mxu0 0.0
      %8211 = vmatpush.msra.mxu0 0.0
      %8212 = vmatpush.msra.mxu0 0.0
      %8213 = vmatpush.msra.mxu0 %v5960
      %8214 = vmatpush.msra.mxu0 %v5957
      %8215 = vmatpush.msra.mxu0 %v5954
      %8216 = vmatpush.msra.mxu0 %v5951
      %8217 = vmatpush.msra.mxu0 %v5948
      %8218 = vmatpush.msra.mxu0 %v5945
      %8219 = vmatpush.msra.mxu0 %v5942
      %8220 = vmatpush.msra.mxu0 %v5939
      %8221 = vmatmul.f32.gmra.mxu0 %v8203
      %v8222 = vpop.f32.mrf.mxu0
      %v8223 = vadd.f32 0.0, %v8222
      %8224 = vdwg.mxu0
      %8225 = vmatpush.msra.mxu0 0.0
      %8226 = vmatpush.msra.mxu0 0.0
      %8227 = vmatpush.msra.mxu0 0.0
      %8228 = vmatpush.msra.mxu0 0.0
      %8229 = vmatpush.msra.mxu0 0.0
      %8230 = vmatpush.msra.mxu0 0.0
      %8231 = vmatpush.msra.mxu0 0.0
      %8232 = vmatpush.msra.mxu0 0.0
      %8233 = vmatpush.msra.mxu0 %v8199
      %8234 = vmatpush.msra.mxu0 %v8196
      %8235 = vmatpush.msra.mxu0 %v8193
      %8236 = vmatpush.msra.mxu0 %v8190
      %8237 = vmatpush.msra.mxu0 %v8187
      %8238 = vmatpush.msra.mxu0 %v8184
      %8239 = vmatpush.msra.mxu0 %v8181
      %8240 = vmatpush.msra.mxu0 %v8178
      %8241 = vmatmul.f32.gmra.mxu0 %v8203
      %v8242 = vpop.f32.mrf.mxu0
      %v8243 = vadd.f32 0.0, %v8242
      %8244 = vdwg.mxu0
      %v8245 = vld [vmem:[%s29] sm:$0xff]
      %v8246 = vld [vmem:[%s31] sm:$0xff]
      %v8248 = vsel %vm1217, %v8243, 0
      %8250 = vmatpush.msra.mxu0 0.0
      %8251 = vmatpush.msra.mxu0 0.0
      %8252 = vmatpush.msra.mxu0 0.0
      %8253 = vmatpush.msra.mxu0 0.0
      %8254 = vmatpush.msra.mxu0 0.0
      %8255 = vmatpush.msra.mxu0 0.0
      %8256 = vmatpush.msra.mxu0 0.0
      %8257 = vmatpush.msra.mxu0 0.0
      %8258 = vmatpush.msra.mxu0 0.0
      %8259 = vmatpush.msra.mxu0 0.0
      %8260 = vmatpush.msra.mxu0 0.0
      %8261 = vmatpush.msra.mxu0 0.0
      %8262 = vmatpush.msra.mxu0 0.0
      %8263 = vmatpush.msra.mxu0 0.0
      %8264 = vmatpush.msra.mxu0 0.0
      %8265 = vmatpush.msra.mxu0 %v8246
      %8266 = vmatmul.f32.gmra.mxu0 %v8248
      %v8267 = vpop.f32.mrf.mxu0
      %v8268 = vadd.f32 0.0, %v8267
      %8269 = vdwg.mxu0
      %v8271 = vsel %vm1217, %v8223, 0
      %8273 = vmatpush.msra.mxu0 0.0
      %8274 = vmatpush.msra.mxu0 0.0
      %8275 = vmatpush.msra.mxu0 0.0
      %8276 = vmatpush.msra.mxu0 0.0
      %8277 = vmatpush.msra.mxu0 0.0
      %8278 = vmatpush.msra.mxu0 0.0
      %8279 = vmatpush.msra.mxu0 0.0
      %8280 = vmatpush.msra.mxu0 0.0
      %8281 = vmatpush.msra.mxu0 0.0
      %8282 = vmatpush.msra.mxu0 0.0
      %8283 = vmatpush.msra.mxu0 0.0
      %8284 = vmatpush.msra.mxu0 0.0
      %8285 = vmatpush.msra.mxu0 0.0
      %8286 = vmatpush.msra.mxu0 0.0
      %8287 = vmatpush.msra.mxu0 0.0
      %8288 = vmatpush.msra.mxu0 %v8245
      %8289 = vmatmul.f32.gmra.mxu0 %v8271
      %v8290 = vpop.f32.mrf.mxu0
      %v8291 = vadd.f32 %v8268, %v8290
      %8292 = vdwg.mxu0
      %v8293 = vld [vmem:[%s33] sm:$0x1]
      %v8294 = vadd.f32 %v8291, %v8293
      %v8295 = vmax.f32 %v8294, 0.0
      %v8296 = vld [vmem:[%s35] sm:$0xf]
      %v8297 = vld [vmem:[%s37] sm:$0x1]
      %vm8298 = vcmask 31744
      %v8300 = vsel %vm8298, %v8295, 0
      %vm8302 = vcmask 1043456
      %v8304 = vsel %vm8302, %v8296, 0
      %8306 = vmatpush.msra.mxu0 0.0
      %8307 = vmatpush.msra.mxu0 0.0
      %8308 = vmatpush.msra.mxu0 0.0
      %8309 = vmatpush.msra.mxu0 0.0
      %8310 = vmatpush.msra.mxu0 0.0
      %8311 = vmatpush.msra.mxu0 0.0
      %8312 = vmatpush.msra.mxu0 0.0
      %8313 = vmatpush.msra.mxu0 0.0
      %8314 = vmatpush.msra.mxu0 0.0
      %8315 = vmatpush.msra.mxu0 0.0
      %8316 = vmatpush.msra.mxu0 0.0
      %8317 = vmatpush.msra.mxu0 0.0
      %8318 = vmatpush.msra.mxu0 0.0
      %8319 = vmatpush.msra.mxu0 0.0
      %8320 = vmatpush.msra.mxu0 0.0
      %8321 = vmatpush.msra.mxu0 %v8304
      %8322 = vmatmul.f32.gmra.mxu0 %v8300
      %v8323 = vpop.f32.mrf.mxu0
      %v8324 = vadd.f32 %v8297, %v8323
      %8325 = vdwg.mxu0
      %v8326 = vmax.f32 %v8324, 0.0
      %v8327 = vmin.f32 %v8326, 1.0
      %v8328 = vld [vmem:[%s39] sm:$0xf]
      %v8329 = vld [vmem:[%s41] sm:$0x1]
      %v8331 = vsel %vm8302, %v8328, 0
      %8333 = vmatpush.msra.mxu0 0.0
      %8334 = vmatpush.msra.mxu0 0.0
      %8335 = vmatpush.msra.mxu0 0.0
      %8336 = vmatpush.msra.mxu0 0.0
      %8337 = vmatpush.msra.mxu0 0.0
      %8338 = vmatpush.msra.mxu0 0.0
      %8339 = vmatpush.msra.mxu0 0.0
      %8340 = vmatpush.msra.mxu0 0.0
      %8341 = vmatpush.msra.mxu0 0.0
      %8342 = vmatpush.msra.mxu0 0.0
      %8343 = vmatpush.msra.mxu0 0.0
      %8344 = vmatpush.msra.mxu0 0.0
      %8345 = vmatpush.msra.mxu0 0.0
      %8346 = vmatpush.msra.mxu0 0.0
      %8347 = vmatpush.msra.mxu0 0.0
      %8348 = vmatpush.msra.mxu0 %v8331
      %8349 = vmatmul.f32.gmra.mxu0 %v8300
      %v8350 = vpop.f32.mrf.mxu0
      %v8351 = vadd.f32 %v8329, %v8350
      %8352 = vdwg.mxu0
      %v8353 = vmax.f32 %v8351, 0.0
      %v8354 = vmin.f32 %v8353, 1.0
      %v8355 = vperm.slane %v8327, 0
      %v8356 = vmul.f32 %v5939, %v8355
      %v8357 = vmul.f32 %v5942, %v8355
      %v8358 = vmul.f32 %v5945, %v8355
      %v8359 = vmul.f32 %v5948, %v8355
      %v8360 = vmul.f32 %v5951, %v8355
      %v8361 = vmul.f32 %v5954, %v8355
      %v8362 = vmul.f32 %v5957, %v8355
      %v8363 = vmul.f32 %v5960, %v8355
      %v8364 = vperm.slane %v8354, 0
      %v8365 = vmul.f32 %v8178, %v8364
      %v8366 = vmul.f32 %v8181, %v8364
      %v8367 = vmul.f32 %v8184, %v8364
      %v8368 = vmul.f32 %v8187, %v8364
      %v8369 = vmul.f32 %v8190, %v8364
      %v8370 = vmul.f32 %v8193, %v8364
      %v8371 = vmul.f32 %v8196, %v8364
      %v8372 = vmul.f32 %v8199, %v8364
      %v8373 = vld [vmem:[%s43] sm:$0xff]
      %v8374 = vld [vmem:[%s45] sm:$0xff]
      %v8376 = vsel %vm1217, %v8365, 0
      %v8379 = vsel %vm1217, %v8366, 0
      %v8382 = vsel %vm1217, %v8367, 0
      %v8385 = vsel %vm1217, %v8368, 0
      %v8388 = vsel %vm1217, %v8369, 0
      %v8391 = vsel %vm1217, %v8370, 0
      %v8394 = vsel %vm1217, %v8371, 0
      %v8397 = vsel %vm1217, %v8372, 0
      %8399 = vmatpush.msra.mxu0 0.0
      %8400 = vmatpush.msra.mxu0 0.0
      %8401 = vmatpush.msra.mxu0 0.0
      %8402 = vmatpush.msra.mxu0 0.0
      %8403 = vmatpush.msra.mxu0 0.0
      %8404 = vmatpush.msra.mxu0 0.0
      %8405 = vmatpush.msra.mxu0 0.0
      %8406 = vmatpush.msra.mxu0 0.0
      %8407 = vmatpush.msra.mxu0 0.0
      %8408 = vmatpush.msra.mxu0 0.0
      %8409 = vmatpush.msra.mxu0 0.0
      %8410 = vmatpush.msra.mxu0 0.0
      %8411 = vmatpush.msra.mxu0 0.0
      %8412 = vmatpush.msra.mxu0 0.0
      %8413 = vmatpush.msra.mxu0 0.0
      %8414 = vmatpush.msra.mxu0 %v8374
      %8415 = vmatmul.f32.gmra.mxu0 %v8376
      %v8416 = vpop.f32.mrf.mxu0
      %v8417 = vadd.f32 0.0, %v8416
      %8418 = vmatmul.f32.gmra.mxu0 %v8379
      %v8419 = vpop.f32.mrf.mxu0
      %v8420 = vadd.f32 0.0, %v8419
      %8421 = vmatmul.f32.gmra.mxu0 %v8382
      %v8422 = vpop.f32.mrf.mxu0
      %v8423 = vadd.f32 0.0, %v8422
      %8424 = vmatmul.f32.gmra.mxu0 %v8385
      %v8425 = vpop.f32.mrf.mxu0
      %v8426 = vadd.f32 0.0, %v8425
      %8427 = vmatmul.f32.gmra.mxu0 %v8388
      %v8428 = vpop.f32.mrf.mxu0
      %v8429 = vadd.f32 0.0, %v8428
      %8430 = vmatmul.f32.gmra.mxu0 %v8391
      %v8431 = vpop.f32.mrf.mxu0
      %v8432 = vadd.f32 0.0, %v8431
      %8433 = vmatmul.f32.gmra.mxu0 %v8394
      %v8434 = vpop.f32.mrf.mxu0
      %v8435 = vadd.f32 0.0, %v8434
      %8436 = vmatmul.f32.gmra.mxu0 %v8397
      %v8437 = vpop.f32.mrf.mxu0
      %v8438 = vadd.f32 0.0, %v8437
      %8439 = vdwg.mxu0
      %v8441 = vsel %vm1217, %v8356, 0
      %v8444 = vsel %vm1217, %v8357, 0
      %v8447 = vsel %vm1217, %v8358, 0
      %v8450 = vsel %vm1217, %v8359, 0
      %v8453 = vsel %vm1217, %v8360, 0
      %v8456 = vsel %vm1217, %v8361, 0
      %v8459 = vsel %vm1217, %v8362, 0
      %v8462 = vsel %vm1217, %v8363, 0
      %8464 = vmatpush.msra.mxu0 0.0
      %8465 = vmatpush.msra.mxu0 0.0
      %8466 = vmatpush.msra.mxu0 0.0
      %8467 = vmatpush.msra.mxu0 0.0
      %8468 = vmatpush.msra.mxu0 0.0
      %8469 = vmatpush.msra.mxu0 0.0
      %8470 = vmatpush.msra.mxu0 0.0
      %8471 = vmatpush.msra.mxu0 0.0
      %8472 = vmatpush.msra.mxu0 0.0
      %8473 = vmatpush.msra.mxu0 0.0
      %8474 = vmatpush.msra.mxu0 0.0
      %8475 = vmatpush.msra.mxu0 0.0
      %8476 = vmatpush.msra.mxu0 0.0
      %8477 = vmatpush.msra.mxu0 0.0
      %8478 = vmatpush.msra.mxu0 0.0
      %8479 = vmatpush.msra.mxu0 %v8373
      %8480 = vmatmul.f32.gmra.mxu0 %v8441
      %v8481 = vpop.f32.mrf.mxu0
      %v8482 = vadd.f32 %v8417, %v8481
      %8483 = vmatmul.f32.gmra.mxu0 %v8444
      %v8484 = vpop.f32.mrf.mxu0
      %v8485 = vadd.f32 %v8420, %v8484
      %8486 = vmatmul.f32.gmra.mxu0 %v8447
      %v8487 = vpop.f32.mrf.mxu0
      %v8488 = vadd.f32 %v8423, %v8487
      %8489 = vmatmul.f32.gmra.mxu0 %v8450
      %v8490 = vpop.f32.mrf.mxu0
      %v8491 = vadd.f32 %v8426, %v8490
      %8492 = vmatmul.f32.gmra.mxu0 %v8453
      %v8493 = vpop.f32.mrf.mxu0
      %v8494 = vadd.f32 %v8429, %v8493
      %8495 = vmatmul.f32.gmra.mxu0 %v8456
      %v8496 = vpop.f32.mrf.mxu0
      %v8497 = vadd.f32 %v8432, %v8496
      %8498 = vmatmul.f32.gmra.mxu0 %v8459
      %v8499 = vpop.f32.mrf.mxu0
      %v8500 = vadd.f32 %v8435, %v8499
      %8501 = vmatmul.f32.gmra.mxu0 %v8462
      %v8502 = vpop.f32.mrf.mxu0
      %v8503 = vadd.f32 %v8438, %v8502
      %8504 = vdwg.mxu0
      %v8505 = vld [vmem:[%s47] sm:$0x1]
      %v8507 = vperm.slane %v8505, 0
      %v8509 = vmul.f32 %v8482, %v8507
      %v8510 = vmul.f32 %v8485, %v8507
      %v8511 = vmul.f32 %v8488, %v8507
      %v8512 = vmul.f32 %v8491, %v8507
      %v8513 = vmul.f32 %v8494, %v8507
      %v8514 = vmul.f32 %v8497, %v8507
      %v8515 = vmul.f32 %v8500, %v8507
      %v8516 = vmul.f32 %v8503, %v8507
      %v8517 = vld [vmem:[%s49] sm:$0x1]
      %v8519 = vperm.slane %v8517, 0
      %v8521 = vadd.f32 %v8509, %v8519
      %v8522 = vadd.f32 %v8510, %v8519
      %v8523 = vadd.f32 %v8511, %v8519
      %v8524 = vadd.f32 %v8512, %v8519
      %v8525 = vadd.f32 %v8513, %v8519
      %v8526 = vadd.f32 %v8514, %v8519
      %v8527 = vadd.f32 %v8515, %v8519
      %v8528 = vadd.f32 %v8516, %v8519
      %vm8529 = vcmask 48128
      %8530 = vst.msk [vmem:[#allocation6] sm:$0xff] %vm8529, 0.0
      %8531 = vst.msk [vmem:[#allocation6 + $0x8] sm:$0xff] %vm8529, 0.0
      %8532 = vst.msk [vmem:[#allocation6 + $0x10] sm:$0xff] %vm8529, 0.0
      %8533 = vst.msk [vmem:[#allocation6 + $0x18] sm:$0xff] %vm8529, 0.0
      %8534 = vst.msk [vmem:[#allocation6 + $0x20] sm:$0xff] %vm8529, 0.0
      %8535 = vst.msk [vmem:[#allocation6 + $0x28] sm:$0xff] %vm8529, 0.0
      %8536 = vst.msk [vmem:[#allocation6 + $0x30] sm:$0xff] %vm8529, 0.0
      %8537 = vst.msk [vmem:[#allocation6 + $0x38] sm:$0xff] %vm8529, 0.0
      %8538 = vst.msk [vmem:[#allocation6 + $0x40] sm:$0xff] %vm8529, 0.0
      %8539 = vst.msk [vmem:[#allocation6 + $0x48] sm:$0xff] %vm8529, 0.0
      %8540 = vst.msk [vmem:[#allocation6 + $0x50] sm:$0xff] %vm8529, 0.0
      %8541 = vst.msk [vmem:[#allocation6 + $0x58] sm:$0xff] %vm8529, 0.0
      %8542 = vst.msk [vmem:[#allocation6 + $0x60] sm:$0xff] %vm8529, 0.0
      %8543 = vst.msk [vmem:[#allocation6 + $0x68] sm:$0xff] %vm8529, 0.0
      %8544 = vst.msk [vmem:[#allocation6 + $0x70] sm:$0xff] %vm8529, 0.0
      %8545 = vst.msk [vmem:[#allocation6 + $0x78] sm:$0xff] %vm8529, 0.0
      %8546 = vst.msk [vmem:[#allocation6 + $0x80] sm:$0xff] %vm8529, 0.0
      %8547 = vst.msk [vmem:[#allocation6 + $0x88] sm:$0xff] %vm8529, 0.0
      %8548 = vst.msk [vmem:[#allocation6 + $0x90] sm:$0xff] %vm8529, 0.0
      %8549 = vst.msk [vmem:[#allocation6 + $0x98] sm:$0xff] %vm8529, 0.0
      %8550 = vst.msk [vmem:[#allocation6 + $0xa0] sm:$0xff] %vm8529, 0.0
      %8551 = vst.msk [vmem:[#allocation6 + $0xa8] sm:$0xff] %vm8529, 0.0
      %8552 = vst.msk [vmem:[#allocation6 + $0xb0] sm:$0xff] %vm8529, 0.0
      %8553 = vst.msk [vmem:[#allocation6 + $0xb8] sm:$0xff] %vm8529, 0.0
      %8554 = vst.msk [vmem:[#allocation6 + $0xc0] sm:$0xff] %vm8529, 0.0
      %8555 = vst.msk [vmem:[#allocation6 + $0xc8] sm:$0xff] %vm8529, 0.0
      %8556 = vst.msk [vmem:[#allocation6 + $0xd0] sm:$0xff] %vm8529, 0.0
      %8557 = vst.msk [vmem:[#allocation6 + $0xd8] sm:$0xff] %vm8529, 0.0
      %8558 = vst.msk [vmem:[#allocation6 + $0xe0] sm:$0xff] %vm8529, 0.0
      %8559 = vst.msk [vmem:[#allocation6 + $0xe8] sm:$0xff] %vm8529, 0.0
      %8560 = vst.msk [vmem:[#allocation6 + $0xf0] sm:$0xff] %vm8529, 0.0
      %8561 = vst.msk [vmem:[#allocation6 + $0xf8] sm:$0xff] %vm8529, 0.0
      %8562 = vst.msk [vmem:[#allocation6 + $0x100] sm:$0xff] %vm8529, 0.0
      %8563 = vst.msk [vmem:[#allocation6 + $0x108] sm:$0xff] %vm8529, 0.0
      %8564 = vst.msk [vmem:[#allocation6 + $0x110] sm:$0xff] %vm8529, 0.0
      %8565 = vst.msk [vmem:[#allocation6 + $0x118] sm:$0xff] %vm8529, 0.0
      %8566 = vst.msk [vmem:[#allocation6 + $0x120] sm:$0xff] %vm8529, 0.0
      %8567 = vst.msk [vmem:[#allocation6 + $0x128] sm:$0xff] %vm8529, 0.0
      %8568 = vst.msk [vmem:[#allocation6 + $0x130] sm:$0xff] %vm8529, 0.0
      %8569 = vst.msk [vmem:[#allocation6 + $0x138] sm:$0xff] %vm8529, 0.0
      %8570 = vst.msk [vmem:[#allocation6 + $0x140] sm:$0xff] %vm8529, 0.0
      %8571 = vst.msk [vmem:[#allocation6 + $0x148] sm:$0xff] %vm8529, 0.0
      %8572 = vst.msk [vmem:[#allocation6 + $0x150] sm:$0xff] %vm8529, 0.0
      %8573 = vst.msk [vmem:[#allocation6 + $0x158] sm:$0xff] %vm8529, 0.0
      %8574 = vst.msk [vmem:[#allocation6 + $0x160] sm:$0xff] %vm8529, 0.0
      %8575 = vst.msk [vmem:[#allocation6 + $0x168] sm:$0xff] %vm8529, 0.0
      %8576 = vst.msk [vmem:[#allocation6 + $0x170] sm:$0xff] %vm8529, 0.0
      %8577 = vst.msk [vmem:[#allocation6 + $0x178] sm:$0xff] %vm8529, 0.0
      %8578 = vst.msk [vmem:[#allocation6 + $0x180] sm:$0xff] %vm8529, 0.0
      %8579 = vst.msk [vmem:[#allocation6 + $0x188] sm:$0xff] %vm8529, 0.0
      %8580 = vst.msk [vmem:[#allocation6 + $0x190] sm:$0xff] %vm8529, 0.0
      %8581 = vst.msk [vmem:[#allocation6 + $0x198] sm:$0xff] %vm8529, 0.0
      %8582 = vst.msk [vmem:[#allocation6 + $0x1a0] sm:$0xff] %vm8529, 0.0
      %8583 = vst.msk [vmem:[#allocation6 + $0x1a8] sm:$0xff] %vm8529, 0.0
      %8584 = vst.msk [vmem:[#allocation6 + $0x1b0] sm:$0xff] %vm8529, 0.0
      %8585 = vst.msk [vmem:[#allocation6 + $0x1b8] sm:$0xff] %vm8529, 0.0
      %8586 = vst.msk [vmem:[#allocation6 + $0x1c0] sm:$0xff] %vm8529, 0.0
      %8587 = vst.msk [vmem:[#allocation6 + $0x1c8] sm:$0xff] %vm8529, 0.0
      %8588 = vst.msk [vmem:[#allocation6 + $0x1d0] sm:$0xff] %vm8529, 0.0
      %8589 = vst.msk [vmem:[#allocation6 + $0x1d8] sm:$0xff] %vm8529, 0.0
      %8590 = vst.msk [vmem:[#allocation6 + $0x1e0] sm:$0xff] %vm8529, 0.0
      %8591 = vst.msk [vmem:[#allocation6 + $0x1e8] sm:$0xff] %vm8529, 0.0
      %8592 = vst.msk [vmem:[#allocation6 + $0x1f0] sm:$0xff] %vm8529, 0.0
      %8593 = vst.msk [vmem:[#allocation6 + $0x1f8] sm:$0xff] %vm8529, 0.0
      %8594 = vst.msk [vmem:[#allocation6 + $0x200] sm:$0xff] %vm8529, 0.0
      %8595 = vst.msk [vmem:[#allocation6 + $0x208] sm:$0xff] %vm8529, 0.0
      %8596 = vst.msk [vmem:[#allocation6 + $0x210] sm:$0xff] %vm8529, 0.0
      %8597 = vst.msk [vmem:[#allocation6 + $0x218] sm:$0xff] %vm8529, 0.0
      %8598 = vst.msk [vmem:[#allocation6 + $0x220] sm:$0xff] %vm8529, 0.0
      %8599 = vst.msk [vmem:[#allocation6 + $0x228] sm:$0xff] %vm8529, 0.0
      %8600 = vst.msk [vmem:[#allocation6 + $0x230] sm:$0xff] %vm8529, 0.0
      %8601 = vst.msk [vmem:[#allocation6 + $0x238] sm:$0xff] %vm8529, 0.0
      %s8602 = scalar_lea.vmem [#allocation6], 192
      %8603 = vst.msk [vmem:[%s8602 + $0x8] sm:$0xff] %vm8529, %v8521
      %8604 = vst.msk [vmem:[%s8602 + $0x20] sm:$0xff] %vm8529, %v8522
      %8605 = vst.msk [vmem:[%s8602 + $0x38] sm:$0xff] %vm8529, %v8523
      %8606 = vst.msk [vmem:[%s8602 + $0x50] sm:$0xff] %vm8529, %v8524
      %8607 = vst.msk [vmem:[%s8602 + $0x68] sm:$0xff] %vm8529, %v8525
      %8608 = vst.msk [vmem:[%s8602 + $0x80] sm:$0xff] %vm8529, %v8526
      %8609 = vst.msk [vmem:[%s8602 + $0x98] sm:$0xff] %vm8529, %v8527
      %8610 = vst.msk [vmem:[%s8602 + $0xb0] sm:$0xff] %vm8529, %v8528
      %v8611 = vld [vmem:[#allocation6 + $0xa8] sm:$0xff]
      %v8612 = vld [vmem:[#allocation6 + $0xb0] sm:$0xff]
      %v8613 = vld [vmem:[#allocation6 + $0xb8] sm:$0xff]
      %v8614 = vld [vmem:[#allocation6 + $0xc0] sm:$0xff]
      %v8615 = vld [vmem:[#allocation6 + $0xc8] sm:$0xff]
      %v8616 = vld [vmem:[#allocation6 + $0xd0] sm:$0xff]
      %v8617 = vld [vmem:[#allocation6 + $0xd8] sm:$0xff]
      %v8618 = vld [vmem:[#allocation6 + $0xe0] sm:$0xff]
      %v8619 = vld [vmem:[#allocation6 + $0xe8] sm:$0xff]
      %v8620 = vld [vmem:[#allocation6 + $0xf0] sm:$0xff]
      %v8621 = vld [vmem:[#allocation6 + $0xf8] sm:$0xff]
      %v8622 = vld [vmem:[#allocation6 + $0x100] sm:$0xff]
      %v8623 = vld [vmem:[#allocation6 + $0x108] sm:$0xff]
      %v8624 = vld [vmem:[#allocation6 + $0x110] sm:$0xff]
      %v8625 = vld [vmem:[#allocation6 + $0x118] sm:$0xff]
      %v8626 = vld [vmem:[#allocation6 + $0x120] sm:$0xff]
      %v8627 = vld [vmem:[#allocation6 + $0x128] sm:$0xff]
      %v8628 = vld [vmem:[#allocation6 + $0x130] sm:$0xff]
      %v8629 = vld [vmem:[#allocation6 + $0x138] sm:$0xff]
      %v8630 = vld [vmem:[#allocation6 + $0x140] sm:$0xff]
      %v8631 = vld [vmem:[#allocation6 + $0x148] sm:$0xff]
      %v8632 = vld [vmem:[#allocation6 + $0x150] sm:$0xff]
      %v8633 = vld [vmem:[#allocation6 + $0x158] sm:$0xff]
      %v8634 = vld [vmem:[#allocation6 + $0x160] sm:$0xff]
      %v8635 = vld [vmem:[#allocation6 + $0x168] sm:$0xff]
      %v8636 = vld [vmem:[#allocation6 + $0x170] sm:$0xff]
      %v8637 = vld [vmem:[#allocation6 + $0x178] sm:$0xff]
      %v8638 = vld [vmem:[#allocation6 + $0x180] sm:$0xff]
      %v8639 = vld [vmem:[#allocation6 + $0x188] sm:$0xff]
      %v8640 = vld [vmem:[#allocation6 + $0x190] sm:$0xff]
      %v8641 = vld [vmem:[%s51] sm:$0x7]
      %v8642 = vld [vmem:[%s51 + $0x4] sm:$0x7]
      %v8643 = vld [vmem:[%s51 + $0x8] sm:$0x7]
      %v8644 = vperm.slane %v8641, 0
      %v8645 = vmul.f32 %v8611, %v8644
      %v8646 = vmul.f32 %v8612, %v8644
      %v8647 = vmul.f32 %v8614, %v8644
      %v8648 = vmul.f32 %v8615, %v8644
      %v8649 = vmul.f32 %v8617, %v8644
      %v8650 = vmul.f32 %v8618, %v8644
      %v8651 = vmul.f32 %v8620, %v8644
      %v8652 = vmul.f32 %v8621, %v8644
      %v8653 = vmul.f32 %v8623, %v8644
      %v8654 = vmul.f32 %v8624, %v8644
      %v8655 = vmul.f32 %v8626, %v8644
      %v8656 = vmul.f32 %v8627, %v8644
      %v8657 = vmul.f32 %v8629, %v8644
      %v8658 = vmul.f32 %v8630, %v8644
      %v8659 = vmul.f32 %v8632, %v8644
      %v8660 = vmul.f32 %v8633, %v8644
      %v8661 = vperm.slane %v8641, 1
      %v8662 = vmul.f32 %v8612, %v8661
      %v8663 = vmul.f32 %v8615, %v8661
      %v8664 = vmul.f32 %v8618, %v8661
      %v8665 = vmul.f32 %v8621, %v8661
      %v8666 = vmul.f32 %v8624, %v8661
      %v8667 = vmul.f32 %v8627, %v8661
      %v8668 = vmul.f32 %v8630, %v8661
      %v8669 = vmul.f32 %v8633, %v8661
      %v8678 = vrot.slane %v8662, 1
      %v8679 = vrot.slane %v8663, 1
      %v8680 = vrot.slane %v8664, 1
      %v8681 = vrot.slane %v8665, 1
      %v8682 = vrot.slane %v8666, 1
      %v8683 = vrot.slane %v8667, 1
      %v8684 = vrot.slane %v8668, 1
      %v8685 = vrot.slane %v8669, 1
      %v8694 = vadd.f32 %v8645, %v8678
      %v8695 = vadd.f32 %v8646, %v8678
      %v8696 = vadd.f32 %v8647, %v8679
      %v8697 = vadd.f32 %v8648, %v8679
      %v8698 = vadd.f32 %v8649, %v8680
      %v8699 = vadd.f32 %v8650, %v8680
      %v8700 = vadd.f32 %v8651, %v8681
      %v8701 = vadd.f32 %v8652, %v8681
      %v8702 = vadd.f32 %v8653, %v8682
      %v8703 = vadd.f32 %v8654, %v8682
      %v8704 = vadd.f32 %v8655, %v8683
      %v8705 = vadd.f32 %v8656, %v8683
      %v8706 = vadd.f32 %v8657, %v8684
      %v8707 = vadd.f32 %v8658, %v8684
      %v8708 = vadd.f32 %v8659, %v8685
      %v8709 = vadd.f32 %v8660, %v8685
      %v8710 = vperm.slane %v8641, 2
      %v8711 = vmul.f32 %v8612, %v8710
      %v8712 = vmul.f32 %v8613, %v8710
      %v8713 = vmul.f32 %v8615, %v8710
      %v8714 = vmul.f32 %v8616, %v8710
      %v8715 = vmul.f32 %v8618, %v8710
      %v8716 = vmul.f32 %v8619, %v8710
      %v8717 = vmul.f32 %v8621, %v8710
      %v8718 = vmul.f32 %v8622, %v8710
      %v8719 = vmul.f32 %v8624, %v8710
      %v8720 = vmul.f32 %v8625, %v8710
      %v8721 = vmul.f32 %v8627, %v8710
      %v8722 = vmul.f32 %v8628, %v8710
      %v8723 = vmul.f32 %v8630, %v8710
      %v8724 = vmul.f32 %v8631, %v8710
      %v8725 = vmul.f32 %v8633, %v8710
      %v8726 = vmul.f32 %v8634, %v8710
      %v8743 = vrot.slane %v8711, 2
      %v8744 = vrot.slane %v8712, 2
      %v8745 = vsel %vm2123, %v8743, %v8744
      %v8746 = vrot.slane %v8713, 2
      %v8747 = vrot.slane %v8714, 2
      %v8748 = vsel %vm2123, %v8746, %v8747
      %v8749 = vrot.slane %v8715, 2
      %v8750 = vrot.slane %v8716, 2
      %v8751 = vsel %vm2123, %v8749, %v8750
      %v8752 = vrot.slane %v8717, 2
      %v8753 = vrot.slane %v8718, 2
      %v8754 = vsel %vm2123, %v8752, %v8753
      %v8755 = vrot.slane %v8719, 2
      %v8756 = vrot.slane %v8720, 2
      %v8757 = vsel %vm2123, %v8755, %v8756
      %v8758 = vrot.slane %v8721, 2
      %v8759 = vrot.slane %v8722, 2
      %v8760 = vsel %vm2123, %v8758, %v8759
      %v8761 = vrot.slane %v8723, 2
      %v8762 = vrot.slane %v8724, 2
      %v8763 = vsel %vm2123, %v8761, %v8762
      %v8764 = vrot.slane %v8725, 2
      %v8765 = vrot.slane %v8726, 2
      %v8766 = vsel %vm2123, %v8764, %v8765
      %v8783 = vadd.f32 %v8694, %v8743
      %v8784 = vadd.f32 %v8695, %v8745
      %v8785 = vadd.f32 %v8696, %v8746
      %v8786 = vadd.f32 %v8697, %v8748
      %v8787 = vadd.f32 %v8698, %v8749
      %v8788 = vadd.f32 %v8699, %v8751
      %v8789 = vadd.f32 %v8700, %v8752
      %v8790 = vadd.f32 %v8701, %v8754
      %v8791 = vadd.f32 %v8702, %v8755
      %v8792 = vadd.f32 %v8703, %v8757
      %v8793 = vadd.f32 %v8704, %v8758
      %v8794 = vadd.f32 %v8705, %v8760
      %v8795 = vadd.f32 %v8706, %v8761
      %v8796 = vadd.f32 %v8707, %v8763
      %v8797 = vadd.f32 %v8708, %v8764
      %v8798 = vadd.f32 %v8709, %v8766
      %v8799 = vperm.slane %v8642, 0
      %v8800 = vmul.f32 %v8614, %v8799
      %v8801 = vmul.f32 %v8615, %v8799
      %v8802 = vmul.f32 %v8617, %v8799
      %v8803 = vmul.f32 %v8618, %v8799
      %v8804 = vmul.f32 %v8620, %v8799
      %v8805 = vmul.f32 %v8621, %v8799
      %v8806 = vmul.f32 %v8623, %v8799
      %v8807 = vmul.f32 %v8624, %v8799
      %v8808 = vmul.f32 %v8626, %v8799
      %v8809 = vmul.f32 %v8627, %v8799
      %v8810 = vmul.f32 %v8629, %v8799
      %v8811 = vmul.f32 %v8630, %v8799
      %v8812 = vmul.f32 %v8632, %v8799
      %v8813 = vmul.f32 %v8633, %v8799
      %v8814 = vmul.f32 %v8635, %v8799
      %v8815 = vmul.f32 %v8636, %v8799
      %v8816 = vadd.f32 %v8783, %v8800
      %v8817 = vadd.f32 %v8784, %v8801
      %v8818 = vadd.f32 %v8785, %v8802
      %v8819 = vadd.f32 %v8786, %v8803
      %v8820 = vadd.f32 %v8787, %v8804
      %v8821 = vadd.f32 %v8788, %v8805
      %v8822 = vadd.f32 %v8789, %v8806
      %v8823 = vadd.f32 %v8790, %v8807
      %v8824 = vadd.f32 %v8791, %v8808
      %v8825 = vadd.f32 %v8792, %v8809
      %v8826 = vadd.f32 %v8793, %v8810
      %v8827 = vadd.f32 %v8794, %v8811
      %v8828 = vadd.f32 %v8795, %v8812
      %v8829 = vadd.f32 %v8796, %v8813
      %v8830 = vadd.f32 %v8797, %v8814
      %v8831 = vadd.f32 %v8798, %v8815
      %v8832 = vperm.slane %v8642, 1
      %v8833 = vmul.f32 %v8615, %v8832
      %v8834 = vmul.f32 %v8618, %v8832
      %v8835 = vmul.f32 %v8621, %v8832
      %v8836 = vmul.f32 %v8624, %v8832
      %v8837 = vmul.f32 %v8627, %v8832
      %v8838 = vmul.f32 %v8630, %v8832
      %v8839 = vmul.f32 %v8633, %v8832
      %v8840 = vmul.f32 %v8636, %v8832
      %v8849 = vrot.slane %v8833, 1
      %v8850 = vrot.slane %v8834, 1
      %v8851 = vrot.slane %v8835, 1
      %v8852 = vrot.slane %v8836, 1
      %v8853 = vrot.slane %v8837, 1
      %v8854 = vrot.slane %v8838, 1
      %v8855 = vrot.slane %v8839, 1
      %v8856 = vrot.slane %v8840, 1
      %v8865 = vadd.f32 %v8816, %v8849
      %v8866 = vadd.f32 %v8817, %v8849
      %v8867 = vadd.f32 %v8818, %v8850
      %v8868 = vadd.f32 %v8819, %v8850
      %v8869 = vadd.f32 %v8820, %v8851
      %v8870 = vadd.f32 %v8821, %v8851
      %v8871 = vadd.f32 %v8822, %v8852
      %v8872 = vadd.f32 %v8823, %v8852
      %v8873 = vadd.f32 %v8824, %v8853
      %v8874 = vadd.f32 %v8825, %v8853
      %v8875 = vadd.f32 %v8826, %v8854
      %v8876 = vadd.f32 %v8827, %v8854
      %v8877 = vadd.f32 %v8828, %v8855
      %v8878 = vadd.f32 %v8829, %v8855
      %v8879 = vadd.f32 %v8830, %v8856
      %v8880 = vadd.f32 %v8831, %v8856
      %v8881 = vperm.slane %v8642, 2
      %v8882 = vmul.f32 %v8615, %v8881
      %v8883 = vmul.f32 %v8616, %v8881
      %v8884 = vmul.f32 %v8618, %v8881
      %v8885 = vmul.f32 %v8619, %v8881
      %v8886 = vmul.f32 %v8621, %v8881
      %v8887 = vmul.f32 %v8622, %v8881
      %v8888 = vmul.f32 %v8624, %v8881
      %v8889 = vmul.f32 %v8625, %v8881
      %v8890 = vmul.f32 %v8627, %v8881
      %v8891 = vmul.f32 %v8628, %v8881
      %v8892 = vmul.f32 %v8630, %v8881
      %v8893 = vmul.f32 %v8631, %v8881
      %v8894 = vmul.f32 %v8633, %v8881
      %v8895 = vmul.f32 %v8634, %v8881
      %v8896 = vmul.f32 %v8636, %v8881
      %v8897 = vmul.f32 %v8637, %v8881
      %v8914 = vrot.slane %v8882, 2
      %v8915 = vrot.slane %v8883, 2
      %v8916 = vsel %vm2123, %v8914, %v8915
      %v8917 = vrot.slane %v8884, 2
      %v8918 = vrot.slane %v8885, 2
      %v8919 = vsel %vm2123, %v8917, %v8918
      %v8920 = vrot.slane %v8886, 2
      %v8921 = vrot.slane %v8887, 2
      %v8922 = vsel %vm2123, %v8920, %v8921
      %v8923 = vrot.slane %v8888, 2
      %v8924 = vrot.slane %v8889, 2
      %v8925 = vsel %vm2123, %v8923, %v8924
      %v8926 = vrot.slane %v8890, 2
      %v8927 = vrot.slane %v8891, 2
      %v8928 = vsel %vm2123, %v8926, %v8927
      %v8929 = vrot.slane %v8892, 2
      %v8930 = vrot.slane %v8893, 2
      %v8931 = vsel %vm2123, %v8929, %v8930
      %v8932 = vrot.slane %v8894, 2
      %v8933 = vrot.slane %v8895, 2
      %v8934 = vsel %vm2123, %v8932, %v8933
      %v8935 = vrot.slane %v8896, 2
      %v8936 = vrot.slane %v8897, 2
      %v8937 = vsel %vm2123, %v8935, %v8936
      %v8954 = vadd.f32 %v8865, %v8914
      %v8955 = vadd.f32 %v8866, %v8916
      %v8956 = vadd.f32 %v8867, %v8917
      %v8957 = vadd.f32 %v8868, %v8919
      %v8958 = vadd.f32 %v8869, %v8920
      %v8959 = vadd.f32 %v8870, %v8922
      %v8960 = vadd.f32 %v8871, %v8923
      %v8961 = vadd.f32 %v8872, %v8925
      %v8962 = vadd.f32 %v8873, %v8926
      %v8963 = vadd.f32 %v8874, %v8928
      %v8964 = vadd.f32 %v8875, %v8929
      %v8965 = vadd.f32 %v8876, %v8931
      %v8966 = vadd.f32 %v8877, %v8932
      %v8967 = vadd.f32 %v8878, %v8934
      %v8968 = vadd.f32 %v8879, %v8935
      %v8969 = vadd.f32 %v8880, %v8937
      %v8970 = vperm.slane %v8643, 0
      %v8971 = vmul.f32 %v8617, %v8970
      %v8972 = vmul.f32 %v8618, %v8970
      %v8973 = vmul.f32 %v8620, %v8970
      %v8974 = vmul.f32 %v8621, %v8970
      %v8975 = vmul.f32 %v8623, %v8970
      %v8976 = vmul.f32 %v8624, %v8970
      %v8977 = vmul.f32 %v8626, %v8970
      %v8978 = vmul.f32 %v8627, %v8970
      %v8979 = vmul.f32 %v8629, %v8970
      %v8980 = vmul.f32 %v8630, %v8970
      %v8981 = vmul.f32 %v8632, %v8970
      %v8982 = vmul.f32 %v8633, %v8970
      %v8983 = vmul.f32 %v8635, %v8970
      %v8984 = vmul.f32 %v8636, %v8970
      %v8985 = vmul.f32 %v8638, %v8970
      %v8986 = vmul.f32 %v8639, %v8970
      %v8987 = vadd.f32 %v8954, %v8971
      %v8988 = vadd.f32 %v8955, %v8972
      %v8989 = vadd.f32 %v8956, %v8973
      %v8990 = vadd.f32 %v8957, %v8974
      %v8991 = vadd.f32 %v8958, %v8975
      %v8992 = vadd.f32 %v8959, %v8976
      %v8993 = vadd.f32 %v8960, %v8977
      %v8994 = vadd.f32 %v8961, %v8978
      %v8995 = vadd.f32 %v8962, %v8979
      %v8996 = vadd.f32 %v8963, %v8980
      %v8997 = vadd.f32 %v8964, %v8981
      %v8998 = vadd.f32 %v8965, %v8982
      %v8999 = vadd.f32 %v8966, %v8983
      %v9000 = vadd.f32 %v8967, %v8984
      %v9001 = vadd.f32 %v8968, %v8985
      %v9002 = vadd.f32 %v8969, %v8986
      %v9003 = vperm.slane %v8643, 1
      %v9004 = vmul.f32 %v8618, %v9003
      %v9005 = vmul.f32 %v8621, %v9003
      %v9006 = vmul.f32 %v8624, %v9003
      %v9007 = vmul.f32 %v8627, %v9003
      %v9008 = vmul.f32 %v8630, %v9003
      %v9009 = vmul.f32 %v8633, %v9003
      %v9010 = vmul.f32 %v8636, %v9003
      %v9011 = vmul.f32 %v8639, %v9003
      %v9020 = vrot.slane %v9004, 1
      %v9021 = vrot.slane %v9005, 1
      %v9022 = vrot.slane %v9006, 1
      %v9023 = vrot.slane %v9007, 1
      %v9024 = vrot.slane %v9008, 1
      %v9025 = vrot.slane %v9009, 1
      %v9026 = vrot.slane %v9010, 1
      %v9027 = vrot.slane %v9011, 1
      %v9036 = vadd.f32 %v8987, %v9020
      %v9037 = vadd.f32 %v8988, %v9020
      %v9038 = vadd.f32 %v8989, %v9021
      %v9039 = vadd.f32 %v8990, %v9021
      %v9040 = vadd.f32 %v8991, %v9022
      %v9041 = vadd.f32 %v8992, %v9022
      %v9042 = vadd.f32 %v8993, %v9023
      %v9043 = vadd.f32 %v8994, %v9023
      %v9044 = vadd.f32 %v8995, %v9024
      %v9045 = vadd.f32 %v8996, %v9024
      %v9046 = vadd.f32 %v8997, %v9025
      %v9047 = vadd.f32 %v8998, %v9025
      %v9048 = vadd.f32 %v8999, %v9026
      %v9049 = vadd.f32 %v9000, %v9026
      %v9050 = vadd.f32 %v9001, %v9027
      %v9051 = vadd.f32 %v9002, %v9027
      %v9052 = vperm.slane %v8643, 2
      %v9053 = vmul.f32 %v8618, %v9052
      %v9054 = vmul.f32 %v8619, %v9052
      %v9055 = vmul.f32 %v8621, %v9052
      %v9056 = vmul.f32 %v8622, %v9052
      %v9057 = vmul.f32 %v8624, %v9052
      %v9058 = vmul.f32 %v8625, %v9052
      %v9059 = vmul.f32 %v8627, %v9052
      %v9060 = vmul.f32 %v8628, %v9052
      %v9061 = vmul.f32 %v8630, %v9052
      %v9062 = vmul.f32 %v8631, %v9052
      %v9063 = vmul.f32 %v8633, %v9052
      %v9064 = vmul.f32 %v8634, %v9052
      %v9065 = vmul.f32 %v8636, %v9052
      %v9066 = vmul.f32 %v8637, %v9052
      %v9067 = vmul.f32 %v8639, %v9052
      %v9068 = vmul.f32 %v8640, %v9052
      %v9085 = vrot.slane %v9053, 2
      %v9086 = vrot.slane %v9054, 2
      %v9087 = vsel %vm2123, %v9085, %v9086
      %v9088 = vrot.slane %v9055, 2
      %v9089 = vrot.slane %v9056, 2
      %v9090 = vsel %vm2123, %v9088, %v9089
      %v9091 = vrot.slane %v9057, 2
      %v9092 = vrot.slane %v9058, 2
      %v9093 = vsel %vm2123, %v9091, %v9092
      %v9094 = vrot.slane %v9059, 2
      %v9095 = vrot.slane %v9060, 2
      %v9096 = vsel %vm2123, %v9094, %v9095
      %v9097 = vrot.slane %v9061, 2
      %v9098 = vrot.slane %v9062, 2
      %v9099 = vsel %vm2123, %v9097, %v9098
      %v9100 = vrot.slane %v9063, 2
      %v9101 = vrot.slane %v9064, 2
      %v9102 = vsel %vm2123, %v9100, %v9101
      %v9103 = vrot.slane %v9065, 2
      %v9104 = vrot.slane %v9066, 2
      %v9105 = vsel %vm2123, %v9103, %v9104
      %v9106 = vrot.slane %v9067, 2
      %v9107 = vrot.slane %v9068, 2
      %v9108 = vsel %vm2123, %v9106, %v9107
      %v9125 = vadd.f32 %v9036, %v9085
      %v9126 = vadd.f32 %v9037, %v9087
      %v9127 = vadd.f32 %v9038, %v9088
      %v9128 = vadd.f32 %v9039, %v9090
      %v9129 = vadd.f32 %v9040, %v9091
      %v9130 = vadd.f32 %v9041, %v9093
      %v9131 = vadd.f32 %v9042, %v9094
      %v9132 = vadd.f32 %v9043, %v9096
      %v9133 = vadd.f32 %v9044, %v9097
      %v9134 = vadd.f32 %v9045, %v9099
      %v9135 = vadd.f32 %v9046, %v9100
      %v9136 = vadd.f32 %v9047, %v9102
      %v9137 = vadd.f32 %v9048, %v9103
      %v9138 = vadd.f32 %v9049, %v9105
      %v9139 = vadd.f32 %v9050, %v9106
      %v9140 = vadd.f32 %v9051, %v9108
      %v9157 = vrot.slane %v9125, 7
      %v9158 = vrot.slane %v9126, 7
      %v9159 = vsel %vm3506, %v9157, %v9158
      %v9160 = vrot.slane %v9127, 7
      %v9161 = vrot.slane %v9128, 7
      %v9162 = vsel %vm3506, %v9160, %v9161
      %v9163 = vrot.slane %v9129, 7
      %v9164 = vrot.slane %v9130, 7
      %v9165 = vsel %vm3506, %v9163, %v9164
      %v9166 = vrot.slane %v9131, 7
      %v9167 = vrot.slane %v9132, 7
      %v9168 = vsel %vm3506, %v9166, %v9167
      %v9169 = vrot.slane %v9133, 7
      %v9170 = vrot.slane %v9134, 7
      %v9171 = vsel %vm3506, %v9169, %v9170
      %v9172 = vrot.slane %v9135, 7
      %v9173 = vrot.slane %v9136, 7
      %v9174 = vsel %vm3506, %v9172, %v9173
      %v9175 = vrot.slane %v9137, 7
      %v9176 = vrot.slane %v9138, 7
      %v9177 = vsel %vm3506, %v9175, %v9176
      %v9178 = vrot.slane %v9139, 7
      %v9179 = vrot.slane %v9140, 7
      %v9180 = vsel %vm3506, %v9178, %v9179
      %v9189 = vld [vmem:[%s53] sm:$0x1]
      %v9191 = vperm.slane %v9189, 0
      %v9193 = vmul.f32 %v9159, %v9191
      %v9194 = vmul.f32 %v9162, %v9191
      %v9195 = vmul.f32 %v9165, %v9191
      %v9196 = vmul.f32 %v9168, %v9191
      %v9197 = vmul.f32 %v9171, %v9191
      %v9198 = vmul.f32 %v9174, %v9191
      %v9199 = vmul.f32 %v9177, %v9191
      %v9200 = vmul.f32 %v9180, %v9191
      %v9201 = vld [vmem:[%s55] sm:$0x1]
      %v9203 = vperm.slane %v9201, 0
      %v9205 = vadd.f32 %v9193, %v9203
      %v9206 = vadd.f32 %v9194, %v9203
      %v9207 = vadd.f32 %v9195, %v9203
      %v9208 = vadd.f32 %v9196, %v9203
      %v9209 = vadd.f32 %v9197, %v9203
      %v9210 = vadd.f32 %v9198, %v9203
      %v9211 = vadd.f32 %v9199, %v9203
      %v9212 = vadd.f32 %v9200, %v9203
      %9213 = vst.msk [vmem:[#allocation5] sm:$0xff] %vm1217, 0.0
      %9214 = vst.msk [vmem:[#allocation5 + $0x8] sm:$0xff] %vm1217, 0.0
      %9215 = vst.msk [vmem:[#allocation5 + $0x10] sm:$0xff] %vm1217, 0.0
      %9216 = vst.msk [vmem:[#allocation5 + $0x18] sm:$0xff] %vm1217, 0.0
      %9217 = vst.msk [vmem:[#allocation5 + $0x20] sm:$0xff] %vm1217, 0.0
      %9218 = vst.msk [vmem:[#allocation5 + $0x28] sm:$0xff] %vm1217, 0.0
      %9219 = vst.msk [vmem:[#allocation5 + $0x30] sm:$0xff] %vm1217, 0.0
      %9220 = vst.msk [vmem:[#allocation5 + $0x38] sm:$0xff] %vm1217, 0.0
      %9221 = vst.msk [vmem:[#allocation5 + $0x40] sm:$0xff] %vm1217, 0.0
      %9222 = vst.msk [vmem:[#allocation5 + $0x48] sm:$0xff] %vm1217, 0.0
      %9223 = vst.msk [vmem:[#allocation5 + $0x50] sm:$0xff] %vm1217, 0.0
      %9224 = vst.msk [vmem:[#allocation5 + $0x58] sm:$0xff] %vm1217, 0.0
      %9225 = vst.msk [vmem:[#allocation5 + $0x60] sm:$0xff] %vm1217, 0.0
      %9226 = vst.msk [vmem:[#allocation5 + $0x68] sm:$0xff] %vm1217, 0.0
      %9227 = vst.msk [vmem:[#allocation5 + $0x70] sm:$0xff] %vm1217, 0.0
      %9228 = vst.msk [vmem:[#allocation5 + $0x78] sm:$0xff] %vm1217, 0.0
      %9229 = vst.msk [vmem:[#allocation5 + $0x80] sm:$0xff] %vm1217, 0.0
      %9230 = vst.msk [vmem:[#allocation5 + $0x88] sm:$0xff] %vm1217, 0.0
      %9231 = vst.msk [vmem:[#allocation5 + $0x90] sm:$0xff] %vm1217, 0.0
      %9232 = vst.msk [vmem:[#allocation5 + $0x98] sm:$0xff] %vm1217, 0.0
      %9233 = vst.msk [vmem:[#allocation5 + $0xa0] sm:$0xff] %vm1217, 0.0
      %9234 = vst.msk [vmem:[#allocation5 + $0xa8] sm:$0xff] %vm1217, 0.0
      %9235 = vst.msk [vmem:[#allocation5 + $0xb0] sm:$0xff] %vm1217, 0.0
      %9236 = vst.msk [vmem:[#allocation5 + $0xb8] sm:$0xff] %vm1217, 0.0
      %9237 = vst.msk [vmem:[#allocation5 + $0xc0] sm:$0xff] %vm1217, 0.0
      %9238 = vst.msk [vmem:[#allocation5 + $0xc8] sm:$0xff] %vm1217, 0.0
      %9239 = vst.msk [vmem:[#allocation5 + $0xd0] sm:$0xff] %vm1217, 0.0
      %9240 = vst.msk [vmem:[#allocation5 + $0xd8] sm:$0xff] %vm1217, 0.0
      %9241 = vst.msk [vmem:[#allocation5 + $0xe0] sm:$0xff] %vm1217, 0.0
      %9242 = vst.msk [vmem:[#allocation5 + $0xe8] sm:$0xff] %vm1217, 0.0
      %9243 = vst.msk [vmem:[#allocation5 + $0xf0] sm:$0xff] %vm1217, 0.0
      %9244 = vst.msk [vmem:[#allocation5 + $0xf8] sm:$0xff] %vm1217, 0.0
      %9245 = vst.msk [vmem:[#allocation5 + $0x100] sm:$0xff] %vm1217, 0.0
      %9246 = vst.msk [vmem:[#allocation5 + $0x108] sm:$0xff] %vm1217, 0.0
      %9247 = vst.msk [vmem:[#allocation5 + $0x110] sm:$0xff] %vm1217, 0.0
      %9248 = vst.msk [vmem:[#allocation5 + $0x118] sm:$0xff] %vm1217, 0.0
      %9249 = vst.msk [vmem:[#allocation5 + $0x120] sm:$0xff] %vm1217, 0.0
      %9250 = vst.msk [vmem:[#allocation5 + $0x128] sm:$0xff] %vm1217, 0.0
      %9251 = vst.msk [vmem:[#allocation5 + $0x130] sm:$0xff] %vm1217, 0.0
      %9252 = vst.msk [vmem:[#allocation5 + $0x138] sm:$0xff] %vm1217, 0.0
      %9253 = vst.msk [vmem:[#allocation5 + $0x140] sm:$0xff] %vm1217, 0.0
      %9254 = vst.msk [vmem:[#allocation5 + $0x148] sm:$0xff] %vm1217, 0.0
      %9255 = vst.msk [vmem:[#allocation5 + $0x150] sm:$0xff] %vm1217, 0.0
      %9256 = vst.msk [vmem:[#allocation5 + $0x158] sm:$0xff] %vm1217, 0.0
      %9257 = vst.msk [vmem:[#allocation5 + $0x160] sm:$0xff] %vm1217, 0.0
      %9258 = vst.msk [vmem:[#allocation5 + $0x168] sm:$0xff] %vm1217, 0.0
      %9259 = vst.msk [vmem:[#allocation5 + $0x170] sm:$0xff] %vm1217, 0.0
      %9260 = vst.msk [vmem:[#allocation5 + $0x178] sm:$0xff] %vm1217, 0.0
      %9261 = vst.msk [vmem:[#allocation5 + $0x180] sm:$0xff] %vm1217, 0.0
      %9262 = vst.msk [vmem:[#allocation5 + $0x188] sm:$0xff] %vm1217, 0.0
      %9263 = vst.msk [vmem:[#allocation5 + $0x190] sm:$0xff] %vm1217, 0.0
      %9264 = vst.msk [vmem:[#allocation5 + $0x198] sm:$0xff] %vm1217, 0.0
      %9265 = vst.msk [vmem:[#allocation5 + $0x1a0] sm:$0xff] %vm1217, 0.0
      %9266 = vst.msk [vmem:[#allocation5 + $0x1a8] sm:$0xff] %vm1217, 0.0
      %9267 = vst.msk [vmem:[#allocation5 + $0x1b0] sm:$0xff] %vm1217, 0.0
      %9268 = vst.msk [vmem:[#allocation5 + $0x1b8] sm:$0xff] %vm1217, 0.0
      %9269 = vst.msk [vmem:[#allocation5 + $0x1c0] sm:$0xff] %vm1217, 0.0
      %9270 = vst.msk [vmem:[#allocation5 + $0x1c8] sm:$0xff] %vm1217, 0.0
      %9271 = vst.msk [vmem:[#allocation5 + $0x1d0] sm:$0xff] %vm1217, 0.0
      %9272 = vst.msk [vmem:[#allocation5 + $0x1d8] sm:$0xff] %vm1217, 0.0
      %9273 = vst.msk [vmem:[#allocation5 + $0x1e0] sm:$0xff] %vm1217, 0.0
      %9274 = vst.msk [vmem:[#allocation5 + $0x1e8] sm:$0xff] %vm1217, 0.0
      %9275 = vst.msk [vmem:[#allocation5 + $0x1f0] sm:$0xff] %vm1217, 0.0
      %9276 = vst.msk [vmem:[#allocation5 + $0x1f8] sm:$0xff] %vm1217, 0.0
      %9277 = vst.msk [vmem:[#allocation5 + $0x200] sm:$0xff] %vm1217, 0.0
      %9278 = vst.msk [vmem:[#allocation5 + $0x208] sm:$0xff] %vm1217, 0.0
      %9279 = vst.msk [vmem:[#allocation5 + $0x210] sm:$0xff] %vm1217, 0.0
      %9280 = vst.msk [vmem:[#allocation5 + $0x218] sm:$0xff] %vm1217, 0.0
      %9281 = vst.msk [vmem:[#allocation5 + $0x220] sm:$0xff] %vm1217, 0.0
      %9282 = vst.msk [vmem:[#allocation5 + $0x228] sm:$0xff] %vm1217, 0.0
      %9283 = vst.msk [vmem:[#allocation5 + $0x230] sm:$0xff] %vm1217, 0.0
      %9284 = vst.msk [vmem:[#allocation5 + $0x238] sm:$0xff] %vm1217, 0.0
      %9285 = vst.msk [vmem:[#allocation5 + $0x240] sm:$0xff] %vm1217, 0.0
      %9286 = vst.msk [vmem:[#allocation5 + $0x248] sm:$0xff] %vm1217, 0.0
      %9287 = vst.msk [vmem:[#allocation5 + $0x250] sm:$0xff] %vm1217, 0.0
      %9288 = vst.msk [vmem:[#allocation5 + $0x258] sm:$0xff] %vm1217, 0.0
      %9289 = vst.msk [vmem:[#allocation5 + $0x260] sm:$0xff] %vm1217, 0.0
      %9290 = vst.msk [vmem:[#allocation5 + $0x268] sm:$0xff] %vm1217, 0.0
      %9291 = vst.msk [vmem:[#allocation5 + $0x270] sm:$0xff] %vm1217, 0.0
      %9292 = vst.msk [vmem:[#allocation5 + $0x278] sm:$0xff] %vm1217, 0.0
      %9293 = vst.msk [vmem:[#allocation5 + $0x280] sm:$0xff] %vm1217, 0.0
      %9294 = vst.msk [vmem:[#allocation5 + $0x288] sm:$0xff] %vm1217, 0.0
      %9295 = vst.msk [vmem:[#allocation5 + $0x290] sm:$0xff] %vm1217, 0.0
      %9296 = vst.msk [vmem:[#allocation5 + $0x298] sm:$0xff] %vm1217, 0.0
      %9297 = vst.msk [vmem:[#allocation5 + $0x2a0] sm:$0xff] %vm1217, 0.0
      %9298 = vst.msk [vmem:[#allocation5 + $0x2a8] sm:$0xff] %vm1217, 0.0
      %9299 = vst.msk [vmem:[#allocation5 + $0x2b0] sm:$0xff] %vm1217, 0.0
      %9300 = vst.msk [vmem:[#allocation5 + $0x2b8] sm:$0xff] %vm1217, 0.0
      %9301 = vst.msk [vmem:[#allocation5 + $0x2c0] sm:$0xff] %vm1217, 0.0
      %9302 = vst.msk [vmem:[#allocation5 + $0x2c8] sm:$0xff] %vm1217, 0.0
      %9303 = vst.msk [vmem:[#allocation5 + $0x2d0] sm:$0xff] %vm1217, 0.0
      %9304 = vst.msk [vmem:[#allocation5 + $0x2d8] sm:$0xff] %vm1217, 0.0
      %9305 = vst.msk [vmem:[#allocation5 + $0x2e0] sm:$0xff] %vm1217, 0.0
      %9306 = vst.msk [vmem:[#allocation5 + $0x2e8] sm:$0xff] %vm1217, 0.0
      %9307 = vst.msk [vmem:[#allocation5 + $0x2f0] sm:$0xff] %vm1217, 0.0
      %9308 = vst.msk [vmem:[#allocation5 + $0x2f8] sm:$0xff] %vm1217, 0.0
      %9309 = vst.msk [vmem:[#allocation5 + $0x300] sm:$0xff] %vm1217, 0.0
      %9310 = vst.msk [vmem:[#allocation5 + $0x308] sm:$0xff] %vm1217, 0.0
      %9311 = vst.msk [vmem:[#allocation5 + $0x310] sm:$0xff] %vm1217, 0.0
      %9312 = vst.msk [vmem:[#allocation5 + $0x318] sm:$0xff] %vm1217, 0.0
      %9313 = vst.msk [vmem:[#allocation5 + $0x320] sm:$0xff] %vm1217, 0.0
      %9314 = vst.msk [vmem:[#allocation5 + $0x328] sm:$0xff] %vm1217, 0.0
      %9315 = vst.msk [vmem:[#allocation5 + $0x330] sm:$0xff] %vm1217, 0.0
      %9316 = vst.msk [vmem:[#allocation5 + $0x338] sm:$0xff] %vm1217, 0.0
      %9317 = vst.msk [vmem:[#allocation5 + $0x340] sm:$0xff] %vm1217, 0.0
      %9318 = vst.msk [vmem:[#allocation5 + $0x348] sm:$0xff] %vm1217, 0.0
      %9319 = vst.msk [vmem:[#allocation5 + $0x350] sm:$0xff] %vm1217, 0.0
      %9320 = vst.msk [vmem:[#allocation5 + $0x358] sm:$0xff] %vm1217, 0.0
      %9321 = vst.msk [vmem:[#allocation5 + $0x360] sm:$0xff] %vm1217, 0.0
      %9322 = vst.msk [vmem:[#allocation5 + $0x368] sm:$0xff] %vm1217, 0.0
      %9323 = vst.msk [vmem:[#allocation5 + $0x370] sm:$0xff] %vm1217, 0.0
      %9324 = vst.msk [vmem:[#allocation5 + $0x378] sm:$0xff] %vm1217, 0.0
      %9325 = vst.msk [vmem:[#allocation5 + $0x380] sm:$0xff] %vm1217, 0.0
      %9326 = vst.msk [vmem:[#allocation5 + $0x388] sm:$0xff] %vm1217, 0.0
      %9327 = vst.msk [vmem:[#allocation5 + $0x390] sm:$0xff] %vm1217, 0.0
      %9328 = vst.msk [vmem:[#allocation5 + $0x398] sm:$0xff] %vm1217, 0.0
      %9329 = vst.msk [vmem:[#allocation5 + $0x3a0] sm:$0xff] %vm1217, 0.0
      %9330 = vst.msk [vmem:[#allocation5 + $0x3a8] sm:$0xff] %vm1217, 0.0
      %9331 = vst.msk [vmem:[#allocation5 + $0x3b0] sm:$0xff] %vm1217, 0.0
      %9332 = vst.msk [vmem:[#allocation5 + $0x3b8] sm:$0xff] %vm1217, 0.0
      %9333 = vst.msk [vmem:[#allocation5 + $0x3c0] sm:$0xff] %vm1217, 0.0
      %9334 = vst.msk [vmem:[#allocation5 + $0x3c8] sm:$0xff] %vm1217, 0.0
      %9335 = vst.msk [vmem:[#allocation5 + $0x3d0] sm:$0xff] %vm1217, 0.0
      %9336 = vst.msk [vmem:[#allocation5 + $0x3d8] sm:$0xff] %vm1217, 0.0
      %9337 = vst.msk [vmem:[#allocation5 + $0x3e0] sm:$0xff] %vm1217, 0.0
      %9338 = vst.msk [vmem:[#allocation5 + $0x3e8] sm:$0xff] %vm1217, 0.0
      %9339 = vst.msk [vmem:[#allocation5 + $0x3f0] sm:$0xff] %vm1217, 0.0
      %9340 = vst.msk [vmem:[#allocation5 + $0x3f8] sm:$0xff] %vm1217, 0.0
      %s9341 = scalar_lea.vmem [#allocation5], 256
      %9342 = vst.msk [vmem:[%s9341 + $0x8] sm:$0xff] %vm1217, %v1168
      %9343 = vst.msk [vmem:[%s9341 + $0x10] sm:$0xff] %vm1217, %v1169
      %9344 = vst.msk [vmem:[%s9341 + $0x28] sm:$0xff] %vm1217, %v1170
      %9345 = vst.msk [vmem:[%s9341 + $0x30] sm:$0xff] %vm1217, %v1171
      %9346 = vst.msk [vmem:[%s9341 + $0x48] sm:$0xff] %vm1217, %v1172
      %9347 = vst.msk [vmem:[%s9341 + $0x50] sm:$0xff] %vm1217, %v1173
      %9348 = vst.msk [vmem:[%s9341 + $0x68] sm:$0xff] %vm1217, %v1174
      %9349 = vst.msk [vmem:[%s9341 + $0x70] sm:$0xff] %vm1217, %v1175
      %9350 = vst.msk [vmem:[%s9341 + $0x88] sm:$0xff] %vm1217, %v1176
      %9351 = vst.msk [vmem:[%s9341 + $0x90] sm:$0xff] %vm1217, %v1177
      %9352 = vst.msk [vmem:[%s9341 + $0xa8] sm:$0xff] %vm1217, %v1178
      %9353 = vst.msk [vmem:[%s9341 + $0xb0] sm:$0xff] %vm1217, %v1179
      %9354 = vst.msk [vmem:[%s9341 + $0xc8] sm:$0xff] %vm1217, %v1180
      %9355 = vst.msk [vmem:[%s9341 + $0xd0] sm:$0xff] %vm1217, %v1181
      %9356 = vst.msk [vmem:[%s9341 + $0xe8] sm:$0xff] %vm1217, %v1182
      %9357 = vst.msk [vmem:[%s9341 + $0xf0] sm:$0xff] %vm1217, %v1183
      %9358 = vst.msk [vmem:[%s9341 + $0x108] sm:$0xff] %vm1217, %v1184
      %9359 = vst.msk [vmem:[%s9341 + $0x110] sm:$0xff] %vm1217, %v1185
      %9360 = vst.msk [vmem:[%s9341 + $0x128] sm:$0xff] %vm1217, %v1186
      %9361 = vst.msk [vmem:[%s9341 + $0x130] sm:$0xff] %vm1217, %v1187
      %9362 = vst.msk [vmem:[%s9341 + $0x148] sm:$0xff] %vm1217, %v1188
      %9363 = vst.msk [vmem:[%s9341 + $0x150] sm:$0xff] %vm1217, %v1189
      %9364 = vst.msk [vmem:[%s9341 + $0x168] sm:$0xff] %vm1217, %v1190
      %9365 = vst.msk [vmem:[%s9341 + $0x170] sm:$0xff] %vm1217, %v1191
      %9366 = vst.msk [vmem:[%s9341 + $0x188] sm:$0xff] %vm1217, %v1192
      %9367 = vst.msk [vmem:[%s9341 + $0x190] sm:$0xff] %vm1217, %v1193
      %9368 = vst.msk [vmem:[%s9341 + $0x1a8] sm:$0xff] %vm1217, %v1194
      %9369 = vst.msk [vmem:[%s9341 + $0x1b0] sm:$0xff] %vm1217, %v1195
      %9370 = vst.msk [vmem:[%s9341 + $0x1c8] sm:$0xff] %vm1217, %v1196
      %9371 = vst.msk [vmem:[%s9341 + $0x1d0] sm:$0xff] %vm1217, %v1197
      %9372 = vst.msk [vmem:[%s9341 + $0x1e8] sm:$0xff] %vm1217, %v1198
      %9373 = vst.msk [vmem:[%s9341 + $0x1f0] sm:$0xff] %vm1217, %v1199
      %v9374 = vld [vmem:[#allocation5 + $0xe0] sm:$0xff]
      %v9375 = vld [vmem:[#allocation5 + $0xe8] sm:$0xff]
      %v9376 = vld [vmem:[#allocation5 + $0xf0] sm:$0xff]
      %v9377 = vld [vmem:[#allocation5 + $0xf8] sm:$0xff]
      %v9378 = vld [vmem:[#allocation5 + $0x100] sm:$0xff]
      %v9379 = vld [vmem:[#allocation5 + $0x108] sm:$0xff]
      %v9380 = vld [vmem:[#allocation5 + $0x110] sm:$0xff]
      %v9381 = vld [vmem:[#allocation5 + $0x118] sm:$0xff]
      %v9382 = vld [vmem:[#allocation5 + $0x120] sm:$0xff]
      %v9383 = vld [vmem:[#allocation5 + $0x128] sm:$0xff]
      %v9384 = vld [vmem:[#allocation5 + $0x130] sm:$0xff]
      %v9385 = vld [vmem:[#allocation5 + $0x138] sm:$0xff]
      %v9386 = vld [vmem:[#allocation5 + $0x140] sm:$0xff]
      %v9387 = vld [vmem:[#allocation5 + $0x148] sm:$0xff]
      %v9388 = vld [vmem:[#allocation5 + $0x150] sm:$0xff]
      %v9389 = vld [vmem:[#allocation5 + $0x158] sm:$0xff]
      %v9390 = vld [vmem:[#allocation5 + $0x160] sm:$0xff]
      %v9391 = vld [vmem:[#allocation5 + $0x168] sm:$0xff]
      %v9392 = vld [vmem:[#allocation5 + $0x170] sm:$0xff]
      %v9393 = vld [vmem:[#allocation5 + $0x178] sm:$0xff]
      %v9394 = vld [vmem:[#allocation5 + $0x180] sm:$0xff]
      %v9395 = vld [vmem:[#allocation5 + $0x188] sm:$0xff]
      %v9396 = vld [vmem:[#allocation5 + $0x190] sm:$0xff]
      %v9397 = vld [vmem:[#allocation5 + $0x198] sm:$0xff]
      %v9398 = vld [vmem:[#allocation5 + $0x1a0] sm:$0xff]
      %v9399 = vld [vmem:[#allocation5 + $0x1a8] sm:$0xff]
      %v9400 = vld [vmem:[#allocation5 + $0x1b0] sm:$0xff]
      %v9401 = vld [vmem:[#allocation5 + $0x1b8] sm:$0xff]
      %v9402 = vld [vmem:[#allocation5 + $0x1c0] sm:$0xff]
      %v9403 = vld [vmem:[#allocation5 + $0x1c8] sm:$0xff]
      %v9404 = vld [vmem:[#allocation5 + $0x1d0] sm:$0xff]
      %v9405 = vld [vmem:[#allocation5 + $0x1d8] sm:$0xff]
      %v9406 = vld [vmem:[#allocation5 + $0x1e0] sm:$0xff]
      %v9407 = vld [vmem:[#allocation5 + $0x1e8] sm:$0xff]
      %v9408 = vld [vmem:[#allocation5 + $0x1f0] sm:$0xff]
      %v9409 = vld [vmem:[#allocation5 + $0x1f8] sm:$0xff]
      %v9410 = vld [vmem:[#allocation5 + $0x200] sm:$0xff]
      %v9411 = vld [vmem:[#allocation5 + $0x208] sm:$0xff]
      %v9412 = vld [vmem:[#allocation5 + $0x210] sm:$0xff]
      %v9413 = vld [vmem:[#allocation5 + $0x218] sm:$0xff]
      %v9414 = vld [vmem:[#allocation5 + $0x220] sm:$0xff]
      %v9415 = vld [vmem:[#allocation5 + $0x228] sm:$0xff]
      %v9416 = vld [vmem:[#allocation5 + $0x230] sm:$0xff]
      %v9417 = vld [vmem:[#allocation5 + $0x238] sm:$0xff]
      %v9418 = vld [vmem:[#allocation5 + $0x240] sm:$0xff]
      %v9419 = vld [vmem:[#allocation5 + $0x248] sm:$0xff]
      %v9420 = vld [vmem:[#allocation5 + $0x250] sm:$0xff]
      %v9421 = vld [vmem:[#allocation5 + $0x258] sm:$0xff]
      %v9422 = vld [vmem:[#allocation5 + $0x260] sm:$0xff]
      %v9423 = vld [vmem:[#allocation5 + $0x268] sm:$0xff]
      %v9424 = vld [vmem:[#allocation5 + $0x270] sm:$0xff]
      %v9425 = vld [vmem:[#allocation5 + $0x278] sm:$0xff]
      %v9426 = vld [vmem:[#allocation5 + $0x280] sm:$0xff]
      %v9427 = vld [vmem:[#allocation5 + $0x288] sm:$0xff]
      %v9428 = vld [vmem:[#allocation5 + $0x290] sm:$0xff]
      %v9429 = vld [vmem:[#allocation5 + $0x298] sm:$0xff]
      %v9430 = vld [vmem:[#allocation5 + $0x2a0] sm:$0xff]
      %v9431 = vld [vmem:[#allocation5 + $0x2a8] sm:$0xff]
      %v9432 = vld [vmem:[#allocation5 + $0x2b0] sm:$0xff]
      %v9433 = vld [vmem:[#allocation5 + $0x2b8] sm:$0xff]
      %v9434 = vld [vmem:[#allocation5 + $0x2c0] sm:$0xff]
      %v9435 = vld [vmem:[#allocation5 + $0x2c8] sm:$0xff]
      %v9436 = vld [vmem:[#allocation5 + $0x2d0] sm:$0xff]
      %v9437 = vld [vmem:[#allocation5 + $0x2d8] sm:$0xff]
      %v9438 = vld [vmem:[#allocation5 + $0x2e0] sm:$0xff]
      %v9439 = vld [vmem:[#allocation5 + $0x2e8] sm:$0xff]
      %v9440 = vld [vmem:[#allocation5 + $0x2f0] sm:$0xff]
      %v9441 = vld [vmem:[#allocation5 + $0x2f8] sm:$0xff]
      %v9442 = vld [vmem:[#allocation5 + $0x300] sm:$0xff]
      %v9443 = vld [vmem:[#allocation5 + $0x308] sm:$0xff]
      %v9444 = vld [vmem:[#allocation5 + $0x310] sm:$0xff]
      %v9445 = vld [vmem:[#allocation5 + $0x318] sm:$0xff]
      %v9446 = vld [vmem:[%s57] sm:$0x7]
      %v9447 = vld [vmem:[%s57 + $0x4] sm:$0x7]
      %v9448 = vld [vmem:[%s57 + $0x8] sm:$0x7]
      %v9449 = vperm.slane %v9446, 0
      %v9450 = vmul.f32 %v9374, %v9449
      %v9451 = vmul.f32 %v9375, %v9449
      %v9452 = vmul.f32 %v9376, %v9449
      %v9453 = vmul.f32 %v9378, %v9449
      %v9454 = vmul.f32 %v9379, %v9449
      %v9455 = vmul.f32 %v9380, %v9449
      %v9456 = vmul.f32 %v9382, %v9449
      %v9457 = vmul.f32 %v9383, %v9449
      %v9458 = vmul.f32 %v9384, %v9449
      %v9459 = vmul.f32 %v9386, %v9449
      %v9460 = vmul.f32 %v9387, %v9449
      %v9461 = vmul.f32 %v9388, %v9449
      %v9462 = vmul.f32 %v9390, %v9449
      %v9463 = vmul.f32 %v9391, %v9449
      %v9464 = vmul.f32 %v9392, %v9449
      %v9465 = vmul.f32 %v9394, %v9449
      %v9466 = vmul.f32 %v9395, %v9449
      %v9467 = vmul.f32 %v9396, %v9449
      %v9468 = vmul.f32 %v9398, %v9449
      %v9469 = vmul.f32 %v9399, %v9449
      %v9470 = vmul.f32 %v9400, %v9449
      %v9471 = vmul.f32 %v9402, %v9449
      %v9472 = vmul.f32 %v9403, %v9449
      %v9473 = vmul.f32 %v9404, %v9449
      %v9474 = vmul.f32 %v9406, %v9449
      %v9475 = vmul.f32 %v9407, %v9449
      %v9476 = vmul.f32 %v9408, %v9449
      %v9477 = vmul.f32 %v9410, %v9449
      %v9478 = vmul.f32 %v9411, %v9449
      %v9479 = vmul.f32 %v9412, %v9449
      %v9480 = vmul.f32 %v9414, %v9449
      %v9481 = vmul.f32 %v9415, %v9449
      %v9482 = vmul.f32 %v9416, %v9449
      %v9483 = vmul.f32 %v9418, %v9449
      %v9484 = vmul.f32 %v9419, %v9449
      %v9485 = vmul.f32 %v9420, %v9449
      %v9486 = vmul.f32 %v9422, %v9449
      %v9487 = vmul.f32 %v9423, %v9449
      %v9488 = vmul.f32 %v9424, %v9449
      %v9489 = vmul.f32 %v9426, %v9449
      %v9490 = vmul.f32 %v9427, %v9449
      %v9491 = vmul.f32 %v9428, %v9449
      %v9492 = vmul.f32 %v9430, %v9449
      %v9493 = vmul.f32 %v9431, %v9449
      %v9494 = vmul.f32 %v9432, %v9449
      %v9495 = vmul.f32 %v9434, %v9449
      %v9496 = vmul.f32 %v9435, %v9449
      %v9497 = vmul.f32 %v9436, %v9449
      %v9498 = vperm.slane %v9446, 1
      %v9499 = vmul.f32 %v9375, %v9498
      %v9500 = vmul.f32 %v9376, %v9498
      %v9501 = vmul.f32 %v9379, %v9498
      %v9502 = vmul.f32 %v9380, %v9498
      %v9503 = vmul.f32 %v9383, %v9498
      %v9504 = vmul.f32 %v9384, %v9498
      %v9505 = vmul.f32 %v9387, %v9498
      %v9506 = vmul.f32 %v9388, %v9498
      %v9507 = vmul.f32 %v9391, %v9498
      %v9508 = vmul.f32 %v9392, %v9498
      %v9509 = vmul.f32 %v9395, %v9498
      %v9510 = vmul.f32 %v9396, %v9498
      %v9511 = vmul.f32 %v9399, %v9498
      %v9512 = vmul.f32 %v9400, %v9498
      %v9513 = vmul.f32 %v9403, %v9498
      %v9514 = vmul.f32 %v9404, %v9498
      %v9515 = vmul.f32 %v9407, %v9498
      %v9516 = vmul.f32 %v9408, %v9498
      %v9517 = vmul.f32 %v9411, %v9498
      %v9518 = vmul.f32 %v9412, %v9498
      %v9519 = vmul.f32 %v9415, %v9498
      %v9520 = vmul.f32 %v9416, %v9498
      %v9521 = vmul.f32 %v9419, %v9498
      %v9522 = vmul.f32 %v9420, %v9498
      %v9523 = vmul.f32 %v9423, %v9498
      %v9524 = vmul.f32 %v9424, %v9498
      %v9525 = vmul.f32 %v9427, %v9498
      %v9526 = vmul.f32 %v9428, %v9498
      %v9527 = vmul.f32 %v9431, %v9498
      %v9528 = vmul.f32 %v9432, %v9498
      %v9529 = vmul.f32 %v9435, %v9498
      %v9530 = vmul.f32 %v9436, %v9498
      %v9563 = vrot.slane %v9499, 1
      %v9564 = vrot.slane %v9500, 1
      %v9565 = vsel %vm1881, %v9563, %v9564
      %v9566 = vrot.slane %v9501, 1
      %v9567 = vrot.slane %v9502, 1
      %v9568 = vsel %vm1881, %v9566, %v9567
      %v9569 = vrot.slane %v9503, 1
      %v9570 = vrot.slane %v9504, 1
      %v9571 = vsel %vm1881, %v9569, %v9570
      %v9572 = vrot.slane %v9505, 1
      %v9573 = vrot.slane %v9506, 1
      %v9574 = vsel %vm1881, %v9572, %v9573
      %v9575 = vrot.slane %v9507, 1
      %v9576 = vrot.slane %v9508, 1
      %v9577 = vsel %vm1881, %v9575, %v9576
      %v9578 = vrot.slane %v9509, 1
      %v9579 = vrot.slane %v9510, 1
      %v9580 = vsel %vm1881, %v9578, %v9579
      %v9581 = vrot.slane %v9511, 1
      %v9582 = vrot.slane %v9512, 1
      %v9583 = vsel %vm1881, %v9581, %v9582
      %v9584 = vrot.slane %v9513, 1
      %v9585 = vrot.slane %v9514, 1
      %v9586 = vsel %vm1881, %v9584, %v9585
      %v9587 = vrot.slane %v9515, 1
      %v9588 = vrot.slane %v9516, 1
      %v9589 = vsel %vm1881, %v9587, %v9588
      %v9590 = vrot.slane %v9517, 1
      %v9591 = vrot.slane %v9518, 1
      %v9592 = vsel %vm1881, %v9590, %v9591
      %v9593 = vrot.slane %v9519, 1
      %v9594 = vrot.slane %v9520, 1
      %v9595 = vsel %vm1881, %v9593, %v9594
      %v9596 = vrot.slane %v9521, 1
      %v9597 = vrot.slane %v9522, 1
      %v9598 = vsel %vm1881, %v9596, %v9597
      %v9599 = vrot.slane %v9523, 1
      %v9600 = vrot.slane %v9524, 1
      %v9601 = vsel %vm1881, %v9599, %v9600
      %v9602 = vrot.slane %v9525, 1
      %v9603 = vrot.slane %v9526, 1
      %v9604 = vsel %vm1881, %v9602, %v9603
      %v9605 = vrot.slane %v9527, 1
      %v9606 = vrot.slane %v9528, 1
      %v9607 = vsel %vm1881, %v9605, %v9606
      %v9608 = vrot.slane %v9529, 1
      %v9609 = vrot.slane %v9530, 1
      %v9610 = vsel %vm1881, %v9608, %v9609
      %v9659 = vadd.f32 %v9450, %v9563
      %v9660 = vadd.f32 %v9451, %v9565
      %v9661 = vadd.f32 %v9452, %v9564
      %v9662 = vadd.f32 %v9453, %v9566
      %v9663 = vadd.f32 %v9454, %v9568
      %v9664 = vadd.f32 %v9455, %v9567
      %v9665 = vadd.f32 %v9456, %v9569
      %v9666 = vadd.f32 %v9457, %v9571
      %v9667 = vadd.f32 %v9458, %v9570
      %v9668 = vadd.f32 %v9459, %v9572
      %v9669 = vadd.f32 %v9460, %v9574
      %v9670 = vadd.f32 %v9461, %v9573
      %v9671 = vadd.f32 %v9462, %v9575
      %v9672 = vadd.f32 %v9463, %v9577
      %v9673 = vadd.f32 %v9464, %v9576
      %v9674 = vadd.f32 %v9465, %v9578
      %v9675 = vadd.f32 %v9466, %v9580
      %v9676 = vadd.f32 %v9467, %v9579
      %v9677 = vadd.f32 %v9468, %v9581
      %v9678 = vadd.f32 %v9469, %v9583
      %v9679 = vadd.f32 %v9470, %v9582
      %v9680 = vadd.f32 %v9471, %v9584
      %v9681 = vadd.f32 %v9472, %v9586
      %v9682 = vadd.f32 %v9473, %v9585
      %v9683 = vadd.f32 %v9474, %v9587
      %v9684 = vadd.f32 %v9475, %v9589
      %v9685 = vadd.f32 %v9476, %v9588
      %v9686 = vadd.f32 %v9477, %v9590
      %v9687 = vadd.f32 %v9478, %v9592
      %v9688 = vadd.f32 %v9479, %v9591
      %v9689 = vadd.f32 %v9480, %v9593
      %v9690 = vadd.f32 %v9481, %v9595
      %v9691 = vadd.f32 %v9482, %v9594
      %v9692 = vadd.f32 %v9483, %v9596
      %v9693 = vadd.f32 %v9484, %v9598
      %v9694 = vadd.f32 %v9485, %v9597
      %v9695 = vadd.f32 %v9486, %v9599
      %v9696 = vadd.f32 %v9487, %v9601
      %v9697 = vadd.f32 %v9488, %v9600
      %v9698 = vadd.f32 %v9489, %v9602
      %v9699 = vadd.f32 %v9490, %v9604
      %v9700 = vadd.f32 %v9491, %v9603
      %v9701 = vadd.f32 %v9492, %v9605
      %v9702 = vadd.f32 %v9493, %v9607
      %v9703 = vadd.f32 %v9494, %v9606
      %v9704 = vadd.f32 %v9495, %v9608
      %v9705 = vadd.f32 %v9496, %v9610
      %v9706 = vadd.f32 %v9497, %v9609
      %v9707 = vperm.slane %v9446, 2
      %v9708 = vmul.f32 %v9375, %v9707
      %v9709 = vmul.f32 %v9376, %v9707
      %v9710 = vmul.f32 %v9377, %v9707
      %v9711 = vmul.f32 %v9379, %v9707
      %v9712 = vmul.f32 %v9380, %v9707
      %v9713 = vmul.f32 %v9381, %v9707
      %v9714 = vmul.f32 %v9383, %v9707
      %v9715 = vmul.f32 %v9384, %v9707
      %v9716 = vmul.f32 %v9385, %v9707
      %v9717 = vmul.f32 %v9387, %v9707
      %v9718 = vmul.f32 %v9388, %v9707
      %v9719 = vmul.f32 %v9389, %v9707
      %v9720 = vmul.f32 %v9391, %v9707
      %v9721 = vmul.f32 %v9392, %v9707
      %v9722 = vmul.f32 %v9393, %v9707
      %v9723 = vmul.f32 %v9395, %v9707
      %v9724 = vmul.f32 %v9396, %v9707
      %v9725 = vmul.f32 %v9397, %v9707
      %v9726 = vmul.f32 %v9399, %v9707
      %v9727 = vmul.f32 %v9400, %v9707
      %v9728 = vmul.f32 %v9401, %v9707
      %v9729 = vmul.f32 %v9403, %v9707
      %v9730 = vmul.f32 %v9404, %v9707
      %v9731 = vmul.f32 %v9405, %v9707
      %v9732 = vmul.f32 %v9407, %v9707
      %v9733 = vmul.f32 %v9408, %v9707
      %v9734 = vmul.f32 %v9409, %v9707
      %v9735 = vmul.f32 %v9411, %v9707
      %v9736 = vmul.f32 %v9412, %v9707
      %v9737 = vmul.f32 %v9413, %v9707
      %v9738 = vmul.f32 %v9415, %v9707
      %v9739 = vmul.f32 %v9416, %v9707
      %v9740 = vmul.f32 %v9417, %v9707
      %v9741 = vmul.f32 %v9419, %v9707
      %v9742 = vmul.f32 %v9420, %v9707
      %v9743 = vmul.f32 %v9421, %v9707
      %v9744 = vmul.f32 %v9423, %v9707
      %v9745 = vmul.f32 %v9424, %v9707
      %v9746 = vmul.f32 %v9425, %v9707
      %v9747 = vmul.f32 %v9427, %v9707
      %v9748 = vmul.f32 %v9428, %v9707
      %v9749 = vmul.f32 %v9429, %v9707
      %v9750 = vmul.f32 %v9431, %v9707
      %v9751 = vmul.f32 %v9432, %v9707
      %v9752 = vmul.f32 %v9433, %v9707
      %v9753 = vmul.f32 %v9435, %v9707
      %v9754 = vmul.f32 %v9436, %v9707
      %v9755 = vmul.f32 %v9437, %v9707
      %v9804 = vrot.slane %v9708, 2
      %v9805 = vrot.slane %v9709, 2
      %v9806 = vsel %vm2123, %v9804, %v9805
      %v9807 = vrot.slane %v9710, 2
      %v9808 = vsel %vm2123, %v9805, %v9807
      %v9809 = vrot.slane %v9711, 2
      %v9810 = vrot.slane %v9712, 2
      %v9811 = vsel %vm2123, %v9809, %v9810
      %v9812 = vrot.slane %v9713, 2
      %v9813 = vsel %vm2123, %v9810, %v9812
      %v9814 = vrot.slane %v9714, 2
      %v9815 = vrot.slane %v9715, 2
      %v9816 = vsel %vm2123, %v9814, %v9815
      %v9817 = vrot.slane %v9716, 2
      %v9818 = vsel %vm2123, %v9815, %v9817
      %v9819 = vrot.slane %v9717, 2
      %v9820 = vrot.slane %v9718, 2
      %v9821 = vsel %vm2123, %v9819, %v9820
      %v9822 = vrot.slane %v9719, 2
      %v9823 = vsel %vm2123, %v9820, %v9822
      %v9824 = vrot.slane %v9720, 2
      %v9825 = vrot.slane %v9721, 2
      %v9826 = vsel %vm2123, %v9824, %v9825
      %v9827 = vrot.slane %v9722, 2
      %v9828 = vsel %vm2123, %v9825, %v9827
      %v9829 = vrot.slane %v9723, 2
      %v9830 = vrot.slane %v9724, 2
      %v9831 = vsel %vm2123, %v9829, %v9830
      %v9832 = vrot.slane %v9725, 2
      %v9833 = vsel %vm2123, %v9830, %v9832
      %v9834 = vrot.slane %v9726, 2
      %v9835 = vrot.slane %v9727, 2
      %v9836 = vsel %vm2123, %v9834, %v9835
      %v9837 = vrot.slane %v9728, 2
      %v9838 = vsel %vm2123, %v9835, %v9837
      %v9839 = vrot.slane %v9729, 2
      %v9840 = vrot.slane %v9730, 2
      %v9841 = vsel %vm2123, %v9839, %v9840
      %v9842 = vrot.slane %v9731, 2
      %v9843 = vsel %vm2123, %v9840, %v9842
      %v9844 = vrot.slane %v9732, 2
      %v9845 = vrot.slane %v9733, 2
      %v9846 = vsel %vm2123, %v9844, %v9845
      %v9847 = vrot.slane %v9734, 2
      %v9848 = vsel %vm2123, %v9845, %v9847
      %v9849 = vrot.slane %v9735, 2
      %v9850 = vrot.slane %v9736, 2
      %v9851 = vsel %vm2123, %v9849, %v9850
      %v9852 = vrot.slane %v9737, 2
      %v9853 = vsel %vm2123, %v9850, %v9852
      %v9854 = vrot.slane %v9738, 2
      %v9855 = vrot.slane %v9739, 2
      %v9856 = vsel %vm2123, %v9854, %v9855
      %v9857 = vrot.slane %v9740, 2
      %v9858 = vsel %vm2123, %v9855, %v9857
      %v9859 = vrot.slane %v9741, 2
      %v9860 = vrot.slane %v9742, 2
      %v9861 = vsel %vm2123, %v9859, %v9860
      %v9862 = vrot.slane %v9743, 2
      %v9863 = vsel %vm2123, %v9860, %v9862
      %v9864 = vrot.slane %v9744, 2
      %v9865 = vrot.slane %v9745, 2
      %v9866 = vsel %vm2123, %v9864, %v9865
      %v9867 = vrot.slane %v9746, 2
      %v9868 = vsel %vm2123, %v9865, %v9867
      %v9869 = vrot.slane %v9747, 2
      %v9870 = vrot.slane %v9748, 2
      %v9871 = vsel %vm2123, %v9869, %v9870
      %v9872 = vrot.slane %v9749, 2
      %v9873 = vsel %vm2123, %v9870, %v9872
      %v9874 = vrot.slane %v9750, 2
      %v9875 = vrot.slane %v9751, 2
      %v9876 = vsel %vm2123, %v9874, %v9875
      %v9877 = vrot.slane %v9752, 2
      %v9878 = vsel %vm2123, %v9875, %v9877
      %v9879 = vrot.slane %v9753, 2
      %v9880 = vrot.slane %v9754, 2
      %v9881 = vsel %vm2123, %v9879, %v9880
      %v9882 = vrot.slane %v9755, 2
      %v9883 = vsel %vm2123, %v9880, %v9882
      %v9932 = vadd.f32 %v9659, %v9804
      %v9933 = vadd.f32 %v9660, %v9806
      %v9934 = vadd.f32 %v9661, %v9808
      %v9935 = vadd.f32 %v9662, %v9809
      %v9936 = vadd.f32 %v9663, %v9811
      %v9937 = vadd.f32 %v9664, %v9813
      %v9938 = vadd.f32 %v9665, %v9814
      %v9939 = vadd.f32 %v9666, %v9816
      %v9940 = vadd.f32 %v9667, %v9818
      %v9941 = vadd.f32 %v9668, %v9819
      %v9942 = vadd.f32 %v9669, %v9821
      %v9943 = vadd.f32 %v9670, %v9823
      %v9944 = vadd.f32 %v9671, %v9824
      %v9945 = vadd.f32 %v9672, %v9826
      %v9946 = vadd.f32 %v9673, %v9828
      %v9947 = vadd.f32 %v9674, %v9829
      %v9948 = vadd.f32 %v9675, %v9831
      %v9949 = vadd.f32 %v9676, %v9833
      %v9950 = vadd.f32 %v9677, %v9834
      %v9951 = vadd.f32 %v9678, %v9836
      %v9952 = vadd.f32 %v9679, %v9838
      %v9953 = vadd.f32 %v9680, %v9839
      %v9954 = vadd.f32 %v9681, %v9841
      %v9955 = vadd.f32 %v9682, %v9843
      %v9956 = vadd.f32 %v9683, %v9844
      %v9957 = vadd.f32 %v9684, %v9846
      %v9958 = vadd.f32 %v9685, %v9848
      %v9959 = vadd.f32 %v9686, %v9849
      %v9960 = vadd.f32 %v9687, %v9851
      %v9961 = vadd.f32 %v9688, %v9853
      %v9962 = vadd.f32 %v9689, %v9854
      %v9963 = vadd.f32 %v9690, %v9856
      %v9964 = vadd.f32 %v9691, %v9858
      %v9965 = vadd.f32 %v9692, %v9859
      %v9966 = vadd.f32 %v9693, %v9861
      %v9967 = vadd.f32 %v9694, %v9863
      %v9968 = vadd.f32 %v9695, %v9864
      %v9969 = vadd.f32 %v9696, %v9866
      %v9970 = vadd.f32 %v9697, %v9868
      %v9971 = vadd.f32 %v9698, %v9869
      %v9972 = vadd.f32 %v9699, %v9871
      %v9973 = vadd.f32 %v9700, %v9873
      %v9974 = vadd.f32 %v9701, %v9874
      %v9975 = vadd.f32 %v9702, %v9876
      %v9976 = vadd.f32 %v9703, %v9878
      %v9977 = vadd.f32 %v9704, %v9879
      %v9978 = vadd.f32 %v9705, %v9881
      %v9979 = vadd.f32 %v9706, %v9883
      %v9980 = vperm.slane %v9447, 0
      %v9981 = vmul.f32 %v9378, %v9980
      %v9982 = vmul.f32 %v9379, %v9980
      %v9983 = vmul.f32 %v9380, %v9980
      %v9984 = vmul.f32 %v9382, %v9980
      %v9985 = vmul.f32 %v9383, %v9980
      %v9986 = vmul.f32 %v9384, %v9980
      %v9987 = vmul.f32 %v9386, %v9980
      %v9988 = vmul.f32 %v9387, %v9980
      %v9989 = vmul.f32 %v9388, %v9980
      %v9990 = vmul.f32 %v9390, %v9980
      %v9991 = vmul.f32 %v9391, %v9980
      %v9992 = vmul.f32 %v9392, %v9980
      %v9993 = vmul.f32 %v9394, %v9980
      %v9994 = vmul.f32 %v9395, %v9980
      %v9995 = vmul.f32 %v9396, %v9980
      %v9996 = vmul.f32 %v9398, %v9980
      %v9997 = vmul.f32 %v9399, %v9980
      %v9998 = vmul.f32 %v9400, %v9980
      %v9999 = vmul.f32 %v9402, %v9980
      %v10000 = vmul.f32 %v9403, %v9980
      %v10001 = vmul.f32 %v9404, %v9980
      %v10002 = vmul.f32 %v9406, %v9980
      %v10003 = vmul.f32 %v9407, %v9980
      %v10004 = vmul.f32 %v9408, %v9980
      %v10005 = vmul.f32 %v9410, %v9980
      %v10006 = vmul.f32 %v9411, %v9980
      %v10007 = vmul.f32 %v9412, %v9980
      %v10008 = vmul.f32 %v9414, %v9980
      %v10009 = vmul.f32 %v9415, %v9980
      %v10010 = vmul.f32 %v9416, %v9980
      %v10011 = vmul.f32 %v9418, %v9980
      %v10012 = vmul.f32 %v9419, %v9980
      %v10013 = vmul.f32 %v9420, %v9980
      %v10014 = vmul.f32 %v9422, %v9980
      %v10015 = vmul.f32 %v9423, %v9980
      %v10016 = vmul.f32 %v9424, %v9980
      %v10017 = vmul.f32 %v9426, %v9980
      %v10018 = vmul.f32 %v9427, %v9980
      %v10019 = vmul.f32 %v9428, %v9980
      %v10020 = vmul.f32 %v9430, %v9980
      %v10021 = vmul.f32 %v9431, %v9980
      %v10022 = vmul.f32 %v9432, %v9980
      %v10023 = vmul.f32 %v9434, %v9980
      %v10024 = vmul.f32 %v9435, %v9980
      %v10025 = vmul.f32 %v9436, %v9980
      %v10026 = vmul.f32 %v9438, %v9980
      %v10027 = vmul.f32 %v9439, %v9980
      %v10028 = vmul.f32 %v9440, %v9980
      %v10029 = vadd.f32 %v9932, %v9981
      %v10030 = vadd.f32 %v9933, %v9982
      %v10031 = vadd.f32 %v9934, %v9983
      %v10032 = vadd.f32 %v9935, %v9984
      %v10033 = vadd.f32 %v9936, %v9985
      %v10034 = vadd.f32 %v9937, %v9986
      %v10035 = vadd.f32 %v9938, %v9987
      %v10036 = vadd.f32 %v9939, %v9988
      %v10037 = vadd.f32 %v9940, %v9989
      %v10038 = vadd.f32 %v9941, %v9990
      %v10039 = vadd.f32 %v9942, %v9991
      %v10040 = vadd.f32 %v9943, %v9992
      %v10041 = vadd.f32 %v9944, %v9993
      %v10042 = vadd.f32 %v9945, %v9994
      %v10043 = vadd.f32 %v9946, %v9995
      %v10044 = vadd.f32 %v9947, %v9996
      %v10045 = vadd.f32 %v9948, %v9997
      %v10046 = vadd.f32 %v9949, %v9998
      %v10047 = vadd.f32 %v9950, %v9999
      %v10048 = vadd.f32 %v9951, %v10000
      %v10049 = vadd.f32 %v9952, %v10001
      %v10050 = vadd.f32 %v9953, %v10002
      %v10051 = vadd.f32 %v9954, %v10003
      %v10052 = vadd.f32 %v9955, %v10004
      %v10053 = vadd.f32 %v9956, %v10005
      %v10054 = vadd.f32 %v9957, %v10006
      %v10055 = vadd.f32 %v9958, %v10007
      %v10056 = vadd.f32 %v9959, %v10008
      %v10057 = vadd.f32 %v9960, %v10009
      %v10058 = vadd.f32 %v9961, %v10010
      %v10059 = vadd.f32 %v9962, %v10011
      %v10060 = vadd.f32 %v9963, %v10012
      %v10061 = vadd.f32 %v9964, %v10013
      %v10062 = vadd.f32 %v9965, %v10014
      %v10063 = vadd.f32 %v9966, %v10015
      %v10064 = vadd.f32 %v9967, %v10016
      %v10065 = vadd.f32 %v9968, %v10017
      %v10066 = vadd.f32 %v9969, %v10018
      %v10067 = vadd.f32 %v9970, %v10019
      %v10068 = vadd.f32 %v9971, %v10020
      %v10069 = vadd.f32 %v9972, %v10021
      %v10070 = vadd.f32 %v9973, %v10022
      %v10071 = vadd.f32 %v9974, %v10023
      %v10072 = vadd.f32 %v9975, %v10024
      %v10073 = vadd.f32 %v9976, %v10025
      %v10074 = vadd.f32 %v9977, %v10026
      %v10075 = vadd.f32 %v9978, %v10027
      %v10076 = vadd.f32 %v9979, %v10028
      %v10077 = vperm.slane %v9447, 1
      %v10078 = vmul.f32 %v9379, %v10077
      %v10079 = vmul.f32 %v9380, %v10077
      %v10080 = vmul.f32 %v9383, %v10077
      %v10081 = vmul.f32 %v9384, %v10077
      %v10082 = vmul.f32 %v9387, %v10077
      %v10083 = vmul.f32 %v9388, %v10077
      %v10084 = vmul.f32 %v9391, %v10077
      %v10085 = vmul.f32 %v9392, %v10077
      %v10086 = vmul.f32 %v9395, %v10077
      %v10087 = vmul.f32 %v9396, %v10077
      %v10088 = vmul.f32 %v9399, %v10077
      %v10089 = vmul.f32 %v9400, %v10077
      %v10090 = vmul.f32 %v9403, %v10077
      %v10091 = vmul.f32 %v9404, %v10077
      %v10092 = vmul.f32 %v9407, %v10077
      %v10093 = vmul.f32 %v9408, %v10077
      %v10094 = vmul.f32 %v9411, %v10077
      %v10095 = vmul.f32 %v9412, %v10077
      %v10096 = vmul.f32 %v9415, %v10077
      %v10097 = vmul.f32 %v9416, %v10077
      %v10098 = vmul.f32 %v9419, %v10077
      %v10099 = vmul.f32 %v9420, %v10077
      %v10100 = vmul.f32 %v9423, %v10077
      %v10101 = vmul.f32 %v9424, %v10077
      %v10102 = vmul.f32 %v9427, %v10077
      %v10103 = vmul.f32 %v9428, %v10077
      %v10104 = vmul.f32 %v9431, %v10077
      %v10105 = vmul.f32 %v9432, %v10077
      %v10106 = vmul.f32 %v9435, %v10077
      %v10107 = vmul.f32 %v9436, %v10077
      %v10108 = vmul.f32 %v9439, %v10077
      %v10109 = vmul.f32 %v9440, %v10077
      %v10142 = vrot.slane %v10078, 1
      %v10143 = vrot.slane %v10079, 1
      %v10144 = vsel %vm1881, %v10142, %v10143
      %v10145 = vrot.slane %v10080, 1
      %v10146 = vrot.slane %v10081, 1
      %v10147 = vsel %vm1881, %v10145, %v10146
      %v10148 = vrot.slane %v10082, 1
      %v10149 = vrot.slane %v10083, 1
      %v10150 = vsel %vm1881, %v10148, %v10149
      %v10151 = vrot.slane %v10084, 1
      %v10152 = vrot.slane %v10085, 1
      %v10153 = vsel %vm1881, %v10151, %v10152
      %v10154 = vrot.slane %v10086, 1
      %v10155 = vrot.slane %v10087, 1
      %v10156 = vsel %vm1881, %v10154, %v10155
      %v10157 = vrot.slane %v10088, 1
      %v10158 = vrot.slane %v10089, 1
      %v10159 = vsel %vm1881, %v10157, %v10158
      %v10160 = vrot.slane %v10090, 1
      %v10161 = vrot.slane %v10091, 1
      %v10162 = vsel %vm1881, %v10160, %v10161
      %v10163 = vrot.slane %v10092, 1
      %v10164 = vrot.slane %v10093, 1
      %v10165 = vsel %vm1881, %v10163, %v10164
      %v10166 = vrot.slane %v10094, 1
      %v10167 = vrot.slane %v10095, 1
      %v10168 = vsel %vm1881, %v10166, %v10167
      %v10169 = vrot.slane %v10096, 1
      %v10170 = vrot.slane %v10097, 1
      %v10171 = vsel %vm1881, %v10169, %v10170
      %v10172 = vrot.slane %v10098, 1
      %v10173 = vrot.slane %v10099, 1
      %v10174 = vsel %vm1881, %v10172, %v10173
      %v10175 = vrot.slane %v10100, 1
      %v10176 = vrot.slane %v10101, 1
      %v10177 = vsel %vm1881, %v10175, %v10176
      %v10178 = vrot.slane %v10102, 1
      %v10179 = vrot.slane %v10103, 1
      %v10180 = vsel %vm1881, %v10178, %v10179
      %v10181 = vrot.slane %v10104, 1
      %v10182 = vrot.slane %v10105, 1
      %v10183 = vsel %vm1881, %v10181, %v10182
      %v10184 = vrot.slane %v10106, 1
      %v10185 = vrot.slane %v10107, 1
      %v10186 = vsel %vm1881, %v10184, %v10185
      %v10187 = vrot.slane %v10108, 1
      %v10188 = vrot.slane %v10109, 1
      %v10189 = vsel %vm1881, %v10187, %v10188
      %v10238 = vadd.f32 %v10029, %v10142
      %v10239 = vadd.f32 %v10030, %v10144
      %v10240 = vadd.f32 %v10031, %v10143
      %v10241 = vadd.f32 %v10032, %v10145
      %v10242 = vadd.f32 %v10033, %v10147
      %v10243 = vadd.f32 %v10034, %v10146
      %v10244 = vadd.f32 %v10035, %v10148
      %v10245 = vadd.f32 %v10036, %v10150
      %v10246 = vadd.f32 %v10037, %v10149
      %v10247 = vadd.f32 %v10038, %v10151
      %v10248 = vadd.f32 %v10039, %v10153
      %v10249 = vadd.f32 %v10040, %v10152
      %v10250 = vadd.f32 %v10041, %v10154
      %v10251 = vadd.f32 %v10042, %v10156
      %v10252 = vadd.f32 %v10043, %v10155
      %v10253 = vadd.f32 %v10044, %v10157
      %v10254 = vadd.f32 %v10045, %v10159
      %v10255 = vadd.f32 %v10046, %v10158
      %v10256 = vadd.f32 %v10047, %v10160
      %v10257 = vadd.f32 %v10048, %v10162
      %v10258 = vadd.f32 %v10049, %v10161
      %v10259 = vadd.f32 %v10050, %v10163
      %v10260 = vadd.f32 %v10051, %v10165
      %v10261 = vadd.f32 %v10052, %v10164
      %v10262 = vadd.f32 %v10053, %v10166
      %v10263 = vadd.f32 %v10054, %v10168
      %v10264 = vadd.f32 %v10055, %v10167
      %v10265 = vadd.f32 %v10056, %v10169
      %v10266 = vadd.f32 %v10057, %v10171
      %v10267 = vadd.f32 %v10058, %v10170
      %v10268 = vadd.f32 %v10059, %v10172
      %v10269 = vadd.f32 %v10060, %v10174
      %v10270 = vadd.f32 %v10061, %v10173
      %v10271 = vadd.f32 %v10062, %v10175
      %v10272 = vadd.f32 %v10063, %v10177
      %v10273 = vadd.f32 %v10064, %v10176
      %v10274 = vadd.f32 %v10065, %v10178
      %v10275 = vadd.f32 %v10066, %v10180
      %v10276 = vadd.f32 %v10067, %v10179
      %v10277 = vadd.f32 %v10068, %v10181
      %v10278 = vadd.f32 %v10069, %v10183
      %v10279 = vadd.f32 %v10070, %v10182
      %v10280 = vadd.f32 %v10071, %v10184
      %v10281 = vadd.f32 %v10072, %v10186
      %v10282 = vadd.f32 %v10073, %v10185
      %v10283 = vadd.f32 %v10074, %v10187
      %v10284 = vadd.f32 %v10075, %v10189
      %v10285 = vadd.f32 %v10076, %v10188
      %v10286 = vperm.slane %v9447, 2
      %v10287 = vmul.f32 %v9379, %v10286
      %v10288 = vmul.f32 %v9380, %v10286
      %v10289 = vmul.f32 %v9381, %v10286
      %v10290 = vmul.f32 %v9383, %v10286
      %v10291 = vmul.f32 %v9384, %v10286
      %v10292 = vmul.f32 %v9385, %v10286
      %v10293 = vmul.f32 %v9387, %v10286
      %v10294 = vmul.f32 %v9388, %v10286
      %v10295 = vmul.f32 %v9389, %v10286
      %v10296 = vmul.f32 %v9391, %v10286
      %v10297 = vmul.f32 %v9392, %v10286
      %v10298 = vmul.f32 %v9393, %v10286
      %v10299 = vmul.f32 %v9395, %v10286
      %v10300 = vmul.f32 %v9396, %v10286
      %v10301 = vmul.f32 %v9397, %v10286
      %v10302 = vmul.f32 %v9399, %v10286
      %v10303 = vmul.f32 %v9400, %v10286
      %v10304 = vmul.f32 %v9401, %v10286
      %v10305 = vmul.f32 %v9403, %v10286
      %v10306 = vmul.f32 %v9404, %v10286
      %v10307 = vmul.f32 %v9405, %v10286
      %v10308 = vmul.f32 %v9407, %v10286
      %v10309 = vmul.f32 %v9408, %v10286
      %v10310 = vmul.f32 %v9409, %v10286
      %v10311 = vmul.f32 %v9411, %v10286
      %v10312 = vmul.f32 %v9412, %v10286
      %v10313 = vmul.f32 %v9413, %v10286
      %v10314 = vmul.f32 %v9415, %v10286
      %v10315 = vmul.f32 %v9416, %v10286
      %v10316 = vmul.f32 %v9417, %v10286
      %v10317 = vmul.f32 %v9419, %v10286
      %v10318 = vmul.f32 %v9420, %v10286
      %v10319 = vmul.f32 %v9421, %v10286
      %v10320 = vmul.f32 %v9423, %v10286
      %v10321 = vmul.f32 %v9424, %v10286
      %v10322 = vmul.f32 %v9425, %v10286
      %v10323 = vmul.f32 %v9427, %v10286
      %v10324 = vmul.f32 %v9428, %v10286
      %v10325 = vmul.f32 %v9429, %v10286
      %v10326 = vmul.f32 %v9431, %v10286
      %v10327 = vmul.f32 %v9432, %v10286
      %v10328 = vmul.f32 %v9433, %v10286
      %v10329 = vmul.f32 %v9435, %v10286
      %v10330 = vmul.f32 %v9436, %v10286
      %v10331 = vmul.f32 %v9437, %v10286
      %v10332 = vmul.f32 %v9439, %v10286
      %v10333 = vmul.f32 %v9440, %v10286
      %v10334 = vmul.f32 %v9441, %v10286
      %v10383 = vrot.slane %v10287, 2
      %v10384 = vrot.slane %v10288, 2
      %v10385 = vsel %vm2123, %v10383, %v10384
      %v10386 = vrot.slane %v10289, 2
      %v10387 = vsel %vm2123, %v10384, %v10386
      %v10388 = vrot.slane %v10290, 2
      %v10389 = vrot.slane %v10291, 2
      %v10390 = vsel %vm2123, %v10388, %v10389
      %v10391 = vrot.slane %v10292, 2
      %v10392 = vsel %vm2123, %v10389, %v10391
      %v10393 = vrot.slane %v10293, 2
      %v10394 = vrot.slane %v10294, 2
      %v10395 = vsel %vm2123, %v10393, %v10394
      %v10396 = vrot.slane %v10295, 2
      %v10397 = vsel %vm2123, %v10394, %v10396
      %v10398 = vrot.slane %v10296, 2
      %v10399 = vrot.slane %v10297, 2
      %v10400 = vsel %vm2123, %v10398, %v10399
      %v10401 = vrot.slane %v10298, 2
      %v10402 = vsel %vm2123, %v10399, %v10401
      %v10403 = vrot.slane %v10299, 2
      %v10404 = vrot.slane %v10300, 2
      %v10405 = vsel %vm2123, %v10403, %v10404
      %v10406 = vrot.slane %v10301, 2
      %v10407 = vsel %vm2123, %v10404, %v10406
      %v10408 = vrot.slane %v10302, 2
      %v10409 = vrot.slane %v10303, 2
      %v10410 = vsel %vm2123, %v10408, %v10409
      %v10411 = vrot.slane %v10304, 2
      %v10412 = vsel %vm2123, %v10409, %v10411
      %v10413 = vrot.slane %v10305, 2
      %v10414 = vrot.slane %v10306, 2
      %v10415 = vsel %vm2123, %v10413, %v10414
      %v10416 = vrot.slane %v10307, 2
      %v10417 = vsel %vm2123, %v10414, %v10416
      %v10418 = vrot.slane %v10308, 2
      %v10419 = vrot.slane %v10309, 2
      %v10420 = vsel %vm2123, %v10418, %v10419
      %v10421 = vrot.slane %v10310, 2
      %v10422 = vsel %vm2123, %v10419, %v10421
      %v10423 = vrot.slane %v10311, 2
      %v10424 = vrot.slane %v10312, 2
      %v10425 = vsel %vm2123, %v10423, %v10424
      %v10426 = vrot.slane %v10313, 2
      %v10427 = vsel %vm2123, %v10424, %v10426
      %v10428 = vrot.slane %v10314, 2
      %v10429 = vrot.slane %v10315, 2
      %v10430 = vsel %vm2123, %v10428, %v10429
      %v10431 = vrot.slane %v10316, 2
      %v10432 = vsel %vm2123, %v10429, %v10431
      %v10433 = vrot.slane %v10317, 2
      %v10434 = vrot.slane %v10318, 2
      %v10435 = vsel %vm2123, %v10433, %v10434
      %v10436 = vrot.slane %v10319, 2
      %v10437 = vsel %vm2123, %v10434, %v10436
      %v10438 = vrot.slane %v10320, 2
      %v10439 = vrot.slane %v10321, 2
      %v10440 = vsel %vm2123, %v10438, %v10439
      %v10441 = vrot.slane %v10322, 2
      %v10442 = vsel %vm2123, %v10439, %v10441
      %v10443 = vrot.slane %v10323, 2
      %v10444 = vrot.slane %v10324, 2
      %v10445 = vsel %vm2123, %v10443, %v10444
      %v10446 = vrot.slane %v10325, 2
      %v10447 = vsel %vm2123, %v10444, %v10446
      %v10448 = vrot.slane %v10326, 2
      %v10449 = vrot.slane %v10327, 2
      %v10450 = vsel %vm2123, %v10448, %v10449
      %v10451 = vrot.slane %v10328, 2
      %v10452 = vsel %vm2123, %v10449, %v10451
      %v10453 = vrot.slane %v10329, 2
      %v10454 = vrot.slane %v10330, 2
      %v10455 = vsel %vm2123, %v10453, %v10454
      %v10456 = vrot.slane %v10331, 2
      %v10457 = vsel %vm2123, %v10454, %v10456
      %v10458 = vrot.slane %v10332, 2
      %v10459 = vrot.slane %v10333, 2
      %v10460 = vsel %vm2123, %v10458, %v10459
      %v10461 = vrot.slane %v10334, 2
      %v10462 = vsel %vm2123, %v10459, %v10461
      %v10511 = vadd.f32 %v10238, %v10383
      %v10512 = vadd.f32 %v10239, %v10385
      %v10513 = vadd.f32 %v10240, %v10387
      %v10514 = vadd.f32 %v10241, %v10388
      %v10515 = vadd.f32 %v10242, %v10390
      %v10516 = vadd.f32 %v10243, %v10392
      %v10517 = vadd.f32 %v10244, %v10393
      %v10518 = vadd.f32 %v10245, %v10395
      %v10519 = vadd.f32 %v10246, %v10397
      %v10520 = vadd.f32 %v10247, %v10398
      %v10521 = vadd.f32 %v10248, %v10400
      %v10522 = vadd.f32 %v10249, %v10402
      %v10523 = vadd.f32 %v10250, %v10403
      %v10524 = vadd.f32 %v10251, %v10405
      %v10525 = vadd.f32 %v10252, %v10407
      %v10526 = vadd.f32 %v10253, %v10408
      %v10527 = vadd.f32 %v10254, %v10410
      %v10528 = vadd.f32 %v10255, %v10412
      %v10529 = vadd.f32 %v10256, %v10413
      %v10530 = vadd.f32 %v10257, %v10415
      %v10531 = vadd.f32 %v10258, %v10417
      %v10532 = vadd.f32 %v10259, %v10418
      %v10533 = vadd.f32 %v10260, %v10420
      %v10534 = vadd.f32 %v10261, %v10422
      %v10535 = vadd.f32 %v10262, %v10423
      %v10536 = vadd.f32 %v10263, %v10425
      %v10537 = vadd.f32 %v10264, %v10427
      %v10538 = vadd.f32 %v10265, %v10428
      %v10539 = vadd.f32 %v10266, %v10430
      %v10540 = vadd.f32 %v10267, %v10432
      %v10541 = vadd.f32 %v10268, %v10433
      %v10542 = vadd.f32 %v10269, %v10435
      %v10543 = vadd.f32 %v10270, %v10437
      %v10544 = vadd.f32 %v10271, %v10438
      %v10545 = vadd.f32 %v10272, %v10440
      %v10546 = vadd.f32 %v10273, %v10442
      %v10547 = vadd.f32 %v10274, %v10443
      %v10548 = vadd.f32 %v10275, %v10445
      %v10549 = vadd.f32 %v10276, %v10447
      %v10550 = vadd.f32 %v10277, %v10448
      %v10551 = vadd.f32 %v10278, %v10450
      %v10552 = vadd.f32 %v10279, %v10452
      %v10553 = vadd.f32 %v10280, %v10453
      %v10554 = vadd.f32 %v10281, %v10455
      %v10555 = vadd.f32 %v10282, %v10457
      %v10556 = vadd.f32 %v10283, %v10458
      %v10557 = vadd.f32 %v10284, %v10460
      %v10558 = vadd.f32 %v10285, %v10462
      %v10559 = vperm.slane %v9448, 0
      %v10560 = vmul.f32 %v9382, %v10559
      %v10561 = vmul.f32 %v9383, %v10559
      %v10562 = vmul.f32 %v9384, %v10559
      %v10563 = vmul.f32 %v9386, %v10559
      %v10564 = vmul.f32 %v9387, %v10559
      %v10565 = vmul.f32 %v9388, %v10559
      %v10566 = vmul.f32 %v9390, %v10559
      %v10567 = vmul.f32 %v9391, %v10559
      %v10568 = vmul.f32 %v9392, %v10559
      %v10569 = vmul.f32 %v9394, %v10559
      %v10570 = vmul.f32 %v9395, %v10559
      %v10571 = vmul.f32 %v9396, %v10559
      %v10572 = vmul.f32 %v9398, %v10559
      %v10573 = vmul.f32 %v9399, %v10559
      %v10574 = vmul.f32 %v9400, %v10559
      %v10575 = vmul.f32 %v9402, %v10559
      %v10576 = vmul.f32 %v9403, %v10559
      %v10577 = vmul.f32 %v9404, %v10559
      %v10578 = vmul.f32 %v9406, %v10559
      %v10579 = vmul.f32 %v9407, %v10559
      %v10580 = vmul.f32 %v9408, %v10559
      %v10581 = vmul.f32 %v9410, %v10559
      %v10582 = vmul.f32 %v9411, %v10559
      %v10583 = vmul.f32 %v9412, %v10559
      %v10584 = vmul.f32 %v9414, %v10559
      %v10585 = vmul.f32 %v9415, %v10559
      %v10586 = vmul.f32 %v9416, %v10559
      %v10587 = vmul.f32 %v9418, %v10559
      %v10588 = vmul.f32 %v9419, %v10559
      %v10589 = vmul.f32 %v9420, %v10559
      %v10590 = vmul.f32 %v9422, %v10559
      %v10591 = vmul.f32 %v9423, %v10559
      %v10592 = vmul.f32 %v9424, %v10559
      %v10593 = vmul.f32 %v9426, %v10559
      %v10594 = vmul.f32 %v9427, %v10559
      %v10595 = vmul.f32 %v9428, %v10559
      %v10596 = vmul.f32 %v9430, %v10559
      %v10597 = vmul.f32 %v9431, %v10559
      %v10598 = vmul.f32 %v9432, %v10559
      %v10599 = vmul.f32 %v9434, %v10559
      %v10600 = vmul.f32 %v9435, %v10559
      %v10601 = vmul.f32 %v9436, %v10559
      %v10602 = vmul.f32 %v9438, %v10559
      %v10603 = vmul.f32 %v9439, %v10559
      %v10604 = vmul.f32 %v9440, %v10559
      %v10605 = vmul.f32 %v9442, %v10559
      %v10606 = vmul.f32 %v9443, %v10559
      %v10607 = vmul.f32 %v9444, %v10559
      %v10608 = vadd.f32 %v10511, %v10560
      %v10609 = vadd.f32 %v10512, %v10561
      %v10610 = vadd.f32 %v10513, %v10562
      %v10611 = vadd.f32 %v10514, %v10563
      %v10612 = vadd.f32 %v10515, %v10564
      %v10613 = vadd.f32 %v10516, %v10565
      %v10614 = vadd.f32 %v10517, %v10566
      %v10615 = vadd.f32 %v10518, %v10567
      %v10616 = vadd.f32 %v10519, %v10568
      %v10617 = vadd.f32 %v10520, %v10569
      %v10618 = vadd.f32 %v10521, %v10570
      %v10619 = vadd.f32 %v10522, %v10571
      %v10620 = vadd.f32 %v10523, %v10572
      %v10621 = vadd.f32 %v10524, %v10573
      %v10622 = vadd.f32 %v10525, %v10574
      %v10623 = vadd.f32 %v10526, %v10575
      %v10624 = vadd.f32 %v10527, %v10576
      %v10625 = vadd.f32 %v10528, %v10577
      %v10626 = vadd.f32 %v10529, %v10578
      %v10627 = vadd.f32 %v10530, %v10579
      %v10628 = vadd.f32 %v10531, %v10580
      %v10629 = vadd.f32 %v10532, %v10581
      %v10630 = vadd.f32 %v10533, %v10582
      %v10631 = vadd.f32 %v10534, %v10583
      %v10632 = vadd.f32 %v10535, %v10584
      %v10633 = vadd.f32 %v10536, %v10585
      %v10634 = vadd.f32 %v10537, %v10586
      %v10635 = vadd.f32 %v10538, %v10587
      %v10636 = vadd.f32 %v10539, %v10588
      %v10637 = vadd.f32 %v10540, %v10589
      %v10638 = vadd.f32 %v10541, %v10590
      %v10639 = vadd.f32 %v10542, %v10591
      %v10640 = vadd.f32 %v10543, %v10592
      %v10641 = vadd.f32 %v10544, %v10593
      %v10642 = vadd.f32 %v10545, %v10594
      %v10643 = vadd.f32 %v10546, %v10595
      %v10644 = vadd.f32 %v10547, %v10596
      %v10645 = vadd.f32 %v10548, %v10597
      %v10646 = vadd.f32 %v10549, %v10598
      %v10647 = vadd.f32 %v10550, %v10599
      %v10648 = vadd.f32 %v10551, %v10600
      %v10649 = vadd.f32 %v10552, %v10601
      %v10650 = vadd.f32 %v10553, %v10602
      %v10651 = vadd.f32 %v10554, %v10603
      %v10652 = vadd.f32 %v10555, %v10604
      %v10653 = vadd.f32 %v10556, %v10605
      %v10654 = vadd.f32 %v10557, %v10606
      %v10655 = vadd.f32 %v10558, %v10607
      %v10656 = vperm.slane %v9448, 1
      %v10657 = vmul.f32 %v9383, %v10656
      %v10658 = vmul.f32 %v9384, %v10656
      %v10659 = vmul.f32 %v9387, %v10656
      %v10660 = vmul.f32 %v9388, %v10656
      %v10661 = vmul.f32 %v9391, %v10656
      %v10662 = vmul.f32 %v9392, %v10656
      %v10663 = vmul.f32 %v9395, %v10656
      %v10664 = vmul.f32 %v9396, %v10656
      %v10665 = vmul.f32 %v9399, %v10656
      %v10666 = vmul.f32 %v9400, %v10656
      %v10667 = vmul.f32 %v9403, %v10656
      %v10668 = vmul.f32 %v9404, %v10656
      %v10669 = vmul.f32 %v9407, %v10656
      %v10670 = vmul.f32 %v9408, %v10656
      %v10671 = vmul.f32 %v9411, %v10656
      %v10672 = vmul.f32 %v9412, %v10656
      %v10673 = vmul.f32 %v9415, %v10656
      %v10674 = vmul.f32 %v9416, %v10656
      %v10675 = vmul.f32 %v9419, %v10656
      %v10676 = vmul.f32 %v9420, %v10656
      %v10677 = vmul.f32 %v9423, %v10656
      %v10678 = vmul.f32 %v9424, %v10656
      %v10679 = vmul.f32 %v9427, %v10656
      %v10680 = vmul.f32 %v9428, %v10656
      %v10681 = vmul.f32 %v9431, %v10656
      %v10682 = vmul.f32 %v9432, %v10656
      %v10683 = vmul.f32 %v9435, %v10656
      %v10684 = vmul.f32 %v9436, %v10656
      %v10685 = vmul.f32 %v9439, %v10656
      %v10686 = vmul.f32 %v9440, %v10656
      %v10687 = vmul.f32 %v9443, %v10656
      %v10688 = vmul.f32 %v9444, %v10656
      %v10721 = vrot.slane %v10657, 1
      %v10722 = vrot.slane %v10658, 1
      %v10723 = vsel %vm1881, %v10721, %v10722
      %v10724 = vrot.slane %v10659, 1
      %v10725 = vrot.slane %v10660, 1
      %v10726 = vsel %vm1881, %v10724, %v10725
      %v10727 = vrot.slane %v10661, 1
      %v10728 = vrot.slane %v10662, 1
      %v10729 = vsel %vm1881, %v10727, %v10728
      %v10730 = vrot.slane %v10663, 1
      %v10731 = vrot.slane %v10664, 1
      %v10732 = vsel %vm1881, %v10730, %v10731
      %v10733 = vrot.slane %v10665, 1
      %v10734 = vrot.slane %v10666, 1
      %v10735 = vsel %vm1881, %v10733, %v10734
      %v10736 = vrot.slane %v10667, 1
      %v10737 = vrot.slane %v10668, 1
      %v10738 = vsel %vm1881, %v10736, %v10737
      %v10739 = vrot.slane %v10669, 1
      %v10740 = vrot.slane %v10670, 1
      %v10741 = vsel %vm1881, %v10739, %v10740
      %v10742 = vrot.slane %v10671, 1
      %v10743 = vrot.slane %v10672, 1
      %v10744 = vsel %vm1881, %v10742, %v10743
      %v10745 = vrot.slane %v10673, 1
      %v10746 = vrot.slane %v10674, 1
      %v10747 = vsel %vm1881, %v10745, %v10746
      %v10748 = vrot.slane %v10675, 1
      %v10749 = vrot.slane %v10676, 1
      %v10750 = vsel %vm1881, %v10748, %v10749
      %v10751 = vrot.slane %v10677, 1
      %v10752 = vrot.slane %v10678, 1
      %v10753 = vsel %vm1881, %v10751, %v10752
      %v10754 = vrot.slane %v10679, 1
      %v10755 = vrot.slane %v10680, 1
      %v10756 = vsel %vm1881, %v10754, %v10755
      %v10757 = vrot.slane %v10681, 1
      %v10758 = vrot.slane %v10682, 1
      %v10759 = vsel %vm1881, %v10757, %v10758
      %v10760 = vrot.slane %v10683, 1
      %v10761 = vrot.slane %v10684, 1
      %v10762 = vsel %vm1881, %v10760, %v10761
      %v10763 = vrot.slane %v10685, 1
      %v10764 = vrot.slane %v10686, 1
      %v10765 = vsel %vm1881, %v10763, %v10764
      %v10766 = vrot.slane %v10687, 1
      %v10767 = vrot.slane %v10688, 1
      %v10768 = vsel %vm1881, %v10766, %v10767
      %v10817 = vadd.f32 %v10608, %v10721
      %v10818 = vadd.f32 %v10609, %v10723
      %v10819 = vadd.f32 %v10610, %v10722
      %v10820 = vadd.f32 %v10611, %v10724
      %v10821 = vadd.f32 %v10612, %v10726
      %v10822 = vadd.f32 %v10613, %v10725
      %v10823 = vadd.f32 %v10614, %v10727
      %v10824 = vadd.f32 %v10615, %v10729
      %v10825 = vadd.f32 %v10616, %v10728
      %v10826 = vadd.f32 %v10617, %v10730
      %v10827 = vadd.f32 %v10618, %v10732
      %v10828 = vadd.f32 %v10619, %v10731
      %v10829 = vadd.f32 %v10620, %v10733
      %v10830 = vadd.f32 %v10621, %v10735
      %v10831 = vadd.f32 %v10622, %v10734
      %v10832 = vadd.f32 %v10623, %v10736
      %v10833 = vadd.f32 %v10624, %v10738
      %v10834 = vadd.f32 %v10625, %v10737
      %v10835 = vadd.f32 %v10626, %v10739
      %v10836 = vadd.f32 %v10627, %v10741
      %v10837 = vadd.f32 %v10628, %v10740
      %v10838 = vadd.f32 %v10629, %v10742
      %v10839 = vadd.f32 %v10630, %v10744
      %v10840 = vadd.f32 %v10631, %v10743
      %v10841 = vadd.f32 %v10632, %v10745
      %v10842 = vadd.f32 %v10633, %v10747
      %v10843 = vadd.f32 %v10634, %v10746
      %v10844 = vadd.f32 %v10635, %v10748
      %v10845 = vadd.f32 %v10636, %v10750
      %v10846 = vadd.f32 %v10637, %v10749
      %v10847 = vadd.f32 %v10638, %v10751
      %v10848 = vadd.f32 %v10639, %v10753
      %v10849 = vadd.f32 %v10640, %v10752
      %v10850 = vadd.f32 %v10641, %v10754
      %v10851 = vadd.f32 %v10642, %v10756
      %v10852 = vadd.f32 %v10643, %v10755
      %v10853 = vadd.f32 %v10644, %v10757
      %v10854 = vadd.f32 %v10645, %v10759
      %v10855 = vadd.f32 %v10646, %v10758
      %v10856 = vadd.f32 %v10647, %v10760
      %v10857 = vadd.f32 %v10648, %v10762
      %v10858 = vadd.f32 %v10649, %v10761
      %v10859 = vadd.f32 %v10650, %v10763
      %v10860 = vadd.f32 %v10651, %v10765
      %v10861 = vadd.f32 %v10652, %v10764
      %v10862 = vadd.f32 %v10653, %v10766
      %v10863 = vadd.f32 %v10654, %v10768
      %v10864 = vadd.f32 %v10655, %v10767
      %v10865 = vperm.slane %v9448, 2
      %v10866 = vmul.f32 %v9383, %v10865
      %v10867 = vmul.f32 %v9384, %v10865
      %v10868 = vmul.f32 %v9385, %v10865
      %v10869 = vmul.f32 %v9387, %v10865
      %v10870 = vmul.f32 %v9388, %v10865
      %v10871 = vmul.f32 %v9389, %v10865
      %v10872 = vmul.f32 %v9391, %v10865
      %v10873 = vmul.f32 %v9392, %v10865
      %v10874 = vmul.f32 %v9393, %v10865
      %v10875 = vmul.f32 %v9395, %v10865
      %v10876 = vmul.f32 %v9396, %v10865
      %v10877 = vmul.f32 %v9397, %v10865
      %v10878 = vmul.f32 %v9399, %v10865
      %v10879 = vmul.f32 %v9400, %v10865
      %v10880 = vmul.f32 %v9401, %v10865
      %v10881 = vmul.f32 %v9403, %v10865
      %v10882 = vmul.f32 %v9404, %v10865
      %v10883 = vmul.f32 %v9405, %v10865
      %v10884 = vmul.f32 %v9407, %v10865
      %v10885 = vmul.f32 %v9408, %v10865
      %v10886 = vmul.f32 %v9409, %v10865
      %v10887 = vmul.f32 %v9411, %v10865
      %v10888 = vmul.f32 %v9412, %v10865
      %v10889 = vmul.f32 %v9413, %v10865
      %v10890 = vmul.f32 %v9415, %v10865
      %v10891 = vmul.f32 %v9416, %v10865
      %v10892 = vmul.f32 %v9417, %v10865
      %v10893 = vmul.f32 %v9419, %v10865
      %v10894 = vmul.f32 %v9420, %v10865
      %v10895 = vmul.f32 %v9421, %v10865
      %v10896 = vmul.f32 %v9423, %v10865
      %v10897 = vmul.f32 %v9424, %v10865
      %v10898 = vmul.f32 %v9425, %v10865
      %v10899 = vmul.f32 %v9427, %v10865
      %v10900 = vmul.f32 %v9428, %v10865
      %v10901 = vmul.f32 %v9429, %v10865
      %v10902 = vmul.f32 %v9431, %v10865
      %v10903 = vmul.f32 %v9432, %v10865
      %v10904 = vmul.f32 %v9433, %v10865
      %v10905 = vmul.f32 %v9435, %v10865
      %v10906 = vmul.f32 %v9436, %v10865
      %v10907 = vmul.f32 %v9437, %v10865
      %v10908 = vmul.f32 %v9439, %v10865
      %v10909 = vmul.f32 %v9440, %v10865
      %v10910 = vmul.f32 %v9441, %v10865
      %v10911 = vmul.f32 %v9443, %v10865
      %v10912 = vmul.f32 %v9444, %v10865
      %v10913 = vmul.f32 %v9445, %v10865
      %v10962 = vrot.slane %v10866, 2
      %v10963 = vrot.slane %v10867, 2
      %v10964 = vsel %vm2123, %v10962, %v10963
      %v10965 = vrot.slane %v10868, 2
      %v10966 = vsel %vm2123, %v10963, %v10965
      %v10967 = vrot.slane %v10869, 2
      %v10968 = vrot.slane %v10870, 2
      %v10969 = vsel %vm2123, %v10967, %v10968
      %v10970 = vrot.slane %v10871, 2
      %v10971 = vsel %vm2123, %v10968, %v10970
      %v10972 = vrot.slane %v10872, 2
      %v10973 = vrot.slane %v10873, 2
      %v10974 = vsel %vm2123, %v10972, %v10973
      %v10975 = vrot.slane %v10874, 2
      %v10976 = vsel %vm2123, %v10973, %v10975
      %v10977 = vrot.slane %v10875, 2
      %v10978 = vrot.slane %v10876, 2
      %v10979 = vsel %vm2123, %v10977, %v10978
      %v10980 = vrot.slane %v10877, 2
      %v10981 = vsel %vm2123, %v10978, %v10980
      %v10982 = vrot.slane %v10878, 2
      %v10983 = vrot.slane %v10879, 2
      %v10984 = vsel %vm2123, %v10982, %v10983
      %v10985 = vrot.slane %v10880, 2
      %v10986 = vsel %vm2123, %v10983, %v10985
      %v10987 = vrot.slane %v10881, 2
      %v10988 = vrot.slane %v10882, 2
      %v10989 = vsel %vm2123, %v10987, %v10988
      %v10990 = vrot.slane %v10883, 2
      %v10991 = vsel %vm2123, %v10988, %v10990
      %v10992 = vrot.slane %v10884, 2
      %v10993 = vrot.slane %v10885, 2
      %v10994 = vsel %vm2123, %v10992, %v10993
      %v10995 = vrot.slane %v10886, 2
      %v10996 = vsel %vm2123, %v10993, %v10995
      %v10997 = vrot.slane %v10887, 2
      %v10998 = vrot.slane %v10888, 2
      %v10999 = vsel %vm2123, %v10997, %v10998
      %v11000 = vrot.slane %v10889, 2
      %v11001 = vsel %vm2123, %v10998, %v11000
      %v11002 = vrot.slane %v10890, 2
      %v11003 = vrot.slane %v10891, 2
      %v11004 = vsel %vm2123, %v11002, %v11003
      %v11005 = vrot.slane %v10892, 2
      %v11006 = vsel %vm2123, %v11003, %v11005
      %v11007 = vrot.slane %v10893, 2
      %v11008 = vrot.slane %v10894, 2
      %v11009 = vsel %vm2123, %v11007, %v11008
      %v11010 = vrot.slane %v10895, 2
      %v11011 = vsel %vm2123, %v11008, %v11010
      %v11012 = vrot.slane %v10896, 2
      %v11013 = vrot.slane %v10897, 2
      %v11014 = vsel %vm2123, %v11012, %v11013
      %v11015 = vrot.slane %v10898, 2
      %v11016 = vsel %vm2123, %v11013, %v11015
      %v11017 = vrot.slane %v10899, 2
      %v11018 = vrot.slane %v10900, 2
      %v11019 = vsel %vm2123, %v11017, %v11018
      %v11020 = vrot.slane %v10901, 2
      %v11021 = vsel %vm2123, %v11018, %v11020
      %v11022 = vrot.slane %v10902, 2
      %v11023 = vrot.slane %v10903, 2
      %v11024 = vsel %vm2123, %v11022, %v11023
      %v11025 = vrot.slane %v10904, 2
      %v11026 = vsel %vm2123, %v11023, %v11025
      %v11027 = vrot.slane %v10905, 2
      %v11028 = vrot.slane %v10906, 2
      %v11029 = vsel %vm2123, %v11027, %v11028
      %v11030 = vrot.slane %v10907, 2
      %v11031 = vsel %vm2123, %v11028, %v11030
      %v11032 = vrot.slane %v10908, 2
      %v11033 = vrot.slane %v10909, 2
      %v11034 = vsel %vm2123, %v11032, %v11033
      %v11035 = vrot.slane %v10910, 2
      %v11036 = vsel %vm2123, %v11033, %v11035
      %v11037 = vrot.slane %v10911, 2
      %v11038 = vrot.slane %v10912, 2
      %v11039 = vsel %vm2123, %v11037, %v11038
      %v11040 = vrot.slane %v10913, 2
      %v11041 = vsel %vm2123, %v11038, %v11040
      %v11090 = vadd.f32 %v10817, %v10962
      %v11091 = vadd.f32 %v10818, %v10964
      %v11092 = vadd.f32 %v10819, %v10966
      %v11093 = vadd.f32 %v10820, %v10967
      %v11094 = vadd.f32 %v10821, %v10969
      %v11095 = vadd.f32 %v10822, %v10971
      %v11096 = vadd.f32 %v10823, %v10972
      %v11097 = vadd.f32 %v10824, %v10974
      %v11098 = vadd.f32 %v10825, %v10976
      %v11099 = vadd.f32 %v10826, %v10977
      %v11100 = vadd.f32 %v10827, %v10979
      %v11101 = vadd.f32 %v10828, %v10981
      %v11102 = vadd.f32 %v10829, %v10982
      %v11103 = vadd.f32 %v10830, %v10984
      %v11104 = vadd.f32 %v10831, %v10986
      %v11105 = vadd.f32 %v10832, %v10987
      %v11106 = vadd.f32 %v10833, %v10989
      %v11107 = vadd.f32 %v10834, %v10991
      %v11108 = vadd.f32 %v10835, %v10992
      %v11109 = vadd.f32 %v10836, %v10994
      %v11110 = vadd.f32 %v10837, %v10996
      %v11111 = vadd.f32 %v10838, %v10997
      %v11112 = vadd.f32 %v10839, %v10999
      %v11113 = vadd.f32 %v10840, %v11001
      %v11114 = vadd.f32 %v10841, %v11002
      %v11115 = vadd.f32 %v10842, %v11004
      %v11116 = vadd.f32 %v10843, %v11006
      %v11117 = vadd.f32 %v10844, %v11007
      %v11118 = vadd.f32 %v10845, %v11009
      %v11119 = vadd.f32 %v10846, %v11011
      %v11120 = vadd.f32 %v10847, %v11012
      %v11121 = vadd.f32 %v10848, %v11014
      %v11122 = vadd.f32 %v10849, %v11016
      %v11123 = vadd.f32 %v10850, %v11017
      %v11124 = vadd.f32 %v10851, %v11019
      %v11125 = vadd.f32 %v10852, %v11021
      %v11126 = vadd.f32 %v10853, %v11022
      %v11127 = vadd.f32 %v10854, %v11024
      %v11128 = vadd.f32 %v10855, %v11026
      %v11129 = vadd.f32 %v10856, %v11027
      %v11130 = vadd.f32 %v10857, %v11029
      %v11131 = vadd.f32 %v10858, %v11031
      %v11132 = vadd.f32 %v10859, %v11032
      %v11133 = vadd.f32 %v10860, %v11034
      %v11134 = vadd.f32 %v10861, %v11036
      %v11135 = vadd.f32 %v10862, %v11037
      %v11136 = vadd.f32 %v10863, %v11039
      %v11137 = vadd.f32 %v10864, %v11041
      %v11186 = vrot.slane %v11090, 7
      %v11187 = vrot.slane %v11091, 7
      %v11188 = vsel %vm3506, %v11186, %v11187
      %v11189 = vrot.slane %v11092, 7
      %v11190 = vsel %vm3506, %v11187, %v11189
      %v11191 = vrot.slane %v11093, 7
      %v11192 = vrot.slane %v11094, 7
      %v11193 = vsel %vm3506, %v11191, %v11192
      %v11194 = vrot.slane %v11095, 7
      %v11195 = vsel %vm3506, %v11192, %v11194
      %v11196 = vrot.slane %v11096, 7
      %v11197 = vrot.slane %v11097, 7
      %v11198 = vsel %vm3506, %v11196, %v11197
      %v11199 = vrot.slane %v11098, 7
      %v11200 = vsel %vm3506, %v11197, %v11199
      %v11201 = vrot.slane %v11099, 7
      %v11202 = vrot.slane %v11100, 7
      %v11203 = vsel %vm3506, %v11201, %v11202
      %v11204 = vrot.slane %v11101, 7
      %v11205 = vsel %vm3506, %v11202, %v11204
      %v11206 = vrot.slane %v11102, 7
      %v11207 = vrot.slane %v11103, 7
      %v11208 = vsel %vm3506, %v11206, %v11207
      %v11209 = vrot.slane %v11104, 7
      %v11210 = vsel %vm3506, %v11207, %v11209
      %v11211 = vrot.slane %v11105, 7
      %v11212 = vrot.slane %v11106, 7
      %v11213 = vsel %vm3506, %v11211, %v11212
      %v11214 = vrot.slane %v11107, 7
      %v11215 = vsel %vm3506, %v11212, %v11214
      %v11216 = vrot.slane %v11108, 7
      %v11217 = vrot.slane %v11109, 7
      %v11218 = vsel %vm3506, %v11216, %v11217
      %v11219 = vrot.slane %v11110, 7
      %v11220 = vsel %vm3506, %v11217, %v11219
      %v11221 = vrot.slane %v11111, 7
      %v11222 = vrot.slane %v11112, 7
      %v11223 = vsel %vm3506, %v11221, %v11222
      %v11224 = vrot.slane %v11113, 7
      %v11225 = vsel %vm3506, %v11222, %v11224
      %v11226 = vrot.slane %v11114, 7
      %v11227 = vrot.slane %v11115, 7
      %v11228 = vsel %vm3506, %v11226, %v11227
      %v11229 = vrot.slane %v11116, 7
      %v11230 = vsel %vm3506, %v11227, %v11229
      %v11231 = vrot.slane %v11117, 7
      %v11232 = vrot.slane %v11118, 7
      %v11233 = vsel %vm3506, %v11231, %v11232
      %v11234 = vrot.slane %v11119, 7
      %v11235 = vsel %vm3506, %v11232, %v11234
      %v11236 = vrot.slane %v11120, 7
      %v11237 = vrot.slane %v11121, 7
      %v11238 = vsel %vm3506, %v11236, %v11237
      %v11239 = vrot.slane %v11122, 7
      %v11240 = vsel %vm3506, %v11237, %v11239
      %v11241 = vrot.slane %v11123, 7
      %v11242 = vrot.slane %v11124, 7
      %v11243 = vsel %vm3506, %v11241, %v11242
      %v11244 = vrot.slane %v11125, 7
      %v11245 = vsel %vm3506, %v11242, %v11244
      %v11246 = vrot.slane %v11126, 7
      %v11247 = vrot.slane %v11127, 7
      %v11248 = vsel %vm3506, %v11246, %v11247
      %v11249 = vrot.slane %v11128, 7
      %v11250 = vsel %vm3506, %v11247, %v11249
      %v11251 = vrot.slane %v11129, 7
      %v11252 = vrot.slane %v11130, 7
      %v11253 = vsel %vm3506, %v11251, %v11252
      %v11254 = vrot.slane %v11131, 7
      %v11255 = vsel %vm3506, %v11252, %v11254
      %v11256 = vrot.slane %v11132, 7
      %v11257 = vrot.slane %v11133, 7
      %v11258 = vsel %vm3506, %v11256, %v11257
      %v11259 = vrot.slane %v11134, 7
      %v11260 = vsel %vm3506, %v11257, %v11259
      %v11261 = vrot.slane %v11135, 7
      %v11262 = vrot.slane %v11136, 7
      %v11263 = vsel %vm3506, %v11261, %v11262
      %v11264 = vrot.slane %v11137, 7
      %v11265 = vsel %vm3506, %v11262, %v11264
      %v11298 = vld [vmem:[%s59] sm:$0x1]
      %v11300 = vperm.slane %v11298, 0
      %v11302 = vmul.f32 %v11188, %v11300
      %v11303 = vmul.f32 %v11190, %v11300
      %v11304 = vmul.f32 %v11193, %v11300
      %v11305 = vmul.f32 %v11195, %v11300
      %v11306 = vmul.f32 %v11198, %v11300
      %v11307 = vmul.f32 %v11200, %v11300
      %v11308 = vmul.f32 %v11203, %v11300
      %v11309 = vmul.f32 %v11205, %v11300
      %v11310 = vmul.f32 %v11208, %v11300
      %v11311 = vmul.f32 %v11210, %v11300
      %v11312 = vmul.f32 %v11213, %v11300
      %v11313 = vmul.f32 %v11215, %v11300
      %v11314 = vmul.f32 %v11218, %v11300
      %v11315 = vmul.f32 %v11220, %v11300
      %v11316 = vmul.f32 %v11223, %v11300
      %v11317 = vmul.f32 %v11225, %v11300
      %v11318 = vmul.f32 %v11228, %v11300
      %v11319 = vmul.f32 %v11230, %v11300
      %v11320 = vmul.f32 %v11233, %v11300
      %v11321 = vmul.f32 %v11235, %v11300
      %v11322 = vmul.f32 %v11238, %v11300
      %v11323 = vmul.f32 %v11240, %v11300
      %v11324 = vmul.f32 %v11243, %v11300
      %v11325 = vmul.f32 %v11245, %v11300
      %v11326 = vmul.f32 %v11248, %v11300
      %v11327 = vmul.f32 %v11250, %v11300
      %v11328 = vmul.f32 %v11253, %v11300
      %v11329 = vmul.f32 %v11255, %v11300
      %v11330 = vmul.f32 %v11258, %v11300
      %v11331 = vmul.f32 %v11260, %v11300
      %v11332 = vmul.f32 %v11263, %v11300
      %v11333 = vmul.f32 %v11265, %v11300
      %v11334 = vld [vmem:[%s61] sm:$0x1]
      %v11336 = vperm.slane %v11334, 0
      %v11338 = vadd.f32 %v11302, %v11336
      %v11339 = vadd.f32 %v11303, %v11336
      %v11340 = vadd.f32 %v11304, %v11336
      %v11341 = vadd.f32 %v11305, %v11336
      %v11342 = vadd.f32 %v11306, %v11336
      %v11343 = vadd.f32 %v11307, %v11336
      %v11344 = vadd.f32 %v11308, %v11336
      %v11345 = vadd.f32 %v11309, %v11336
      %v11346 = vadd.f32 %v11310, %v11336
      %v11347 = vadd.f32 %v11311, %v11336
      %v11348 = vadd.f32 %v11312, %v11336
      %v11349 = vadd.f32 %v11313, %v11336
      %v11350 = vadd.f32 %v11314, %v11336
      %v11351 = vadd.f32 %v11315, %v11336
      %v11352 = vadd.f32 %v11316, %v11336
      %v11353 = vadd.f32 %v11317, %v11336
      %v11354 = vadd.f32 %v11318, %v11336
      %v11355 = vadd.f32 %v11319, %v11336
      %v11356 = vadd.f32 %v11320, %v11336
      %v11357 = vadd.f32 %v11321, %v11336
      %v11358 = vadd.f32 %v11322, %v11336
      %v11359 = vadd.f32 %v11323, %v11336
      %v11360 = vadd.f32 %v11324, %v11336
      %v11361 = vadd.f32 %v11325, %v11336
      %v11362 = vadd.f32 %v11326, %v11336
      %v11363 = vadd.f32 %v11327, %v11336
      %v11364 = vadd.f32 %v11328, %v11336
      %v11365 = vadd.f32 %v11329, %v11336
      %v11366 = vadd.f32 %v11330, %v11336
      %v11367 = vadd.f32 %v11331, %v11336
      %v11368 = vadd.f32 %v11332, %v11336
      %v11369 = vadd.f32 %v11333, %v11336
      %11370 = vmatpush.msra.mxu0 %v11353
      %11371 = vmatpush.msra.mxu0 %v11352
      %11372 = vmatpush.msra.mxu0 %v11351
      %11373 = vmatpush.msra.mxu0 %v11350
      %11374 = vmatpush.msra.mxu0 %v11349
      %11375 = vmatpush.msra.mxu0 %v11348
      %11376 = vmatpush.msra.mxu0 %v11347
      %11377 = vmatpush.msra.mxu0 %v11346
      %11378 = vmatpush.msra.mxu0 %v11345
      %11379 = vmatpush.msra.mxu0 %v11344
      %11380 = vmatpush.msra.mxu0 %v11343
      %11381 = vmatpush.msra.mxu0 %v11342
      %11382 = vmatpush.msra.mxu0 %v11341
      %11383 = vmatpush.msra.mxu0 %v11340
      %11384 = vmatpush.msra.mxu0 %v11339
      %11385 = vmatpush.msra.mxu0 %v11338
      %11386 = vmatmul.f32.gmra.mxu0 %v1200
      %v11387 = vpop.f32.mrf.mxu0
      %v11388 = vadd.f32 0.0, %v11387
      %11389 = vmatmul.f32.gmra.mxu0 %v1202
      %v11390 = vpop.f32.mrf.mxu0
      %v11391 = vadd.f32 0.0, %v11390
      %11392 = vmatmul.f32.gmra.mxu0 %v1204
      %v11393 = vpop.f32.mrf.mxu0
      %v11394 = vadd.f32 0.0, %v11393
      %11395 = vmatmul.f32.gmra.mxu0 %v1206
      %v11396 = vpop.f32.mrf.mxu0
      %v11397 = vadd.f32 0.0, %v11396
      %11398 = vmatmul.f32.gmra.mxu0 %v1208
      %v11399 = vpop.f32.mrf.mxu0
      %v11400 = vadd.f32 0.0, %v11399
      %11401 = vmatmul.f32.gmra.mxu0 %v1210
      %v11402 = vpop.f32.mrf.mxu0
      %v11403 = vadd.f32 0.0, %v11402
      %11404 = vmatmul.f32.gmra.mxu0 %v1212
      %v11405 = vpop.f32.mrf.mxu0
      %v11406 = vadd.f32 0.0, %v11405
      %11407 = vmatmul.f32.gmra.mxu0 %v1214
      %v11408 = vpop.f32.mrf.mxu0
      %v11409 = vadd.f32 0.0, %v11408
      %11410 = vdwg.mxu0
      %11411 = vmatpush.msra.mxu0 %v11369
      %11412 = vmatpush.msra.mxu0 %v11368
      %11413 = vmatpush.msra.mxu0 %v11367
      %11414 = vmatpush.msra.mxu0 %v11366
      %11415 = vmatpush.msra.mxu0 %v11365
      %11416 = vmatpush.msra.mxu0 %v11364
      %11417 = vmatpush.msra.mxu0 %v11363
      %11418 = vmatpush.msra.mxu0 %v11362
      %11419 = vmatpush.msra.mxu0 %v11361
      %11420 = vmatpush.msra.mxu0 %v11360
      %11421 = vmatpush.msra.mxu0 %v11359
      %11422 = vmatpush.msra.mxu0 %v11358
      %11423 = vmatpush.msra.mxu0 %v11357
      %11424 = vmatpush.msra.mxu0 %v11356
      %11425 = vmatpush.msra.mxu0 %v11355
      %11426 = vmatpush.msra.mxu0 %v11354
      %11427 = vmatmul.f32.gmra.mxu0 %v1201
      %v11428 = vpop.f32.mrf.mxu0
      %v11429 = vadd.f32 %v11388, %v11428
      %11430 = vmatmul.f32.gmra.mxu0 %v1203
      %v11431 = vpop.f32.mrf.mxu0
      %v11432 = vadd.f32 %v11391, %v11431
      %11433 = vmatmul.f32.gmra.mxu0 %v1205
      %v11434 = vpop.f32.mrf.mxu0
      %v11435 = vadd.f32 %v11394, %v11434
      %11436 = vmatmul.f32.gmra.mxu0 %v1207
      %v11437 = vpop.f32.mrf.mxu0
      %v11438 = vadd.f32 %v11397, %v11437
      %11439 = vmatmul.f32.gmra.mxu0 %v1209
      %v11440 = vpop.f32.mrf.mxu0
      %v11441 = vadd.f32 %v11400, %v11440
      %11442 = vmatmul.f32.gmra.mxu0 %v1211
      %v11443 = vpop.f32.mrf.mxu0
      %v11444 = vadd.f32 %v11403, %v11443
      %11445 = vmatmul.f32.gmra.mxu0 %v1213
      %v11446 = vpop.f32.mrf.mxu0
      %v11447 = vadd.f32 %v11406, %v11446
      %11448 = vmatmul.f32.gmra.mxu0 %v1215
      %v11449 = vpop.f32.mrf.mxu0
      %v11450 = vadd.f32 %v11409, %v11449
      %11451 = vdwg.mxu0
      %v11452 = vld [vmem:[%s63] sm:$0xff]
      %v11454 = vsel %vm1217, %v11429, 0
      %v11457 = vsel %vm1217, %v11432, 0
      %v11460 = vsel %vm1217, %v11435, 0
      %v11463 = vsel %vm1217, %v11438, 0
      %v11466 = vsel %vm1217, %v11441, 0
      %v11469 = vsel %vm1217, %v11444, 0
      %v11472 = vsel %vm1217, %v11447, 0
      %v11475 = vsel %vm1217, %v11450, 0
      %11477 = vmatpush.msra.mxu0 0.0
      %11478 = vmatpush.msra.mxu0 0.0
      %11479 = vmatpush.msra.mxu0 0.0
      %11480 = vmatpush.msra.mxu0 0.0
      %11481 = vmatpush.msra.mxu0 0.0
      %11482 = vmatpush.msra.mxu0 0.0
      %11483 = vmatpush.msra.mxu0 0.0
      %11484 = vmatpush.msra.mxu0 0.0
      %11485 = vmatpush.msra.mxu0 0.0
      %11486 = vmatpush.msra.mxu0 0.0
      %11487 = vmatpush.msra.mxu0 0.0
      %11488 = vmatpush.msra.mxu0 0.0
      %11489 = vmatpush.msra.mxu0 0.0
      %11490 = vmatpush.msra.mxu0 0.0
      %11491 = vmatpush.msra.mxu0 0.0
      %11492 = vmatpush.msra.mxu0 %v11452
      %11493 = vmatmul.f32.gmra.mxu0 %v11454
      %v11494 = vpop.f32.mrf.mxu0
      %v11495 = vadd.f32 0.0, %v11494
      %11496 = vmatmul.f32.gmra.mxu0 %v11457
      %v11497 = vpop.f32.mrf.mxu0
      %v11498 = vadd.f32 0.0, %v11497
      %11499 = vmatmul.f32.gmra.mxu0 %v11460
      %v11500 = vpop.f32.mrf.mxu0
      %v11501 = vadd.f32 0.0, %v11500
      %11502 = vmatmul.f32.gmra.mxu0 %v11463
      %v11503 = vpop.f32.mrf.mxu0
      %v11504 = vadd.f32 0.0, %v11503
      %11505 = vmatmul.f32.gmra.mxu0 %v11466
      %v11506 = vpop.f32.mrf.mxu0
      %v11507 = vadd.f32 0.0, %v11506
      %11508 = vmatmul.f32.gmra.mxu0 %v11469
      %v11509 = vpop.f32.mrf.mxu0
      %v11510 = vadd.f32 0.0, %v11509
      %11511 = vmatmul.f32.gmra.mxu0 %v11472
      %v11512 = vpop.f32.mrf.mxu0
      %v11513 = vadd.f32 0.0, %v11512
      %11514 = vmatmul.f32.gmra.mxu0 %v11475
      %v11515 = vpop.f32.mrf.mxu0
      %v11516 = vadd.f32 0.0, %v11515
      %11517 = vdwg.mxu0
      %v11518 = vld [vmem:[%s65] sm:$0x1]
      %v11520 = vperm.slane %v11518, 0
      %v11522 = vmul.f32 %v11495, %v11520
      %v11523 = vmul.f32 %v11498, %v11520
      %v11524 = vmul.f32 %v11501, %v11520
      %v11525 = vmul.f32 %v11504, %v11520
      %v11526 = vmul.f32 %v11507, %v11520
      %v11527 = vmul.f32 %v11510, %v11520
      %v11528 = vmul.f32 %v11513, %v11520
      %v11529 = vmul.f32 %v11516, %v11520
      %v11530 = vld [vmem:[%s67] sm:$0x1]
      %v11532 = vperm.slane %v11530, 0
      %v11534 = vadd.f32 %v11522, %v11532
      %v11535 = vadd.f32 %v11523, %v11532
      %v11536 = vadd.f32 %v11524, %v11532
      %v11537 = vadd.f32 %v11525, %v11532
      %v11538 = vadd.f32 %v11526, %v11532
      %v11539 = vadd.f32 %v11527, %v11532
      %v11540 = vadd.f32 %v11528, %v11532
      %v11541 = vadd.f32 %v11529, %v11532
      %v11542 = vld [vmem:[%s69] sm:$0xff]
      %11543 = vmatpush.msra.mxu0 0.0
      %11544 = vmatpush.msra.mxu0 0.0
      %11545 = vmatpush.msra.mxu0 0.0
      %11546 = vmatpush.msra.mxu0 0.0
      %11547 = vmatpush.msra.mxu0 0.0
      %11548 = vmatpush.msra.mxu0 0.0
      %11549 = vmatpush.msra.mxu0 0.0
      %11550 = vmatpush.msra.mxu0 0.0
      %11551 = vmatpush.msra.mxu0 0.0
      %11552 = vmatpush.msra.mxu0 0.0
      %11553 = vmatpush.msra.mxu0 0.0
      %11554 = vmatpush.msra.mxu0 0.0
      %11555 = vmatpush.msra.mxu0 0.0
      %11556 = vmatpush.msra.mxu0 0.0
      %11557 = vmatpush.msra.mxu0 0.0
      %11558 = vmatpush.msra.mxu0 %v11542
      %11559 = vmatmul.f32.gmra.mxu0 %v11454
      %v11560 = vpop.f32.mrf.mxu0
      %v11561 = vadd.f32 0.0, %v11560
      %11562 = vmatmul.f32.gmra.mxu0 %v11457
      %v11563 = vpop.f32.mrf.mxu0
      %v11564 = vadd.f32 0.0, %v11563
      %11565 = vmatmul.f32.gmra.mxu0 %v11460
      %v11566 = vpop.f32.mrf.mxu0
      %v11567 = vadd.f32 0.0, %v11566
      %11568 = vmatmul.f32.gmra.mxu0 %v11463
      %v11569 = vpop.f32.mrf.mxu0
      %v11570 = vadd.f32 0.0, %v11569
      %11571 = vmatmul.f32.gmra.mxu0 %v11466
      %v11572 = vpop.f32.mrf.mxu0
      %v11573 = vadd.f32 0.0, %v11572
      %11574 = vmatmul.f32.gmra.mxu0 %v11469
      %v11575 = vpop.f32.mrf.mxu0
      %v11576 = vadd.f32 0.0, %v11575
      %11577 = vmatmul.f32.gmra.mxu0 %v11472
      %v11578 = vpop.f32.mrf.mxu0
      %v11579 = vadd.f32 0.0, %v11578
      %11580 = vmatmul.f32.gmra.mxu0 %v11475
      %v11581 = vpop.f32.mrf.mxu0
      %v11582 = vadd.f32 0.0, %v11581
      %11583 = vdwg.mxu0
      %v11584 = vld [vmem:[%s71] sm:$0x1]
      %v11586 = vperm.slane %v11584, 0
      %v11588 = vmul.f32 %v11561, %v11586
      %v11589 = vmul.f32 %v11564, %v11586
      %v11590 = vmul.f32 %v11567, %v11586
      %v11591 = vmul.f32 %v11570, %v11586
      %v11592 = vmul.f32 %v11573, %v11586
      %v11593 = vmul.f32 %v11576, %v11586
      %v11594 = vmul.f32 %v11579, %v11586
      %v11595 = vmul.f32 %v11582, %v11586
      %v11596 = vld [vmem:[%s73] sm:$0x1]
      %v11598 = vperm.slane %v11596, 0
      %v11600 = vadd.f32 %v11588, %v11598
      %v11601 = vadd.f32 %v11589, %v11598
      %v11602 = vadd.f32 %v11590, %v11598
      %v11603 = vadd.f32 %v11591, %v11598
      %v11604 = vadd.f32 %v11592, %v11598
      %v11605 = vadd.f32 %v11593, %v11598
      %v11606 = vadd.f32 %v11594, %v11598
      %v11607 = vadd.f32 %v11595, %v11598
      %v11608 = vadd.f32 %v8521, %v11534
      %v11609 = vadd.f32 %v8522, %v11535
      %v11610 = vadd.f32 %v8523, %v11536
      %v11611 = vadd.f32 %v8524, %v11537
      %v11612 = vadd.f32 %v8525, %v11538
      %v11613 = vadd.f32 %v8526, %v11539
      %v11614 = vadd.f32 %v8527, %v11540
      %v11615 = vadd.f32 %v8528, %v11541
      %11616 = vst.msk [vmem:[%s1162] sm:$0xff] %vm8529, %v11608
      %11617 = vst.msk [vmem:[%s1162 + $0x8] sm:$0xff] %vm8529, %v11609
      %11618 = vst.msk [vmem:[%s1162 + $0x10] sm:$0xff] %vm8529, %v11610
      %11619 = vst.msk [vmem:[%s1162 + $0x18] sm:$0xff] %vm8529, %v11611
      %11620 = vst.msk [vmem:[%s1162 + $0x20] sm:$0xff] %vm8529, %v11612
      %11621 = vst.msk [vmem:[%s1162 + $0x28] sm:$0xff] %vm8529, %v11613
      %11622 = vst.msk [vmem:[%s1162 + $0x30] sm:$0xff] %vm8529, %v11614
      %11623 = vst.msk [vmem:[%s1162 + $0x38] sm:$0xff] %vm8529, %v11615
      %v11624 = vadd.f32 %v9205, %v11600
      %v11625 = vadd.f32 %v9206, %v11601
      %v11626 = vadd.f32 %v9207, %v11602
      %v11627 = vadd.f32 %v9208, %v11603
      %v11628 = vadd.f32 %v9209, %v11604
      %v11629 = vadd.f32 %v9210, %v11605
      %v11630 = vadd.f32 %v9211, %v11606
      %v11631 = vadd.f32 %v9212, %v11607
      %11632 = vst.msk [vmem:[%s1167] sm:$0xff] %vm8529, %v11624
      %11633 = vst.msk [vmem:[%s1167 + $0x8] sm:$0xff] %vm8529, %v11625
      %11634 = vst.msk [vmem:[%s1167 + $0x10] sm:$0xff] %vm8529, %v11626
      %11635 = vst.msk [vmem:[%s1167 + $0x18] sm:$0xff] %vm8529, %v11627
      %11636 = vst.msk [vmem:[%s1167 + $0x20] sm:$0xff] %vm8529, %v11628
      %11637 = vst.msk [vmem:[%s1167 + $0x28] sm:$0xff] %vm8529, %v11629
      %11638 = vst.msk [vmem:[%s1167 + $0x30] sm:$0xff] %vm8529, %v11630
      %11639 = vst.msk [vmem:[%s1167 + $0x38] sm:$0xff] %vm8529, %v11631
      %p11640 = scmp.lt.s32.totalorder %s89, 1
      %s11641 = scalar_select %p11640, %s89, 1
      %s11642 = smul.addr %s11641, 8
      %s11643 = smul.addr %s11642, 8
      %s11644 = scalar_lea.vmem %s75, %s11643
      %p11645 = scmp.lt.s32.totalorder %s89, 1
      %s11646 = scalar_select %p11645, %s89, 1
      %s11647 = smul.addr %s11646, 8
      %s11648 = smul.addr %s11647, 8
      %s11649 = scalar_lea.vmem %s77, %s11648
      // Predicated region
      $region169: #{tpu_custom_call.1} parent=167 // pred_check
        %p11650 = pneg %p889
      $region170: #{tpu_custom_call.1} parent=167 // pred_check_branch
        %11652 = sbr.rel (%p11650) target = $region172
      $region171: #{tpu_custom_call.1} parent=167 // pred_region
        _
      $region172: #{tpu_custom_call.1} parent=167 // pred_fallthru
        _
      // Predicated region
      $region173: #{tpu_custom_call.1} parent=167 // pred_check
        %p11653 = pneg %p915
      $region174: #{tpu_custom_call.1} parent=167 // pred_check_branch
        %11655 = sbr.rel (%p11653) target = $region176
      $region175: #{tpu_custom_call.1} parent=167 // pred_region
        _
      $region176: #{tpu_custom_call.1} parent=167 // pred_fallthru
        _
    $region168: #{tpu_custom_call.1} parent=5 // pred_fallthru
      _
    %p11656 = scmp.le.s32.totalorder 2, %s84
    // Predicated region
    $region177: #{tpu_custom_call.1} parent=5 // pred_check
      %p11657 = pneg %p11656
    $region178: #{tpu_custom_call.1} parent=5 // pred_check_branch
      %11659 = sbr.rel (%p11657) target = $region180
    $region179: #{tpu_custom_call.1} parent=5 // pred_region
      %s11660 = ssub.s32 %s84, 2
      // Predicated region
      $region181: #{tpu_custom_call.1} parent=179 // pred_check
        %p11661 = pneg %p895
      $region182: #{tpu_custom_call.1} parent=179 // pred_check_branch
        %11663 = sbr.rel (%p11661) target = $region184
      $region183: #{tpu_custom_call.1} parent=179 // pred_region
        %p11664 = scmp.lt.s32.totalorder %s90, 1
        %s11665 = scalar_select %p11664, %s90, 1
        %s11666 = smul.addr %s11665, 8
        %s11667 = smul.addr %s11666, 8
        %s11668 = scalar_lea.vmem %s75, %s11667
      $region184: #{tpu_custom_call.1} parent=179 // pred_fallthru
        _
      // Predicated region
      $region185: #{tpu_custom_call.1} parent=179 // pred_check
        %p11669 = pneg %p921
      $region186: #{tpu_custom_call.1} parent=179 // pred_check_branch
        %11671 = sbr.rel (%p11669) target = $region188
      $region187: #{tpu_custom_call.1} parent=179 // pred_region
        %p11672 = scmp.lt.s32.totalorder %s90, 1
        %s11673 = scalar_select %p11672, %s90, 1
        %s11674 = smul.addr %s11673, 8
        %s11675 = smul.addr %s11674, 8
        %s11676 = scalar_lea.vmem %s77, %s11675
      $region188: #{tpu_custom_call.1} parent=179 // pred_fallthru
        _
    $region180: #{tpu_custom_call.1} parent=5 // pred_fallthru
      _
  $region6: #{tpu_custom_call.1} parent=0 // loop_footer
    %s88 = sadd.s32 1, %s84
  $region7: #{tpu_custom_call.1} parent=0 // loop_footer_branch
    %83 = sbr.rel target = $region3
  $region8: #{tpu_custom_call.1} parent=0 // loop_exit
    _

</llo_original>
